<compile_context>
chip_gen: v5e
topology: v5e:2x2
jax: 0.10.0
libtpu: 0.0.40
codegen_flags: <defaults>
</compile_context>

<pallas_src>
import functools

import jax
import jax.numpy as jnp
from jax.experimental import pallas as pl
from jax.experimental.pallas import tpu as pltpu


# ----------------------------------------------------------------------------
# Flat padded-volume layout helpers
# ----------------------------------------------------------------------------
def _layout(D, H, W):
    """Per channel, the (D+2) zero-halo depth planes, each an (H+2)xW
    zero-row-padded plane, are flattened into one lane axis so every 3x3x3 tap
    is a single contiguous lane-shifted window of the whole volume.  The front
    pad absorbs the most-negative tap shift (-L-W-1) and 128-aligns the
    interior store; the back pad absorbs the most-positive shift (+L+W+1)."""
    L = (H + 2) * W                       # flat length of one padded plane
    pad_front = (-L) % 128                # pad_front + L is a multiple of 128
    if pad_front < W + 1:
        pad_front += 128
    vp = pad_front + (D + 2) * L + W + 1
    vp = -(-vp // 128) * 128              # lane-dense total width
    return L, pad_front, vp


def _flatten_pad(x_ncdhw, pad_front, vp):
    """(B, C, D, H, W) -> (B, C, vp) flat padded volume (plain XLA, one pass)."""
    B, C, D, H, W = x_ncdhw.shape
    L = (H + 2) * W
    xp = jnp.pad(x_ncdhw, ((0, 0), (0, 0), (1, 1), (1, 1), (0, 0)))
    xf = xp.reshape(B, C, (D + 2) * L)
    back = vp - pad_front - (D + 2) * L
    return jnp.pad(xf, ((0, 0), (0, 0), (pad_front, back)))


def _repack_weight(w_oidhw):
    """torch (Co, Ci, kd, kh, kw) -> bf16 (Co, Kpad), K rows ordered
    (kd, kh, kw, ci) and zero-padded to a multiple of 128 (216->256, 432->512)."""
    co, ci = w_oidhw.shape[:2]
    k = 27 * ci
    kp = -(-k // 128) * 128
    w = jnp.transpose(w_oidhw, (2, 3, 4, 1, 0)).reshape(k, co).T
    w = jnp.pad(w, ((0, 0), (0, kp - k)))
    return w.astype(jnp.bfloat16)


def _build_masks(D, H, W):
    """(4, D*L) f32 masks: rows 0/2 kill the W-wraparound of the kw=0 / kw=2
    taps, row 1 is unused (ones), row 3 marks valid (non-pad-row) columns."""
    L = (H + 2) * W
    c = jnp.arange(D * L, dtype=jnp.int32)
    wcol = c % W
    row = (c % L) // W
    kw0 = (wcol != 0).astype(jnp.float32)
    kw2 = (wcol != W - 1).astype(jnp.float32)
    valid = ((row >= 1) & (row <= H)).astype(jnp.float32)
    return jnp.stack([kw0, jnp.ones_like(kw0), kw2, valid], axis=0)


# ----------------------------------------------------------------------------
# Pallas kernels
# ----------------------------------------------------------------------------
def _conv_volume_kernel(s_ref, m_ref, w_ref, x_ref, y_ref, ss_ref,
                        patches_ref, act_ref=None, *,
                        D, H, W, pad_front, k_real, pre_act):
    """One batch sample: 3x3x3 conv over the whole flat padded volume as a
    single (Co, Kpad) x (Kpad, D*L) MXU matmul, fused with the previous
    NormBlock's scale+ReLU (pre_act) and the SE3-BN sum-of-squares."""
    ci = x_ref.shape[1]
    co, vp = y_ref.shape[1], y_ref.shape[2]
    L = (H + 2) * W
    DL = D * L

    # Mask rows hoisted out of the tap loop (loaded once per step).
    kw_masks = (m_ref[0:1, :], None, m_ref[2:3, :])       # (1, D*L) each
    valid = m_ref[3:4, :]                                  # (1, D*L)

    if pre_act:
        # NB1 scale + ReLU applied once to the resident volume (f32 on the
        # VPU; the zero halos stay zero).  The 27 tap windows then read the
        # activated copy instead of redoing this work per tap.
        act_ref[...] = jnp.maximum(x_ref[0] * s_ref[...], 0.0)

        def load(start):
            return act_ref[:, start:start + DL]
    else:
        def load(start):
            return x_ref[0, :, start:start + DL]

    # Zero the K-padding rows of the im2col scratch (done every step so the
    # "parallel" batch axis can be sharded across cores with no stale-VMEM
    # hazard; cost is small vs the patch assembly itself).
    kp = patches_ref.shape[0]
    if kp > k_real:
        patches_ref[k_real:kp, :] = jnp.zeros((kp - k_real, DL),
                                              patches_ref.dtype)

    # im2col by lane shifts: every tap is one contiguous window of the flat
    # padded volume, masked for W wraparound, cast to bf16 and written
    # straight into the patches scratch (no concatenate temporaries).
    base = pad_front + L
    t = 0
    for kd in range(3):
        for kh in range(3):
            for kw in range(3):
                start = base + (kd - 1) * L + (kh - 1) * W + (kw - 1)
                piece = load(start)                        # (Ci, D*L) f32
                if kw != 1:
                    piece = piece * kw_masks[kw]
                patches_ref[t * ci:(t + 1) * ci, :] = (
                    piece.astype(patches_ref.dtype))
                t += 1

    # Single MXU matmul for the whole volume (bf16 in, f32 accumulation).
    acc = jnp.dot(w_ref[...], patches_ref[...],
                  preferred_element_type=jnp.float32)      # (Co, D*L)
    acc = acc * valid                                      # zero pad-row cols

    # Per-batch sum-of-squares for the SE3 batch-norm statistics (reduced
    # across batches in the wrapper).
    ss_ref[0] = jnp.sum(acc * acc, axis=1, keepdims=True)

    # Write the conv output directly in the flat padded layout the next stage
    # consumes: lane-dense stores, no jnp.pad round trip through HBM.
    lo = base
    hi = lo + DL
    y_ref[0, :, 0:lo] = jnp.zeros((co, lo), jnp.float32)
    y_ref[0, :, hi:vp] = jnp.zeros((co, vp - hi), jnp.float32)
    y_ref[0, :, lo:hi] = acc


def _epilogue_kernel(s_ref, y_ref, x_ref, o_ref, *, D, H, W, pad_front):
    # Fused epilogue: BN2 channel scale + identity shortcut + final ReLU
    # (NormSoftplus == ReLU for scalar capsules), on the interior of the flat
    # padded layout only (all f32 elementwise).
    L = (H + 2) * W
    lo = pad_front + L
    hi = lo + D * L
    o_ref[0] = jnp.maximum(
        y_ref[0, :, lo:hi] * s_ref[...] + x_ref[0, :, lo:hi], 0.0)


# ----------------------------------------------------------------------------
# pallas_call wrappers
# ----------------------------------------------------------------------------
def _conv_bn_stats(xflat, w_pad, scale, masks, *, D, H, W, pad_front, pre_act):
    B, ci, vp = xflat.shape
    co, kp = w_pad.shape
    L = (H + 2) * W
    DL = D * L
    k_real = 27 * ci
    kernel = functools.partial(
        _conv_volume_kernel, D=D, H=H, W=W, pad_front=pad_front,
        k_real=k_real, pre_act=pre_act)
    scratch = [pltpu.VMEM((kp, DL), jnp.bfloat16)]          # im2col patches
    if pre_act:
        scratch.append(pltpu.VMEM((ci, vp), jnp.float32))   # activated volume
    return pl.pallas_call(
        kernel,
        out_shape=(
            jax.ShapeDtypeStruct((B, co, vp), jnp.float32),  # flat conv out
            jax.ShapeDtypeStruct((B, co, 1), jnp.float32),   # per-batch ss
        ),
        grid=(B,),
        in_specs=[
            pl.BlockSpec((ci, 1), lambda b: (0, 0)),            # prev BN scale
            pl.BlockSpec((4, DL), lambda b: (0, 0)),            # masks
            pl.BlockSpec((co, kp), lambda b: (0, 0)),           # bf16 weights
            pl.BlockSpec((1, ci, vp), lambda b: (b, 0, 0)),     # flat volume
        ],
        out_specs=(
            pl.BlockSpec((1, co, vp), lambda b: (b, 0, 0)),
            pl.BlockSpec((1, co, 1), lambda b: (b, 0, 0)),
        ),
        scratch_shapes=scratch,
        compiler_params=pltpu.CompilerParams(
            # Every batch writes its own ss / y blocks -> no cross-step
            # accumulator -> the single grid axis can shard across cores.
            dimension_semantics=("parallel",),
            vmem_limit_bytes=32 * 1024 * 1024,
        ),
    )(scale, masks, w_pad, xflat)


def _fused_epilogue(y2, xflat, scale, *, D, H, W, pad_front):
    B, C, vp = y2.shape
    DL = D * (H + 2) * W
    kernel = functools.partial(_epilogue_kernel, D=D, H=H, W=W,
                               pad_front=pad_front)
    return pl.pallas_call(
        kernel,
        out_shape=jax.ShapeDtypeStruct((B, C, DL), jnp.float32),
        grid=(B,),
        in_specs=[
            pl.BlockSpec((C, 1), lambda b: (0, 0)),
            pl.BlockSpec((1, C, vp), lambda b: (b, 0, 0)),
            pl.BlockSpec((1, C, vp), lambda b: (b, 0, 0)),
        ],
        out_specs=pl.BlockSpec((1, C, DL), lambda b: (b, 0, 0)),
        compiler_params=pltpu.CompilerParams(
            dimension_semantics=("parallel",)),
    )(scale, y2, xflat)


# ----------------------------------------------------------------------------
# Plain-JAX glue: BN scale, forward pass
# ----------------------------------------------------------------------------
def _bn_scale(ss, gamma, count, eps):
    # ss: (B, C, 1) per-batch partial sums -> scale-only capsule batch norm.
    mean_sq = jnp.sum(ss[:, :, 0], axis=0) / count
    return (gamma * jax.lax.rsqrt(mean_sq + eps)).reshape(-1, 1)


def se3_norm_res_block(x_ncdhw, params, eps=1e-5):
    """SE3NormResBlock forward (scalar capsules, stride=1, identity shortcut)."""
    B, Cin, D, H, W = x_ncdhw.shape
    L, pad_front, vp = _layout(D, H, W)

    w1 = _repack_weight(params["w1"])                  # (Cmid, 256) bf16
    w2 = _repack_weight(params["w2"])                  # (Cin, 512) bf16
    masks = _build_masks(D, H, W)                      # (4, D*L) f32
    xflat = _flatten_pad(x_ncdhw, pad_front, vp)       # (B, Cin, vp) f32

    # NormBlock 1: conv + batch-stat sum-of-squares (its scale/ReLU is
    # deferred and fused into conv2's input path).
    ones = jnp.ones((Cin, 1), jnp.float32)
    y1, ss1 = _conv_bn_stats(xflat, w1, ones, masks, D=D, H=H, W=W,
                             pad_front=pad_front, pre_act=False)
    s1 = _bn_scale(ss1, params["g1"], B * D * H * W, eps)   # (Cmid, 1)

    # NormBlock 2: conv of ReLU(s1 * y1), applied inside the kernel; y1 is
    # already in the flat padded layout, no re-pad round trip.
    y2, ss2 = _conv_bn_stats(y1, w2, s1, masks, D=D, H=H, W=W,
                             pad_front=pad_front, pre_act=True)
    s2 = _bn_scale(ss2, params["g2"], B * D * H * W, eps)   # (Cin, 1)

    # Fused epilogue: ReLU(s2 * y2 + x) on the flat interior.
    out_flat = _fused_epilogue(y2, xflat, s2, D=D, H=H, W=W,
                               pad_front=pad_front)         # (B, Cin, D*L)
    out = out_flat.reshape(B, Cin, D, H + 2, W)[:, :, :, 1:H + 1, :]
    return out


# ----------------------------------------------------------------------------
# Pure-JAX reference (for self-check)
# ----------------------------------------------------------------------------
def ref_forward(x_ncdhw, params, eps=1e-5, mxu_dtype=jnp.float32):
    def conv(h, w):
        wj = jnp.transpose(w, (2, 3, 4, 1, 0)).astype(mxu_dtype)  # DHWIO
        return jax.lax.conv_general_dilated(
            h.astype(mxu_dtype), wj, (1, 1, 1), "SAME",
            dimension_numbers=("NDHWC", "DHWIO", "NDHWC"),
            preferred_element_type=jnp.float32)

    def nb(h, w, g, act):
        y = conv(h, w)
        ms = jnp.mean(y * y, axis=(0, 1, 2, 3))
        y = y * (g * jax.lax.rsqrt(ms + eps))
        return jnp.maximum(y, 0.0) if act else y

    xc = jnp.transpose(x_ncdhw, (0, 2, 3, 4, 1))
    h = nb(xc, params["w1"], params["g1"], True)
    h = nb(h, params["w2"], params["g2"], False)
    out = jnp.maximum(h + xc, 0.0)
    return jnp.transpose(out, (0, 4, 1, 2, 3))


# ----------------------------------------------------------------------------
if __name__ == "__main__":
    key = jax.random.PRNGKey(0)
    B, Cin, Cmid, D, H, W = 2, 8, 16, 8, 8, 8  # in_repr=(8,), out_reprs=[(16,), (8,)]
    k1, k2, k3, k4, k5 = jax.random.split(key, 5)

    x = jax.random.normal(k1, (B, Cin, D, H, W), dtype=jnp.float32)
    params = {
        "w1": 0.1 * jax.random.normal(k2, (Cmid, Cin, 3, 3, 3), jnp.float32),
        "w2": 0.1 * jax.random.normal(k3, (Cin, Cmid, 3, 3, 3), jnp.float32),
        "g1": 1.0 + 0.1 * jax.random.normal(k4, (Cmid,), jnp.float32),
        "g2": 1.0 + 0.1 * jax.random.normal(k5, (Cin,), jnp.float32),
    }

    fwd = jax.jit(se3_norm_res_block)
    out = jax.block_until_ready(fwd(x, params))
    assert out.shape == (B, Cin, D, H, W)
    assert out.dtype == jnp.float32

    # Tight check vs. a reference with the same MXU precision (bf16 inputs,
    # f32 accumulation), loose sanity check vs. the pure-f32 reference.
    ref_mx = ref_forward(x, params, mxu_dtype=jnp.bfloat16)
    ref_fp = ref_forward(x, params, mxu_dtype=jnp.float32)
    err_mx = float(jnp.max(jnp.abs(out - ref_mx)))
    err_fp = float(jnp.max(jnp.abs(out - ref_fp)))
    assert jnp.allclose(out, ref_mx, atol=5e-3, rtol=5e-3), (
        f"mismatch vs bf16-matmul reference, max abs err = {err_mx}")
    assert jnp.allclose(out, ref_fp, atol=5e-2, rtol=5e-2), (
        f"mismatch vs f32 reference, max abs err = {err_fp}")

    print("KERNEL_OK")
</pallas_src>

<mosaic_0001>
module attributes {stable_mosaic.version = 11 : i64} {
  func.func @_conv_volume_kernel(%arg0: i32, %arg1: memref<8x1xf32, #tpu.memory_space<vmem>>, %arg2: memref<4x640xf32, #tpu.memory_space<vmem>>, %arg3: memref<16x256xbf16, #tpu.memory_space<vmem>>, %arg4: memref<1x8x896xf32, #tpu.memory_space<vmem>>, %arg5: memref<1x16x896xf32, #tpu.memory_space<vmem>>, %arg6: memref<1x16x1xf32, #tpu.memory_space<vmem>>, %arg7: memref<256x640xbf16, #tpu.memory_space<vmem>>) attributes {dimension_semantics = [#tpu.dimension_semantics<parallel>], iteration_bounds = array<i64: 2>, scalar_prefetch = 0 : i64, scratch_operands = 1 : i64, tpu.core_type = #tpu.core_type<tc>, window_params = [{pipeline_mode = #tpu.pipeline_mode<synchronous>, transform_indices = @transform_0, window_bounds = array<i64: 8, 1>}, {pipeline_mode = #tpu.pipeline_mode<synchronous>, transform_indices = @transform_1, window_bounds = array<i64: 4, 640>}, {pipeline_mode = #tpu.pipeline_mode<synchronous>, transform_indices = @transform_2, window_bounds = array<i64: 16, 256>}, {transform_indices = @transform_3, window_bounds = array<i64: 1, 8, 896>}, {transform_indices = @transform_4, window_bounds = array<i64: 1, 16, 896>}, {transform_indices = @transform_5, window_bounds = array<i64: 1, 16, 1>}]} {
    %c0 = arith.constant 0 : index
    %c0_0 = arith.constant 0 : index
    %0 = vector.load %arg2[%c0, %c0_0] : memref<4x640xf32, #tpu.memory_space<vmem>>, vector<1x640xf32>
    %c2 = arith.constant 2 : index
    %c0_1 = arith.constant 0 : index
    %1 = vector.load %arg2[%c2, %c0_1] : memref<4x640xf32, #tpu.memory_space<vmem>>, vector<1x640xf32>
    %c3 = arith.constant 3 : index
    %c0_2 = arith.constant 0 : index
    %2 = vector.load %arg2[%c3, %c0_2] : memref<4x640xf32, #tpu.memory_space<vmem>>, vector<1x640xf32>
    %cst = arith.constant 0.000000e+00 : bf16
    %3 = vector.broadcast %cst : bf16 to vector<40x640xbf16>
    %c216 = arith.constant 216 : index
    %c0_3 = arith.constant 0 : index
    %4 = vector.load %arg7[%c216, %c0_3] : memref<256x640xbf16, #tpu.memory_space<vmem>>, vector<40x640xbf16>
    tpu.vector_store %arg7[%c216, %c0_3], %3 {strides = array<i32>} : memref<256x640xbf16, #tpu.memory_space<vmem>>, vector<40x640xbf16>,
    %c0_4 = arith.constant 0 : index
    %c0_5 = arith.constant 0 : index
    %c39 = arith.constant 39 : index
    %5 = vector.load %arg4[%c0_4, %c0_5, %c39] : memref<1x8x896xf32, #tpu.memory_space<vmem>>, vector<1x8x640xf32>
    %6 = vector.shape_cast %5 : vector<1x8x640xf32> to vector<8x640xf32>
    %7 = vector.broadcast %0 : vector<1x640xf32> to vector<8x640xf32>
    %8 = arith.mulf %6, %7 : vector<8x640xf32>
    %9 = arith.truncf %8 : vector<8x640xf32> to vector<8x640xbf16>
    %c0_6 = arith.constant 0 : index
    %c0_7 = arith.constant 0 : index
    %10 = vector.load %arg7[%c0_6, %c0_7] : memref<256x640xbf16, #tpu.memory_space<vmem>>, vector<8x640xbf16>
    tpu.vector_store %arg7[%c0_6, %c0_7], %9 {strides = array<i32>} : memref<256x640xbf16, #tpu.memory_space<vmem>>, vector<8x640xbf16>,
    %c0_8 = arith.constant 0 : index
    %c0_9 = arith.constant 0 : index
    %c40 = arith.constant 40 : index
    %11 = vector.load %arg4[%c0_8, %c0_9, %c40] : memref<1x8x896xf32, #tpu.memory_space<vmem>>, vector<1x8x640xf32>
    %12 = vector.shape_cast %11 : vector<1x8x640xf32> to vector<8x640xf32>
    %13 = arith.truncf %12 : vector<8x640xf32> to vector<8x640xbf16>
    %c8 = arith.constant 8 : index
    %c0_10 = arith.constant 0 : index
    %14 = vector.load %arg7[%c8, %c0_10] : memref<256x640xbf16, #tpu.memory_space<vmem>>, vector<8x640xbf16>
    tpu.vector_store %arg7[%c8, %c0_10], %13 {strides = array<i32>} : memref<256x640xbf16, #tpu.memory_space<vmem>>, vector<8x640xbf16>,
    %c0_11 = arith.constant 0 : index
    %c0_12 = arith.constant 0 : index
    %c41 = arith.constant 41 : index
    %15 = vector.load %arg4[%c0_11, %c0_12, %c41] : memref<1x8x896xf32, #tpu.memory_space<vmem>>, vector<1x8x640xf32>
    %16 = vector.shape_cast %15 : vector<1x8x640xf32> to vector<8x640xf32>
    %17 = vector.broadcast %1 : vector<1x640xf32> to vector<8x640xf32>
    %18 = arith.mulf %16, %17 : vector<8x640xf32>
    %19 = arith.truncf %18 : vector<8x640xf32> to vector<8x640xbf16>
    %c16 = arith.constant 16 : index
    %c0_13 = arith.constant 0 : index
    %20 = vector.load %arg7[%c16, %c0_13] : memref<256x640xbf16, #tpu.memory_space<vmem>>, vector<8x640xbf16>
    tpu.vector_store %arg7[%c16, %c0_13], %19 {strides = array<i32>} : memref<256x640xbf16, #tpu.memory_space<vmem>>, vector<8x640xbf16>,
    %c0_14 = arith.constant 0 : index
    %c0_15 = arith.constant 0 : index
    %c47 = arith.constant 47 : index
    %21 = vector.load %arg4[%c0_14, %c0_15, %c47] : memref<1x8x896xf32, #tpu.memory_space<vmem>>, vector<1x8x640xf32>
    %22 = vector.shape_cast %21 : vector<1x8x640xf32> to vector<8x640xf32>
    %23 = vector.broadcast %0 : vector<1x640xf32> to vector<8x640xf32>
    %24 = arith.mulf %22, %23 : vector<8x640xf32>
    %25 = arith.truncf %24 : vector<8x640xf32> to vector<8x640xbf16>
    %c24 = arith.constant 24 : index
    %c0_16 = arith.constant 0 : index
    %26 = vector.load %arg7[%c24, %c0_16] : memref<256x640xbf16, #tpu.memory_space<vmem>>, vector<8x640xbf16>
    tpu.vector_store %arg7[%c24, %c0_16], %25 {strides = array<i32>} : memref<256x640xbf16, #tpu.memory_space<vmem>>, vector<8x640xbf16>,
    %c0_17 = arith.constant 0 : index
    %c0_18 = arith.constant 0 : index
    %c48 = arith.constant 48 : index
    %27 = vector.load %arg4[%c0_17, %c0_18, %c48] : memref<1x8x896xf32, #tpu.memory_space<vmem>>, vector<1x8x640xf32>
    %28 = vector.shape_cast %27 : vector<1x8x640xf32> to vector<8x640xf32>
    %29 = arith.truncf %28 : vector<8x640xf32> to vector<8x640xbf16>
    %c32 = arith.constant 32 : index
    %c0_19 = arith.constant 0 : index
    %30 = vector.load %arg7[%c32, %c0_19] : memref<256x640xbf16, #tpu.memory_space<vmem>>, vector<8x640xbf16>
    tpu.vector_store %arg7[%c32, %c0_19], %29 {strides = array<i32>} : memref<256x640xbf16, #tpu.memory_space<vmem>>, vector<8x640xbf16>,
    %c0_20 = arith.constant 0 : index
    %c0_21 = arith.constant 0 : index
    %c49 = arith.constant 49 : index
    %31 = vector.load %arg4[%c0_20, %c0_21, %c49] : memref<1x8x896xf32, #tpu.memory_space<vmem>>, vector<1x8x640xf32>
    %32 = vector.shape_cast %31 : vector<1x8x640xf32> to vector<8x640xf32>
    %33 = vector.broadcast %1 : vector<1x640xf32> to vector<8x640xf32>
    %34 = arith.mulf %32, %33 : vector<8x640xf32>
    %35 = arith.truncf %34 : vector<8x640xf32> to vector<8x640xbf16>
    %c40_22 = arith.constant 40 : index
    %c0_23 = arith.constant 0 : index
    %36 = vector.load %arg7[%c40_22, %c0_23] : memref<256x640xbf16, #tpu.memory_space<vmem>>, vector<8x640xbf16>
    tpu.vector_store %arg7[%c40_22, %c0_23], %35 {strides = array<i32>} : memref<256x640xbf16, #tpu.memory_space<vmem>>, vector<8x640xbf16>,
    %c0_24 = arith.constant 0 : index
    %c0_25 = arith.constant 0 : index
    %c55 = arith.constant 55 : index
    %37 = vector.load %arg4[%c0_24, %c0_25, %c55] : memref<1x8x896xf32, #tpu.memory_space<vmem>>, vector<1x8x640xf32>
    %38 = vector.shape_cast %37 : vector<1x8x640xf32> to vector<8x640xf32>
    %39 = vector.broadcast %0 : vector<1x640xf32> to vector<8x640xf32>
    %40 = arith.mulf %38, %39 : vector<8x640xf32>
    %41 = arith.truncf %40 : vector<8x640xf32> to vector<8x640xbf16>
    %c48_26 = arith.constant 48 : index
    %c0_27 = arith.constant 0 : index
    %42 = vector.load %arg7[%c48_26, %c0_27] : memref<256x640xbf16, #tpu.memory_space<vmem>>, vector<8x640xbf16>
    tpu.vector_store %arg7[%c48_26, %c0_27], %41 {strides = array<i32>} : memref<256x640xbf16, #tpu.memory_space<vmem>>, vector<8x640xbf16>,
    %c0_28 = arith.constant 0 : index
    %c0_29 = arith.constant 0 : index
    %c56 = arith.constant 56 : index
    %43 = vector.load %arg4[%c0_28, %c0_29, %c56] : memref<1x8x896xf32, #tpu.memory_space<vmem>>, vector<1x8x640xf32>
    %44 = vector.shape_cast %43 : vector<1x8x640xf32> to vector<8x640xf32>
    %45 = arith.truncf %44 : vector<8x640xf32> to vector<8x640xbf16>
    %c56_30 = arith.constant 56 : index
    %c0_31 = arith.constant 0 : index
    %46 = vector.load %arg7[%c56_30, %c0_31] : memref<256x640xbf16, #tpu.memory_space<vmem>>, vector<8x640xbf16>
    tpu.vector_store %arg7[%c56_30, %c0_31], %45 {strides = array<i32>} : memref<256x640xbf16, #tpu.memory_space<vmem>>, vector<8x640xbf16>,
    %c0_32 = arith.constant 0 : index
    %c0_33 = arith.constant 0 : index
    %c57 = arith.constant 57 : index
    %47 = vector.load %arg4[%c0_32, %c0_33, %c57] : memref<1x8x896xf32, #tpu.memory_space<vmem>>, vector<1x8x640xf32>
    %48 = vector.shape_cast %47 : vector<1x8x640xf32> to vector<8x640xf32>
    %49 = vector.broadcast %1 : vector<1x640xf32> to vector<8x640xf32>
    %50 = arith.mulf %48, %49 : vector<8x640xf32>
    %51 = arith.truncf %50 : vector<8x640xf32> to vector<8x640xbf16>
    %c64 = arith.constant 64 : index
    %c0_34 = arith.constant 0 : index
    %52 = vector.load %arg7[%c64, %c0_34] : memref<256x640xbf16, #tpu.memory_space<vmem>>, vector<8x640xbf16>
    tpu.vector_store %arg7[%c64, %c0_34], %51 {strides = array<i32>} : memref<256x640xbf16, #tpu.memory_space<vmem>>, vector<8x640xbf16>,
    %c0_35 = arith.constant 0 : index
    %c0_36 = arith.constant 0 : index
    %c119 = arith.constant 119 : index
    %53 = vector.load %arg4[%c0_35, %c0_36, %c119] : memref<1x8x896xf32, #tpu.memory_space<vmem>>, vector<1x8x640xf32>
    %54 = vector.shape_cast %53 : vector<1x8x640xf32> to vector<8x640xf32>
    %55 = vector.broadcast %0 : vector<1x640xf32> to vector<8x640xf32>
    %56 = arith.mulf %54, %55 : vector<8x640xf32>
    %57 = arith.truncf %56 : vector<8x640xf32> to vector<8x640xbf16>
    %c72 = arith.constant 72 : index
    %c0_37 = arith.constant 0 : index
    %58 = vector.load %arg7[%c72, %c0_37] : memref<256x640xbf16, #tpu.memory_space<vmem>>, vector<8x640xbf16>
    tpu.vector_store %arg7[%c72, %c0_37], %57 {strides = array<i32>} : memref<256x640xbf16, #tpu.memory_space<vmem>>, vector<8x640xbf16>,
    %c0_38 = arith.constant 0 : index
    %c0_39 = arith.constant 0 : index
    %c120 = arith.constant 120 : index
    %59 = vector.load %arg4[%c0_38, %c0_39, %c120] : memref<1x8x896xf32, #tpu.memory_space<vmem>>, vector<1x8x640xf32>
    %60 = vector.shape_cast %59 : vector<1x8x640xf32> to vector<8x640xf32>
    %61 = arith.truncf %60 : vector<8x640xf32> to vector<8x640xbf16>
    %c80 = arith.constant 80 : index
    %c0_40 = arith.constant 0 : index
    %62 = vector.load %arg7[%c80, %c0_40] : memref<256x640xbf16, #tpu.memory_space<vmem>>, vector<8x640xbf16>
    tpu.vector_store %arg7[%c80, %c0_40], %61 {strides = array<i32>} : memref<256x640xbf16, #tpu.memory_space<vmem>>, vector<8x640xbf16>,
    %c0_41 = arith.constant 0 : index
    %c0_42 = arith.constant 0 : index
    %c121 = arith.constant 121 : index
    %63 = vector.load %arg4[%c0_41, %c0_42, %c121] : memref<1x8x896xf32, #tpu.memory_space<vmem>>, vector<1x8x640xf32>
    %64 = vector.shape_cast %63 : vector<1x8x640xf32> to vector<8x640xf32>
    %65 = vector.broadcast %1 : vector<1x640xf32> to vector<8x640xf32>
    %66 = arith.mulf %64, %65 : vector<8x640xf32>
    %67 = arith.truncf %66 : vector<8x640xf32> to vector<8x640xbf16>
    %c88 = arith.constant 88 : index
    %c0_43 = arith.constant 0 : index
    %68 = vector.load %arg7[%c88, %c0_43] : memref<256x640xbf16, #tpu.memory_space<vmem>>, vector<8x640xbf16>
    tpu.vector_store %arg7[%c88, %c0_43], %67 {strides = array<i32>} : memref<256x640xbf16, #tpu.memory_space<vmem>>, vector<8x640xbf16>,
    %c0_44 = arith.constant 0 : index
    %c0_45 = arith.constant 0 : index
    %c127 = arith.constant 127 : index
    %69 = vector.load %arg4[%c0_44, %c0_45, %c127] : memref<1x8x896xf32, #tpu.memory_space<vmem>>, vector<1x8x640xf32>
    %70 = vector.shape_cast %69 : vector<1x8x640xf32> to vector<8x640xf32>
    %71 = vector.broadcast %0 : vector<1x640xf32> to vector<8x640xf32>
    %72 = arith.mulf %70, %71 : vector<8x640xf32>
    %73 = arith.truncf %72 : vector<8x640xf32> to vector<8x640xbf16>
    %c96 = arith.constant 96 : index
    %c0_46 = arith.constant 0 : index
    %74 = vector.load %arg7[%c96, %c0_46] : memref<256x640xbf16, #tpu.memory_space<vmem>>, vector<8x640xbf16>
    tpu.vector_store %arg7[%c96, %c0_46], %73 {strides = array<i32>} : memref<256x640xbf16, #tpu.memory_space<vmem>>, vector<8x640xbf16>,
    %c0_47 = arith.constant 0 : index
    %c0_48 = arith.constant 0 : index
    %c128 = arith.constant 128 : index
    %75 = vector.load %arg4[%c0_47, %c0_48, %c128] : memref<1x8x896xf32, #tpu.memory_space<vmem>>, vector<1x8x640xf32>
    %76 = vector.shape_cast %75 : vector<1x8x640xf32> to vector<8x640xf32>
    %77 = arith.truncf %76 : vector<8x640xf32> to vector<8x640xbf16>
    %c104 = arith.constant 104 : index
    %c0_49 = arith.constant 0 : index
    %78 = vector.load %arg7[%c104, %c0_49] : memref<256x640xbf16, #tpu.memory_space<vmem>>, vector<8x640xbf16>
    tpu.vector_store %arg7[%c104, %c0_49], %77 {strides = array<i32>} : memref<256x640xbf16, #tpu.memory_space<vmem>>, vector<8x640xbf16>,
    %c0_50 = arith.constant 0 : index
    %c0_51 = arith.constant 0 : index
    %c129 = arith.constant 129 : index
    %79 = vector.load %arg4[%c0_50, %c0_51, %c129] : memref<1x8x896xf32, #tpu.memory_space<vmem>>, vector<1x8x640xf32>
    %80 = vector.shape_cast %79 : vector<1x8x640xf32> to vector<8x640xf32>
    %81 = vector.broadcast %1 : vector<1x640xf32> to vector<8x640xf32>
    %82 = arith.mulf %80, %81 : vector<8x640xf32>
    %83 = arith.truncf %82 : vector<8x640xf32> to vector<8x640xbf16>
    %c112 = arith.constant 112 : index
    %c0_52 = arith.constant 0 : index
    %84 = vector.load %arg7[%c112, %c0_52] : memref<256x640xbf16, #tpu.memory_space<vmem>>, vector<8x640xbf16>
    tpu.vector_store %arg7[%c112, %c0_52], %83 {strides = array<i32>} : memref<256x640xbf16, #tpu.memory_space<vmem>>, vector<8x640xbf16>,
    %c0_53 = arith.constant 0 : index
    %c0_54 = arith.constant 0 : index
    %c135 = arith.constant 135 : index
    %85 = vector.load %arg4[%c0_53, %c0_54, %c135] : memref<1x8x896xf32, #tpu.memory_space<vmem>>, vector<1x8x640xf32>
    %86 = vector.shape_cast %85 : vector<1x8x640xf32> to vector<8x640xf32>
    %87 = vector.broadcast %0 : vector<1x640xf32> to vector<8x640xf32>
    %88 = arith.mulf %86, %87 : vector<8x640xf32>
    %89 = arith.truncf %88 : vector<8x640xf32> to vector<8x640xbf16>
    %c120_55 = arith.constant 120 : index
    %c0_56 = arith.constant 0 : index
    %90 = vector.load %arg7[%c120_55, %c0_56] : memref<256x640xbf16, #tpu.memory_space<vmem>>, vector<8x640xbf16>
    tpu.vector_store %arg7[%c120_55, %c0_56], %89 {strides = array<i32>} : memref<256x640xbf16, #tpu.memory_space<vmem>>, vector<8x640xbf16>,
    %c0_57 = arith.constant 0 : index
    %c0_58 = arith.constant 0 : index
    %c136 = arith.constant 136 : index
    %91 = vector.load %arg4[%c0_57, %c0_58, %c136] : memref<1x8x896xf32, #tpu.memory_space<vmem>>, vector<1x8x640xf32>
    %92 = vector.shape_cast %91 : vector<1x8x640xf32> to vector<8x640xf32>
    %93 = arith.truncf %92 : vector<8x640xf32> to vector<8x640xbf16>
    %c128_59 = arith.constant 128 : index
    %c0_60 = arith.constant 0 : index
    %94 = vector.load %arg7[%c128_59, %c0_60] : memref<256x640xbf16, #tpu.memory_space<vmem>>, vector<8x640xbf16>
    tpu.vector_store %arg7[%c128_59, %c0_60], %93 {strides = array<i32>} : memref<256x640xbf16, #tpu.memory_space<vmem>>, vector<8x640xbf16>,
    %c0_61 = arith.constant 0 : index
    %c0_62 = arith.constant 0 : index
    %c137 = arith.constant 137 : index
    %95 = vector.load %arg4[%c0_61, %c0_62, %c137] : memref<1x8x896xf32, #tpu.memory_space<vmem>>, vector<1x8x640xf32>
    %96 = vector.shape_cast %95 : vector<1x8x640xf32> to vector<8x640xf32>
    %97 = vector.broadcast %1 : vector<1x640xf32> to vector<8x640xf32>
    %98 = arith.mulf %96, %97 : vector<8x640xf32>
    %99 = arith.truncf %98 : vector<8x640xf32> to vector<8x640xbf16>
    %c136_63 = arith.constant 136 : index
    %c0_64 = arith.constant 0 : index
    %100 = vector.load %arg7[%c136_63, %c0_64] : memref<256x640xbf16, #tpu.memory_space<vmem>>, vector<8x640xbf16>
    tpu.vector_store %arg7[%c136_63, %c0_64], %99 {strides = array<i32>} : memref<256x640xbf16, #tpu.memory_space<vmem>>, vector<8x640xbf16>,
    %c0_65 = arith.constant 0 : index
    %c0_66 = arith.constant 0 : index
    %c199 = arith.constant 199 : index
    %101 = vector.load %arg4[%c0_65, %c0_66, %c199] : memref<1x8x896xf32, #tpu.memory_space<vmem>>, vector<1x8x640xf32>
    %102 = vector.shape_cast %101 : vector<1x8x640xf32> to vector<8x640xf32>
    %103 = vector.broadcast %0 : vector<1x640xf32> to vector<8x640xf32>
    %104 = arith.mulf %102, %103 : vector<8x640xf32>
    %105 = arith.truncf %104 : vector<8x640xf32> to vector<8x640xbf16>
    %c144 = arith.constant 144 : index
    %c0_67 = arith.constant 0 : index
    %106 = vector.load %arg7[%c144, %c0_67] : memref<256x640xbf16, #tpu.memory_space<vmem>>, vector<8x640xbf16>
    tpu.vector_store %arg7[%c144, %c0_67], %105 {strides = array<i32>} : memref<256x640xbf16, #tpu.memory_space<vmem>>, vector<8x640xbf16>,
    %c0_68 = arith.constant 0 : index
    %c0_69 = arith.constant 0 : index
    %c200 = arith.constant 200 : index
    %107 = vector.load %arg4[%c0_68, %c0_69, %c200] : memref<1x8x896xf32, #tpu.memory_space<vmem>>, vector<1x8x640xf32>
    %108 = vector.shape_cast %107 : vector<1x8x640xf32> to vector<8x640xf32>
    %109 = arith.truncf %108 : vector<8x640xf32> to vector<8x640xbf16>
    %c152 = arith.constant 152 : index
    %c0_70 = arith.constant 0 : index
    %110 = vector.load %arg7[%c152, %c0_70] : memref<256x640xbf16, #tpu.memory_space<vmem>>, vector<8x640xbf16>
    tpu.vector_store %arg7[%c152, %c0_70], %109 {strides = array<i32>} : memref<256x640xbf16, #tpu.memory_space<vmem>>, vector<8x640xbf16>,
    %c0_71 = arith.constant 0 : index
    %c0_72 = arith.constant 0 : index
    %c201 = arith.constant 201 : index
    %111 = vector.load %arg4[%c0_71, %c0_72, %c201] : memref<1x8x896xf32, #tpu.memory_space<vmem>>, vector<1x8x640xf32>
    %112 = vector.shape_cast %111 : vector<1x8x640xf32> to vector<8x640xf32>
    %113 = vector.broadcast %1 : vector<1x640xf32> to vector<8x640xf32>
    %114 = arith.mulf %112, %113 : vector<8x640xf32>
    %115 = arith.truncf %114 : vector<8x640xf32> to vector<8x640xbf16>
    %c160 = arith.constant 160 : index
    %c0_73 = arith.constant 0 : index
    %116 = vector.load %arg7[%c160, %c0_73] : memref<256x640xbf16, #tpu.memory_space<vmem>>, vector<8x640xbf16>
    tpu.vector_store %arg7[%c160, %c0_73], %115 {strides = array<i32>} : memref<256x640xbf16, #tpu.memory_space<vmem>>, vector<8x640xbf16>,
    %c0_74 = arith.constant 0 : index
    %c0_75 = arith.constant 0 : index
    %c207 = arith.constant 207 : index
    %117 = vector.load %arg4[%c0_74, %c0_75, %c207] : memref<1x8x896xf32, #tpu.memory_space<vmem>>, vector<1x8x640xf32>
    %118 = vector.shape_cast %117 : vector<1x8x640xf32> to vector<8x640xf32>
    %119 = vector.broadcast %0 : vector<1x640xf32> to vector<8x640xf32>
    %120 = arith.mulf %118, %119 : vector<8x640xf32>
    %121 = arith.truncf %120 : vector<8x640xf32> to vector<8x640xbf16>
    %c168 = arith.constant 168 : index
    %c0_76 = arith.constant 0 : index
    %122 = vector.load %arg7[%c168, %c0_76] : memref<256x640xbf16, #tpu.memory_space<vmem>>, vector<8x640xbf16>
    tpu.vector_store %arg7[%c168, %c0_76], %121 {strides = array<i32>} : memref<256x640xbf16, #tpu.memory_space<vmem>>, vector<8x640xbf16>,
    %c0_77 = arith.constant 0 : index
    %c0_78 = arith.constant 0 : index
    %c208 = arith.constant 208 : index
    %123 = vector.load %arg4[%c0_77, %c0_78, %c208] : memref<1x8x896xf32, #tpu.memory_space<vmem>>, vector<1x8x640xf32>
    %124 = vector.shape_cast %123 : vector<1x8x640xf32> to vector<8x640xf32>
    %125 = arith.truncf %124 : vector<8x640xf32> to vector<8x640xbf16>
    %c176 = arith.constant 176 : index
    %c0_79 = arith.constant 0 : index
    %126 = vector.load %arg7[%c176, %c0_79] : memref<256x640xbf16, #tpu.memory_space<vmem>>, vector<8x640xbf16>
    tpu.vector_store %arg7[%c176, %c0_79], %125 {strides = array<i32>} : memref<256x640xbf16, #tpu.memory_space<vmem>>, vector<8x640xbf16>,
    %c0_80 = arith.constant 0 : index
    %c0_81 = arith.constant 0 : index
    %c209 = arith.constant 209 : index
    %127 = vector.load %arg4[%c0_80, %c0_81, %c209] : memref<1x8x896xf32, #tpu.memory_space<vmem>>, vector<1x8x640xf32>
    %128 = vector.shape_cast %127 : vector<1x8x640xf32> to vector<8x640xf32>
    %129 = vector.broadcast %1 : vector<1x640xf32> to vector<8x640xf32>
    %130 = arith.mulf %128, %129 : vector<8x640xf32>
    %131 = arith.truncf %130 : vector<8x640xf32> to vector<8x640xbf16>
    %c184 = arith.constant 184 : index
    %c0_82 = arith.constant 0 : index
    %132 = vector.load %arg7[%c184, %c0_82] : memref<256x640xbf16, #tpu.memory_space<vmem>>, vector<8x640xbf16>
    tpu.vector_store %arg7[%c184, %c0_82], %131 {strides = array<i32>} : memref<256x640xbf16, #tpu.memory_space<vmem>>, vector<8x640xbf16>,
    %c0_83 = arith.constant 0 : index
    %c0_84 = arith.constant 0 : index
    %c215 = arith.constant 215 : index
    %133 = vector.load %arg4[%c0_83, %c0_84, %c215] : memref<1x8x896xf32, #tpu.memory_space<vmem>>, vector<1x8x640xf32>
    %134 = vector.shape_cast %133 : vector<1x8x640xf32> to vector<8x640xf32>
    %135 = vector.broadcast %0 : vector<1x640xf32> to vector<8x640xf32>
    %136 = arith.mulf %134, %135 : vector<8x640xf32>
    %137 = arith.truncf %136 : vector<8x640xf32> to vector<8x640xbf16>
    %c192 = arith.constant 192 : index
    %c0_85 = arith.constant 0 : index
    %138 = vector.load %arg7[%c192, %c0_85] : memref<256x640xbf16, #tpu.memory_space<vmem>>, vector<8x640xbf16>
    tpu.vector_store %arg7[%c192, %c0_85], %137 {strides = array<i32>} : memref<256x640xbf16, #tpu.memory_space<vmem>>, vector<8x640xbf16>,
    %c0_86 = arith.constant 0 : index
    %c0_87 = arith.constant 0 : index
    %c216_88 = arith.constant 216 : index
    %139 = vector.load %arg4[%c0_86, %c0_87, %c216_88] : memref<1x8x896xf32, #tpu.memory_space<vmem>>, vector<1x8x640xf32>
    %140 = vector.shape_cast %139 : vector<1x8x640xf32> to vector<8x640xf32>
    %141 = arith.truncf %140 : vector<8x640xf32> to vector<8x640xbf16>
    %c200_89 = arith.constant 200 : index
    %c0_90 = arith.constant 0 : index
    %142 = vector.load %arg7[%c200_89, %c0_90] : memref<256x640xbf16, #tpu.memory_space<vmem>>, vector<8x640xbf16>
    tpu.vector_store %arg7[%c200_89, %c0_90], %141 {strides = array<i32>} : memref<256x640xbf16, #tpu.memory_space<vmem>>, vector<8x640xbf16>,
    %c0_91 = arith.constant 0 : index
    %c0_92 = arith.constant 0 : index
    %c217 = arith.constant 217 : index
    %143 = vector.load %arg4[%c0_91, %c0_92, %c217] : memref<1x8x896xf32, #tpu.memory_space<vmem>>, vector<1x8x640xf32>
    %144 = vector.shape_cast %143 : vector<1x8x640xf32> to vector<8x640xf32>
    %145 = vector.broadcast %1 : vector<1x640xf32> to vector<8x640xf32>
    %146 = arith.mulf %144, %145 : vector<8x640xf32>
    %147 = arith.truncf %146 : vector<8x640xf32> to vector<8x640xbf16>
    %c208_93 = arith.constant 208 : index
    %c0_94 = arith.constant 0 : index
    %148 = vector.load %arg7[%c208_93, %c0_94] : memref<256x640xbf16, #tpu.memory_space<vmem>>, vector<8x640xbf16>
    tpu.vector_store %arg7[%c208_93, %c0_94], %147 {strides = array<i32>} : memref<256x640xbf16, #tpu.memory_space<vmem>>, vector<8x640xbf16>,
    %c0_95 = arith.constant 0 : index
    %c0_96 = arith.constant 0 : index
    %149 = vector.load %arg3[%c0_95, %c0_96] : memref<16x256xbf16, #tpu.memory_space<vmem>>, vector<16x256xbf16>
    %c0_97 = arith.constant 0 : index
    %c0_98 = arith.constant 0 : index
    %150 = vector.load %arg7[%c0_97, %c0_98] : memref<256x640xbf16, #tpu.memory_space<vmem>>, vector<256x640xbf16>
    %cst_99 = arith.constant dense<0.000000e+00> : vector<16x640xf32>
    %151 = tpu.matmul %149, %150, %cst_99 {dimension_numbers = #tpu.dot_dimension_numbers<[1], [0], [0], [1], [0, 0, 1, 1], [], []>} : vector<16x256xbf16>, vector<256x640xbf16>, vector<16x640xf32> -> vector<16x640xf32>
    %152 = vector.broadcast %2 : vector<1x640xf32> to vector<16x640xf32>
    %153 = arith.mulf %151, %152 : vector<16x640xf32>
    %154 = arith.mulf %153, %153 : vector<16x640xf32>
    %cst_100 = arith.constant dense<0.000000e+00> : vector<16xf32>
    %155 = vector.multi_reduction <add>, %154, %cst_100 [1] : vector<16x640xf32> to vector<16xf32>
    %156 = vector.shape_cast %155 : vector<16xf32> to vector<16x1xf32>
    %c0_101 = arith.constant 0 : index
    %c0_102 = arith.constant 0 : index
    %c0_103 = arith.constant 0 : index
    %157 = vector.load %arg6[%c0_101, %c0_102, %c0_103] : memref<1x16x1xf32, #tpu.memory_space<vmem>>, vector<1x16x1xf32>
    %158 = vector.shape_cast %157 : vector<1x16x1xf32> to vector<16x1xf32>
    %159 = vector.shape_cast %156 : vector<16x1xf32> to vector<1x16x1xf32>
    tpu.vector_store %arg6[%c0_101, %c0_102, %c0_103], %159 {strides = array<i32>} : memref<1x16x1xf32, #tpu.memory_space<vmem>>, vector<1x16x1xf32>,
    %cst_104 = arith.constant 0.000000e+00 : f32
    %160 = vector.broadcast %cst_104 : f32 to vector<16x128xf32>
    %c0_105 = arith.constant 0 : index
    %c0_106 = arith.constant 0 : index
    %c0_107 = arith.constant 0 : index
    %161 = vector.load %arg5[%c0_105, %c0_106, %c0_107] : memref<1x16x896xf32, #tpu.memory_space<vmem>>, vector<1x16x128xf32>
    %162 = vector.shape_cast %161 : vector<1x16x128xf32> to vector<16x128xf32>
    %163 = vector.shape_cast %160 : vector<16x128xf32> to vector<1x16x128xf32>
    tpu.vector_store %arg5[%c0_105, %c0_106, %c0_107], %163 {strides = array<i32>} : memref<1x16x896xf32, #tpu.memory_space<vmem>>, vector<1x16x128xf32>,
    %cst_108 = arith.constant 0.000000e+00 : f32
    %164 = vector.broadcast %cst_108 : f32 to vector<16x128xf32>
    %c0_109 = arith.constant 0 : index
    %c0_110 = arith.constant 0 : index
    %c768 = arith.constant 768 : index
    %165 = vector.load %arg5[%c0_109, %c0_110, %c768] : memref<1x16x896xf32, #tpu.memory_space<vmem>>, vector<1x16x128xf32>
    %166 = vector.shape_cast %165 : vector<1x16x128xf32> to vector<16x128xf32>
    %167 = vector.shape_cast %164 : vector<16x128xf32> to vector<1x16x128xf32>
    tpu.vector_store %arg5[%c0_109, %c0_110, %c768], %167 {strides = array<i32>} : memref<1x16x896xf32, #tpu.memory_space<vmem>>, vector<1x16x128xf32>,
    %c0_111 = arith.constant 0 : index
    %c0_112 = arith.constant 0 : index
    %c128_113 = arith.constant 128 : index
    %168 = vector.load %arg5[%c0_111, %c0_112, %c128_113] : memref<1x16x896xf32, #tpu.memory_space<vmem>>, vector<1x16x640xf32>
    %169 = vector.shape_cast %168 : vector<1x16x640xf32> to vector<16x640xf32>
    %170 = vector.shape_cast %153 : vector<16x640xf32> to vector<1x16x640xf32>
    tpu.vector_store %arg5[%c0_111, %c0_112, %c128_113], %170 {strides = array<i32>} : memref<1x16x896xf32, #tpu.memory_space<vmem>>, vector<1x16x640xf32>,
    return
  }
  func.func @transform_0(%arg0: i32) -> (i32, i32) {
    %c0_i32 = arith.constant 0 : i32
    %c0_i32_0 = arith.constant 0 : i32
    %c0_i32_1 = arith.constant 0 : i32
    return %c0_i32, %c0_i32_0 : i32, i32
  }
  func.func @transform_1(%arg0: i32) -> (i32, i32) {
    %c0_i32 = arith.constant 0 : i32
    %c0_i32_0 = arith.constant 0 : i32
    %c0_i32_1 = arith.constant 0 : i32
    return %c0_i32, %c0_i32_0 : i32, i32
  }
  func.func @transform_2(%arg0: i32) -> (i32, i32) {
    %c0_i32 = arith.constant 0 : i32
    %c0_i32_0 = arith.constant 0 : i32
    %c0_i32_1 = arith.constant 0 : i32
    return %c0_i32, %c0_i32_0 : i32, i32
  }
  func.func @transform_3(%arg0: i32) -> (i32, i32, i32) {
    %c0_i32 = arith.constant 0 : i32
    %c0_i32_0 = arith.constant 0 : i32
    %c0_i32_1 = arith.constant 0 : i32
    return %arg0, %c0_i32, %c0_i32_0 : i32, i32, i32
  }
  func.func @transform_4(%arg0: i32) -> (i32, i32, i32) {
    %c0_i32 = arith.constant 0 : i32
    %c0_i32_0 = arith.constant 0 : i32
    %c0_i32_1 = arith.constant 0 : i32
    return %arg0, %c0_i32, %c0_i32_0 : i32, i32, i32
  }
  func.func @transform_5(%arg0: i32) -> (i32, i32, i32) {
    %c0_i32 = arith.constant 0 : i32
    %c0_i32_0 = arith.constant 0 : i32
    %c0_i32_1 = arith.constant 0 : i32
    return %arg0, %c0_i32, %c0_i32_0 : i32, i32, i32
  }
}

module attributes {stable_mosaic.version = 11 : i64} {
  func.func @_conv_volume_kernel(%arg0: i32, %arg1: memref<16x1xf32, #tpu.memory_space<vmem>>, %arg2: memref<4x640xf32, #tpu.memory_space<vmem>>, %arg3: memref<8x512xbf16, #tpu.memory_space<vmem>>, %arg4: memref<1x16x896xf32, #tpu.memory_space<vmem>>, %arg5: memref<1x8x896xf32, #tpu.memory_space<vmem>>, %arg6: memref<1x8x1xf32, #tpu.memory_space<vmem>>, %arg7: memref<512x640xbf16, #tpu.memory_space<vmem>>, %arg8: memref<16x896xf32, #tpu.memory_space<vmem>>) attributes {dimension_semantics = [#tpu.dimension_semantics<parallel>], iteration_bounds = array<i64: 2>, scalar_prefetch = 0 : i64, scratch_operands = 2 : i64, tpu.core_type = #tpu.core_type<tc>, window_params = [{pipeline_mode = #tpu.pipeline_mode<synchronous>, transform_indices = @transform_0, window_bounds = array<i64: 16, 1>}, {pipeline_mode = #tpu.pipeline_mode<synchronous>, transform_indices = @transform_1, window_bounds = array<i64: 4, 640>}, {pipeline_mode = #tpu.pipeline_mode<synchronous>, transform_indices = @transform_2, window_bounds = array<i64: 8, 512>}, {transform_indices = @transform_3, window_bounds = array<i64: 1, 16, 896>}, {transform_indices = @transform_4, window_bounds = array<i64: 1, 8, 896>}, {transform_indices = @transform_5, window_bounds = array<i64: 1, 8, 1>}]} {
    %c0 = arith.constant 0 : index
    %c0_0 = arith.constant 0 : index
    %0 = vector.load %arg2[%c0, %c0_0] : memref<4x640xf32, #tpu.memory_space<vmem>>, vector<1x640xf32>
    %c2 = arith.constant 2 : index
    %c0_1 = arith.constant 0 : index
    %1 = vector.load %arg2[%c2, %c0_1] : memref<4x640xf32, #tpu.memory_space<vmem>>, vector<1x640xf32>
    %c3 = arith.constant 3 : index
    %c0_2 = arith.constant 0 : index
    %2 = vector.load %arg2[%c3, %c0_2] : memref<4x640xf32, #tpu.memory_space<vmem>>, vector<1x640xf32>
    %c0_3 = arith.constant 0 : index
    %c0_4 = arith.constant 0 : index
    %c0_5 = arith.constant 0 : index
    %3 = vector.load %arg4[%c0_3, %c0_4, %c0_5] : memref<1x16x896xf32, #tpu.memory_space<vmem>>, vector<1x16x896xf32>
    %4 = vector.shape_cast %3 : vector<1x16x896xf32> to vector<16x896xf32>
    %c0_6 = arith.constant 0 : index
    %c0_7 = arith.constant 0 : index
    %5 = vector.load %arg1[%c0_6, %c0_7] : memref<16x1xf32, #tpu.memory_space<vmem>>, vector<16x1xf32>
    %6 = vector.broadcast %5 : vector<16x1xf32> to vector<16x896xf32>
    %7 = arith.mulf %4, %6 : vector<16x896xf32>
    %cst = arith.constant 0.000000e+00 : f32
    %8 = vector.broadcast %cst : f32 to vector<16x896xf32>
    %9 = arith.maximumf %7, %8 : vector<16x896xf32>
    %c0_8 = arith.constant 0 : index
    %c0_9 = arith.constant 0 : index
    %10 = vector.load %arg8[%c0_8, %c0_9] : memref<16x896xf32, #tpu.memory_space<vmem>>, vector<16x896xf32>
    tpu.vector_store %arg8[%c0_8, %c0_9], %9 {strides = array<i32>} : memref<16x896xf32, #tpu.memory_space<vmem>>, vector<16x896xf32>,
    %cst_10 = arith.constant 0.000000e+00 : bf16
    %11 = vector.broadcast %cst_10 : bf16 to vector<80x640xbf16>
    %c432 = arith.constant 432 : index
    %c0_11 = arith.constant 0 : index
    %12 = vector.load %arg7[%c432, %c0_11] : memref<512x640xbf16, #tpu.memory_space<vmem>>, vector<80x640xbf16>
    tpu.vector_store %arg7[%c432, %c0_11], %11 {strides = array<i32>} : memref<512x640xbf16, #tpu.memory_space<vmem>>, vector<80x640xbf16>,
    %c0_12 = arith.constant 0 : index
    %c39 = arith.constant 39 : index
    %13 = vector.load %arg8[%c0_12, %c39] : memref<16x896xf32, #tpu.memory_space<vmem>>, vector<16x640xf32>
    %14 = vector.broadcast %0 : vector<1x640xf32> to vector<16x640xf32>
    %15 = arith.mulf %13, %14 : vector<16x640xf32>
    %16 = arith.truncf %15 : vector<16x640xf32> to vector<16x640xbf16>
    %c0_13 = arith.constant 0 : index
    %c0_14 = arith.constant 0 : index
    %17 = vector.load %arg7[%c0_13, %c0_14] : memref<512x640xbf16, #tpu.memory_space<vmem>>, vector<16x640xbf16>
    tpu.vector_store %arg7[%c0_13, %c0_14], %16 {strides = array<i32>} : memref<512x640xbf16, #tpu.memory_space<vmem>>, vector<16x640xbf16>,
    %c0_15 = arith.constant 0 : index
    %c40 = arith.constant 40 : index
    %18 = vector.load %arg8[%c0_15, %c40] : memref<16x896xf32, #tpu.memory_space<vmem>>, vector<16x640xf32>
    %19 = arith.truncf %18 : vector<16x640xf32> to vector<16x640xbf16>
    %c16 = arith.constant 16 : index
    %c0_16 = arith.constant 0 : index
    %20 = vector.load %arg7[%c16, %c0_16] : memref<512x640xbf16, #tpu.memory_space<vmem>>, vector<16x640xbf16>
    tpu.vector_store %arg7[%c16, %c0_16], %19 {strides = array<i32>} : memref<512x640xbf16, #tpu.memory_space<vmem>>, vector<16x640xbf16>,
    %c0_17 = arith.constant 0 : index
    %c41 = arith.constant 41 : index
    %21 = vector.load %arg8[%c0_17, %c41] : memref<16x896xf32, #tpu.memory_space<vmem>>, vector<16x640xf32>
    %22 = vector.broadcast %1 : vector<1x640xf32> to vector<16x640xf32>
    %23 = arith.mulf %21, %22 : vector<16x640xf32>
    %24 = arith.truncf %23 : vector<16x640xf32> to vector<16x640xbf16>
    %c32 = arith.constant 32 : index
    %c0_18 = arith.constant 0 : index
    %25 = vector.load %arg7[%c32, %c0_18] : memref<512x640xbf16, #tpu.memory_space<vmem>>, vector<16x640xbf16>
    tpu.vector_store %arg7[%c32, %c0_18], %24 {strides = array<i32>} : memref<512x640xbf16, #tpu.memory_space<vmem>>, vector<16x640xbf16>,
    %c0_19 = arith.constant 0 : index
    %c47 = arith.constant 47 : index
    %26 = vector.load %arg8[%c0_19, %c47] : memref<16x896xf32, #tpu.memory_space<vmem>>, vector<16x640xf32>
    %27 = vector.broadcast %0 : vector<1x640xf32> to vector<16x640xf32>
    %28 = arith.mulf %26, %27 : vector<16x640xf32>
    %29 = arith.truncf %28 : vector<16x640xf32> to vector<16x640xbf16>
    %c48 = arith.constant 48 : index
    %c0_20 = arith.constant 0 : index
    %30 = vector.load %arg7[%c48, %c0_20] : memref<512x640xbf16, #tpu.memory_space<vmem>>, vector<16x640xbf16>
    tpu.vector_store %arg7[%c48, %c0_20], %29 {strides = array<i32>} : memref<512x640xbf16, #tpu.memory_space<vmem>>, vector<16x640xbf16>,
    %c0_21 = arith.constant 0 : index
    %c48_22 = arith.constant 48 : index
    %31 = vector.load %arg8[%c0_21, %c48_22] : memref<16x896xf32, #tpu.memory_space<vmem>>, vector<16x640xf32>
    %32 = arith.truncf %31 : vector<16x640xf32> to vector<16x640xbf16>
    %c64 = arith.constant 64 : index
    %c0_23 = arith.constant 0 : index
    %33 = vector.load %arg7[%c64, %c0_23] : memref<512x640xbf16, #tpu.memory_space<vmem>>, vector<16x640xbf16>
    tpu.vector_store %arg7[%c64, %c0_23], %32 {strides = array<i32>} : memref<512x640xbf16, #tpu.memory_space<vmem>>, vector<16x640xbf16>,
    %c0_24 = arith.constant 0 : index
    %c49 = arith.constant 49 : index
    %34 = vector.load %arg8[%c0_24, %c49] : memref<16x896xf32, #tpu.memory_space<vmem>>, vector<16x640xf32>
    %35 = vector.broadcast %1 : vector<1x640xf32> to vector<16x640xf32>
    %36 = arith.mulf %34, %35 : vector<16x640xf32>
    %37 = arith.truncf %36 : vector<16x640xf32> to vector<16x640xbf16>
    %c80 = arith.constant 80 : index
    %c0_25 = arith.constant 0 : index
    %38 = vector.load %arg7[%c80, %c0_25] : memref<512x640xbf16, #tpu.memory_space<vmem>>, vector<16x640xbf16>
    tpu.vector_store %arg7[%c80, %c0_25], %37 {strides = array<i32>} : memref<512x640xbf16, #tpu.memory_space<vmem>>, vector<16x640xbf16>,
    %c0_26 = arith.constant 0 : index
    %c55 = arith.constant 55 : index
    %39 = vector.load %arg8[%c0_26, %c55] : memref<16x896xf32, #tpu.memory_space<vmem>>, vector<16x640xf32>
    %40 = vector.broadcast %0 : vector<1x640xf32> to vector<16x640xf32>
    %41 = arith.mulf %39, %40 : vector<16x640xf32>
    %42 = arith.truncf %41 : vector<16x640xf32> to vector<16x640xbf16>
    %c96 = arith.constant 96 : index
    %c0_27 = arith.constant 0 : index
    %43 = vector.load %arg7[%c96, %c0_27] : memref<512x640xbf16, #tpu.memory_space<vmem>>, vector<16x640xbf16>
    tpu.vector_store %arg7[%c96, %c0_27], %42 {strides = array<i32>} : memref<512x640xbf16, #tpu.memory_space<vmem>>, vector<16x640xbf16>,
    %c0_28 = arith.constant 0 : index
    %c56 = arith.constant 56 : index
    %44 = vector.load %arg8[%c0_28, %c56] : memref<16x896xf32, #tpu.memory_space<vmem>>, vector<16x640xf32>
    %45 = arith.truncf %44 : vector<16x640xf32> to vector<16x640xbf16>
    %c112 = arith.constant 112 : index
    %c0_29 = arith.constant 0 : index
    %46 = vector.load %arg7[%c112, %c0_29] : memref<512x640xbf16, #tpu.memory_space<vmem>>, vector<16x640xbf16>
    tpu.vector_store %arg7[%c112, %c0_29], %45 {strides = array<i32>} : memref<512x640xbf16, #tpu.memory_space<vmem>>, vector<16x640xbf16>,
    %c0_30 = arith.constant 0 : index
    %c57 = arith.constant 57 : index
    %47 = vector.load %arg8[%c0_30, %c57] : memref<16x896xf32, #tpu.memory_space<vmem>>, vector<16x640xf32>
    %48 = vector.broadcast %1 : vector<1x640xf32> to vector<16x640xf32>
    %49 = arith.mulf %47, %48 : vector<16x640xf32>
    %50 = arith.truncf %49 : vector<16x640xf32> to vector<16x640xbf16>
    %c128 = arith.constant 128 : index
    %c0_31 = arith.constant 0 : index
    %51 = vector.load %arg7[%c128, %c0_31] : memref<512x640xbf16, #tpu.memory_space<vmem>>, vector<16x640xbf16>
    tpu.vector_store %arg7[%c128, %c0_31], %50 {strides = array<i32>} : memref<512x640xbf16, #tpu.memory_space<vmem>>, vector<16x640xbf16>,
    %c0_32 = arith.constant 0 : index
    %c119 = arith.constant 119 : index
    %52 = vector.load %arg8[%c0_32, %c119] : memref<16x896xf32, #tpu.memory_space<vmem>>, vector<16x640xf32>
    %53 = vector.broadcast %0 : vector<1x640xf32> to vector<16x640xf32>
    %54 = arith.mulf %52, %53 : vector<16x640xf32>
    %55 = arith.truncf %54 : vector<16x640xf32> to vector<16x640xbf16>
    %c144 = arith.constant 144 : index
    %c0_33 = arith.constant 0 : index
    %56 = vector.load %arg7[%c144, %c0_33] : memref<512x640xbf16, #tpu.memory_space<vmem>>, vector<16x640xbf16>
    tpu.vector_store %arg7[%c144, %c0_33], %55 {strides = array<i32>} : memref<512x640xbf16, #tpu.memory_space<vmem>>, vector<16x640xbf16>,
    %c0_34 = arith.constant 0 : index
    %c120 = arith.constant 120 : index
    %57 = vector.load %arg8[%c0_34, %c120] : memref<16x896xf32, #tpu.memory_space<vmem>>, vector<16x640xf32>
    %58 = arith.truncf %57 : vector<16x640xf32> to vector<16x640xbf16>
    %c160 = arith.constant 160 : index
    %c0_35 = arith.constant 0 : index
    %59 = vector.load %arg7[%c160, %c0_35] : memref<512x640xbf16, #tpu.memory_space<vmem>>, vector<16x640xbf16>
    tpu.vector_store %arg7[%c160, %c0_35], %58 {strides = array<i32>} : memref<512x640xbf16, #tpu.memory_space<vmem>>, vector<16x640xbf16>,
    %c0_36 = arith.constant 0 : index
    %c121 = arith.constant 121 : index
    %60 = vector.load %arg8[%c0_36, %c121] : memref<16x896xf32, #tpu.memory_space<vmem>>, vector<16x640xf32>
    %61 = vector.broadcast %1 : vector<1x640xf32> to vector<16x640xf32>
    %62 = arith.mulf %60, %61 : vector<16x640xf32>
    %63 = arith.truncf %62 : vector<16x640xf32> to vector<16x640xbf16>
    %c176 = arith.constant 176 : index
    %c0_37 = arith.constant 0 : index
    %64 = vector.load %arg7[%c176, %c0_37] : memref<512x640xbf16, #tpu.memory_space<vmem>>, vector<16x640xbf16>
    tpu.vector_store %arg7[%c176, %c0_37], %63 {strides = array<i32>} : memref<512x640xbf16, #tpu.memory_space<vmem>>, vector<16x640xbf16>,
    %c0_38 = arith.constant 0 : index
    %c127 = arith.constant 127 : index
    %65 = vector.load %arg8[%c0_38, %c127] : memref<16x896xf32, #tpu.memory_space<vmem>>, vector<16x640xf32>
    %66 = vector.broadcast %0 : vector<1x640xf32> to vector<16x640xf32>
    %67 = arith.mulf %65, %66 : vector<16x640xf32>
    %68 = arith.truncf %67 : vector<16x640xf32> to vector<16x640xbf16>
    %c192 = arith.constant 192 : index
    %c0_39 = arith.constant 0 : index
    %69 = vector.load %arg7[%c192, %c0_39] : memref<512x640xbf16, #tpu.memory_space<vmem>>, vector<16x640xbf16>
    tpu.vector_store %arg7[%c192, %c0_39], %68 {strides = array<i32>} : memref<512x640xbf16, #tpu.memory_space<vmem>>, vector<16x640xbf16>,
    %c0_40 = arith.constant 0 : index
    %c128_41 = arith.constant 128 : index
    %70 = vector.load %arg8[%c0_40, %c128_41] : memref<16x896xf32, #tpu.memory_space<vmem>>, vector<16x640xf32>
    %71 = arith.truncf %70 : vector<16x640xf32> to vector<16x640xbf16>
    %c208 = arith.constant 208 : index
    %c0_42 = arith.constant 0 : index
    %72 = vector.load %arg7[%c208, %c0_42] : memref<512x640xbf16, #tpu.memory_space<vmem>>, vector<16x640xbf16>
    tpu.vector_store %arg7[%c208, %c0_42], %71 {strides = array<i32>} : memref<512x640xbf16, #tpu.memory_space<vmem>>, vector<16x640xbf16>,
    %c0_43 = arith.constant 0 : index
    %c129 = arith.constant 129 : index
    %73 = vector.load %arg8[%c0_43, %c129] : memref<16x896xf32, #tpu.memory_space<vmem>>, vector<16x640xf32>
    %74 = vector.broadcast %1 : vector<1x640xf32> to vector<16x640xf32>
    %75 = arith.mulf %73, %74 : vector<16x640xf32>
    %76 = arith.truncf %75 : vector<16x640xf32> to vector<16x640xbf16>
    %c224 = arith.constant 224 : index
    %c0_44 = arith.constant 0 : index
    %77 = vector.load %arg7[%c224, %c0_44] : memref<512x640xbf16, #tpu.memory_space<vmem>>, vector<16x640xbf16>
    tpu.vector_store %arg7[%c224, %c0_44], %76 {strides = array<i32>} : memref<512x640xbf16, #tpu.memory_space<vmem>>, vector<16x640xbf16>,
    %c0_45 = arith.constant 0 : index
    %c135 = arith.constant 135 : index
    %78 = vector.load %arg8[%c0_45, %c135] : memref<16x896xf32, #tpu.memory_space<vmem>>, vector<16x640xf32>
    %79 = vector.broadcast %0 : vector<1x640xf32> to vector<16x640xf32>
    %80 = arith.mulf %78, %79 : vector<16x640xf32>
    %81 = arith.truncf %80 : vector<16x640xf32> to vector<16x640xbf16>
    %c240 = arith.constant 240 : index
    %c0_46 = arith.constant 0 : index
    %82 = vector.load %arg7[%c240, %c0_46] : memref<512x640xbf16, #tpu.memory_space<vmem>>, vector<16x640xbf16>
    tpu.vector_store %arg7[%c240, %c0_46], %81 {strides = array<i32>} : memref<512x640xbf16, #tpu.memory_space<vmem>>, vector<16x640xbf16>,
    %c0_47 = arith.constant 0 : index
    %c136 = arith.constant 136 : index
    %83 = vector.load %arg8[%c0_47, %c136] : memref<16x896xf32, #tpu.memory_space<vmem>>, vector<16x640xf32>
    %84 = arith.truncf %83 : vector<16x640xf32> to vector<16x640xbf16>
    %c256 = arith.constant 256 : index
    %c0_48 = arith.constant 0 : index
    %85 = vector.load %arg7[%c256, %c0_48] : memref<512x640xbf16, #tpu.memory_space<vmem>>, vector<16x640xbf16>
    tpu.vector_store %arg7[%c256, %c0_48], %84 {strides = array<i32>} : memref<512x640xbf16, #tpu.memory_space<vmem>>, vector<16x640xbf16>,
    %c0_49 = arith.constant 0 : index
    %c137 = arith.constant 137 : index
    %86 = vector.load %arg8[%c0_49, %c137] : memref<16x896xf32, #tpu.memory_space<vmem>>, vector<16x640xf32>
    %87 = vector.broadcast %1 : vector<1x640xf32> to vector<16x640xf32>
    %88 = arith.mulf %86, %87 : vector<16x640xf32>
    %89 = arith.truncf %88 : vector<16x640xf32> to vector<16x640xbf16>
    %c272 = arith.constant 272 : index
    %c0_50 = arith.constant 0 : index
    %90 = vector.load %arg7[%c272, %c0_50] : memref<512x640xbf16, #tpu.memory_space<vmem>>, vector<16x640xbf16>
    tpu.vector_store %arg7[%c272, %c0_50], %89 {strides = array<i32>} : memref<512x640xbf16, #tpu.memory_space<vmem>>, vector<16x640xbf16>,
    %c0_51 = arith.constant 0 : index
    %c199 = arith.constant 199 : index
    %91 = vector.load %arg8[%c0_51, %c199] : memref<16x896xf32, #tpu.memory_space<vmem>>, vector<16x640xf32>
    %92 = vector.broadcast %0 : vector<1x640xf32> to vector<16x640xf32>
    %93 = arith.mulf %91, %92 : vector<16x640xf32>
    %94 = arith.truncf %93 : vector<16x640xf32> to vector<16x640xbf16>
    %c288 = arith.constant 288 : index
    %c0_52 = arith.constant 0 : index
    %95 = vector.load %arg7[%c288, %c0_52] : memref<512x640xbf16, #tpu.memory_space<vmem>>, vector<16x640xbf16>
    tpu.vector_store %arg7[%c288, %c0_52], %94 {strides = array<i32>} : memref<512x640xbf16, #tpu.memory_space<vmem>>, vector<16x640xbf16>,
    %c0_53 = arith.constant 0 : index
    %c200 = arith.constant 200 : index
    %96 = vector.load %arg8[%c0_53, %c200] : memref<16x896xf32, #tpu.memory_space<vmem>>, vector<16x640xf32>
    %97 = arith.truncf %96 : vector<16x640xf32> to vector<16x640xbf16>
    %c304 = arith.constant 304 : index
    %c0_54 = arith.constant 0 : index
    %98 = vector.load %arg7[%c304, %c0_54] : memref<512x640xbf16, #tpu.memory_space<vmem>>, vector<16x640xbf16>
    tpu.vector_store %arg7[%c304, %c0_54], %97 {strides = array<i32>} : memref<512x640xbf16, #tpu.memory_space<vmem>>, vector<16x640xbf16>,
    %c0_55 = arith.constant 0 : index
    %c201 = arith.constant 201 : index
    %99 = vector.load %arg8[%c0_55, %c201] : memref<16x896xf32, #tpu.memory_space<vmem>>, vector<16x640xf32>
    %100 = vector.broadcast %1 : vector<1x640xf32> to vector<16x640xf32>
    %101 = arith.mulf %99, %100 : vector<16x640xf32>
    %102 = arith.truncf %101 : vector<16x640xf32> to vector<16x640xbf16>
    %c320 = arith.constant 320 : index
    %c0_56 = arith.constant 0 : index
    %103 = vector.load %arg7[%c320, %c0_56] : memref<512x640xbf16, #tpu.memory_space<vmem>>, vector<16x640xbf16>
    tpu.vector_store %arg7[%c320, %c0_56], %102 {strides = array<i32>} : memref<512x640xbf16, #tpu.memory_space<vmem>>, vector<16x640xbf16>,
    %c0_57 = arith.constant 0 : index
    %c207 = arith.constant 207 : index
    %104 = vector.load %arg8[%c0_57, %c207] : memref<16x896xf32, #tpu.memory_space<vmem>>, vector<16x640xf32>
    %105 = vector.broadcast %0 : vector<1x640xf32> to vector<16x640xf32>
    %106 = arith.mulf %104, %105 : vector<16x640xf32>
    %107 = arith.truncf %106 : vector<16x640xf32> to vector<16x640xbf16>
    %c336 = arith.constant 336 : index
    %c0_58 = arith.constant 0 : index
    %108 = vector.load %arg7[%c336, %c0_58] : memref<512x640xbf16, #tpu.memory_space<vmem>>, vector<16x640xbf16>
    tpu.vector_store %arg7[%c336, %c0_58], %107 {strides = array<i32>} : memref<512x640xbf16, #tpu.memory_space<vmem>>, vector<16x640xbf16>,
    %c0_59 = arith.constant 0 : index
    %c208_60 = arith.constant 208 : index
    %109 = vector.load %arg8[%c0_59, %c208_60] : memref<16x896xf32, #tpu.memory_space<vmem>>, vector<16x640xf32>
    %110 = arith.truncf %109 : vector<16x640xf32> to vector<16x640xbf16>
    %c352 = arith.constant 352 : index
    %c0_61 = arith.constant 0 : index
    %111 = vector.load %arg7[%c352, %c0_61] : memref<512x640xbf16, #tpu.memory_space<vmem>>, vector<16x640xbf16>
    tpu.vector_store %arg7[%c352, %c0_61], %110 {strides = array<i32>} : memref<512x640xbf16, #tpu.memory_space<vmem>>, vector<16x640xbf16>,
    %c0_62 = arith.constant 0 : index
    %c209 = arith.constant 209 : index
    %112 = vector.load %arg8[%c0_62, %c209] : memref<16x896xf32, #tpu.memory_space<vmem>>, vector<16x640xf32>
    %113 = vector.broadcast %1 : vector<1x640xf32> to vector<16x640xf32>
    %114 = arith.mulf %112, %113 : vector<16x640xf32>
    %115 = arith.truncf %114 : vector<16x640xf32> to vector<16x640xbf16>
    %c368 = arith.constant 368 : index
    %c0_63 = arith.constant 0 : index
    %116 = vector.load %arg7[%c368, %c0_63] : memref<512x640xbf16, #tpu.memory_space<vmem>>, vector<16x640xbf16>
    tpu.vector_store %arg7[%c368, %c0_63], %115 {strides = array<i32>} : memref<512x640xbf16, #tpu.memory_space<vmem>>, vector<16x640xbf16>,
    %c0_64 = arith.constant 0 : index
    %c215 = arith.constant 215 : index
    %117 = vector.load %arg8[%c0_64, %c215] : memref<16x896xf32, #tpu.memory_space<vmem>>, vector<16x640xf32>
    %118 = vector.broadcast %0 : vector<1x640xf32> to vector<16x640xf32>
    %119 = arith.mulf %117, %118 : vector<16x640xf32>
    %120 = arith.truncf %119 : vector<16x640xf32> to vector<16x640xbf16>
    %c384 = arith.constant 384 : index
    %c0_65 = arith.constant 0 : index
    %121 = vector.load %arg7[%c384, %c0_65] : memref<512x640xbf16, #tpu.memory_space<vmem>>, vector<16x640xbf16>
    tpu.vector_store %arg7[%c384, %c0_65], %120 {strides = array<i32>} : memref<512x640xbf16, #tpu.memory_space<vmem>>, vector<16x640xbf16>,
    %c0_66 = arith.constant 0 : index
    %c216 = arith.constant 216 : index
    %122 = vector.load %arg8[%c0_66, %c216] : memref<16x896xf32, #tpu.memory_space<vmem>>, vector<16x640xf32>
    %123 = arith.truncf %122 : vector<16x640xf32> to vector<16x640xbf16>
    %c400 = arith.constant 400 : index
    %c0_67 = arith.constant 0 : index
    %124 = vector.load %arg7[%c400, %c0_67] : memref<512x640xbf16, #tpu.memory_space<vmem>>, vector<16x640xbf16>
    tpu.vector_store %arg7[%c400, %c0_67], %123 {strides = array<i32>} : memref<512x640xbf16, #tpu.memory_space<vmem>>, vector<16x640xbf16>,
    %c0_68 = arith.constant 0 : index
    %c217 = arith.constant 217 : index
    %125 = vector.load %arg8[%c0_68, %c217] : memref<16x896xf32, #tpu.memory_space<vmem>>, vector<16x640xf32>
    %126 = vector.broadcast %1 : vector<1x640xf32> to vector<16x640xf32>
    %127 = arith.mulf %125, %126 : vector<16x640xf32>
    %128 = arith.truncf %127 : vector<16x640xf32> to vector<16x640xbf16>
    %c416 = arith.constant 416 : index
    %c0_69 = arith.constant 0 : index
    %129 = vector.load %arg7[%c416, %c0_69] : memref<512x640xbf16, #tpu.memory_space<vmem>>, vector<16x640xbf16>
    tpu.vector_store %arg7[%c416, %c0_69], %128 {strides = array<i32>} : memref<512x640xbf16, #tpu.memory_space<vmem>>, vector<16x640xbf16>,
    %c0_70 = arith.constant 0 : index
    %c0_71 = arith.constant 0 : index
    %130 = vector.load %arg3[%c0_70, %c0_71] : memref<8x512xbf16, #tpu.memory_space<vmem>>, vector<8x512xbf16>
    %c0_72 = arith.constant 0 : index
    %c0_73 = arith.constant 0 : index
    %131 = vector.load %arg7[%c0_72, %c0_73] : memref<512x640xbf16, #tpu.memory_space<vmem>>, vector<512x640xbf16>
    %cst_74 = arith.constant dense<0.000000e+00> : vector<8x640xf32>
    %132 = tpu.matmul %130, %131, %cst_74 {dimension_numbers = #tpu.dot_dimension_numbers<[1], [0], [0], [1], [0, 0, 1, 1], [], []>} : vector<8x512xbf16>, vector<512x640xbf16>, vector<8x640xf32> -> vector<8x640xf32>
    %133 = vector.broadcast %2 : vector<1x640xf32> to vector<8x640xf32>
    %134 = arith.mulf %132, %133 : vector<8x640xf32>
    %135 = arith.mulf %134, %134 : vector<8x640xf32>
    %cst_75 = arith.constant dense<0.000000e+00> : vector<8xf32>
    %136 = vector.multi_reduction <add>, %135, %cst_75 [1] : vector<8x640xf32> to vector<8xf32>
    %137 = vector.shape_cast %136 : vector<8xf32> to vector<8x1xf32>
    %c0_76 = arith.constant 0 : index
    %c0_77 = arith.constant 0 : index
    %c0_78 = arith.constant 0 : index
    %138 = vector.load %arg6[%c0_76, %c0_77, %c0_78] : memref<1x8x1xf32, #tpu.memory_space<vmem>>, vector<1x8x1xf32>
    %139 = vector.shape_cast %138 : vector<1x8x1xf32> to vector<8x1xf32>
    %140 = vector.shape_cast %137 : vector<8x1xf32> to vector<1x8x1xf32>
    tpu.vector_store %arg6[%c0_76, %c0_77, %c0_78], %140 {strides = array<i32>} : memref<1x8x1xf32, #tpu.memory_space<vmem>>, vector<1x8x1xf32>,
    %cst_79 = arith.constant 0.000000e+00 : f32
    %141 = vector.broadcast %cst_79 : f32 to vector<8x128xf32>
    %c0_80 = arith.constant 0 : index
    %c0_81 = arith.constant 0 : index
    %c0_82 = arith.constant 0 : index
    %142 = vector.load %arg5[%c0_80, %c0_81, %c0_82] : memref<1x8x896xf32, #tpu.memory_space<vmem>>, vector<1x8x128xf32>
    %143 = vector.shape_cast %142 : vector<1x8x128xf32> to vector<8x128xf32>
    %144 = vector.shape_cast %141 : vector<8x128xf32> to vector<1x8x128xf32>
    tpu.vector_store %arg5[%c0_80, %c0_81, %c0_82], %144 {strides = array<i32>} : memref<1x8x896xf32, #tpu.memory_space<vmem>>, vector<1x8x128xf32>,
    %cst_83 = arith.constant 0.000000e+00 : f32
    %145 = vector.broadcast %cst_83 : f32 to vector<8x128xf32>
    %c0_84 = arith.constant 0 : index
    %c0_85 = arith.constant 0 : index
    %c768 = arith.constant 768 : index
    %146 = vector.load %arg5[%c0_84, %c0_85, %c768] : memref<1x8x896xf32, #tpu.memory_space<vmem>>, vector<1x8x128xf32>
    %147 = vector.shape_cast %146 : vector<1x8x128xf32> to vector<8x128xf32>
    %148 = vector.shape_cast %145 : vector<8x128xf32> to vector<1x8x128xf32>
    tpu.vector_store %arg5[%c0_84, %c0_85, %c768], %148 {strides = array<i32>} : memref<1x8x896xf32, #tpu.memory_space<vmem>>, vector<1x8x128xf32>,
    %c0_86 = arith.constant 0 : index
    %c0_87 = arith.constant 0 : index
    %c128_88 = arith.constant 128 : index
    %149 = vector.load %arg5[%c0_86, %c0_87, %c128_88] : memref<1x8x896xf32, #tpu.memory_space<vmem>>, vector<1x8x640xf32>
    %150 = vector.shape_cast %149 : vector<1x8x640xf32> to vector<8x640xf32>
    %151 = vector.shape_cast %134 : vector<8x640xf32> to vector<1x8x640xf32>
    tpu.vector_store %arg5[%c0_86, %c0_87, %c128_88], %151 {strides = array<i32>} : memref<1x8x896xf32, #tpu.memory_space<vmem>>, vector<1x8x640xf32>,
    return
  }
  func.func @transform_0(%arg0: i32) -> (i32, i32) {
    %c0_i32 = arith.constant 0 : i32
    %c0_i32_0 = arith.constant 0 : i32
    %c0_i32_1 = arith.constant 0 : i32
    return %c0_i32, %c0_i32_0 : i32, i32
  }
  func.func @transform_1(%arg0: i32) -> (i32, i32) {
    %c0_i32 = arith.constant 0 : i32
    %c0_i32_0 = arith.constant 0 : i32
    %c0_i32_1 = arith.constant 0 : i32
    return %c0_i32, %c0_i32_0 : i32, i32
  }
  func.func @transform_2(%arg0: i32) -> (i32, i32) {
    %c0_i32 = arith.constant 0 : i32
    %c0_i32_0 = arith.constant 0 : i32
    %c0_i32_1 = arith.constant 0 : i32
    return %c0_i32, %c0_i32_0 : i32, i32
  }
  func.func @transform_3(%arg0: i32) -> (i32, i32, i32) {
    %c0_i32 = arith.constant 0 : i32
    %c0_i32_0 = arith.constant 0 : i32
    %c0_i32_1 = arith.constant 0 : i32
    return %arg0, %c0_i32, %c0_i32_0 : i32, i32, i32
  }
  func.func @transform_4(%arg0: i32) -> (i32, i32, i32) {
    %c0_i32 = arith.constant 0 : i32
    %c0_i32_0 = arith.constant 0 : i32
    %c0_i32_1 = arith.constant 0 : i32
    return %arg0, %c0_i32, %c0_i32_0 : i32, i32, i32
  }
  func.func @transform_5(%arg0: i32) -> (i32, i32, i32) {
    %c0_i32 = arith.constant 0 : i32
    %c0_i32_0 = arith.constant 0 : i32
    %c0_i32_1 = arith.constant 0 : i32
    return %arg0, %c0_i32, %c0_i32_0 : i32, i32, i32
  }
}

module attributes {stable_mosaic.version = 11 : i64} {
  func.func @_epilogue_kernel(%arg0: i32, %arg1: memref<8x1xf32, #tpu.memory_space<vmem>>, %arg2: memref<1x8x896xf32, #tpu.memory_space<vmem>>, %arg3: memref<1x8x896xf32, #tpu.memory_space<vmem>>, %arg4: memref<1x8x640xf32, #tpu.memory_space<vmem>>) attributes {dimension_semantics = [#tpu.dimension_semantics<parallel>], iteration_bounds = array<i64: 2>, scalar_prefetch = 0 : i64, scratch_operands = 0 : i64, tpu.core_type = #tpu.core_type<tc>, window_params = [{pipeline_mode = #tpu.pipeline_mode<synchronous>, transform_indices = @transform_0, window_bounds = array<i64: 8, 1>}, {transform_indices = @transform_1, window_bounds = array<i64: 1, 8, 896>}, {transform_indices = @transform_2, window_bounds = array<i64: 1, 8, 896>}, {transform_indices = @transform_3, window_bounds = array<i64: 1, 8, 640>}]} {
    %c0 = arith.constant 0 : index
    %c0_0 = arith.constant 0 : index
    %c128 = arith.constant 128 : index
    %0 = vector.load %arg2[%c0, %c0_0, %c128] : memref<1x8x896xf32, #tpu.memory_space<vmem>>, vector<1x8x640xf32>
    %1 = vector.shape_cast %0 : vector<1x8x640xf32> to vector<8x640xf32>
    %c0_1 = arith.constant 0 : index
    %c0_2 = arith.constant 0 : index
    %2 = vector.load %arg1[%c0_1, %c0_2] : memref<8x1xf32, #tpu.memory_space<vmem>>, vector<8x1xf32>
    %3 = vector.broadcast %2 : vector<8x1xf32> to vector<8x640xf32>
    %4 = arith.mulf %1, %3 : vector<8x640xf32>
    %c0_3 = arith.constant 0 : index
    %c0_4 = arith.constant 0 : index
    %c128_5 = arith.constant 128 : index
    %5 = vector.load %arg3[%c0_3, %c0_4, %c128_5] : memref<1x8x896xf32, #tpu.memory_space<vmem>>, vector<1x8x640xf32>
    %6 = vector.shape_cast %5 : vector<1x8x640xf32> to vector<8x640xf32>
    %7 = arith.addf %4, %6 : vector<8x640xf32>
    %cst = arith.constant 0.000000e+00 : f32
    %8 = vector.broadcast %cst : f32 to vector<8x640xf32>
    %9 = arith.maximumf %7, %8 : vector<8x640xf32>
    %c0_6 = arith.constant 0 : index
    %c0_7 = arith.constant 0 : index
    %c0_8 = arith.constant 0 : index
    %10 = vector.load %arg4[%c0_6, %c0_7, %c0_8] : memref<1x8x640xf32, #tpu.memory_space<vmem>>, vector<1x8x640xf32>
    %11 = vector.shape_cast %10 : vector<1x8x640xf32> to vector<8x640xf32>
    %12 = vector.shape_cast %9 : vector<8x640xf32> to vector<1x8x640xf32>
    tpu.vector_store %arg4[%c0_6, %c0_7, %c0_8], %12 {strides = array<i32>} : memref<1x8x640xf32, #tpu.memory_space<vmem>>, vector<1x8x640xf32>,
    return
  }
  func.func @transform_0(%arg0: i32) -> (i32, i32) {
    %c0_i32 = arith.constant 0 : i32
    %c0_i32_0 = arith.constant 0 : i32
    %c0_i32_1 = arith.constant 0 : i32
    return %c0_i32, %c0_i32_0 : i32, i32
  }
  func.func @transform_1(%arg0: i32) -> (i32, i32, i32) {
    %c0_i32 = arith.constant 0 : i32
    %c0_i32_0 = arith.constant 0 : i32
    %c0_i32_1 = arith.constant 0 : i32
    return %arg0, %c0_i32, %c0_i32_0 : i32, i32, i32
  }
  func.func @transform_2(%arg0: i32) -> (i32, i32, i32) {
    %c0_i32 = arith.constant 0 : i32
    %c0_i32_0 = arith.constant 0 : i32
    %c0_i32_1 = arith.constant 0 : i32
    return %arg0, %c0_i32, %c0_i32_0 : i32, i32, i32
  }
  func.func @transform_3(%arg0: i32) -> (i32, i32, i32) {
    %c0_i32 = arith.constant 0 : i32
    %c0_i32_0 = arith.constant 0 : i32
    %c0_i32_1 = arith.constant 0 : i32
    return %arg0, %c0_i32, %c0_i32_0 : i32, i32, i32
  }
}

</mosaic_0001>

<llo_original>
// kernel: se3_norm_res_block.5
$region0: #{se3_norm_res_block.5}
  #allocation0 [shape = 'u32[]', space=smem, size = 0x4, offset = 0x4, fixed_abs, tag = 'smem constant byte address 0x4 - core index']
  #allocation1 [shape = 'u32[72,128]{1,0:T(1,128)}', space=vmem, size = 0x9000, scoped, tag = 'internal scratch']
  %s0 = inlined_call_operand.vmem [shape: f32[8,1], index: 0, kind: input, shape index: {}]
  %s1 = inlined_call_operand.vmem [shape: f32[2,8,896], index: 1, kind: input, shape index: {}]
  %s2 = inlined_call_operand.vmem [shape: f32[2,8,896], index: 2, kind: input, shape index: {}]
  %s3 = inlined_call_operand.vmem [shape: f32[2,8,640], index: 3, kind: output, shape index: {}]
  %s4 = sld [smem:[#allocation0]]
  $region45: #{se3_norm_res_block.5} parent=0
    _
  %s6 = ssub.s32 1, %s4
  %s7 = scalar_select 0, %s6, %s4
  loop: start=0, step=1, limit=4
  $region2: #{se3_norm_res_block.5} parent=0 // loop_pre_header
    _
  $region3: #{se3_norm_res_block.5} parent=0 // loop_header
    %s9 = sphi 0, %s13
    %p10 = scmp.ge.s32.totalorder %s9, 4
    %s17 = sphi 0, %s17
    %s19 = sphi 0, %s17
    %s20 = sphi 0, %s19
    %s34 = sphi 0, %s20
    %s40 = sphi 0, %s42
    %s43 = sphi 0, %s40
    %s44 = sphi 0, %s43
    %s60 = sphi 0, %s44
    %s66 = sphi 0, %s68
    %s69 = sphi 0, %s66
    %s70 = sphi 0, %s69
    %s86 = sphi 0, %s70
    %s92 = sphi 0, %s94
    %s95 = sphi 0, %s92
    %s96 = sphi 0, %s95
    %s112 = sphi 0, %s96
  $region4: #{se3_norm_res_block.5} parent=0 // loop_header_branch
    %12 = sbr.rel (%p10) target = $region8
  $region5: #{se3_norm_res_block.5} parent=0 // loop_body
    %s14 = ssub.s32 %s9, 1
    %s15 = ssub.s32 %s9, 2
    %s16 = sadd.s32 %s9, 1
    %s18 = sadd.s32 %s17, 1
    %p21 = scmp.eq.s32.totalorder %s9, 1
    %p22 = scmp.ne.s32.totalorder %s17, %s19
    %p23 = scmp.eq.s32.totalorder %s9, 0
    %p24 = por %p22, %p23
    %p25 = scmp.ne.s32.totalorder %s17, %s19
    %p26 = scmp.eq.s32.totalorder %s14, 1
    %p27 = por %p25, %p26
    %p28 = scmp.ne.s32.totalorder %s19, %s20
    %p29 = scmp.eq.s32.totalorder %s14, 0
    %p30 = por %p28, %p29
    %p31 = scmp.ne.s32.totalorder %s19, %s20
    %p32 = scmp.eq.s32.totalorder %s15, 1
    %p33 = por %p31, %p32
    %p35 = scmp.ne.s32.totalorder %s20, %s34
    %p36 = scmp.eq.s32.totalorder %s15, 0
    %p37 = por %p35, %p36
    %s38 = ssub.s32 %s9, %s16
    %p39 = scmp.eq.s32.totalorder %s38, 0
    %s41 = sadd.s32 %s40, 1
    %s42 = scalar_select %p39, %s40, %s41
    %p45 = pneg %p39
    %p46 = scmp.eq.s32.totalorder %s9, 1
    %p47 = por %p45, %p46
    %p48 = scmp.ne.s32.totalorder %s40, %s43
    %p49 = scmp.eq.s32.totalorder %s9, 0
    %p50 = por %p48, %p49
    %p51 = scmp.ne.s32.totalorder %s40, %s43
    %p52 = scmp.eq.s32.totalorder %s14, 1
    %p53 = por %p51, %p52
    %p54 = scmp.ne.s32.totalorder %s43, %s44
    %p55 = scmp.eq.s32.totalorder %s14, 0
    %p56 = por %p54, %p55
    %p57 = scmp.ne.s32.totalorder %s43, %s44
    %p58 = scmp.eq.s32.totalorder %s15, 1
    %p59 = por %p57, %p58
    %p61 = scmp.ne.s32.totalorder %s44, %s60
    %p62 = scmp.eq.s32.totalorder %s15, 0
    %p63 = por %p61, %p62
    %s64 = ssub.s32 %s9, %s16
    %p65 = scmp.eq.s32.totalorder %s64, 0
    %s67 = sadd.s32 %s66, 1
    %s68 = scalar_select %p65, %s66, %s67
    %p71 = pneg %p65
    %p72 = scmp.eq.s32.totalorder %s9, 1
    %p73 = por %p71, %p72
    %p74 = scmp.ne.s32.totalorder %s66, %s69
    %p75 = scmp.eq.s32.totalorder %s9, 0
    %p76 = por %p74, %p75
    %p77 = scmp.ne.s32.totalorder %s66, %s69
    %p78 = scmp.eq.s32.totalorder %s14, 1
    %p79 = por %p77, %p78
    %p80 = scmp.ne.s32.totalorder %s69, %s70
    %p81 = scmp.eq.s32.totalorder %s14, 0
    %p82 = por %p80, %p81
    %p83 = scmp.ne.s32.totalorder %s69, %s70
    %p84 = scmp.eq.s32.totalorder %s15, 1
    %p85 = por %p83, %p84
    %p87 = scmp.ne.s32.totalorder %s70, %s86
    %p88 = scmp.eq.s32.totalorder %s15, 0
    %p89 = por %p87, %p88
    %s90 = ssub.s32 %s9, %s16
    %p91 = scmp.eq.s32.totalorder %s90, 0
    %s93 = sadd.s32 %s92, 1
    %s94 = scalar_select %p91, %s92, %s93
    %p97 = pneg %p91
    %p98 = scmp.eq.s32.totalorder %s9, 1
    %p99 = por %p97, %p98
    %p100 = scmp.ne.s32.totalorder %s92, %s95
    %p101 = scmp.eq.s32.totalorder %s9, 0
    %p102 = por %p100, %p101
    %p103 = scmp.ne.s32.totalorder %s92, %s95
    %p104 = scmp.eq.s32.totalorder %s14, 1
    %p105 = por %p103, %p104
    %p106 = scmp.ne.s32.totalorder %s95, %s96
    %p107 = scmp.eq.s32.totalorder %s14, 0
    %p108 = por %p106, %p107
    %p109 = scmp.ne.s32.totalorder %s95, %s96
    %p110 = scmp.eq.s32.totalorder %s15, 1
    %p111 = por %p109, %p110
    %p113 = scmp.ne.s32.totalorder %s96, %s112
    %p114 = scmp.eq.s32.totalorder %s15, 0
    %p115 = por %p113, %p114
    %p116 = scmp.le.s32.totalorder 1, %s9
    %p117 = scmp.lt.s32.totalorder %s9, 3
    %p118 = pnand %p116, %p117
    %p119 = pneg %p118
    // Predicated region
    $region9: #{se3_norm_res_block.5} parent=5 // pred_check
      _
    $region10: #{se3_norm_res_block.5} parent=5 // pred_check_branch
      %121 = sbr.rel (%p118) target = $region12
    $region11: #{se3_norm_res_block.5} parent=5 // pred_region
      %s122 = ssub.s32 %s9, 1
      // Predicated region
      $region13: #{se3_norm_res_block.5} parent=11 // pred_check
        %p123 = pneg %p30
      $region14: #{se3_norm_res_block.5} parent=11 // pred_check_branch
        %125 = sbr.rel (%p123) target = $region16
      $region15: #{se3_norm_res_block.5} parent=11 // pred_region
        _
      $region16: #{se3_norm_res_block.5} parent=11 // pred_fallthru
        _
    $region12: #{se3_norm_res_block.5} parent=5 // pred_fallthru
      _
    %p126 = scmp.lt.s32.totalorder %s9, 2
    // Predicated region
    $region17: #{se3_norm_res_block.5} parent=5 // pred_check
      %p127 = pneg %p126
    $region18: #{se3_norm_res_block.5} parent=5 // pred_check_branch
      %129 = sbr.rel (%p127) target = $region20
    $region19: #{se3_norm_res_block.5} parent=5 // pred_region
      // Predicated region
      $region21: #{se3_norm_res_block.5} parent=19 // pred_check
        %p130 = pneg %p50
      $region22: #{se3_norm_res_block.5} parent=19 // pred_check_branch
        %132 = sbr.rel (%p130) target = $region24
      $region23: #{se3_norm_res_block.5} parent=19 // pred_region
        %p133 = scmp.lt.s32.totalorder %s9, 1
        %s134 = scalar_select %p133, %s9, 1
        %s135 = smul.addr %s134, 7
        %s136 = smul.addr %s135, 8
        %s137 = scalar_lea.vmem %s1, %s136
      $region24: #{se3_norm_res_block.5} parent=19 // pred_fallthru
        _
      // Predicated region
      $region25: #{se3_norm_res_block.5} parent=19 // pred_check
        %p138 = pneg %p76
      $region26: #{se3_norm_res_block.5} parent=19 // pred_check_branch
        %140 = sbr.rel (%p138) target = $region28
      $region27: #{se3_norm_res_block.5} parent=19 // pred_region
        %p141 = scmp.lt.s32.totalorder %s9, 1
        %s142 = scalar_select %p141, %s9, 1
        %s143 = smul.addr %s142, 7
        %s144 = smul.addr %s143, 8
        %s145 = scalar_lea.vmem %s2, %s144
      $region28: #{se3_norm_res_block.5} parent=19 // pred_fallthru
        _
    $region20: #{se3_norm_res_block.5} parent=5 // pred_fallthru
      _
    %p146 = scmp.le.s32.totalorder 1, %s9
    %p147 = scmp.lt.s32.totalorder %s9, 3
    %p148 = pnand %p146, %p147
    %p149 = pneg %p148
    // Predicated region
    $region29: #{se3_norm_res_block.5} parent=5 // pred_check
      _
    $region30: #{se3_norm_res_block.5} parent=5 // pred_check_branch
      %151 = sbr.rel (%p148) target = $region32
    $region31: #{se3_norm_res_block.5} parent=5 // pred_region
      %s152 = ssub.s32 %s9, 1
      %p153 = pneg %p30
      %p154 = pneg %p27
      %p155 = scmp.lt.s32.totalorder %s14, 1
      %s156 = scalar_select %p155, %s14, 1
      %s157 = smul.addr %s156, 7
      %s158 = smul.addr %s157, 8
      %s159 = scalar_lea.vmem %s1, %s158
      %p160 = pneg %p56
      %p161 = pneg %p53
      %p162 = scmp.lt.s32.totalorder %s14, 1
      %s163 = scalar_select %p162, %s14, 1
      %s164 = smul.addr %s163, 7
      %s165 = smul.addr %s164, 8
      %s166 = scalar_lea.vmem %s2, %s165
      %p167 = pneg %p82
      %p168 = pneg %p79
      %p169 = pneg %p108
      %p170 = pneg %p105
      %p171 = scmp.lt.s32.totalorder %s14, 1
      %s172 = scalar_select %p171, %s14, 1
      %s173 = smul.addr %s172, 5
      %s174 = smul.addr %s173, 8
      %s175 = scalar_lea.vmem %s3, %s174
      %p176 = scmp.lt.s32.totalorder %s14, 1
      %s177 = scalar_select %p176, %s14, 1
      %s178 = smul.addr %s177, 7
      %s179 = smul.addr %s178, 8
      %s180 = scalar_lea.vmem %s1, %s179
      %p181 = scmp.lt.s32.totalorder %s14, 1
      %s182 = scalar_select %p181, %s14, 1
      %s183 = smul.addr %s182, 7
      %s184 = smul.addr %s183, 8
      %s185 = scalar_lea.vmem %s2, %s184
      %p186 = scmp.lt.s32.totalorder %s14, 1
      %s187 = scalar_select %p186, %s14, 1
      %s188 = smul.addr %s187, 5
      %s189 = smul.addr %s188, 8
      %s190 = scalar_lea.vmem %s3, %s189
      %v191 = vld [vmem:[%s180 + $0x8] sm:$0xff]
      %v192 = vld [vmem:[%s180 + $0x10] sm:$0xff]
      %v193 = vld [vmem:[%s180 + $0x18] sm:$0xff]
      %v194 = vld [vmem:[%s180 + $0x20] sm:$0xff]
      %v195 = vld [vmem:[%s180 + $0x28] sm:$0xff]
      %v196 = vld [vmem:[%s0] sm:$0xff]
      %198 = vset.pattern.permute.xlu0 0
      %199 = vperm.xlu0 %198, %v196
      %v200 = vpop.permute.xlu0 %199
      %v202 = vmul.f32 %v191, %v200
      %v203 = vmul.f32 %v192, %v200
      %v204 = vmul.f32 %v193, %v200
      %v205 = vmul.f32 %v194, %v200
      %v206 = vmul.f32 %v195, %v200
      %v207 = vld [vmem:[%s185 + $0x8] sm:$0xff]
      %v208 = vld [vmem:[%s185 + $0x10] sm:$0xff]
      %v209 = vld [vmem:[%s185 + $0x18] sm:$0xff]
      %v210 = vld [vmem:[%s185 + $0x20] sm:$0xff]
      %v211 = vld [vmem:[%s185 + $0x28] sm:$0xff]
      %v212 = vadd.f32 %v202, %v207
      %v213 = vadd.f32 %v203, %v208
      %v214 = vadd.f32 %v204, %v209
      %v215 = vadd.f32 %v205, %v210
      %v216 = vadd.f32 %v206, %v211
      %v217 = vmax.f32 %v212, 0.0
      %v218 = vmax.f32 %v213, 0.0
      %v219 = vmax.f32 %v214, 0.0
      %v220 = vmax.f32 %v215, 0.0
      %v221 = vmax.f32 %v216, 0.0
      %222 = vst [vmem:[%s190] sm:$0xff] %v217
      %223 = vst [vmem:[%s190 + $0x8] sm:$0xff] %v218
      %224 = vst [vmem:[%s190 + $0x10] sm:$0xff] %v219
      %225 = vst [vmem:[%s190 + $0x18] sm:$0xff] %v220
      %226 = vst [vmem:[%s190 + $0x20] sm:$0xff] %v221
      %p227 = scmp.lt.s32.totalorder %s14, 1
      %s228 = scalar_select %p227, %s14, 1
      %s229 = smul.addr %s228, 5
      %s230 = smul.addr %s229, 8
      %s231 = scalar_lea.vmem %s3, %s230
      // Predicated region
      $region33: #{se3_norm_res_block.5} parent=31 // pred_check
        %p232 = pneg %p105
      $region34: #{se3_norm_res_block.5} parent=31 // pred_check_branch
        %234 = sbr.rel (%p232) target = $region36
      $region35: #{se3_norm_res_block.5} parent=31 // pred_region
        _
      $region36: #{se3_norm_res_block.5} parent=31 // pred_fallthru
        _
    $region32: #{se3_norm_res_block.5} parent=5 // pred_fallthru
      _
    %p235 = scmp.le.s32.totalorder 2, %s9
    // Predicated region
    $region37: #{se3_norm_res_block.5} parent=5 // pred_check
      %p236 = pneg %p235
    $region38: #{se3_norm_res_block.5} parent=5 // pred_check_branch
      %238 = sbr.rel (%p236) target = $region40
    $region39: #{se3_norm_res_block.5} parent=5 // pred_region
      %s239 = ssub.s32 %s9, 2
      // Predicated region
      $region41: #{se3_norm_res_block.5} parent=39 // pred_check
        %p240 = pneg %p111
      $region42: #{se3_norm_res_block.5} parent=39 // pred_check_branch
        %242 = sbr.rel (%p240) target = $region44
      $region43: #{se3_norm_res_block.5} parent=39 // pred_region
        %p243 = scmp.lt.s32.totalorder %s15, 1
        %s244 = scalar_select %p243, %s15, 1
        %s245 = smul.addr %s244, 5
        %s246 = smul.addr %s245, 8
        %s247 = scalar_lea.vmem %s3, %s246
      $region44: #{se3_norm_res_block.5} parent=39 // pred_fallthru
        _
    $region40: #{se3_norm_res_block.5} parent=5 // pred_fallthru
      _
  $region6: #{se3_norm_res_block.5} parent=0 // loop_footer
    %s13 = sadd.s32 1, %s9
  $region7: #{se3_norm_res_block.5} parent=0 // loop_footer_branch
    %8 = sbr.rel target = $region3
  $region8: #{se3_norm_res_block.5} parent=0 // loop_exit
    _

// kernel: se3_norm_res_block.3
$region0: #{se3_norm_res_block.3}
  #allocation0 [shape = 'u32[]', space=smem, size = 0x4, offset = 0x4, fixed_abs, tag = 'smem constant byte address 0x4 - core index']
  #allocation1 [shape = 'u32[72,128]{1,0:T(1,128)}', space=vmem, size = 0x9000, scoped, tag = 'internal scratch']
  #allocation2 [shape = 'bf16[256,640]{1,0:T(8,128)(2,1)}', space=vmem, size = 0x50000, scoped, tag = 'scratch operand']
  %s0 = inlined_call_operand.vmem [shape: f32[8,1], index: 0, kind: input, shape index: {}]
  %s1 = inlined_call_operand.vmem [shape: f32[4,640], index: 1, kind: input, shape index: {}]
  %s2 = inlined_call_operand.vmem [shape: bf16[16,256], index: 2, kind: input, shape index: {}]
  %s3 = inlined_call_operand.vmem [shape: f32[2,8,896], index: 3, kind: input, shape index: {}]
  %s4 = inlined_call_operand.vmem [shape: f32[2,16,896], index: 4, kind: output, shape index: {0}]
  %s5 = inlined_call_operand.vmem [shape: f32[2,16,1], index: 5, kind: output, shape index: {1}]
  %6 = xla_tuple %s4, %s5
  %s7 = sld [smem:[#allocation0]]
  $region57: #{se3_norm_res_block.3} parent=0
    _
  %s9 = ssub.s32 1, %s7
  %s10 = scalar_select 0, %s9, %s7
  loop: start=0, step=1, limit=4
  $region2: #{se3_norm_res_block.3} parent=0 // loop_pre_header
    _
  $region3: #{se3_norm_res_block.3} parent=0 // loop_header
    %s12 = sphi 0, %s16
    %p13 = scmp.ge.s32.totalorder %s12, 4
    %s20 = sphi 0, %s20
    %s22 = sphi 0, %s20
    %s23 = sphi 0, %s22
    %s37 = sphi 0, %s23
    %s41 = sphi 0, %s41
    %s43 = sphi 0, %s41
    %s44 = sphi 0, %s43
    %s58 = sphi 0, %s44
    %s62 = sphi 0, %s62
    %s64 = sphi 0, %s62
    %s65 = sphi 0, %s64
    %s79 = sphi 0, %s65
    %s85 = sphi 0, %s87
    %s88 = sphi 0, %s85
    %s89 = sphi 0, %s88
    %s105 = sphi 0, %s89
    %s111 = sphi 0, %s113
    %s114 = sphi 0, %s111
    %s115 = sphi 0, %s114
    %s131 = sphi 0, %s115
    %s137 = sphi 0, %s139
    %s140 = sphi 0, %s137
    %s141 = sphi 0, %s140
    %s157 = sphi 0, %s141
  $region4: #{se3_norm_res_block.3} parent=0 // loop_header_branch
    %15 = sbr.rel (%p13) target = $region8
  $region5: #{se3_norm_res_block.3} parent=0 // loop_body
    %s17 = ssub.s32 %s12, 1
    %s18 = ssub.s32 %s12, 2
    %s19 = sadd.s32 %s12, 1
    %s21 = sadd.s32 %s20, 1
    %p24 = scmp.eq.s32.totalorder %s12, 1
    %p25 = scmp.ne.s32.totalorder %s20, %s22
    %p26 = scmp.eq.s32.totalorder %s12, 0
    %p27 = por %p25, %p26
    %p28 = scmp.ne.s32.totalorder %s20, %s22
    %p29 = scmp.eq.s32.totalorder %s17, 1
    %p30 = por %p28, %p29
    %p31 = scmp.ne.s32.totalorder %s22, %s23
    %p32 = scmp.eq.s32.totalorder %s17, 0
    %p33 = por %p31, %p32
    %p34 = scmp.ne.s32.totalorder %s22, %s23
    %p35 = scmp.eq.s32.totalorder %s18, 1
    %p36 = por %p34, %p35
    %p38 = scmp.ne.s32.totalorder %s23, %s37
    %p39 = scmp.eq.s32.totalorder %s18, 0
    %p40 = por %p38, %p39
    %s42 = sadd.s32 %s41, 1
    %p45 = scmp.eq.s32.totalorder %s12, 1
    %p46 = scmp.ne.s32.totalorder %s41, %s43
    %p47 = scmp.eq.s32.totalorder %s12, 0
    %p48 = por %p46, %p47
    %p49 = scmp.ne.s32.totalorder %s41, %s43
    %p50 = scmp.eq.s32.totalorder %s17, 1
    %p51 = por %p49, %p50
    %p52 = scmp.ne.s32.totalorder %s43, %s44
    %p53 = scmp.eq.s32.totalorder %s17, 0
    %p54 = por %p52, %p53
    %p55 = scmp.ne.s32.totalorder %s43, %s44
    %p56 = scmp.eq.s32.totalorder %s18, 1
    %p57 = por %p55, %p56
    %p59 = scmp.ne.s32.totalorder %s44, %s58
    %p60 = scmp.eq.s32.totalorder %s18, 0
    %p61 = por %p59, %p60
    %s63 = sadd.s32 %s62, 1
    %p66 = scmp.eq.s32.totalorder %s12, 1
    %p67 = scmp.ne.s32.totalorder %s62, %s64
    %p68 = scmp.eq.s32.totalorder %s12, 0
    %p69 = por %p67, %p68
    %p70 = scmp.ne.s32.totalorder %s62, %s64
    %p71 = scmp.eq.s32.totalorder %s17, 1
    %p72 = por %p70, %p71
    %p73 = scmp.ne.s32.totalorder %s64, %s65
    %p74 = scmp.eq.s32.totalorder %s17, 0
    %p75 = por %p73, %p74
    %p76 = scmp.ne.s32.totalorder %s64, %s65
    %p77 = scmp.eq.s32.totalorder %s18, 1
    %p78 = por %p76, %p77
    %p80 = scmp.ne.s32.totalorder %s65, %s79
    %p81 = scmp.eq.s32.totalorder %s18, 0
    %p82 = por %p80, %p81
    %s83 = ssub.s32 %s12, %s19
    %p84 = scmp.eq.s32.totalorder %s83, 0
    %s86 = sadd.s32 %s85, 1
    %s87 = scalar_select %p84, %s85, %s86
    %p90 = pneg %p84
    %p91 = scmp.eq.s32.totalorder %s12, 1
    %p92 = por %p90, %p91
    %p93 = scmp.ne.s32.totalorder %s85, %s88
    %p94 = scmp.eq.s32.totalorder %s12, 0
    %p95 = por %p93, %p94
    %p96 = scmp.ne.s32.totalorder %s85, %s88
    %p97 = scmp.eq.s32.totalorder %s17, 1
    %p98 = por %p96, %p97
    %p99 = scmp.ne.s32.totalorder %s88, %s89
    %p100 = scmp.eq.s32.totalorder %s17, 0
    %p101 = por %p99, %p100
    %p102 = scmp.ne.s32.totalorder %s88, %s89
    %p103 = scmp.eq.s32.totalorder %s18, 1
    %p104 = por %p102, %p103
    %p106 = scmp.ne.s32.totalorder %s89, %s105
    %p107 = scmp.eq.s32.totalorder %s18, 0
    %p108 = por %p106, %p107
    %s109 = ssub.s32 %s12, %s19
    %p110 = scmp.eq.s32.totalorder %s109, 0
    %s112 = sadd.s32 %s111, 1
    %s113 = scalar_select %p110, %s111, %s112
    %p116 = pneg %p110
    %p117 = scmp.eq.s32.totalorder %s12, 1
    %p118 = por %p116, %p117
    %p119 = scmp.ne.s32.totalorder %s111, %s114
    %p120 = scmp.eq.s32.totalorder %s12, 0
    %p121 = por %p119, %p120
    %p122 = scmp.ne.s32.totalorder %s111, %s114
    %p123 = scmp.eq.s32.totalorder %s17, 1
    %p124 = por %p122, %p123
    %p125 = scmp.ne.s32.totalorder %s114, %s115
    %p126 = scmp.eq.s32.totalorder %s17, 0
    %p127 = por %p125, %p126
    %p128 = scmp.ne.s32.totalorder %s114, %s115
    %p129 = scmp.eq.s32.totalorder %s18, 1
    %p130 = por %p128, %p129
    %p132 = scmp.ne.s32.totalorder %s115, %s131
    %p133 = scmp.eq.s32.totalorder %s18, 0
    %p134 = por %p132, %p133
    %s135 = ssub.s32 %s12, %s19
    %p136 = scmp.eq.s32.totalorder %s135, 0
    %s138 = sadd.s32 %s137, 1
    %s139 = scalar_select %p136, %s137, %s138
    %p142 = pneg %p136
    %p143 = scmp.eq.s32.totalorder %s12, 1
    %p144 = por %p142, %p143
    %p145 = scmp.ne.s32.totalorder %s137, %s140
    %p146 = scmp.eq.s32.totalorder %s12, 0
    %p147 = por %p145, %p146
    %p148 = scmp.ne.s32.totalorder %s137, %s140
    %p149 = scmp.eq.s32.totalorder %s17, 1
    %p150 = por %p148, %p149
    %p151 = scmp.ne.s32.totalorder %s140, %s141
    %p152 = scmp.eq.s32.totalorder %s17, 0
    %p153 = por %p151, %p152
    %p154 = scmp.ne.s32.totalorder %s140, %s141
    %p155 = scmp.eq.s32.totalorder %s18, 1
    %p156 = por %p154, %p155
    %p158 = scmp.ne.s32.totalorder %s141, %s157
    %p159 = scmp.eq.s32.totalorder %s18, 0
    %p160 = por %p158, %p159
    %p161 = scmp.le.s32.totalorder 1, %s12
    %p162 = scmp.lt.s32.totalorder %s12, 3
    %p163 = pnand %p161, %p162
    %p164 = pneg %p163
    // Predicated region
    $region9: #{se3_norm_res_block.3} parent=5 // pred_check
      _
    $region10: #{se3_norm_res_block.3} parent=5 // pred_check_branch
      %166 = sbr.rel (%p163) target = $region12
    $region11: #{se3_norm_res_block.3} parent=5 // pred_region
      %s167 = ssub.s32 %s12, 1
      // Predicated region
      $region13: #{se3_norm_res_block.3} parent=11 // pred_check
        %p168 = pneg %p33
      $region14: #{se3_norm_res_block.3} parent=11 // pred_check_branch
        %170 = sbr.rel (%p168) target = $region16
      $region15: #{se3_norm_res_block.3} parent=11 // pred_region
        _
      $region16: #{se3_norm_res_block.3} parent=11 // pred_fallthru
        _
      // Predicated region
      $region17: #{se3_norm_res_block.3} parent=11 // pred_check
        %p171 = pneg %p54
      $region18: #{se3_norm_res_block.3} parent=11 // pred_check_branch
        %173 = sbr.rel (%p171) target = $region20
      $region19: #{se3_norm_res_block.3} parent=11 // pred_region
        _
      $region20: #{se3_norm_res_block.3} parent=11 // pred_fallthru
        _
      // Predicated region
      $region21: #{se3_norm_res_block.3} parent=11 // pred_check
        %p174 = pneg %p75
      $region22: #{se3_norm_res_block.3} parent=11 // pred_check_branch
        %176 = sbr.rel (%p174) target = $region24
      $region23: #{se3_norm_res_block.3} parent=11 // pred_region
        _
      $region24: #{se3_norm_res_block.3} parent=11 // pred_fallthru
        _
    $region12: #{se3_norm_res_block.3} parent=5 // pred_fallthru
      _
    %p177 = scmp.lt.s32.totalorder %s12, 2
    // Predicated region
    $region25: #{se3_norm_res_block.3} parent=5 // pred_check
      %p178 = pneg %p177
    $region26: #{se3_norm_res_block.3} parent=5 // pred_check_branch
      %180 = sbr.rel (%p178) target = $region28
    $region27: #{se3_norm_res_block.3} parent=5 // pred_region
      // Predicated region
      $region29: #{se3_norm_res_block.3} parent=27 // pred_check
        %p181 = pneg %p95
      $region30: #{se3_norm_res_block.3} parent=27 // pred_check_branch
        %183 = sbr.rel (%p181) target = $region32
      $region31: #{se3_norm_res_block.3} parent=27 // pred_region
        %p184 = scmp.lt.s32.totalorder %s12, 1
        %s185 = scalar_select %p184, %s12, 1
        %s186 = smul.addr %s185, 7
        %s187 = smul.addr %s186, 8
        %s188 = scalar_lea.vmem %s3, %s187
      $region32: #{se3_norm_res_block.3} parent=27 // pred_fallthru
        _
    $region28: #{se3_norm_res_block.3} parent=5 // pred_fallthru
      _
    %p189 = scmp.le.s32.totalorder 1, %s12
    %p190 = scmp.lt.s32.totalorder %s12, 3
    %p191 = pnand %p189, %p190
    %p192 = pneg %p191
    // Predicated region
    $region33: #{se3_norm_res_block.3} parent=5 // pred_check
      _
    $region34: #{se3_norm_res_block.3} parent=5 // pred_check_branch
      %194 = sbr.rel (%p191) target = $region36
    $region35: #{se3_norm_res_block.3} parent=5 // pred_region
      %s195 = ssub.s32 %s12, 1
      %p196 = pneg %p33
      %p197 = pneg %p30
      %p198 = pneg %p54
      %p199 = pneg %p51
      %p200 = pneg %p75
      %p201 = pneg %p72
      %p202 = scmp.lt.s32.totalorder %s17, 1
      %s203 = scalar_select %p202, %s17, 1
      %s204 = smul.addr %s203, 7
      %s205 = smul.addr %s204, 8
      %s206 = scalar_lea.vmem %s3, %s205
      %p207 = pneg %p101
      %p208 = pneg %p98
      %p209 = pneg %p127
      %p210 = pneg %p124
      %p211 = scmp.lt.s32.totalorder %s17, 1
      %s212 = scalar_select %p211, %s17, 1
      %s213 = smul.addr %s212, 14
      %s214 = smul.addr %s213, 8
      %s215 = scalar_lea.vmem %s4, %s214
      %p216 = pneg %p153
      %p217 = pneg %p150
      %p218 = scmp.lt.s32.totalorder %s17, 1
      %s219 = scalar_select %p218, %s17, 1
      %s220 = smul.addr %s219, 2
      %s221 = smul.addr %s220, 8
      %s222 = scalar_lea.vmem %s5, %s221
      %p223 = scmp.lt.s32.totalorder %s17, 1
      %s224 = scalar_select %p223, %s17, 1
      %s225 = smul.addr %s224, 7
      %s226 = smul.addr %s225, 8
      %s227 = scalar_lea.vmem %s3, %s226
      %p228 = scmp.lt.s32.totalorder %s17, 1
      %s229 = scalar_select %p228, %s17, 1
      %s230 = smul.addr %s229, 14
      %s231 = smul.addr %s230, 8
      %s232 = scalar_lea.vmem %s4, %s231
      %p233 = scmp.lt.s32.totalorder %s17, 1
      %s234 = scalar_select %p233, %s17, 1
      %s235 = smul.addr %s234, 2
      %s236 = smul.addr %s235, 8
      %s237 = scalar_lea.vmem %s5, %s236
      %v239 = vld [vmem:[%s1] ss:$4 sm:$0x1f]
      %s240 = scalar_lea.vmem %s1, 2
      %v241 = vld [vmem:[%s240] ss:$4 sm:$0x1f]
      %s242 = scalar_lea.vmem %s1, 3
      %v243 = vld [vmem:[%s242] ss:$4 sm:$0x1f]
      %244 = vst [vmem:[#allocation2 + $0x21c] sm:$0xff] 0
      %245 = vst [vmem:[#allocation2 + $0x224] sm:$0xff] 0
      %246 = vst [vmem:[#allocation2 + $0x22c] sm:$0xf] 0
      %247 = vst [vmem:[#allocation2 + $0x230] sm:$0xff] 0
      %248 = vst [vmem:[#allocation2 + $0x238] sm:$0xff] 0
      %249 = vst [vmem:[#allocation2 + $0x240] sm:$0xf] 0
      %250 = vst [vmem:[#allocation2 + $0x244] sm:$0xff] 0
      %251 = vst [vmem:[#allocation2 + $0x24c] sm:$0xff] 0
      %252 = vst [vmem:[#allocation2 + $0x254] sm:$0xf] 0
      %253 = vst [vmem:[#allocation2 + $0x258] sm:$0xff] 0
      %254 = vst [vmem:[#allocation2 + $0x260] sm:$0xff] 0
      %255 = vst [vmem:[#allocation2 + $0x268] sm:$0xf] 0
      %256 = vst [vmem:[#allocation2 + $0x26c] sm:$0xff] 0
      %257 = vst [vmem:[#allocation2 + $0x274] sm:$0xff] 0
      %258 = vst [vmem:[#allocation2 + $0x27c] sm:$0xf] 0
      %v259 = vld [vmem:[%s227] sm:$0xff]
      %v260 = vld [vmem:[%s227 + $0x8] sm:$0xff]
      %v261 = vld [vmem:[%s227 + $0x10] sm:$0xff]
      %v262 = vld [vmem:[%s227 + $0x18] sm:$0xff]
      %v263 = vld [vmem:[%s227 + $0x20] sm:$0xff]
      %v264 = vld [vmem:[%s227 + $0x28] sm:$0xff]
      %v266 = vperm.slane %v239, 0
      %v267 = vperm.slane %v239, 1
      %v268 = vperm.slane %v239, 2
      %v269 = vperm.slane %v239, 3
      %v270 = vperm.slane %v239, 4
      %271 = vrot.lane.b32.xlu0 %v266, 39
      %v272 = vpop.permute.xlu0 %271
      %273 = vrot.lane.b32.xlu0 %v267, 39
      %v274 = vpop.permute.xlu0 %273
      %275 = vrot.lane.b32.xlu0 %v268, 39
      %v276 = vpop.permute.xlu0 %275
      %277 = vrot.lane.b32.xlu0 %v269, 39
      %v278 = vpop.permute.xlu0 %277
      %279 = vrot.lane.b32.xlu0 %v270, 39
      %v280 = vpop.permute.xlu0 %279
      %vm281 = vcmask 318464
      %v282 = vsel %vm281, %v272, %v274
      %v283 = vsel %vm281, %v274, %v276
      %v284 = vsel %vm281, %v276, %v278
      %v285 = vsel %vm281, %v278, %v280
      %v292 = vmul.f32 %v259, %v272
      %v293 = vmul.f32 %v260, %v282
      %v294 = vmul.f32 %v261, %v283
      %v295 = vmul.f32 %v262, %v284
      %v296 = vmul.f32 %v263, %v285
      %v297 = vmul.f32 %v264, %v280
      %v298 = vpack.c.bf16 %v293, %v292
      %v299 = vpack.c.bf16 %v295, %v294
      %v300 = vpack.c.bf16 %v297, %v296
      %304 = vrot.lane.b32.xlu0 %v298, 89
      %v305 = vpop.permute.xlu0 %304
      %306 = vrot.lane.b32.xlu0 %v299, 89
      %v307 = vpop.permute.xlu0 %306
      %308 = vrot.lane.b32.xlu0 %v300, 89
      %v309 = vpop.permute.xlu0 %308
      %v310 = vrot.slane %v305, 4
      %v311 = vrot.slane %v307, 4
      %v312 = vrot.slane %v309, 4
      %vm313 = vcmask 1043456
      %v314 = vsel %vm313, %v310, %v311
      %vm315 = vcmask 728064
      %v316 = vsel %vm315, %v305, %v314
      %v317 = vsel %vm313, %v311, %v312
      %v318 = vsel %vm315, %v307, %v317
      %v319 = vsel %vm315, %v309, %v312
      %323 = vst [vmem:[#allocation2] sm:$0xff] %v316
      %324 = vst [vmem:[#allocation2 + $0x8] sm:$0xff] %v318
      %325 = vst [vmem:[#allocation2 + $0x10] sm:$0xf] %v319
      %v326 = vld [vmem:[%s227] sm:$0xff]
      %v327 = vld [vmem:[%s227 + $0x8] sm:$0xff]
      %v328 = vld [vmem:[%s227 + $0x10] sm:$0xff]
      %v329 = vld [vmem:[%s227 + $0x18] sm:$0xff]
      %v330 = vld [vmem:[%s227 + $0x20] sm:$0xff]
      %v331 = vld [vmem:[%s227 + $0x28] sm:$0xff]
      %v332 = vpack.c.bf16 %v327, %v326
      %v333 = vpack.c.bf16 %v329, %v328
      %v334 = vpack.c.bf16 %v331, %v330
      %338 = vrot.lane.b32.xlu0 %v332, 88
      %v339 = vpop.permute.xlu0 %338
      %340 = vrot.lane.b32.xlu0 %v333, 88
      %v341 = vpop.permute.xlu0 %340
      %342 = vrot.lane.b32.xlu0 %v334, 88
      %v343 = vpop.permute.xlu0 %342
      %v344 = vrot.slane %v339, 4
      %v345 = vrot.slane %v341, 4
      %v346 = vrot.slane %v343, 4
      %v347 = vsel %vm313, %v344, %v345
      %vm348 = vcmask 719872
      %v349 = vsel %vm348, %v339, %v347
      %v350 = vsel %vm313, %v345, %v346
      %v351 = vsel %vm348, %v341, %v350
      %v352 = vsel %vm348, %v343, %v346
      %356 = vst [vmem:[#allocation2 + $0x14] sm:$0xff] %v349
      %357 = vst [vmem:[#allocation2 + $0x1c] sm:$0xff] %v351
      %358 = vst [vmem:[#allocation2 + $0x24] sm:$0xf] %v352
      %v359 = vld [vmem:[%s227] sm:$0xff]
      %v360 = vld [vmem:[%s227 + $0x8] sm:$0xff]
      %v361 = vld [vmem:[%s227 + $0x10] sm:$0xff]
      %v362 = vld [vmem:[%s227 + $0x18] sm:$0xff]
      %v363 = vld [vmem:[%s227 + $0x20] sm:$0xff]
      %v364 = vld [vmem:[%s227 + $0x28] sm:$0xff]
      %v366 = vperm.slane %v241, 0
      %v367 = vperm.slane %v241, 1
      %v368 = vperm.slane %v241, 2
      %v369 = vperm.slane %v241, 3
      %v370 = vperm.slane %v241, 4
      %371 = vrot.lane.b32.xlu0 %v366, 41
      %v372 = vpop.permute.xlu0 %371
      %373 = vrot.lane.b32.xlu0 %v367, 41
      %v374 = vpop.permute.xlu0 %373
      %375 = vrot.lane.b32.xlu0 %v368, 41
      %v376 = vpop.permute.xlu0 %375
      %377 = vrot.lane.b32.xlu0 %v369, 41
      %v378 = vpop.permute.xlu0 %377
      %379 = vrot.lane.b32.xlu0 %v370, 41
      %v380 = vpop.permute.xlu0 %379
      %vm381 = vcmask 334848
      %v382 = vsel %vm381, %v372, %v374
      %v383 = vsel %vm381, %v374, %v376
      %v384 = vsel %vm381, %v376, %v378
      %v385 = vsel %vm381, %v378, %v380
      %v392 = vmul.f32 %v359, %v372
      %v393 = vmul.f32 %v360, %v382
      %v394 = vmul.f32 %v361, %v383
      %v395 = vmul.f32 %v362, %v384
      %v396 = vmul.f32 %v363, %v385
      %v397 = vmul.f32 %v364, %v380
      %v398 = vpack.c.bf16 %v393, %v392
      %v399 = vpack.c.bf16 %v395, %v394
      %v400 = vpack.c.bf16 %v397, %v396
      %404 = vrot.lane.b32.xlu0 %v398, 87
      %v405 = vpop.permute.xlu0 %404
      %406 = vrot.lane.b32.xlu0 %v399, 87
      %v407 = vpop.permute.xlu0 %406
      %408 = vrot.lane.b32.xlu0 %v400, 87
      %v409 = vpop.permute.xlu0 %408
      %v410 = vrot.slane %v405, 4
      %v411 = vrot.slane %v407, 4
      %v412 = vrot.slane %v409, 4
      %v413 = vsel %vm313, %v410, %v411
      %vm414 = vcmask 711680
      %v415 = vsel %vm414, %v405, %v413
      %v416 = vsel %vm313, %v411, %v412
      %v417 = vsel %vm414, %v407, %v416
      %v418 = vsel %vm414, %v409, %v412
      %422 = vst [vmem:[#allocation2 + $0x28] sm:$0xff] %v415
      %423 = vst [vmem:[#allocation2 + $0x30] sm:$0xff] %v417
      %424 = vst [vmem:[#allocation2 + $0x38] sm:$0xf] %v418
      %v425 = vld [vmem:[%s227] sm:$0xff]
      %v426 = vld [vmem:[%s227 + $0x8] sm:$0xff]
      %v427 = vld [vmem:[%s227 + $0x10] sm:$0xff]
      %v428 = vld [vmem:[%s227 + $0x18] sm:$0xff]
      %v429 = vld [vmem:[%s227 + $0x20] sm:$0xff]
      %v430 = vld [vmem:[%s227 + $0x28] sm:$0xff]
      %431 = vrot.lane.b32.xlu0 %v266, 47
      %v432 = vpop.permute.xlu0 %431
      %433 = vrot.lane.b32.xlu0 %v267, 47
      %v434 = vpop.permute.xlu0 %433
      %435 = vrot.lane.b32.xlu0 %v268, 47
      %v436 = vpop.permute.xlu0 %435
      %437 = vrot.lane.b32.xlu0 %v269, 47
      %v438 = vpop.permute.xlu0 %437
      %439 = vrot.lane.b32.xlu0 %v270, 47
      %v440 = vpop.permute.xlu0 %439
      %vm441 = vcmask 384000
      %v442 = vsel %vm441, %v432, %v434
      %v443 = vsel %vm441, %v434, %v436
      %v444 = vsel %vm441, %v436, %v438
      %v445 = vsel %vm441, %v438, %v440
      %v452 = vmul.f32 %v425, %v432
      %v453 = vmul.f32 %v426, %v442
      %v454 = vmul.f32 %v427, %v443
      %v455 = vmul.f32 %v428, %v444
      %v456 = vmul.f32 %v429, %v445
      %v457 = vmul.f32 %v430, %v440
      %v458 = vpack.c.bf16 %v453, %v452
      %v459 = vpack.c.bf16 %v455, %v454
      %v460 = vpack.c.bf16 %v457, %v456
      %464 = vrot.lane.b32.xlu0 %v458, 81
      %v465 = vpop.permute.xlu0 %464
      %466 = vrot.lane.b32.xlu0 %v459, 81
      %v467 = vpop.permute.xlu0 %466
      %468 = vrot.lane.b32.xlu0 %v460, 81
      %v469 = vpop.permute.xlu0 %468
      %v470 = vrot.slane %v465, 4
      %v471 = vrot.slane %v467, 4
      %v472 = vrot.slane %v469, 4
      %v473 = vsel %vm313, %v470, %v471
      %vm474 = vcmask 662528
      %v475 = vsel %vm474, %v465, %v473
      %v476 = vsel %vm313, %v471, %v472
      %v477 = vsel %vm474, %v467, %v476
      %v478 = vsel %vm474, %v469, %v472
      %482 = vst [vmem:[#allocation2 + $0x3c] sm:$0xff] %v475
      %483 = vst [vmem:[#allocation2 + $0x44] sm:$0xff] %v477
      %484 = vst [vmem:[#allocation2 + $0x4c] sm:$0xf] %v478
      %v485 = vld [vmem:[%s227] sm:$0xff]
      %v486 = vld [vmem:[%s227 + $0x8] sm:$0xff]
      %v487 = vld [vmem:[%s227 + $0x10] sm:$0xff]
      %v488 = vld [vmem:[%s227 + $0x18] sm:$0xff]
      %v489 = vld [vmem:[%s227 + $0x20] sm:$0xff]
      %v490 = vld [vmem:[%s227 + $0x28] sm:$0xff]
      %v491 = vpack.c.bf16 %v486, %v485
      %v492 = vpack.c.bf16 %v488, %v487
      %v493 = vpack.c.bf16 %v490, %v489
      %497 = vrot.lane.b32.xlu0 %v491, 80
      %v498 = vpop.permute.xlu0 %497
      %499 = vrot.lane.b32.xlu0 %v492, 80
      %v500 = vpop.permute.xlu0 %499
      %501 = vrot.lane.b32.xlu0 %v493, 80
      %v502 = vpop.permute.xlu0 %501
      %v503 = vrot.slane %v498, 4
      %v504 = vrot.slane %v500, 4
      %v505 = vrot.slane %v502, 4
      %v506 = vsel %vm313, %v503, %v504
      %vm507 = vcmask 654336
      %v508 = vsel %vm507, %v498, %v506
      %v509 = vsel %vm313, %v504, %v505
      %v510 = vsel %vm507, %v500, %v509
      %v511 = vsel %vm507, %v502, %v505
      %515 = vst [vmem:[#allocation2 + $0x50] sm:$0xff] %v508
      %516 = vst [vmem:[#allocation2 + $0x58] sm:$0xff] %v510
      %517 = vst [vmem:[#allocation2 + $0x60] sm:$0xf] %v511
      %v518 = vld [vmem:[%s227] sm:$0xff]
      %v519 = vld [vmem:[%s227 + $0x8] sm:$0xff]
      %v520 = vld [vmem:[%s227 + $0x10] sm:$0xff]
      %v521 = vld [vmem:[%s227 + $0x18] sm:$0xff]
      %v522 = vld [vmem:[%s227 + $0x20] sm:$0xff]
      %v523 = vld [vmem:[%s227 + $0x28] sm:$0xff]
      %524 = vrot.lane.b32.xlu0 %v366, 49
      %v525 = vpop.permute.xlu0 %524
      %526 = vrot.lane.b32.xlu0 %v367, 49
      %v527 = vpop.permute.xlu0 %526
      %528 = vrot.lane.b32.xlu0 %v368, 49
      %v529 = vpop.permute.xlu0 %528
      %530 = vrot.lane.b32.xlu0 %v369, 49
      %v531 = vpop.permute.xlu0 %530
      %532 = vrot.lane.b32.xlu0 %v370, 49
      %v533 = vpop.permute.xlu0 %532
      %vm534 = vcmask 400384
      %v535 = vsel %vm534, %v525, %v527
      %v536 = vsel %vm534, %v527, %v529
      %v537 = vsel %vm534, %v529, %v531
      %v538 = vsel %vm534, %v531, %v533
      %v545 = vmul.f32 %v518, %v525
      %v546 = vmul.f32 %v519, %v535
      %v547 = vmul.f32 %v520, %v536
      %v548 = vmul.f32 %v521, %v537
      %v549 = vmul.f32 %v522, %v538
      %v550 = vmul.f32 %v523, %v533
      %v551 = vpack.c.bf16 %v546, %v545
      %v552 = vpack.c.bf16 %v548, %v547
      %v553 = vpack.c.bf16 %v550, %v549
      %557 = vrot.lane.b32.xlu0 %v551, 79
      %v558 = vpop.permute.xlu0 %557
      %559 = vrot.lane.b32.xlu0 %v552, 79
      %v560 = vpop.permute.xlu0 %559
      %561 = vrot.lane.b32.xlu0 %v553, 79
      %v562 = vpop.permute.xlu0 %561
      %v563 = vrot.slane %v558, 4
      %v564 = vrot.slane %v560, 4
      %v565 = vrot.slane %v562, 4
      %v566 = vsel %vm313, %v563, %v564
      %vm567 = vcmask 646144
      %v568 = vsel %vm567, %v558, %v566
      %v569 = vsel %vm313, %v564, %v565
      %v570 = vsel %vm567, %v560, %v569
      %v571 = vsel %vm567, %v562, %v565
      %575 = vst [vmem:[#allocation2 + $0x64] sm:$0xff] %v568
      %576 = vst [vmem:[#allocation2 + $0x6c] sm:$0xff] %v570
      %577 = vst [vmem:[#allocation2 + $0x74] sm:$0xf] %v571
      %v578 = vld [vmem:[%s227] sm:$0xff]
      %v579 = vld [vmem:[%s227 + $0x8] sm:$0xff]
      %v580 = vld [vmem:[%s227 + $0x10] sm:$0xff]
      %v581 = vld [vmem:[%s227 + $0x18] sm:$0xff]
      %v582 = vld [vmem:[%s227 + $0x20] sm:$0xff]
      %v583 = vld [vmem:[%s227 + $0x28] sm:$0xff]
      %584 = vrot.lane.b32.xlu0 %v266, 55
      %v585 = vpop.permute.xlu0 %584
      %586 = vrot.lane.b32.xlu0 %v267, 55
      %v587 = vpop.permute.xlu0 %586
      %588 = vrot.lane.b32.xlu0 %v268, 55
      %v589 = vpop.permute.xlu0 %588
      %590 = vrot.lane.b32.xlu0 %v269, 55
      %v591 = vpop.permute.xlu0 %590
      %592 = vrot.lane.b32.xlu0 %v270, 55
      %v593 = vpop.permute.xlu0 %592
      %vm594 = vcmask 449536
      %v595 = vsel %vm594, %v585, %v587
      %v596 = vsel %vm594, %v587, %v589
      %v597 = vsel %vm594, %v589, %v591
      %v598 = vsel %vm594, %v591, %v593
      %v605 = vmul.f32 %v578, %v585
      %v606 = vmul.f32 %v579, %v595
      %v607 = vmul.f32 %v580, %v596
      %v608 = vmul.f32 %v581, %v597
      %v609 = vmul.f32 %v582, %v598
      %v610 = vmul.f32 %v583, %v593
      %v611 = vpack.c.bf16 %v606, %v605
      %v612 = vpack.c.bf16 %v608, %v607
      %v613 = vpack.c.bf16 %v610, %v609
      %617 = vrot.lane.b32.xlu0 %v611, 73
      %v618 = vpop.permute.xlu0 %617
      %619 = vrot.lane.b32.xlu0 %v612, 73
      %v620 = vpop.permute.xlu0 %619
      %621 = vrot.lane.b32.xlu0 %v613, 73
      %v622 = vpop.permute.xlu0 %621
      %v623 = vrot.slane %v618, 4
      %v624 = vrot.slane %v620, 4
      %v625 = vrot.slane %v622, 4
      %v626 = vsel %vm313, %v623, %v624
      %vm627 = vcmask 596992
      %v628 = vsel %vm627, %v618, %v626
      %v629 = vsel %vm313, %v624, %v625
      %v630 = vsel %vm627, %v620, %v629
      %v631 = vsel %vm627, %v622, %v625
      %635 = vst [vmem:[#allocation2 + $0x78] sm:$0xff] %v628
      %636 = vst [vmem:[#allocation2 + $0x80] sm:$0xff] %v630
      %637 = vst [vmem:[#allocation2 + $0x88] sm:$0xf] %v631
      %v638 = vld [vmem:[%s227] sm:$0xff]
      %v639 = vld [vmem:[%s227 + $0x8] sm:$0xff]
      %v640 = vld [vmem:[%s227 + $0x10] sm:$0xff]
      %v641 = vld [vmem:[%s227 + $0x18] sm:$0xff]
      %v642 = vld [vmem:[%s227 + $0x20] sm:$0xff]
      %v643 = vld [vmem:[%s227 + $0x28] sm:$0xff]
      %v644 = vpack.c.bf16 %v639, %v638
      %v645 = vpack.c.bf16 %v641, %v640
      %v646 = vpack.c.bf16 %v643, %v642
      %650 = vrot.lane.b32.xlu0 %v644, 72
      %v651 = vpop.permute.xlu0 %650
      %652 = vrot.lane.b32.xlu0 %v645, 72
      %v653 = vpop.permute.xlu0 %652
      %654 = vrot.lane.b32.xlu0 %v646, 72
      %v655 = vpop.permute.xlu0 %654
      %v656 = vrot.slane %v651, 4
      %v657 = vrot.slane %v653, 4
      %v658 = vrot.slane %v655, 4
      %v659 = vsel %vm313, %v656, %v657
      %vm660 = vcmask 588800
      %v661 = vsel %vm660, %v651, %v659
      %v662 = vsel %vm313, %v657, %v658
      %v663 = vsel %vm660, %v653, %v662
      %v664 = vsel %vm660, %v655, %v658
      %668 = vst [vmem:[#allocation2 + $0x8c] sm:$0xff] %v661
      %669 = vst [vmem:[#allocation2 + $0x94] sm:$0xff] %v663
      %670 = vst [vmem:[#allocation2 + $0x9c] sm:$0xf] %v664
      %v671 = vld [vmem:[%s227] sm:$0xff]
      %v672 = vld [vmem:[%s227 + $0x8] sm:$0xff]
      %v673 = vld [vmem:[%s227 + $0x10] sm:$0xff]
      %v674 = vld [vmem:[%s227 + $0x18] sm:$0xff]
      %v675 = vld [vmem:[%s227 + $0x20] sm:$0xff]
      %v676 = vld [vmem:[%s227 + $0x28] sm:$0xff]
      %677 = vrot.lane.b32.xlu0 %v366, 57
      %v678 = vpop.permute.xlu0 %677
      %679 = vrot.lane.b32.xlu0 %v367, 57
      %v680 = vpop.permute.xlu0 %679
      %681 = vrot.lane.b32.xlu0 %v368, 57
      %v682 = vpop.permute.xlu0 %681
      %683 = vrot.lane.b32.xlu0 %v369, 57
      %v684 = vpop.permute.xlu0 %683
      %685 = vrot.lane.b32.xlu0 %v370, 57
      %v686 = vpop.permute.xlu0 %685
      %vm687 = vcmask 465920
      %v688 = vsel %vm687, %v678, %v680
      %v689 = vsel %vm687, %v680, %v682
      %v690 = vsel %vm687, %v682, %v684
      %v691 = vsel %vm687, %v684, %v686
      %v698 = vmul.f32 %v671, %v678
      %v699 = vmul.f32 %v672, %v688
      %v700 = vmul.f32 %v673, %v689
      %v701 = vmul.f32 %v674, %v690
      %v702 = vmul.f32 %v675, %v691
      %v703 = vmul.f32 %v676, %v686
      %v704 = vpack.c.bf16 %v699, %v698
      %v705 = vpack.c.bf16 %v701, %v700
      %v706 = vpack.c.bf16 %v703, %v702
      %710 = vrot.lane.b32.xlu0 %v704, 71
      %v711 = vpop.permute.xlu0 %710
      %712 = vrot.lane.b32.xlu0 %v705, 71
      %v713 = vpop.permute.xlu0 %712
      %714 = vrot.lane.b32.xlu0 %v706, 71
      %v715 = vpop.permute.xlu0 %714
      %v716 = vrot.slane %v711, 4
      %v717 = vrot.slane %v713, 4
      %v718 = vrot.slane %v715, 4
      %v719 = vsel %vm313, %v716, %v717
      %vm720 = vcmask 580608
      %v721 = vsel %vm720, %v711, %v719
      %v722 = vsel %vm313, %v717, %v718
      %v723 = vsel %vm720, %v713, %v722
      %v724 = vsel %vm720, %v715, %v718
      %728 = vst [vmem:[#allocation2 + $0xa0] sm:$0xff] %v721
      %729 = vst [vmem:[#allocation2 + $0xa8] sm:$0xff] %v723
      %730 = vst [vmem:[#allocation2 + $0xb0] sm:$0xf] %v724
      %v731 = vld [vmem:[%s227] sm:$0xff]
      %v732 = vld [vmem:[%s227 + $0x8] sm:$0xff]
      %v733 = vld [vmem:[%s227 + $0x10] sm:$0xff]
      %v734 = vld [vmem:[%s227 + $0x18] sm:$0xff]
      %v735 = vld [vmem:[%s227 + $0x20] sm:$0xff]
      %v736 = vld [vmem:[%s227 + $0x28] sm:$0xff]
      %737 = vrot.lane.b32.xlu0 %v266, 119
      %v738 = vpop.permute.xlu0 %737
      %739 = vrot.lane.b32.xlu0 %v267, 119
      %v740 = vpop.permute.xlu0 %739
      %741 = vrot.lane.b32.xlu0 %v268, 119
      %v742 = vpop.permute.xlu0 %741
      %743 = vrot.lane.b32.xlu0 %v269, 119
      %v744 = vpop.permute.xlu0 %743
      %745 = vrot.lane.b32.xlu0 %v270, 119
      %v746 = vpop.permute.xlu0 %745
      %vm747 = vcmask 973824
      %v748 = vsel %vm747, %v738, %v740
      %v749 = vsel %vm747, %v740, %v742
      %v750 = vsel %vm747, %v742, %v744
      %v751 = vsel %vm747, %v744, %v746
      %v758 = vmul.f32 %v731, %v738
      %v759 = vmul.f32 %v732, %v748
      %v760 = vmul.f32 %v733, %v749
      %v761 = vmul.f32 %v734, %v750
      %v762 = vmul.f32 %v735, %v751
      %v763 = vmul.f32 %v736, %v746
      %v764 = vpack.c.bf16 %v759, %v758
      %v765 = vpack.c.bf16 %v761, %v760
      %v766 = vpack.c.bf16 %v763, %v762
      %770 = vrot.lane.b32.xlu0 %v764, 9
      %v771 = vpop.permute.xlu0 %770
      %772 = vrot.lane.b32.xlu0 %v765, 9
      %v773 = vpop.permute.xlu0 %772
      %774 = vrot.lane.b32.xlu0 %v766, 9
      %v775 = vpop.permute.xlu0 %774
      %v776 = vrot.slane %v771, 4
      %v777 = vrot.slane %v773, 4
      %v778 = vrot.slane %v775, 4
      %v779 = vsel %vm313, %v776, %v777
      %vm780 = vcmask 72704
      %v781 = vsel %vm780, %v771, %v779
      %v782 = vsel %vm313, %v777, %v778
      %v783 = vsel %vm780, %v773, %v782
      %v784 = vsel %vm780, %v775, %v778
      %788 = vst [vmem:[#allocation2 + $0xb4] sm:$0xff] %v781
      %789 = vst [vmem:[#allocation2 + $0xbc] sm:$0xff] %v783
      %790 = vst [vmem:[#allocation2 + $0xc4] sm:$0xf] %v784
      %v791 = vld [vmem:[%s227] sm:$0xff]
      %v792 = vld [vmem:[%s227 + $0x8] sm:$0xff]
      %v793 = vld [vmem:[%s227 + $0x10] sm:$0xff]
      %v794 = vld [vmem:[%s227 + $0x18] sm:$0xff]
      %v795 = vld [vmem:[%s227 + $0x20] sm:$0xff]
      %v796 = vld [vmem:[%s227 + $0x28] sm:$0xff]
      %v797 = vpack.c.bf16 %v792, %v791
      %v798 = vpack.c.bf16 %v794, %v793
      %v799 = vpack.c.bf16 %v796, %v795
      %803 = vrot.lane.b32.xlu0 %v797, 8
      %v804 = vpop.permute.xlu0 %803
      %805 = vrot.lane.b32.xlu0 %v798, 8
      %v806 = vpop.permute.xlu0 %805
      %807 = vrot.lane.b32.xlu0 %v799, 8
      %v808 = vpop.permute.xlu0 %807
      %v809 = vrot.slane %v804, 4
      %v810 = vrot.slane %v806, 4
      %v811 = vrot.slane %v808, 4
      %v812 = vsel %vm313, %v809, %v810
      %vm813 = vcmask 64512
      %v814 = vsel %vm813, %v804, %v812
      %v815 = vsel %vm313, %v810, %v811
      %v816 = vsel %vm813, %v806, %v815
      %v817 = vsel %vm813, %v808, %v811
      %821 = vst [vmem:[#allocation2 + $0xc8] sm:$0xff] %v814
      %822 = vst [vmem:[#allocation2 + $0xd0] sm:$0xff] %v816
      %823 = vst [vmem:[#allocation2 + $0xd8] sm:$0xf] %v817
      %v824 = vld [vmem:[%s227] sm:$0xff]
      %v825 = vld [vmem:[%s227 + $0x8] sm:$0xff]
      %v826 = vld [vmem:[%s227 + $0x10] sm:$0xff]
      %v827 = vld [vmem:[%s227 + $0x18] sm:$0xff]
      %v828 = vld [vmem:[%s227 + $0x20] sm:$0xff]
      %v829 = vld [vmem:[%s227 + $0x28] sm:$0xff]
      %830 = vrot.lane.b32.xlu0 %v366, 121
      %v831 = vpop.permute.xlu0 %830
      %832 = vrot.lane.b32.xlu0 %v367, 121
      %v833 = vpop.permute.xlu0 %832
      %834 = vrot.lane.b32.xlu0 %v368, 121
      %v835 = vpop.permute.xlu0 %834
      %836 = vrot.lane.b32.xlu0 %v369, 121
      %v837 = vpop.permute.xlu0 %836
      %838 = vrot.lane.b32.xlu0 %v370, 121
      %v839 = vpop.permute.xlu0 %838
      %vm840 = vcmask 990208
      %v841 = vsel %vm840, %v831, %v833
      %v842 = vsel %vm840, %v833, %v835
      %v843 = vsel %vm840, %v835, %v837
      %v844 = vsel %vm840, %v837, %v839
      %v851 = vmul.f32 %v824, %v831
      %v852 = vmul.f32 %v825, %v841
      %v853 = vmul.f32 %v826, %v842
      %v854 = vmul.f32 %v827, %v843
      %v855 = vmul.f32 %v828, %v844
      %v856 = vmul.f32 %v829, %v839
      %v857 = vpack.c.bf16 %v852, %v851
      %v858 = vpack.c.bf16 %v854, %v853
      %v859 = vpack.c.bf16 %v856, %v855
      %863 = vrot.lane.b32.xlu0 %v857, 7
      %v864 = vpop.permute.xlu0 %863
      %865 = vrot.lane.b32.xlu0 %v858, 7
      %v866 = vpop.permute.xlu0 %865
      %867 = vrot.lane.b32.xlu0 %v859, 7
      %v868 = vpop.permute.xlu0 %867
      %v869 = vrot.slane %v864, 4
      %v870 = vrot.slane %v866, 4
      %v871 = vrot.slane %v868, 4
      %v872 = vsel %vm313, %v869, %v870
      %vm873 = vcmask 56320
      %v874 = vsel %vm873, %v864, %v872
      %v875 = vsel %vm313, %v870, %v871
      %v876 = vsel %vm873, %v866, %v875
      %v877 = vsel %vm873, %v868, %v871
      %881 = vst [vmem:[#allocation2 + $0xdc] sm:$0xff] %v874
      %882 = vst [vmem:[#allocation2 + $0xe4] sm:$0xff] %v876
      %883 = vst [vmem:[#allocation2 + $0xec] sm:$0xf] %v877
      %v884 = vld [vmem:[%s227] sm:$0xff]
      %v885 = vld [vmem:[%s227 + $0x8] sm:$0xff]
      %v886 = vld [vmem:[%s227 + $0x10] sm:$0xff]
      %v887 = vld [vmem:[%s227 + $0x18] sm:$0xff]
      %v888 = vld [vmem:[%s227 + $0x20] sm:$0xff]
      %v889 = vld [vmem:[%s227 + $0x28] sm:$0xff]
      %890 = vrot.lane.b32.xlu0 %v266, 127
      %v891 = vpop.permute.xlu0 %890
      %892 = vrot.lane.b32.xlu0 %v267, 127
      %v893 = vpop.permute.xlu0 %892
      %894 = vrot.lane.b32.xlu0 %v268, 127
      %v895 = vpop.permute.xlu0 %894
      %896 = vrot.lane.b32.xlu0 %v269, 127
      %v897 = vpop.permute.xlu0 %896
      %898 = vrot.lane.b32.xlu0 %v270, 127
      %v899 = vpop.permute.xlu0 %898
      %vm900 = vcmask 1039360
      %v901 = vsel %vm900, %v891, %v893
      %v902 = vsel %vm900, %v893, %v895
      %v903 = vsel %vm900, %v895, %v897
      %v904 = vsel %vm900, %v897, %v899
      %v911 = vmul.f32 %v884, %v891
      %v912 = vmul.f32 %v885, %v901
      %v913 = vmul.f32 %v886, %v902
      %v914 = vmul.f32 %v887, %v903
      %v915 = vmul.f32 %v888, %v904
      %v916 = vmul.f32 %v889, %v899
      %v917 = vpack.c.bf16 %v912, %v911
      %v918 = vpack.c.bf16 %v914, %v913
      %v919 = vpack.c.bf16 %v916, %v915
      %923 = vrot.lane.b32.xlu0 %v917, 1
      %v924 = vpop.permute.xlu0 %923
      %925 = vrot.lane.b32.xlu0 %v918, 1
      %v926 = vpop.permute.xlu0 %925
      %927 = vrot.lane.b32.xlu0 %v919, 1
      %v928 = vpop.permute.xlu0 %927
      %v929 = vrot.slane %v924, 4
      %v930 = vrot.slane %v926, 4
      %v931 = vrot.slane %v928, 4
      %v932 = vsel %vm313, %v929, %v930
      %vm933 = vcmask 7168
      %v934 = vsel %vm933, %v924, %v932
      %v935 = vsel %vm313, %v930, %v931
      %v936 = vsel %vm933, %v926, %v935
      %v937 = vsel %vm933, %v928, %v931
      %941 = vst [vmem:[#allocation2 + $0xf0] sm:$0xff] %v934
      %942 = vst [vmem:[#allocation2 + $0xf8] sm:$0xff] %v936
      %943 = vst [vmem:[#allocation2 + $0x100] sm:$0xf] %v937
      %v944 = vld [vmem:[%s227 + $0x8] sm:$0xff]
      %v945 = vld [vmem:[%s227 + $0x10] sm:$0xff]
      %v946 = vld [vmem:[%s227 + $0x18] sm:$0xff]
      %v947 = vld [vmem:[%s227 + $0x20] sm:$0xff]
      %v948 = vld [vmem:[%s227 + $0x28] sm:$0xff]
      %v949 = vpack.c.bf16 %v945, %v944
      %v950 = vpack.c.bf16 %v947, %v946
      %v951 = vpack.c.bf16 %v948, %v948
      %952 = vst [vmem:[#allocation2 + $0x104] sm:$0xff] %v949
      %953 = vst [vmem:[#allocation2 + $0x10c] sm:$0xff] %v950
      %954 = vst [vmem:[#allocation2 + $0x114] sm:$0xf] %v951
      %v955 = vld [vmem:[%s227 + $0x8] sm:$0xff]
      %v956 = vld [vmem:[%s227 + $0x10] sm:$0xff]
      %v957 = vld [vmem:[%s227 + $0x18] sm:$0xff]
      %v958 = vld [vmem:[%s227 + $0x20] sm:$0xff]
      %v959 = vld [vmem:[%s227 + $0x28] sm:$0xff]
      %v960 = vld [vmem:[%s227 + $0x30] sm:$0xff]
      %961 = vrot.lane.b32.xlu0 %v366, 1
      %v962 = vpop.permute.xlu0 %961
      %963 = vrot.lane.b32.xlu0 %v367, 1
      %v964 = vpop.permute.xlu0 %963
      %965 = vrot.lane.b32.xlu0 %v368, 1
      %v966 = vpop.permute.xlu0 %965
      %967 = vrot.lane.b32.xlu0 %v369, 1
      %v968 = vpop.permute.xlu0 %967
      %969 = vrot.lane.b32.xlu0 %v370, 1
      %v970 = vpop.permute.xlu0 %969
      %vm971 = vcmask 7168
      %v972 = vsel %vm971, %v962, %v964
      %v973 = vsel %vm971, %v964, %v966
      %v974 = vsel %vm971, %v966, %v968
      %v975 = vsel %vm971, %v968, %v970
      %v982 = vmul.f32 %v955, %v962
      %v983 = vmul.f32 %v956, %v972
      %v984 = vmul.f32 %v957, %v973
      %v985 = vmul.f32 %v958, %v974
      %v986 = vmul.f32 %v959, %v975
      %v987 = vmul.f32 %v960, %v970
      %v988 = vpack.c.bf16 %v983, %v982
      %v989 = vpack.c.bf16 %v985, %v984
      %v990 = vpack.c.bf16 %v987, %v986
      %994 = vrot.lane.b32.xlu0 %v988, 127
      %v995 = vpop.permute.xlu0 %994
      %996 = vrot.lane.b32.xlu0 %v989, 127
      %v997 = vpop.permute.xlu0 %996
      %998 = vrot.lane.b32.xlu0 %v990, 127
      %v999 = vpop.permute.xlu0 %998
      %v1000 = vrot.slane %v995, 4
      %v1001 = vrot.slane %v997, 4
      %v1002 = vrot.slane %v999, 4
      %v1003 = vsel %vm313, %v1000, %v1001
      %vm1004 = vcmask 1039360
      %v1005 = vsel %vm1004, %v995, %v1003
      %v1006 = vsel %vm313, %v1001, %v1002
      %v1007 = vsel %vm1004, %v997, %v1006
      %v1008 = vsel %vm1004, %v999, %v1002
      %1012 = vst [vmem:[#allocation2 + $0x118] sm:$0xff] %v1005
      %1013 = vst [vmem:[#allocation2 + $0x120] sm:$0xff] %v1007
      %1014 = vst [vmem:[#allocation2 + $0x128] sm:$0xf] %v1008
      %v1015 = vld [vmem:[%s227 + $0x8] sm:$0xff]
      %v1016 = vld [vmem:[%s227 + $0x10] sm:$0xff]
      %v1017 = vld [vmem:[%s227 + $0x18] sm:$0xff]
      %v1018 = vld [vmem:[%s227 + $0x20] sm:$0xff]
      %v1019 = vld [vmem:[%s227 + $0x28] sm:$0xff]
      %v1020 = vld [vmem:[%s227 + $0x30] sm:$0xff]
      %1021 = vrot.lane.b32.xlu0 %v266, 7
      %v1022 = vpop.permute.xlu0 %1021
      %1023 = vrot.lane.b32.xlu0 %v267, 7
      %v1024 = vpop.permute.xlu0 %1023
      %1025 = vrot.lane.b32.xlu0 %v268, 7
      %v1026 = vpop.permute.xlu0 %1025
      %1027 = vrot.lane.b32.xlu0 %v269, 7
      %v1028 = vpop.permute.xlu0 %1027
      %1029 = vrot.lane.b32.xlu0 %v270, 7
      %v1030 = vpop.permute.xlu0 %1029
      %vm1031 = vcmask 56320
      %v1032 = vsel %vm1031, %v1022, %v1024
      %v1033 = vsel %vm1031, %v1024, %v1026
      %v1034 = vsel %vm1031, %v1026, %v1028
      %v1035 = vsel %vm1031, %v1028, %v1030
      %v1042 = vmul.f32 %v1015, %v1022
      %v1043 = vmul.f32 %v1016, %v1032
      %v1044 = vmul.f32 %v1017, %v1033
      %v1045 = vmul.f32 %v1018, %v1034
      %v1046 = vmul.f32 %v1019, %v1035
      %v1047 = vmul.f32 %v1020, %v1030
      %v1048 = vpack.c.bf16 %v1043, %v1042
      %v1049 = vpack.c.bf16 %v1045, %v1044
      %v1050 = vpack.c.bf16 %v1047, %v1046
      %1054 = vrot.lane.b32.xlu0 %v1048, 121
      %v1055 = vpop.permute.xlu0 %1054
      %1056 = vrot.lane.b32.xlu0 %v1049, 121
      %v1057 = vpop.permute.xlu0 %1056
      %1058 = vrot.lane.b32.xlu0 %v1050, 121
      %v1059 = vpop.permute.xlu0 %1058
      %v1060 = vrot.slane %v1055, 4
      %v1061 = vrot.slane %v1057, 4
      %v1062 = vrot.slane %v1059, 4
      %v1063 = vsel %vm313, %v1060, %v1061
      %vm1064 = vcmask 990208
      %v1065 = vsel %vm1064, %v1055, %v1063
      %v1066 = vsel %vm313, %v1061, %v1062
      %v1067 = vsel %vm1064, %v1057, %v1066
      %v1068 = vsel %vm1064, %v1059, %v1062
      %1072 = vst [vmem:[#allocation2 + $0x12c] sm:$0xff] %v1065
      %1073 = vst [vmem:[#allocation2 + $0x134] sm:$0xff] %v1067
      %1074 = vst [vmem:[#allocation2 + $0x13c] sm:$0xf] %v1068
      %v1075 = vld [vmem:[%s227 + $0x8] sm:$0xff]
      %v1076 = vld [vmem:[%s227 + $0x10] sm:$0xff]
      %v1077 = vld [vmem:[%s227 + $0x18] sm:$0xff]
      %v1078 = vld [vmem:[%s227 + $0x20] sm:$0xff]
      %v1079 = vld [vmem:[%s227 + $0x28] sm:$0xff]
      %v1080 = vld [vmem:[%s227 + $0x30] sm:$0xff]
      %v1081 = vpack.c.bf16 %v1076, %v1075
      %v1082 = vpack.c.bf16 %v1078, %v1077
      %v1083 = vpack.c.bf16 %v1080, %v1079
      %1087 = vrot.lane.b32.xlu0 %v1081, 120
      %v1088 = vpop.permute.xlu0 %1087
      %1089 = vrot.lane.b32.xlu0 %v1082, 120
      %v1090 = vpop.permute.xlu0 %1089
      %1091 = vrot.lane.b32.xlu0 %v1083, 120
      %v1092 = vpop.permute.xlu0 %1091
      %v1093 = vrot.slane %v1088, 4
      %v1094 = vrot.slane %v1090, 4
      %v1095 = vrot.slane %v1092, 4
      %v1096 = vsel %vm313, %v1093, %v1094
      %vm1097 = vcmask 982016
      %v1098 = vsel %vm1097, %v1088, %v1096
      %v1099 = vsel %vm313, %v1094, %v1095
      %v1100 = vsel %vm1097, %v1090, %v1099
      %v1101 = vsel %vm1097, %v1092, %v1095
      %1105 = vst [vmem:[#allocation2 + $0x140] sm:$0xff] %v1098
      %1106 = vst [vmem:[#allocation2 + $0x148] sm:$0xff] %v1100
      %1107 = vst [vmem:[#allocation2 + $0x150] sm:$0xf] %v1101
      %v1108 = vld [vmem:[%s227 + $0x8] sm:$0xff]
      %v1109 = vld [vmem:[%s227 + $0x10] sm:$0xff]
      %v1110 = vld [vmem:[%s227 + $0x18] sm:$0xff]
      %v1111 = vld [vmem:[%s227 + $0x20] sm:$0xff]
      %v1112 = vld [vmem:[%s227 + $0x28] sm:$0xff]
      %v1113 = vld [vmem:[%s227 + $0x30] sm:$0xff]
      %1114 = vrot.lane.b32.xlu0 %v366, 9
      %v1115 = vpop.permute.xlu0 %1114
      %1116 = vrot.lane.b32.xlu0 %v367, 9
      %v1117 = vpop.permute.xlu0 %1116
      %1118 = vrot.lane.b32.xlu0 %v368, 9
      %v1119 = vpop.permute.xlu0 %1118
      %1120 = vrot.lane.b32.xlu0 %v369, 9
      %v1121 = vpop.permute.xlu0 %1120
      %1122 = vrot.lane.b32.xlu0 %v370, 9
      %v1123 = vpop.permute.xlu0 %1122
      %vm1124 = vcmask 72704
      %v1125 = vsel %vm1124, %v1115, %v1117
      %v1126 = vsel %vm1124, %v1117, %v1119
      %v1127 = vsel %vm1124, %v1119, %v1121
      %v1128 = vsel %vm1124, %v1121, %v1123
      %v1135 = vmul.f32 %v1108, %v1115
      %v1136 = vmul.f32 %v1109, %v1125
      %v1137 = vmul.f32 %v1110, %v1126
      %v1138 = vmul.f32 %v1111, %v1127
      %v1139 = vmul.f32 %v1112, %v1128
      %v1140 = vmul.f32 %v1113, %v1123
      %v1141 = vpack.c.bf16 %v1136, %v1135
      %v1142 = vpack.c.bf16 %v1138, %v1137
      %v1143 = vpack.c.bf16 %v1140, %v1139
      %1147 = vrot.lane.b32.xlu0 %v1141, 119
      %v1148 = vpop.permute.xlu0 %1147
      %1149 = vrot.lane.b32.xlu0 %v1142, 119
      %v1150 = vpop.permute.xlu0 %1149
      %1151 = vrot.lane.b32.xlu0 %v1143, 119
      %v1152 = vpop.permute.xlu0 %1151
      %v1153 = vrot.slane %v1148, 4
      %v1154 = vrot.slane %v1150, 4
      %v1155 = vrot.slane %v1152, 4
      %v1156 = vsel %vm313, %v1153, %v1154
      %vm1157 = vcmask 973824
      %v1158 = vsel %vm1157, %v1148, %v1156
      %v1159 = vsel %vm313, %v1154, %v1155
      %v1160 = vsel %vm1157, %v1150, %v1159
      %v1161 = vsel %vm1157, %v1152, %v1155
      %1165 = vst [vmem:[#allocation2 + $0x154] sm:$0xff] %v1158
      %1166 = vst [vmem:[#allocation2 + $0x15c] sm:$0xff] %v1160
      %1167 = vst [vmem:[#allocation2 + $0x164] sm:$0xf] %v1161
      %v1168 = vld [vmem:[%s227 + $0x8] sm:$0xff]
      %v1169 = vld [vmem:[%s227 + $0x10] sm:$0xff]
      %v1170 = vld [vmem:[%s227 + $0x18] sm:$0xff]
      %v1171 = vld [vmem:[%s227 + $0x20] sm:$0xff]
      %v1172 = vld [vmem:[%s227 + $0x28] sm:$0xff]
      %v1173 = vld [vmem:[%s227 + $0x30] sm:$0xff]
      %1174 = vrot.lane.b32.xlu0 %v266, 71
      %v1175 = vpop.permute.xlu0 %1174
      %1176 = vrot.lane.b32.xlu0 %v267, 71
      %v1177 = vpop.permute.xlu0 %1176
      %1178 = vrot.lane.b32.xlu0 %v268, 71
      %v1179 = vpop.permute.xlu0 %1178
      %1180 = vrot.lane.b32.xlu0 %v269, 71
      %v1181 = vpop.permute.xlu0 %1180
      %1182 = vrot.lane.b32.xlu0 %v270, 71
      %v1183 = vpop.permute.xlu0 %1182
      %vm1184 = vcmask 580608
      %v1185 = vsel %vm1184, %v1175, %v1177
      %v1186 = vsel %vm1184, %v1177, %v1179
      %v1187 = vsel %vm1184, %v1179, %v1181
      %v1188 = vsel %vm1184, %v1181, %v1183
      %v1195 = vmul.f32 %v1168, %v1175
      %v1196 = vmul.f32 %v1169, %v1185
      %v1197 = vmul.f32 %v1170, %v1186
      %v1198 = vmul.f32 %v1171, %v1187
      %v1199 = vmul.f32 %v1172, %v1188
      %v1200 = vmul.f32 %v1173, %v1183
      %v1201 = vpack.c.bf16 %v1196, %v1195
      %v1202 = vpack.c.bf16 %v1198, %v1197
      %v1203 = vpack.c.bf16 %v1200, %v1199
      %1207 = vrot.lane.b32.xlu0 %v1201, 57
      %v1208 = vpop.permute.xlu0 %1207
      %1209 = vrot.lane.b32.xlu0 %v1202, 57
      %v1210 = vpop.permute.xlu0 %1209
      %1211 = vrot.lane.b32.xlu0 %v1203, 57
      %v1212 = vpop.permute.xlu0 %1211
      %v1213 = vrot.slane %v1208, 4
      %v1214 = vrot.slane %v1210, 4
      %v1215 = vrot.slane %v1212, 4
      %v1216 = vsel %vm313, %v1213, %v1214
      %vm1217 = vcmask 465920
      %v1218 = vsel %vm1217, %v1208, %v1216
      %v1219 = vsel %vm313, %v1214, %v1215
      %v1220 = vsel %vm1217, %v1210, %v1219
      %v1221 = vsel %vm1217, %v1212, %v1215
      %1225 = vst [vmem:[#allocation2 + $0x168] sm:$0xff] %v1218
      %1226 = vst [vmem:[#allocation2 + $0x170] sm:$0xff] %v1220
      %1227 = vst [vmem:[#allocation2 + $0x178] sm:$0xf] %v1221
      %v1228 = vld [vmem:[%s227 + $0x8] sm:$0xff]
      %v1229 = vld [vmem:[%s227 + $0x10] sm:$0xff]
      %v1230 = vld [vmem:[%s227 + $0x18] sm:$0xff]
      %v1231 = vld [vmem:[%s227 + $0x20] sm:$0xff]
      %v1232 = vld [vmem:[%s227 + $0x28] sm:$0xff]
      %v1233 = vld [vmem:[%s227 + $0x30] sm:$0xff]
      %v1234 = vpack.c.bf16 %v1229, %v1228
      %v1235 = vpack.c.bf16 %v1231, %v1230
      %v1236 = vpack.c.bf16 %v1233, %v1232
      %1240 = vrot.lane.b32.xlu0 %v1234, 56
      %v1241 = vpop.permute.xlu0 %1240
      %1242 = vrot.lane.b32.xlu0 %v1235, 56
      %v1243 = vpop.permute.xlu0 %1242
      %1244 = vrot.lane.b32.xlu0 %v1236, 56
      %v1245 = vpop.permute.xlu0 %1244
      %v1246 = vrot.slane %v1241, 4
      %v1247 = vrot.slane %v1243, 4
      %v1248 = vrot.slane %v1245, 4
      %v1249 = vsel %vm313, %v1246, %v1247
      %vm1250 = vcmask 457728
      %v1251 = vsel %vm1250, %v1241, %v1249
      %v1252 = vsel %vm313, %v1247, %v1248
      %v1253 = vsel %vm1250, %v1243, %v1252
      %v1254 = vsel %vm1250, %v1245, %v1248
      %1258 = vst [vmem:[#allocation2 + $0x17c] sm:$0xff] %v1251
      %1259 = vst [vmem:[#allocation2 + $0x184] sm:$0xff] %v1253
      %1260 = vst [vmem:[#allocation2 + $0x18c] sm:$0xf] %v1254
      %v1261 = vld [vmem:[%s227 + $0x8] sm:$0xff]
      %v1262 = vld [vmem:[%s227 + $0x10] sm:$0xff]
      %v1263 = vld [vmem:[%s227 + $0x18] sm:$0xff]
      %v1264 = vld [vmem:[%s227 + $0x20] sm:$0xff]
      %v1265 = vld [vmem:[%s227 + $0x28] sm:$0xff]
      %v1266 = vld [vmem:[%s227 + $0x30] sm:$0xff]
      %1267 = vrot.lane.b32.xlu0 %v366, 73
      %v1268 = vpop.permute.xlu0 %1267
      %1269 = vrot.lane.b32.xlu0 %v367, 73
      %v1270 = vpop.permute.xlu0 %1269
      %1271 = vrot.lane.b32.xlu0 %v368, 73
      %v1272 = vpop.permute.xlu0 %1271
      %1273 = vrot.lane.b32.xlu0 %v369, 73
      %v1274 = vpop.permute.xlu0 %1273
      %1275 = vrot.lane.b32.xlu0 %v370, 73
      %v1276 = vpop.permute.xlu0 %1275
      %vm1277 = vcmask 596992
      %v1278 = vsel %vm1277, %v1268, %v1270
      %v1279 = vsel %vm1277, %v1270, %v1272
      %v1280 = vsel %vm1277, %v1272, %v1274
      %v1281 = vsel %vm1277, %v1274, %v1276
      %v1288 = vmul.f32 %v1261, %v1268
      %v1289 = vmul.f32 %v1262, %v1278
      %v1290 = vmul.f32 %v1263, %v1279
      %v1291 = vmul.f32 %v1264, %v1280
      %v1292 = vmul.f32 %v1265, %v1281
      %v1293 = vmul.f32 %v1266, %v1276
      %v1294 = vpack.c.bf16 %v1289, %v1288
      %v1295 = vpack.c.bf16 %v1291, %v1290
      %v1296 = vpack.c.bf16 %v1293, %v1292
      %1300 = vrot.lane.b32.xlu0 %v1294, 55
      %v1301 = vpop.permute.xlu0 %1300
      %1302 = vrot.lane.b32.xlu0 %v1295, 55
      %v1303 = vpop.permute.xlu0 %1302
      %1304 = vrot.lane.b32.xlu0 %v1296, 55
      %v1305 = vpop.permute.xlu0 %1304
      %v1306 = vrot.slane %v1301, 4
      %v1307 = vrot.slane %v1303, 4
      %v1308 = vrot.slane %v1305, 4
      %v1309 = vsel %vm313, %v1306, %v1307
      %vm1310 = vcmask 449536
      %v1311 = vsel %vm1310, %v1301, %v1309
      %v1312 = vsel %vm313, %v1307, %v1308
      %v1313 = vsel %vm1310, %v1303, %v1312
      %v1314 = vsel %vm1310, %v1305, %v1308
      %1318 = vst [vmem:[#allocation2 + $0x190] sm:$0xff] %v1311
      %1319 = vst [vmem:[#allocation2 + $0x198] sm:$0xff] %v1313
      %1320 = vst [vmem:[#allocation2 + $0x1a0] sm:$0xf] %v1314
      %v1321 = vld [vmem:[%s227 + $0x8] sm:$0xff]
      %v1322 = vld [vmem:[%s227 + $0x10] sm:$0xff]
      %v1323 = vld [vmem:[%s227 + $0x18] sm:$0xff]
      %v1324 = vld [vmem:[%s227 + $0x20] sm:$0xff]
      %v1325 = vld [vmem:[%s227 + $0x28] sm:$0xff]
      %v1326 = vld [vmem:[%s227 + $0x30] sm:$0xff]
      %1327 = vrot.lane.b32.xlu0 %v266, 79
      %v1328 = vpop.permute.xlu0 %1327
      %1329 = vrot.lane.b32.xlu0 %v267, 79
      %v1330 = vpop.permute.xlu0 %1329
      %1331 = vrot.lane.b32.xlu0 %v268, 79
      %v1332 = vpop.permute.xlu0 %1331
      %1333 = vrot.lane.b32.xlu0 %v269, 79
      %v1334 = vpop.permute.xlu0 %1333
      %1335 = vrot.lane.b32.xlu0 %v270, 79
      %v1336 = vpop.permute.xlu0 %1335
      %vm1337 = vcmask 646144
      %v1338 = vsel %vm1337, %v1328, %v1330
      %v1339 = vsel %vm1337, %v1330, %v1332
      %v1340 = vsel %vm1337, %v1332, %v1334
      %v1341 = vsel %vm1337, %v1334, %v1336
      %v1348 = vmul.f32 %v1321, %v1328
      %v1349 = vmul.f32 %v1322, %v1338
      %v1350 = vmul.f32 %v1323, %v1339
      %v1351 = vmul.f32 %v1324, %v1340
      %v1352 = vmul.f32 %v1325, %v1341
      %v1353 = vmul.f32 %v1326, %v1336
      %v1354 = vpack.c.bf16 %v1349, %v1348
      %v1355 = vpack.c.bf16 %v1351, %v1350
      %v1356 = vpack.c.bf16 %v1353, %v1352
      %1360 = vrot.lane.b32.xlu0 %v1354, 49
      %v1361 = vpop.permute.xlu0 %1360
      %1362 = vrot.lane.b32.xlu0 %v1355, 49
      %v1363 = vpop.permute.xlu0 %1362
      %1364 = vrot.lane.b32.xlu0 %v1356, 49
      %v1365 = vpop.permute.xlu0 %1364
      %v1366 = vrot.slane %v1361, 4
      %v1367 = vrot.slane %v1363, 4
      %v1368 = vrot.slane %v1365, 4
      %v1369 = vsel %vm313, %v1366, %v1367
      %vm1370 = vcmask 400384
      %v1371 = vsel %vm1370, %v1361, %v1369
      %v1372 = vsel %vm313, %v1367, %v1368
      %v1373 = vsel %vm1370, %v1363, %v1372
      %v1374 = vsel %vm1370, %v1365, %v1368
      %1378 = vst [vmem:[#allocation2 + $0x1a4] sm:$0xff] %v1371
      %1379 = vst [vmem:[#allocation2 + $0x1ac] sm:$0xff] %v1373
      %1380 = vst [vmem:[#allocation2 + $0x1b4] sm:$0xf] %v1374
      %v1381 = vld [vmem:[%s227 + $0x8] sm:$0xff]
      %v1382 = vld [vmem:[%s227 + $0x10] sm:$0xff]
      %v1383 = vld [vmem:[%s227 + $0x18] sm:$0xff]
      %v1384 = vld [vmem:[%s227 + $0x20] sm:$0xff]
      %v1385 = vld [vmem:[%s227 + $0x28] sm:$0xff]
      %v1386 = vld [vmem:[%s227 + $0x30] sm:$0xff]
      %v1387 = vpack.c.bf16 %v1382, %v1381
      %v1388 = vpack.c.bf16 %v1384, %v1383
      %v1389 = vpack.c.bf16 %v1386, %v1385
      %1393 = vrot.lane.b32.xlu0 %v1387, 48
      %v1394 = vpop.permute.xlu0 %1393
      %1395 = vrot.lane.b32.xlu0 %v1388, 48
      %v1396 = vpop.permute.xlu0 %1395
      %1397 = vrot.lane.b32.xlu0 %v1389, 48
      %v1398 = vpop.permute.xlu0 %1397
      %v1399 = vrot.slane %v1394, 4
      %v1400 = vrot.slane %v1396, 4
      %v1401 = vrot.slane %v1398, 4
      %v1402 = vsel %vm313, %v1399, %v1400
      %vm1403 = vcmask 392192
      %v1404 = vsel %vm1403, %v1394, %v1402
      %v1405 = vsel %vm313, %v1400, %v1401
      %v1406 = vsel %vm1403, %v1396, %v1405
      %v1407 = vsel %vm1403, %v1398, %v1401
      %1411 = vst [vmem:[#allocation2 + $0x1b8] sm:$0xff] %v1404
      %1412 = vst [vmem:[#allocation2 + $0x1c0] sm:$0xff] %v1406
      %1413 = vst [vmem:[#allocation2 + $0x1c8] sm:$0xf] %v1407
      %v1414 = vld [vmem:[%s227 + $0x8] sm:$0xff]
      %v1415 = vld [vmem:[%s227 + $0x10] sm:$0xff]
      %v1416 = vld [vmem:[%s227 + $0x18] sm:$0xff]
      %v1417 = vld [vmem:[%s227 + $0x20] sm:$0xff]
      %v1418 = vld [vmem:[%s227 + $0x28] sm:$0xff]
      %v1419 = vld [vmem:[%s227 + $0x30] sm:$0xff]
      %1420 = vrot.lane.b32.xlu0 %v366, 81
      %v1421 = vpop.permute.xlu0 %1420
      %1422 = vrot.lane.b32.xlu0 %v367, 81
      %v1423 = vpop.permute.xlu0 %1422
      %1424 = vrot.lane.b32.xlu0 %v368, 81
      %v1425 = vpop.permute.xlu0 %1424
      %1426 = vrot.lane.b32.xlu0 %v369, 81
      %v1427 = vpop.permute.xlu0 %1426
      %1428 = vrot.lane.b32.xlu0 %v370, 81
      %v1429 = vpop.permute.xlu0 %1428
      %vm1430 = vcmask 662528
      %v1431 = vsel %vm1430, %v1421, %v1423
      %v1432 = vsel %vm1430, %v1423, %v1425
      %v1433 = vsel %vm1430, %v1425, %v1427
      %v1434 = vsel %vm1430, %v1427, %v1429
      %v1441 = vmul.f32 %v1414, %v1421
      %v1442 = vmul.f32 %v1415, %v1431
      %v1443 = vmul.f32 %v1416, %v1432
      %v1444 = vmul.f32 %v1417, %v1433
      %v1445 = vmul.f32 %v1418, %v1434
      %v1446 = vmul.f32 %v1419, %v1429
      %v1447 = vpack.c.bf16 %v1442, %v1441
      %v1448 = vpack.c.bf16 %v1444, %v1443
      %v1449 = vpack.c.bf16 %v1446, %v1445
      %1453 = vrot.lane.b32.xlu0 %v1447, 47
      %v1454 = vpop.permute.xlu0 %1453
      %1455 = vrot.lane.b32.xlu0 %v1448, 47
      %v1456 = vpop.permute.xlu0 %1455
      %1457 = vrot.lane.b32.xlu0 %v1449, 47
      %v1458 = vpop.permute.xlu0 %1457
      %v1459 = vrot.slane %v1454, 4
      %v1460 = vrot.slane %v1456, 4
      %v1461 = vrot.slane %v1458, 4
      %v1462 = vsel %vm313, %v1459, %v1460
      %vm1463 = vcmask 384000
      %v1464 = vsel %vm1463, %v1454, %v1462
      %v1465 = vsel %vm313, %v1460, %v1461
      %v1466 = vsel %vm1463, %v1456, %v1465
      %v1467 = vsel %vm1463, %v1458, %v1461
      %1471 = vst [vmem:[#allocation2 + $0x1cc] sm:$0xff] %v1464
      %1472 = vst [vmem:[#allocation2 + $0x1d4] sm:$0xff] %v1466
      %1473 = vst [vmem:[#allocation2 + $0x1dc] sm:$0xf] %v1467
      %v1474 = vld [vmem:[%s227 + $0x8] sm:$0xff]
      %v1475 = vld [vmem:[%s227 + $0x10] sm:$0xff]
      %v1476 = vld [vmem:[%s227 + $0x18] sm:$0xff]
      %v1477 = vld [vmem:[%s227 + $0x20] sm:$0xff]
      %v1478 = vld [vmem:[%s227 + $0x28] sm:$0xff]
      %v1479 = vld [vmem:[%s227 + $0x30] sm:$0xff]
      %1480 = vrot.lane.b32.xlu0 %v266, 87
      %v1481 = vpop.permute.xlu0 %1480
      %1482 = vrot.lane.b32.xlu0 %v267, 87
      %v1483 = vpop.permute.xlu0 %1482
      %1484 = vrot.lane.b32.xlu0 %v268, 87
      %v1485 = vpop.permute.xlu0 %1484
      %1486 = vrot.lane.b32.xlu0 %v269, 87
      %v1487 = vpop.permute.xlu0 %1486
      %1488 = vrot.lane.b32.xlu0 %v270, 87
      %v1489 = vpop.permute.xlu0 %1488
      %vm1490 = vcmask 711680
      %v1491 = vsel %vm1490, %v1481, %v1483
      %v1492 = vsel %vm1490, %v1483, %v1485
      %v1493 = vsel %vm1490, %v1485, %v1487
      %v1494 = vsel %vm1490, %v1487, %v1489
      %v1501 = vmul.f32 %v1474, %v1481
      %v1502 = vmul.f32 %v1475, %v1491
      %v1503 = vmul.f32 %v1476, %v1492
      %v1504 = vmul.f32 %v1477, %v1493
      %v1505 = vmul.f32 %v1478, %v1494
      %v1506 = vmul.f32 %v1479, %v1489
      %v1507 = vpack.c.bf16 %v1502, %v1501
      %v1508 = vpack.c.bf16 %v1504, %v1503
      %v1509 = vpack.c.bf16 %v1506, %v1505
      %1513 = vrot.lane.b32.xlu0 %v1507, 41
      %v1514 = vpop.permute.xlu0 %1513
      %1515 = vrot.lane.b32.xlu0 %v1508, 41
      %v1516 = vpop.permute.xlu0 %1515
      %1517 = vrot.lane.b32.xlu0 %v1509, 41
      %v1518 = vpop.permute.xlu0 %1517
      %v1519 = vrot.slane %v1514, 4
      %v1520 = vrot.slane %v1516, 4
      %v1521 = vrot.slane %v1518, 4
      %v1522 = vsel %vm313, %v1519, %v1520
      %vm1523 = vcmask 334848
      %v1524 = vsel %vm1523, %v1514, %v1522
      %v1525 = vsel %vm313, %v1520, %v1521
      %v1526 = vsel %vm1523, %v1516, %v1525
      %v1527 = vsel %vm1523, %v1518, %v1521
      %1531 = vst [vmem:[#allocation2 + $0x1e0] sm:$0xff] %v1524
      %1532 = vst [vmem:[#allocation2 + $0x1e8] sm:$0xff] %v1526
      %1533 = vst [vmem:[#allocation2 + $0x1f0] sm:$0xf] %v1527
      %v1534 = vld [vmem:[%s227 + $0x8] sm:$0xff]
      %v1535 = vld [vmem:[%s227 + $0x10] sm:$0xff]
      %v1536 = vld [vmem:[%s227 + $0x18] sm:$0xff]
      %v1537 = vld [vmem:[%s227 + $0x20] sm:$0xff]
      %v1538 = vld [vmem:[%s227 + $0x28] sm:$0xff]
      %v1539 = vld [vmem:[%s227 + $0x30] sm:$0xff]
      %v1540 = vpack.c.bf16 %v1535, %v1534
      %v1541 = vpack.c.bf16 %v1537, %v1536
      %v1542 = vpack.c.bf16 %v1539, %v1538
      %1546 = vrot.lane.b32.xlu0 %v1540, 40
      %v1547 = vpop.permute.xlu0 %1546
      %1548 = vrot.lane.b32.xlu0 %v1541, 40
      %v1549 = vpop.permute.xlu0 %1548
      %1550 = vrot.lane.b32.xlu0 %v1542, 40
      %v1551 = vpop.permute.xlu0 %1550
      %v1552 = vrot.slane %v1547, 4
      %v1553 = vrot.slane %v1549, 4
      %v1554 = vrot.slane %v1551, 4
      %v1555 = vsel %vm313, %v1552, %v1553
      %vm1556 = vcmask 326656
      %v1557 = vsel %vm1556, %v1547, %v1555
      %v1558 = vsel %vm313, %v1553, %v1554
      %v1559 = vsel %vm1556, %v1549, %v1558
      %v1560 = vsel %vm1556, %v1551, %v1554
      %1564 = vst [vmem:[#allocation2 + $0x1f4] sm:$0xff] %v1557
      %1565 = vst [vmem:[#allocation2 + $0x1fc] sm:$0xff] %v1559
      %1566 = vst [vmem:[#allocation2 + $0x204] sm:$0xf] %v1560
      %v1567 = vld [vmem:[%s227 + $0x8] sm:$0xff]
      %v1568 = vld [vmem:[%s227 + $0x10] sm:$0xff]
      %v1569 = vld [vmem:[%s227 + $0x18] sm:$0xff]
      %v1570 = vld [vmem:[%s227 + $0x20] sm:$0xff]
      %v1571 = vld [vmem:[%s227 + $0x28] sm:$0xff]
      %v1572 = vld [vmem:[%s227 + $0x30] sm:$0xff]
      %1573 = vrot.lane.b32.xlu0 %v366, 89
      %v1574 = vpop.permute.xlu0 %1573
      %1575 = vrot.lane.b32.xlu0 %v367, 89
      %v1576 = vpop.permute.xlu0 %1575
      %1577 = vrot.lane.b32.xlu0 %v368, 89
      %v1578 = vpop.permute.xlu0 %1577
      %1579 = vrot.lane.b32.xlu0 %v369, 89
      %v1580 = vpop.permute.xlu0 %1579
      %1581 = vrot.lane.b32.xlu0 %v370, 89
      %v1582 = vpop.permute.xlu0 %1581
      %vm1583 = vcmask 728064
      %v1584 = vsel %vm1583, %v1574, %v1576
      %v1585 = vsel %vm1583, %v1576, %v1578
      %v1586 = vsel %vm1583, %v1578, %v1580
      %v1587 = vsel %vm1583, %v1580, %v1582
      %v1594 = vmul.f32 %v1567, %v1574
      %v1595 = vmul.f32 %v1568, %v1584
      %v1596 = vmul.f32 %v1569, %v1585
      %v1597 = vmul.f32 %v1570, %v1586
      %v1598 = vmul.f32 %v1571, %v1587
      %v1599 = vmul.f32 %v1572, %v1582
      %v1600 = vpack.c.bf16 %v1595, %v1594
      %v1601 = vpack.c.bf16 %v1597, %v1596
      %v1602 = vpack.c.bf16 %v1599, %v1598
      %1606 = vrot.lane.b32.xlu0 %v1600, 39
      %v1607 = vpop.permute.xlu0 %1606
      %1608 = vrot.lane.b32.xlu0 %v1601, 39
      %v1609 = vpop.permute.xlu0 %1608
      %1610 = vrot.lane.b32.xlu0 %v1602, 39
      %v1611 = vpop.permute.xlu0 %1610
      %v1612 = vrot.slane %v1607, 4
      %v1613 = vrot.slane %v1609, 4
      %v1614 = vrot.slane %v1611, 4
      %v1615 = vsel %vm313, %v1612, %v1613
      %vm1616 = vcmask 318464
      %v1617 = vsel %vm1616, %v1607, %v1615
      %v1618 = vsel %vm313, %v1613, %v1614
      %v1619 = vsel %vm1616, %v1609, %v1618
      %v1620 = vsel %vm1616, %v1611, %v1614
      %1624 = vst [vmem:[#allocation2 + $0x208] sm:$0xff] %v1617
      %1625 = vst [vmem:[#allocation2 + $0x210] sm:$0xff] %v1619
      %1626 = vst [vmem:[#allocation2 + $0x218] sm:$0xf] %v1620
      %v1627 = vld [vmem:[%s2] sm:$0xff]
      %v1628 = vld [vmem:[%s2 + $0x8] sm:$0xff]
      %v1629 = vld [vmem:[#allocation2] sm:$0xff]
      %v1630 = vld [vmem:[#allocation2 + $0x8] sm:$0xff]
      %v1631 = vld [vmem:[#allocation2 + $0x10] sm:$0xf]
      %v1632 = vld [vmem:[#allocation2 + $0x14] sm:$0xff]
      %v1633 = vld [vmem:[#allocation2 + $0x1c] sm:$0xff]
      %v1634 = vld [vmem:[#allocation2 + $0x24] sm:$0xf]
      %v1635 = vld [vmem:[#allocation2 + $0x28] sm:$0xff]
      %v1636 = vld [vmem:[#allocation2 + $0x30] sm:$0xff]
      %v1637 = vld [vmem:[#allocation2 + $0x38] sm:$0xf]
      %v1638 = vld [vmem:[#allocation2 + $0x3c] sm:$0xff]
      %v1639 = vld [vmem:[#allocation2 + $0x44] sm:$0xff]
      %v1640 = vld [vmem:[#allocation2 + $0x4c] sm:$0xf]
      %v1641 = vld [vmem:[#allocation2 + $0x50] sm:$0xff]
      %v1642 = vld [vmem:[#allocation2 + $0x58] sm:$0xff]
      %v1643 = vld [vmem:[#allocation2 + $0x60] sm:$0xf]
      %v1644 = vld [vmem:[#allocation2 + $0x64] sm:$0xff]
      %v1645 = vld [vmem:[#allocation2 + $0x6c] sm:$0xff]
      %v1646 = vld [vmem:[#allocation2 + $0x74] sm:$0xf]
      %v1647 = vld [vmem:[#allocation2 + $0x78] sm:$0xff]
      %v1648 = vld [vmem:[#allocation2 + $0x80] sm:$0xff]
      %v1649 = vld [vmem:[#allocation2 + $0x88] sm:$0xf]
      %v1650 = vld [vmem:[#allocation2 + $0x8c] sm:$0xff]
      %v1651 = vld [vmem:[#allocation2 + $0x94] sm:$0xff]
      %v1652 = vld [vmem:[#allocation2 + $0x9c] sm:$0xf]
      %v1653 = vld [vmem:[#allocation2 + $0xa0] sm:$0xff]
      %v1654 = vld [vmem:[#allocation2 + $0xa8] sm:$0xff]
      %v1655 = vld [vmem:[#allocation2 + $0xb0] sm:$0xf]
      %v1656 = vld [vmem:[#allocation2 + $0xb4] sm:$0xff]
      %v1657 = vld [vmem:[#allocation2 + $0xbc] sm:$0xff]
      %v1658 = vld [vmem:[#allocation2 + $0xc4] sm:$0xf]
      %v1659 = vld [vmem:[#allocation2 + $0xc8] sm:$0xff]
      %v1660 = vld [vmem:[#allocation2 + $0xd0] sm:$0xff]
      %v1661 = vld [vmem:[#allocation2 + $0xd8] sm:$0xf]
      %v1662 = vld [vmem:[#allocation2 + $0xdc] sm:$0xff]
      %v1663 = vld [vmem:[#allocation2 + $0xe4] sm:$0xff]
      %v1664 = vld [vmem:[#allocation2 + $0xec] sm:$0xf]
      %v1665 = vld [vmem:[#allocation2 + $0xf0] sm:$0xff]
      %v1666 = vld [vmem:[#allocation2 + $0xf8] sm:$0xff]
      %v1667 = vld [vmem:[#allocation2 + $0x100] sm:$0xf]
      %v1668 = vld [vmem:[#allocation2 + $0x104] sm:$0xff]
      %v1669 = vld [vmem:[#allocation2 + $0x10c] sm:$0xff]
      %v1670 = vld [vmem:[#allocation2 + $0x114] sm:$0xf]
      %v1671 = vld [vmem:[#allocation2 + $0x118] sm:$0xff]
      %v1672 = vld [vmem:[#allocation2 + $0x120] sm:$0xff]
      %v1673 = vld [vmem:[#allocation2 + $0x128] sm:$0xf]
      %v1674 = vld [vmem:[#allocation2 + $0x12c] sm:$0xff]
      %v1675 = vld [vmem:[#allocation2 + $0x134] sm:$0xff]
      %v1676 = vld [vmem:[#allocation2 + $0x13c] sm:$0xf]
      %v1677 = vld [vmem:[#allocation2 + $0x140] sm:$0xff]
      %v1678 = vld [vmem:[#allocation2 + $0x148] sm:$0xff]
      %v1679 = vld [vmem:[#allocation2 + $0x150] sm:$0xf]
      %v1680 = vld [vmem:[#allocation2 + $0x154] sm:$0xff]
      %v1681 = vld [vmem:[#allocation2 + $0x15c] sm:$0xff]
      %v1682 = vld [vmem:[#allocation2 + $0x164] sm:$0xf]
      %v1683 = vld [vmem:[#allocation2 + $0x168] sm:$0xff]
      %v1684 = vld [vmem:[#allocation2 + $0x170] sm:$0xff]
      %v1685 = vld [vmem:[#allocation2 + $0x178] sm:$0xf]
      %v1686 = vld [vmem:[#allocation2 + $0x17c] sm:$0xff]
      %v1687 = vld [vmem:[#allocation2 + $0x184] sm:$0xff]
      %v1688 = vld [vmem:[#allocation2 + $0x18c] sm:$0xf]
      %v1689 = vld [vmem:[#allocation2 + $0x190] sm:$0xff]
      %v1690 = vld [vmem:[#allocation2 + $0x198] sm:$0xff]
      %v1691 = vld [vmem:[#allocation2 + $0x1a0] sm:$0xf]
      %v1692 = vld [vmem:[#allocation2 + $0x1a4] sm:$0xff]
      %v1693 = vld [vmem:[#allocation2 + $0x1ac] sm:$0xff]
      %v1694 = vld [vmem:[#allocation2 + $0x1b4] sm:$0xf]
      %v1695 = vld [vmem:[#allocation2 + $0x1b8] sm:$0xff]
      %v1696 = vld [vmem:[#allocation2 + $0x1c0] sm:$0xff]
      %v1697 = vld [vmem:[#allocation2 + $0x1c8] sm:$0xf]
      %v1698 = vld [vmem:[#allocation2 + $0x1cc] sm:$0xff]
      %v1699 = vld [vmem:[#allocation2 + $0x1d4] sm:$0xff]
      %v1700 = vld [vmem:[#allocation2 + $0x1dc] sm:$0xf]
      %v1701 = vld [vmem:[#allocation2 + $0x1e0] sm:$0xff]
      %v1702 = vld [vmem:[#allocation2 + $0x1e8] sm:$0xff]
      %v1703 = vld [vmem:[#allocation2 + $0x1f0] sm:$0xf]
      %v1704 = vld [vmem:[#allocation2 + $0x1f4] sm:$0xff]
      %v1705 = vld [vmem:[#allocation2 + $0x1fc] sm:$0xff]
      %v1706 = vld [vmem:[#allocation2 + $0x204] sm:$0xf]
      %v1707 = vld [vmem:[#allocation2 + $0x208] sm:$0xff]
      %v1708 = vld [vmem:[#allocation2 + $0x210] sm:$0xff]
      %v1709 = vld [vmem:[#allocation2 + $0x218] sm:$0xf]
      %v1710 = vld [vmem:[#allocation2 + $0x21c] sm:$0xff]
      %v1711 = vld [vmem:[#allocation2 + $0x224] sm:$0xff]
      %v1712 = vld [vmem:[#allocation2 + $0x22c] sm:$0xf]
      %v1713 = vld [vmem:[#allocation2 + $0x230] sm:$0xff]
      %v1714 = vld [vmem:[#allocation2 + $0x238] sm:$0xff]
      %v1715 = vld [vmem:[#allocation2 + $0x240] sm:$0xf]
      %v1716 = vld [vmem:[#allocation2 + $0x244] sm:$0xff]
      %v1717 = vld [vmem:[#allocation2 + $0x24c] sm:$0xff]
      %v1718 = vld [vmem:[#allocation2 + $0x254] sm:$0xf]
      %v1719 = vld [vmem:[#allocation2 + $0x258] sm:$0xff]
      %v1720 = vld [vmem:[#allocation2 + $0x260] sm:$0xff]
      %v1721 = vld [vmem:[#allocation2 + $0x268] sm:$0xf]
      %v1722 = vld [vmem:[#allocation2 + $0x26c] sm:$0xff]
      %v1723 = vld [vmem:[#allocation2 + $0x274] sm:$0xff]
      %v1724 = vld [vmem:[#allocation2 + $0x27c] sm:$0xf]
      %v1727 = vunpack.c.l.b16 %v1627
      %v1728 = vunpack.c.h.b16 %v1627
      %v1729 = vunpack.c.l.b16 %v1628
      %v1730 = vunpack.c.h.b16 %v1628
      %v1731 = vpack.c.b16 %v1729, %v1727
      %v1732 = vpack.c.b16 %v1730, %v1728
      %v1831 = vunpack.c.l.b16 %v1629
      %v1832 = vunpack.c.h.b16 %v1629
      %v1833 = vunpack.c.l.b16 %v1630
      %v1834 = vunpack.c.h.b16 %v1630
      %v1835 = vunpack.c.l.b16 %v1631
      %v1836 = vunpack.c.l.b16 %v1632
      %v1837 = vunpack.c.h.b16 %v1632
      %v1838 = vunpack.c.l.b16 %v1633
      %v1839 = vunpack.c.h.b16 %v1633
      %v1840 = vunpack.c.l.b16 %v1634
      %v1841 = vunpack.c.l.b16 %v1635
      %v1842 = vunpack.c.h.b16 %v1635
      %v1843 = vunpack.c.l.b16 %v1636
      %v1844 = vunpack.c.h.b16 %v1636
      %v1845 = vunpack.c.l.b16 %v1637
      %v1846 = vunpack.c.l.b16 %v1638
      %v1847 = vunpack.c.h.b16 %v1638
      %v1848 = vunpack.c.l.b16 %v1639
      %v1849 = vunpack.c.h.b16 %v1639
      %v1850 = vunpack.c.l.b16 %v1640
      %v1851 = vunpack.c.l.b16 %v1641
      %v1852 = vunpack.c.h.b16 %v1641
      %v1853 = vunpack.c.l.b16 %v1642
      %v1854 = vunpack.c.h.b16 %v1642
      %v1855 = vunpack.c.l.b16 %v1643
      %v1856 = vunpack.c.l.b16 %v1644
      %v1857 = vunpack.c.h.b16 %v1644
      %v1858 = vunpack.c.l.b16 %v1645
      %v1859 = vunpack.c.h.b16 %v1645
      %v1860 = vunpack.c.l.b16 %v1646
      %v1861 = vunpack.c.l.b16 %v1647
      %v1862 = vunpack.c.h.b16 %v1647
      %v1863 = vunpack.c.l.b16 %v1648
      %v1864 = vunpack.c.h.b16 %v1648
      %v1865 = vunpack.c.l.b16 %v1649
      %v1866 = vunpack.c.l.b16 %v1650
      %v1867 = vunpack.c.h.b16 %v1650
      %v1868 = vunpack.c.l.b16 %v1651
      %v1869 = vunpack.c.h.b16 %v1651
      %v1870 = vunpack.c.l.b16 %v1652
      %v1871 = vunpack.c.l.b16 %v1653
      %v1872 = vunpack.c.h.b16 %v1653
      %v1873 = vunpack.c.l.b16 %v1654
      %v1874 = vunpack.c.h.b16 %v1654
      %v1875 = vunpack.c.l.b16 %v1655
      %v1876 = vunpack.c.l.b16 %v1656
      %v1877 = vunpack.c.h.b16 %v1656
      %v1878 = vunpack.c.l.b16 %v1657
      %v1879 = vunpack.c.h.b16 %v1657
      %v1880 = vunpack.c.l.b16 %v1658
      %v1881 = vunpack.c.l.b16 %v1659
      %v1882 = vunpack.c.h.b16 %v1659
      %v1883 = vunpack.c.l.b16 %v1660
      %v1884 = vunpack.c.h.b16 %v1660
      %v1885 = vunpack.c.l.b16 %v1661
      %v1886 = vunpack.c.l.b16 %v1662
      %v1887 = vunpack.c.h.b16 %v1662
      %v1888 = vunpack.c.l.b16 %v1663
      %v1889 = vunpack.c.h.b16 %v1663
      %v1890 = vunpack.c.l.b16 %v1664
      %v1891 = vunpack.c.l.b16 %v1665
      %v1892 = vunpack.c.h.b16 %v1665
      %v1893 = vunpack.c.l.b16 %v1666
      %v1894 = vunpack.c.h.b16 %v1666
      %v1895 = vunpack.c.l.b16 %v1667
      %v1896 = vunpack.c.l.b16 %v1668
      %v1897 = vunpack.c.h.b16 %v1668
      %v1898 = vunpack.c.l.b16 %v1669
      %v1899 = vunpack.c.h.b16 %v1669
      %v1900 = vunpack.c.l.b16 %v1670
      %v1901 = vunpack.c.l.b16 %v1671
      %v1902 = vunpack.c.h.b16 %v1671
      %v1903 = vunpack.c.l.b16 %v1672
      %v1904 = vunpack.c.h.b16 %v1672
      %v1905 = vunpack.c.l.b16 %v1673
      %v1906 = vunpack.c.l.b16 %v1674
      %v1907 = vunpack.c.h.b16 %v1674
      %v1908 = vunpack.c.l.b16 %v1675
      %v1909 = vunpack.c.h.b16 %v1675
      %v1910 = vunpack.c.l.b16 %v1676
      %v1911 = vunpack.c.l.b16 %v1677
      %v1912 = vunpack.c.h.b16 %v1677
      %v1913 = vunpack.c.l.b16 %v1678
      %v1914 = vunpack.c.h.b16 %v1678
      %v1915 = vunpack.c.l.b16 %v1679
      %v1916 = vunpack.c.l.b16 %v1680
      %v1917 = vunpack.c.h.b16 %v1680
      %v1918 = vunpack.c.l.b16 %v1681
      %v1919 = vunpack.c.h.b16 %v1681
      %v1920 = vunpack.c.l.b16 %v1682
      %v1921 = vunpack.c.l.b16 %v1683
      %v1922 = vunpack.c.h.b16 %v1683
      %v1923 = vunpack.c.l.b16 %v1684
      %v1924 = vunpack.c.h.b16 %v1684
      %v1925 = vunpack.c.l.b16 %v1685
      %v1926 = vunpack.c.l.b16 %v1686
      %v1927 = vunpack.c.h.b16 %v1686
      %v1928 = vunpack.c.l.b16 %v1687
      %v1929 = vunpack.c.h.b16 %v1687
      %v1930 = vunpack.c.l.b16 %v1688
      %v1931 = vunpack.c.l.b16 %v1689
      %v1932 = vunpack.c.h.b16 %v1689
      %v1933 = vunpack.c.l.b16 %v1690
      %v1934 = vunpack.c.h.b16 %v1690
      %v1935 = vunpack.c.l.b16 %v1691
      %v1936 = vunpack.c.l.b16 %v1692
      %v1937 = vunpack.c.h.b16 %v1692
      %v1938 = vunpack.c.l.b16 %v1693
      %v1939 = vunpack.c.h.b16 %v1693
      %v1940 = vunpack.c.l.b16 %v1694
      %v1941 = vunpack.c.l.b16 %v1695
      %v1942 = vunpack.c.h.b16 %v1695
      %v1943 = vunpack.c.l.b16 %v1696
      %v1944 = vunpack.c.h.b16 %v1696
      %v1945 = vunpack.c.l.b16 %v1697
      %v1946 = vunpack.c.l.b16 %v1698
      %v1947 = vunpack.c.h.b16 %v1698
      %v1948 = vunpack.c.l.b16 %v1699
      %v1949 = vunpack.c.h.b16 %v1699
      %v1950 = vunpack.c.l.b16 %v1700
      %v1951 = vunpack.c.l.b16 %v1701
      %v1952 = vunpack.c.h.b16 %v1701
      %v1953 = vunpack.c.l.b16 %v1702
      %v1954 = vunpack.c.h.b16 %v1702
      %v1955 = vunpack.c.l.b16 %v1703
      %v1956 = vunpack.c.l.b16 %v1704
      %v1957 = vunpack.c.h.b16 %v1704
      %v1958 = vunpack.c.l.b16 %v1705
      %v1959 = vunpack.c.h.b16 %v1705
      %v1960 = vunpack.c.l.b16 %v1706
      %v1961 = vunpack.c.l.b16 %v1707
      %v1962 = vunpack.c.h.b16 %v1707
      %v1963 = vunpack.c.l.b16 %v1708
      %v1964 = vunpack.c.h.b16 %v1708
      %v1965 = vunpack.c.l.b16 %v1709
      %v1966 = vunpack.c.l.b16 %v1710
      %v1967 = vunpack.c.h.b16 %v1710
      %v1968 = vunpack.c.l.b16 %v1711
      %v1969 = vunpack.c.h.b16 %v1711
      %v1970 = vunpack.c.l.b16 %v1712
      %v1971 = vunpack.c.l.b16 %v1713
      %v1972 = vunpack.c.h.b16 %v1713
      %v1973 = vunpack.c.l.b16 %v1714
      %v1974 = vunpack.c.h.b16 %v1714
      %v1975 = vunpack.c.l.b16 %v1715
      %v1976 = vunpack.c.l.b16 %v1716
      %v1977 = vunpack.c.h.b16 %v1716
      %v1978 = vunpack.c.l.b16 %v1717
      %v1979 = vunpack.c.h.b16 %v1717
      %v1980 = vunpack.c.l.b16 %v1718
      %v1981 = vunpack.c.l.b16 %v1719
      %v1982 = vunpack.c.h.b16 %v1719
      %v1983 = vunpack.c.l.b16 %v1720
      %v1984 = vunpack.c.h.b16 %v1720
      %v1985 = vunpack.c.l.b16 %v1721
      %v1986 = vunpack.c.l.b16 %v1722
      %v1987 = vunpack.c.h.b16 %v1722
      %v1988 = vunpack.c.l.b16 %v1723
      %v1989 = vunpack.c.h.b16 %v1723
      %v1990 = vunpack.c.l.b16 %v1724
      %v1991 = vpack.c.b16 %v1836, %v1831
      %v1992 = vpack.c.b16 %v1837, %v1832
      %v1993 = vpack.c.b16 %v1838, %v1833
      %v1994 = vpack.c.b16 %v1839, %v1834
      %v1995 = vpack.c.b16 %v1840, %v1835
      %v1996 = vpack.c.b16 %v1846, %v1841
      %v1997 = vpack.c.b16 %v1847, %v1842
      %v1998 = vpack.c.b16 %v1848, %v1843
      %v1999 = vpack.c.b16 %v1849, %v1844
      %v2000 = vpack.c.b16 %v1850, %v1845
      %v2001 = vpack.c.b16 %v1856, %v1851
      %v2002 = vpack.c.b16 %v1857, %v1852
      %v2003 = vpack.c.b16 %v1858, %v1853
      %v2004 = vpack.c.b16 %v1859, %v1854
      %v2005 = vpack.c.b16 %v1860, %v1855
      %v2006 = vpack.c.b16 %v1866, %v1861
      %v2007 = vpack.c.b16 %v1867, %v1862
      %v2008 = vpack.c.b16 %v1868, %v1863
      %v2009 = vpack.c.b16 %v1869, %v1864
      %v2010 = vpack.c.b16 %v1870, %v1865
      %v2011 = vpack.c.b16 %v1876, %v1871
      %v2012 = vpack.c.b16 %v1877, %v1872
      %v2013 = vpack.c.b16 %v1878, %v1873
      %v2014 = vpack.c.b16 %v1879, %v1874
      %v2015 = vpack.c.b16 %v1880, %v1875
      %v2016 = vpack.c.b16 %v1886, %v1881
      %v2017 = vpack.c.b16 %v1887, %v1882
      %v2018 = vpack.c.b16 %v1888, %v1883
      %v2019 = vpack.c.b16 %v1889, %v1884
      %v2020 = vpack.c.b16 %v1890, %v1885
      %v2021 = vpack.c.b16 %v1896, %v1891
      %v2022 = vpack.c.b16 %v1897, %v1892
      %v2023 = vpack.c.b16 %v1898, %v1893
      %v2024 = vpack.c.b16 %v1899, %v1894
      %v2025 = vpack.c.b16 %v1900, %v1895
      %v2026 = vpack.c.b16 %v1906, %v1901
      %v2027 = vpack.c.b16 %v1907, %v1902
      %v2028 = vpack.c.b16 %v1908, %v1903
      %v2029 = vpack.c.b16 %v1909, %v1904
      %v2030 = vpack.c.b16 %v1910, %v1905
      %v2031 = vpack.c.b16 %v1916, %v1911
      %v2032 = vpack.c.b16 %v1917, %v1912
      %v2033 = vpack.c.b16 %v1918, %v1913
      %v2034 = vpack.c.b16 %v1919, %v1914
      %v2035 = vpack.c.b16 %v1920, %v1915
      %v2036 = vpack.c.b16 %v1926, %v1921
      %v2037 = vpack.c.b16 %v1927, %v1922
      %v2038 = vpack.c.b16 %v1928, %v1923
      %v2039 = vpack.c.b16 %v1929, %v1924
      %v2040 = vpack.c.b16 %v1930, %v1925
      %v2041 = vpack.c.b16 %v1936, %v1931
      %v2042 = vpack.c.b16 %v1937, %v1932
      %v2043 = vpack.c.b16 %v1938, %v1933
      %v2044 = vpack.c.b16 %v1939, %v1934
      %v2045 = vpack.c.b16 %v1940, %v1935
      %v2046 = vpack.c.b16 %v1946, %v1941
      %v2047 = vpack.c.b16 %v1947, %v1942
      %v2048 = vpack.c.b16 %v1948, %v1943
      %v2049 = vpack.c.b16 %v1949, %v1944
      %v2050 = vpack.c.b16 %v1950, %v1945
      %v2051 = vpack.c.b16 %v1956, %v1951
      %v2052 = vpack.c.b16 %v1957, %v1952
      %v2053 = vpack.c.b16 %v1958, %v1953
      %v2054 = vpack.c.b16 %v1959, %v1954
      %v2055 = vpack.c.b16 %v1960, %v1955
      %v2056 = vpack.c.b16 %v1966, %v1961
      %v2057 = vpack.c.b16 %v1967, %v1962
      %v2058 = vpack.c.b16 %v1968, %v1963
      %v2059 = vpack.c.b16 %v1969, %v1964
      %v2060 = vpack.c.b16 %v1970, %v1965
      %v2061 = vpack.c.b16 %v1976, %v1971
      %v2062 = vpack.c.b16 %v1977, %v1972
      %v2063 = vpack.c.b16 %v1978, %v1973
      %v2064 = vpack.c.b16 %v1979, %v1974
      %v2065 = vpack.c.b16 %v1980, %v1975
      %v2066 = vpack.c.b16 %v1986, %v1981
      %v2067 = vpack.c.b16 %v1987, %v1982
      %v2068 = vpack.c.b16 %v1988, %v1983
      %v2069 = vpack.c.b16 %v1989, %v1984
      %v2070 = vpack.c.b16 %v1990, %v1985
      %2151 = vmatpush.bf16.msra.mxu0 %v2026
      %2152 = vmatpush.bf16.msra.mxu0 %v2021
      %2153 = vmatpush.bf16.msra.mxu0 %v2016
      %2154 = vmatpush.bf16.msra.mxu0 %v2011
      %2155 = vmatpush.bf16.msra.mxu0 %v2006
      %2156 = vmatpush.bf16.msra.mxu0 %v2001
      %2157 = vmatpush.bf16.msra.mxu0 %v1996
      %2158 = vmatpush.bf16.msra.mxu0 %v1991
      %2159 = vmatmul.bf16.gmra.mxu0 %v1731
      %v2160 = vpop.f32.mrf.mxu0
      %v2161 = vadd.f32 0.0, %v2160
      %v2162 = vpop.f32.mrf.mxu0
      %v2163 = vadd.f32 0.0, %v2162
      %2164 = vdwg.mxu0
      %2165 = vmatpush.bf16.msra.mxu0 %v2066
      %2166 = vmatpush.bf16.msra.mxu0 %v2061
      %2167 = vmatpush.bf16.msra.mxu0 %v2056
      %2168 = vmatpush.bf16.msra.mxu0 %v2051
      %2169 = vmatpush.bf16.msra.mxu0 %v2046
      %2170 = vmatpush.bf16.msra.mxu0 %v2041
      %2171 = vmatpush.bf16.msra.mxu0 %v2036
      %2172 = vmatpush.bf16.msra.mxu0 %v2031
      %2173 = vmatmul.bf16.gmra.mxu0 %v1732
      %v2174 = vpop.f32.mrf.mxu0
      %v2175 = vadd.f32 %v2161, %v2174
      %v2176 = vpop.f32.mrf.mxu0
      %v2177 = vadd.f32 %v2163, %v2176
      %2178 = vdwg.mxu0
      %2179 = vmatpush.bf16.msra.mxu0 %v2027
      %2180 = vmatpush.bf16.msra.mxu0 %v2022
      %2181 = vmatpush.bf16.msra.mxu0 %v2017
      %2182 = vmatpush.bf16.msra.mxu0 %v2012
      %2183 = vmatpush.bf16.msra.mxu0 %v2007
      %2184 = vmatpush.bf16.msra.mxu0 %v2002
      %2185 = vmatpush.bf16.msra.mxu0 %v1997
      %2186 = vmatpush.bf16.msra.mxu0 %v1992
      %2187 = vmatmul.bf16.gmra.mxu0 %v1731
      %v2188 = vpop.f32.mrf.mxu0
      %v2189 = vadd.f32 0.0, %v2188
      %v2190 = vpop.f32.mrf.mxu0
      %v2191 = vadd.f32 0.0, %v2190
      %2192 = vdwg.mxu0
      %2193 = vmatpush.bf16.msra.mxu0 %v2067
      %2194 = vmatpush.bf16.msra.mxu0 %v2062
      %2195 = vmatpush.bf16.msra.mxu0 %v2057
      %2196 = vmatpush.bf16.msra.mxu0 %v2052
      %2197 = vmatpush.bf16.msra.mxu0 %v2047
      %2198 = vmatpush.bf16.msra.mxu0 %v2042
      %2199 = vmatpush.bf16.msra.mxu0 %v2037
      %2200 = vmatpush.bf16.msra.mxu0 %v2032
      %2201 = vmatmul.bf16.gmra.mxu0 %v1732
      %v2202 = vpop.f32.mrf.mxu0
      %v2203 = vadd.f32 %v2189, %v2202
      %v2204 = vpop.f32.mrf.mxu0
      %v2205 = vadd.f32 %v2191, %v2204
      %2206 = vdwg.mxu0
      %2207 = vmatpush.bf16.msra.mxu0 %v2028
      %2208 = vmatpush.bf16.msra.mxu0 %v2023
      %2209 = vmatpush.bf16.msra.mxu0 %v2018
      %2210 = vmatpush.bf16.msra.mxu0 %v2013
      %2211 = vmatpush.bf16.msra.mxu0 %v2008
      %2212 = vmatpush.bf16.msra.mxu0 %v2003
      %2213 = vmatpush.bf16.msra.mxu0 %v1998
      %2214 = vmatpush.bf16.msra.mxu0 %v1993
      %2215 = vmatmul.bf16.gmra.mxu0 %v1731
      %v2216 = vpop.f32.mrf.mxu0
      %v2217 = vadd.f32 0.0, %v2216
      %v2218 = vpop.f32.mrf.mxu0
      %v2219 = vadd.f32 0.0, %v2218
      %2220 = vdwg.mxu0
      %2221 = vmatpush.bf16.msra.mxu0 %v2068
      %2222 = vmatpush.bf16.msra.mxu0 %v2063
      %2223 = vmatpush.bf16.msra.mxu0 %v2058
      %2224 = vmatpush.bf16.msra.mxu0 %v2053
      %2225 = vmatpush.bf16.msra.mxu0 %v2048
      %2226 = vmatpush.bf16.msra.mxu0 %v2043
      %2227 = vmatpush.bf16.msra.mxu0 %v2038
      %2228 = vmatpush.bf16.msra.mxu0 %v2033
      %2229 = vmatmul.bf16.gmra.mxu0 %v1732
      %v2230 = vpop.f32.mrf.mxu0
      %v2231 = vadd.f32 %v2217, %v2230
      %v2232 = vpop.f32.mrf.mxu0
      %v2233 = vadd.f32 %v2219, %v2232
      %2234 = vdwg.mxu0
      %2235 = vmatpush.bf16.msra.mxu0 %v2029
      %2236 = vmatpush.bf16.msra.mxu0 %v2024
      %2237 = vmatpush.bf16.msra.mxu0 %v2019
      %2238 = vmatpush.bf16.msra.mxu0 %v2014
      %2239 = vmatpush.bf16.msra.mxu0 %v2009
      %2240 = vmatpush.bf16.msra.mxu0 %v2004
      %2241 = vmatpush.bf16.msra.mxu0 %v1999
      %2242 = vmatpush.bf16.msra.mxu0 %v1994
      %2243 = vmatmul.bf16.gmra.mxu0 %v1731
      %v2244 = vpop.f32.mrf.mxu0
      %v2245 = vadd.f32 0.0, %v2244
      %v2246 = vpop.f32.mrf.mxu0
      %v2247 = vadd.f32 0.0, %v2246
      %2248 = vdwg.mxu0
      %2249 = vmatpush.bf16.msra.mxu0 %v2069
      %2250 = vmatpush.bf16.msra.mxu0 %v2064
      %2251 = vmatpush.bf16.msra.mxu0 %v2059
      %2252 = vmatpush.bf16.msra.mxu0 %v2054
      %2253 = vmatpush.bf16.msra.mxu0 %v2049
      %2254 = vmatpush.bf16.msra.mxu0 %v2044
      %2255 = vmatpush.bf16.msra.mxu0 %v2039
      %2256 = vmatpush.bf16.msra.mxu0 %v2034
      %2257 = vmatmul.bf16.gmra.mxu0 %v1732
      %v2258 = vpop.f32.mrf.mxu0
      %v2259 = vadd.f32 %v2245, %v2258
      %v2260 = vpop.f32.mrf.mxu0
      %v2261 = vadd.f32 %v2247, %v2260
      %2262 = vdwg.mxu0
      %2263 = vmatpush.bf16.msra.mxu0 %v2030
      %2264 = vmatpush.bf16.msra.mxu0 %v2025
      %2265 = vmatpush.bf16.msra.mxu0 %v2020
      %2266 = vmatpush.bf16.msra.mxu0 %v2015
      %2267 = vmatpush.bf16.msra.mxu0 %v2010
      %2268 = vmatpush.bf16.msra.mxu0 %v2005
      %2269 = vmatpush.bf16.msra.mxu0 %v2000
      %2270 = vmatpush.bf16.msra.mxu0 %v1995
      %2271 = vmatmul.bf16.gmra.mxu0 %v1731
      %v2272 = vpop.f32.mrf.mxu0
      %v2273 = vadd.f32 0.0, %v2272
      %v2274 = vpop.f32.mrf.mxu0
      %v2275 = vadd.f32 0.0, %v2274
      %2276 = vdwg.mxu0
      %2277 = vmatpush.bf16.msra.mxu0 %v2070
      %2278 = vmatpush.bf16.msra.mxu0 %v2065
      %2279 = vmatpush.bf16.msra.mxu0 %v2060
      %2280 = vmatpush.bf16.msra.mxu0 %v2055
      %2281 = vmatpush.bf16.msra.mxu0 %v2050
      %2282 = vmatpush.bf16.msra.mxu0 %v2045
      %2283 = vmatpush.bf16.msra.mxu0 %v2040
      %2284 = vmatpush.bf16.msra.mxu0 %v2035
      %2285 = vmatmul.bf16.gmra.mxu0 %v1732
      %v2286 = vpop.f32.mrf.mxu0
      %v2287 = vadd.f32 %v2273, %v2286
      %v2288 = vpop.f32.mrf.mxu0
      %v2289 = vadd.f32 %v2275, %v2288
      %2290 = vdwg.mxu0
      %v2292 = vperm.slane %v243, 0
      %v2293 = vperm.slane %v243, 1
      %v2294 = vperm.slane %v243, 2
      %v2295 = vperm.slane %v243, 3
      %v2296 = vperm.slane %v243, 4
      %v2302 = vmul.f32 %v2175, %v2292
      %v2303 = vmul.f32 %v2203, %v2293
      %v2304 = vmul.f32 %v2231, %v2294
      %v2305 = vmul.f32 %v2259, %v2295
      %v2306 = vmul.f32 %v2287, %v2296
      %v2307 = vmul.f32 %v2177, %v2292
      %v2308 = vmul.f32 %v2205, %v2293
      %v2309 = vmul.f32 %v2233, %v2294
      %v2310 = vmul.f32 %v2261, %v2295
      %v2311 = vmul.f32 %v2289, %v2296
      %v2312 = vmul.f32 %v2302, %v2302
      %v2313 = vmul.f32 %v2303, %v2303
      %v2314 = vmul.f32 %v2304, %v2304
      %v2315 = vmul.f32 %v2305, %v2305
      %v2316 = vmul.f32 %v2306, %v2306
      %v2317 = vmul.f32 %v2307, %v2307
      %v2318 = vmul.f32 %v2308, %v2308
      %v2319 = vmul.f32 %v2309, %v2309
      %v2320 = vmul.f32 %v2310, %v2310
      %v2321 = vmul.f32 %v2311, %v2311
      %v2322 = vadd.f32 %v2312, %v2313
      %v2323 = vadd.f32 %v2322, %v2314
      %v2324 = vadd.f32 %v2323, %v2315
      %v2325 = vadd.f32 %v2324, %v2316
      %2326 = vadd.xlane.f32.xlu0 %v2325
      %v2327 = vpop.xlane.xlu0 %2326
      %v2328 = vadd.f32 %v2317, %v2318
      %v2329 = vadd.f32 %v2328, %v2319
      %v2330 = vadd.f32 %v2329, %v2320
      %v2331 = vadd.f32 %v2330, %v2321
      %2332 = vadd.xlane.f32.xlu0 %v2331
      %v2333 = vpop.xlane.xlu0 %2332
      %2334 = vst.msk [vmem:[%s237] sm:$0xff] %vm971, %v2327
      %2335 = vst.msk [vmem:[%s237 + $0x8] sm:$0xff] %vm971, %v2333
      %2336 = vst [vmem:[%s232] sm:$0xff] 0.0
      %2337 = vst [vmem:[%s232 + $0x38] sm:$0xff] 0.0
      %2338 = vst [vmem:[%s232 + $0x30] sm:$0xff] 0.0
      %2339 = vst [vmem:[%s232 + $0x68] sm:$0xff] 0.0
      %2340 = vst [vmem:[%s232 + $0x8] sm:$0xff] %v2302
      %2341 = vst [vmem:[%s232 + $0x10] sm:$0xff] %v2303
      %2342 = vst [vmem:[%s232 + $0x18] sm:$0xff] %v2304
      %2343 = vst [vmem:[%s232 + $0x20] sm:$0xff] %v2305
      %2344 = vst [vmem:[%s232 + $0x28] sm:$0xff] %v2306
      %2345 = vst [vmem:[%s232 + $0x40] sm:$0xff] %v2307
      %2346 = vst [vmem:[%s232 + $0x48] sm:$0xff] %v2308
      %2347 = vst [vmem:[%s232 + $0x50] sm:$0xff] %v2309
      %2348 = vst [vmem:[%s232 + $0x58] sm:$0xff] %v2310
      %2349 = vst [vmem:[%s232 + $0x60] sm:$0xff] %v2311
      %p2350 = scmp.lt.s32.totalorder %s17, 1
      %s2351 = scalar_select %p2350, %s17, 1
      %s2352 = smul.addr %s2351, 14
      %s2353 = smul.addr %s2352, 8
      %s2354 = scalar_lea.vmem %s4, %s2353
      %p2355 = scmp.lt.s32.totalorder %s17, 1
      %s2356 = scalar_select %p2355, %s17, 1
      %s2357 = smul.addr %s2356, 2
      %s2358 = smul.addr %s2357, 8
      %s2359 = scalar_lea.vmem %s5, %s2358
      // Predicated region
      $region37: #{se3_norm_res_block.3} parent=35 // pred_check
        %p2360 = pneg %p124
      $region38: #{se3_norm_res_block.3} parent=35 // pred_check_branch
        %2362 = sbr.rel (%p2360) target = $region40
      $region39: #{se3_norm_res_block.3} parent=35 // pred_region
        _
      $region40: #{se3_norm_res_block.3} parent=35 // pred_fallthru
        _
      // Predicated region
      $region41: #{se3_norm_res_block.3} parent=35 // pred_check
        %p2363 = pneg %p150
      $region42: #{se3_norm_res_block.3} parent=35 // pred_check_branch
        %2365 = sbr.rel (%p2363) target = $region44
      $region43: #{se3_norm_res_block.3} parent=35 // pred_region
        _
      $region44: #{se3_norm_res_block.3} parent=35 // pred_fallthru
        _
    $region36: #{se3_norm_res_block.3} parent=5 // pred_fallthru
      _
    %p2366 = scmp.le.s32.totalorder 2, %s12
    // Predicated region
    $region45: #{se3_norm_res_block.3} parent=5 // pred_check
      %p2367 = pneg %p2366
    $region46: #{se3_norm_res_block.3} parent=5 // pred_check_branch
      %2369 = sbr.rel (%p2367) target = $region48
    $region47: #{se3_norm_res_block.3} parent=5 // pred_region
      %s2370 = ssub.s32 %s12, 2
      // Predicated region
      $region49: #{se3_norm_res_block.3} parent=47 // pred_check
        %p2371 = pneg %p130
      $region50: #{se3_norm_res_block.3} parent=47 // pred_check_branch
        %2373 = sbr.rel (%p2371) target = $region52
      $region51: #{se3_norm_res_block.3} parent=47 // pred_region
        %p2374 = scmp.lt.s32.totalorder %s18, 1
        %s2375 = scalar_select %p2374, %s18, 1
        %s2376 = smul.addr %s2375, 14
        %s2377 = smul.addr %s2376, 8
        %s2378 = scalar_lea.vmem %s4, %s2377
      $region52: #{se3_norm_res_block.3} parent=47 // pred_fallthru
        _
      // Predicated region
      $region53: #{se3_norm_res_block.3} parent=47 // pred_check
        %p2379 = pneg %p156
      $region54: #{se3_norm_res_block.3} parent=47 // pred_check_branch
        %2381 = sbr.rel (%p2379) target = $region56
      $region55: #{se3_norm_res_block.3} parent=47 // pred_region
        %p2382 = scmp.lt.s32.totalorder %s18, 1
        %s2383 = scalar_select %p2382, %s18, 1
        %s2384 = smul.addr %s2383, 2
        %s2385 = smul.addr %s2384, 8
        %s2386 = scalar_lea.vmem %s5, %s2385
      $region56: #{se3_norm_res_block.3} parent=47 // pred_fallthru
        _
    $region48: #{se3_norm_res_block.3} parent=5 // pred_fallthru
      _
  $region6: #{se3_norm_res_block.3} parent=0 // loop_footer
    %s16 = sadd.s32 1, %s12
  $region7: #{se3_norm_res_block.3} parent=0 // loop_footer_branch
    %11 = sbr.rel target = $region3
  $region8: #{se3_norm_res_block.3} parent=0 // loop_exit
    _

// kernel: se3_norm_res_block.4
$region0: #{se3_norm_res_block.4}
  #allocation0 [shape = 'u32[]', space=smem, size = 0x4, offset = 0x4, fixed_abs, tag = 'smem constant byte address 0x4 - core index']
  #allocation1 [shape = 'u32[72,128]{1,0:T(1,128)}', space=vmem, size = 0x9000, scoped, tag = 'internal scratch']
  #allocation2 [shape = 'bf16[512,640]{1,0:T(8,128)(2,1)}', space=vmem, size = 0xa0000, scoped, tag = 'scratch operand']
  #allocation3 [shape = 'f32[16,896]{1,0:T(8,128)}', space=vmem, size = 0xe000, scoped, tag = 'scratch operand']
  %s0 = inlined_call_operand.vmem [shape: f32[16,1], index: 0, kind: input, shape index: {}]
  %s1 = inlined_call_operand.vmem [shape: f32[4,640], index: 1, kind: input, shape index: {}]
  %s2 = inlined_call_operand.vmem [shape: bf16[8,512], index: 2, kind: input, shape index: {}]
  %s3 = inlined_call_operand.vmem [shape: f32[2,16,896], index: 3, kind: input, shape index: {}]
  %s4 = inlined_call_operand.vmem [shape: f32[2,8,896], index: 4, kind: output, shape index: {0}]
  %s5 = inlined_call_operand.vmem [shape: f32[2,8,1], index: 5, kind: output, shape index: {1}]
  %6 = xla_tuple %s4, %s5
  %s7 = sld [smem:[#allocation0]]
  $region57: #{se3_norm_res_block.4} parent=0
    _
  %s9 = ssub.s32 1, %s7
  %s10 = scalar_select 0, %s9, %s7
  loop: start=0, step=1, limit=4
  $region2: #{se3_norm_res_block.4} parent=0 // loop_pre_header
    _
  $region3: #{se3_norm_res_block.4} parent=0 // loop_header
    %s12 = sphi 0, %s16
    %p13 = scmp.ge.s32.totalorder %s12, 4
    %s20 = sphi 0, %s20
    %s22 = sphi 0, %s20
    %s23 = sphi 0, %s22
    %s37 = sphi 0, %s23
    %s41 = sphi 0, %s41
    %s43 = sphi 0, %s41
    %s44 = sphi 0, %s43
    %s58 = sphi 0, %s44
    %s62 = sphi 0, %s62
    %s64 = sphi 0, %s62
    %s65 = sphi 0, %s64
    %s79 = sphi 0, %s65
    %s85 = sphi 0, %s87
    %s88 = sphi 0, %s85
    %s89 = sphi 0, %s88
    %s105 = sphi 0, %s89
    %s111 = sphi 0, %s113
    %s114 = sphi 0, %s111
    %s115 = sphi 0, %s114
    %s131 = sphi 0, %s115
    %s137 = sphi 0, %s139
    %s140 = sphi 0, %s137
    %s141 = sphi 0, %s140
    %s157 = sphi 0, %s141
  $region4: #{se3_norm_res_block.4} parent=0 // loop_header_branch
    %15 = sbr.rel (%p13) target = $region8
  $region5: #{se3_norm_res_block.4} parent=0 // loop_body
    %s17 = ssub.s32 %s12, 1
    %s18 = ssub.s32 %s12, 2
    %s19 = sadd.s32 %s12, 1
    %s21 = sadd.s32 %s20, 1
    %p24 = scmp.eq.s32.totalorder %s12, 1
    %p25 = scmp.ne.s32.totalorder %s20, %s22
    %p26 = scmp.eq.s32.totalorder %s12, 0
    %p27 = por %p25, %p26
    %p28 = scmp.ne.s32.totalorder %s20, %s22
    %p29 = scmp.eq.s32.totalorder %s17, 1
    %p30 = por %p28, %p29
    %p31 = scmp.ne.s32.totalorder %s22, %s23
    %p32 = scmp.eq.s32.totalorder %s17, 0
    %p33 = por %p31, %p32
    %p34 = scmp.ne.s32.totalorder %s22, %s23
    %p35 = scmp.eq.s32.totalorder %s18, 1
    %p36 = por %p34, %p35
    %p38 = scmp.ne.s32.totalorder %s23, %s37
    %p39 = scmp.eq.s32.totalorder %s18, 0
    %p40 = por %p38, %p39
    %s42 = sadd.s32 %s41, 1
    %p45 = scmp.eq.s32.totalorder %s12, 1
    %p46 = scmp.ne.s32.totalorder %s41, %s43
    %p47 = scmp.eq.s32.totalorder %s12, 0
    %p48 = por %p46, %p47
    %p49 = scmp.ne.s32.totalorder %s41, %s43
    %p50 = scmp.eq.s32.totalorder %s17, 1
    %p51 = por %p49, %p50
    %p52 = scmp.ne.s32.totalorder %s43, %s44
    %p53 = scmp.eq.s32.totalorder %s17, 0
    %p54 = por %p52, %p53
    %p55 = scmp.ne.s32.totalorder %s43, %s44
    %p56 = scmp.eq.s32.totalorder %s18, 1
    %p57 = por %p55, %p56
    %p59 = scmp.ne.s32.totalorder %s44, %s58
    %p60 = scmp.eq.s32.totalorder %s18, 0
    %p61 = por %p59, %p60
    %s63 = sadd.s32 %s62, 1
    %p66 = scmp.eq.s32.totalorder %s12, 1
    %p67 = scmp.ne.s32.totalorder %s62, %s64
    %p68 = scmp.eq.s32.totalorder %s12, 0
    %p69 = por %p67, %p68
    %p70 = scmp.ne.s32.totalorder %s62, %s64
    %p71 = scmp.eq.s32.totalorder %s17, 1
    %p72 = por %p70, %p71
    %p73 = scmp.ne.s32.totalorder %s64, %s65
    %p74 = scmp.eq.s32.totalorder %s17, 0
    %p75 = por %p73, %p74
    %p76 = scmp.ne.s32.totalorder %s64, %s65
    %p77 = scmp.eq.s32.totalorder %s18, 1
    %p78 = por %p76, %p77
    %p80 = scmp.ne.s32.totalorder %s65, %s79
    %p81 = scmp.eq.s32.totalorder %s18, 0
    %p82 = por %p80, %p81
    %s83 = ssub.s32 %s12, %s19
    %p84 = scmp.eq.s32.totalorder %s83, 0
    %s86 = sadd.s32 %s85, 1
    %s87 = scalar_select %p84, %s85, %s86
    %p90 = pneg %p84
    %p91 = scmp.eq.s32.totalorder %s12, 1
    %p92 = por %p90, %p91
    %p93 = scmp.ne.s32.totalorder %s85, %s88
    %p94 = scmp.eq.s32.totalorder %s12, 0
    %p95 = por %p93, %p94
    %p96 = scmp.ne.s32.totalorder %s85, %s88
    %p97 = scmp.eq.s32.totalorder %s17, 1
    %p98 = por %p96, %p97
    %p99 = scmp.ne.s32.totalorder %s88, %s89
    %p100 = scmp.eq.s32.totalorder %s17, 0
    %p101 = por %p99, %p100
    %p102 = scmp.ne.s32.totalorder %s88, %s89
    %p103 = scmp.eq.s32.totalorder %s18, 1
    %p104 = por %p102, %p103
    %p106 = scmp.ne.s32.totalorder %s89, %s105
    %p107 = scmp.eq.s32.totalorder %s18, 0
    %p108 = por %p106, %p107
    %s109 = ssub.s32 %s12, %s19
    %p110 = scmp.eq.s32.totalorder %s109, 0
    %s112 = sadd.s32 %s111, 1
    %s113 = scalar_select %p110, %s111, %s112
    %p116 = pneg %p110
    %p117 = scmp.eq.s32.totalorder %s12, 1
    %p118 = por %p116, %p117
    %p119 = scmp.ne.s32.totalorder %s111, %s114
    %p120 = scmp.eq.s32.totalorder %s12, 0
    %p121 = por %p119, %p120
    %p122 = scmp.ne.s32.totalorder %s111, %s114
    %p123 = scmp.eq.s32.totalorder %s17, 1
    %p124 = por %p122, %p123
    %p125 = scmp.ne.s32.totalorder %s114, %s115
    %p126 = scmp.eq.s32.totalorder %s17, 0
    %p127 = por %p125, %p126
    %p128 = scmp.ne.s32.totalorder %s114, %s115
    %p129 = scmp.eq.s32.totalorder %s18, 1
    %p130 = por %p128, %p129
    %p132 = scmp.ne.s32.totalorder %s115, %s131
    %p133 = scmp.eq.s32.totalorder %s18, 0
    %p134 = por %p132, %p133
    %s135 = ssub.s32 %s12, %s19
    %p136 = scmp.eq.s32.totalorder %s135, 0
    %s138 = sadd.s32 %s137, 1
    %s139 = scalar_select %p136, %s137, %s138
    %p142 = pneg %p136
    %p143 = scmp.eq.s32.totalorder %s12, 1
    %p144 = por %p142, %p143
    %p145 = scmp.ne.s32.totalorder %s137, %s140
    %p146 = scmp.eq.s32.totalorder %s12, 0
    %p147 = por %p145, %p146
    %p148 = scmp.ne.s32.totalorder %s137, %s140
    %p149 = scmp.eq.s32.totalorder %s17, 1
    %p150 = por %p148, %p149
    %p151 = scmp.ne.s32.totalorder %s140, %s141
    %p152 = scmp.eq.s32.totalorder %s17, 0
    %p153 = por %p151, %p152
    %p154 = scmp.ne.s32.totalorder %s140, %s141
    %p155 = scmp.eq.s32.totalorder %s18, 1
    %p156 = por %p154, %p155
    %p158 = scmp.ne.s32.totalorder %s141, %s157
    %p159 = scmp.eq.s32.totalorder %s18, 0
    %p160 = por %p158, %p159
    %p161 = scmp.le.s32.totalorder 1, %s12
    %p162 = scmp.lt.s32.totalorder %s12, 3
    %p163 = pnand %p161, %p162
    %p164 = pneg %p163
    // Predicated region
    $region9: #{se3_norm_res_block.4} parent=5 // pred_check
      _
    $region10: #{se3_norm_res_block.4} parent=5 // pred_check_branch
      %166 = sbr.rel (%p163) target = $region12
    $region11: #{se3_norm_res_block.4} parent=5 // pred_region
      %s167 = ssub.s32 %s12, 1
      // Predicated region
      $region13: #{se3_norm_res_block.4} parent=11 // pred_check
        %p168 = pneg %p33
      $region14: #{se3_norm_res_block.4} parent=11 // pred_check_branch
        %170 = sbr.rel (%p168) target = $region16
      $region15: #{se3_norm_res_block.4} parent=11 // pred_region
        _
      $region16: #{se3_norm_res_block.4} parent=11 // pred_fallthru
        _
      // Predicated region
      $region17: #{se3_norm_res_block.4} parent=11 // pred_check
        %p171 = pneg %p54
      $region18: #{se3_norm_res_block.4} parent=11 // pred_check_branch
        %173 = sbr.rel (%p171) target = $region20
      $region19: #{se3_norm_res_block.4} parent=11 // pred_region
        _
      $region20: #{se3_norm_res_block.4} parent=11 // pred_fallthru
        _
      // Predicated region
      $region21: #{se3_norm_res_block.4} parent=11 // pred_check
        %p174 = pneg %p75
      $region22: #{se3_norm_res_block.4} parent=11 // pred_check_branch
        %176 = sbr.rel (%p174) target = $region24
      $region23: #{se3_norm_res_block.4} parent=11 // pred_region
        _
      $region24: #{se3_norm_res_block.4} parent=11 // pred_fallthru
        _
    $region12: #{se3_norm_res_block.4} parent=5 // pred_fallthru
      _
    %p177 = scmp.lt.s32.totalorder %s12, 2
    // Predicated region
    $region25: #{se3_norm_res_block.4} parent=5 // pred_check
      %p178 = pneg %p177
    $region26: #{se3_norm_res_block.4} parent=5 // pred_check_branch
      %180 = sbr.rel (%p178) target = $region28
    $region27: #{se3_norm_res_block.4} parent=5 // pred_region
      // Predicated region
      $region29: #{se3_norm_res_block.4} parent=27 // pred_check
        %p181 = pneg %p95
      $region30: #{se3_norm_res_block.4} parent=27 // pred_check_branch
        %183 = sbr.rel (%p181) target = $region32
      $region31: #{se3_norm_res_block.4} parent=27 // pred_region
        %p184 = scmp.lt.s32.totalorder %s12, 1
        %s185 = scalar_select %p184, %s12, 1
        %s186 = smul.addr %s185, 14
        %s187 = smul.addr %s186, 8
        %s188 = scalar_lea.vmem %s3, %s187
      $region32: #{se3_norm_res_block.4} parent=27 // pred_fallthru
        _
    $region28: #{se3_norm_res_block.4} parent=5 // pred_fallthru
      _
    %p189 = scmp.le.s32.totalorder 1, %s12
    %p190 = scmp.lt.s32.totalorder %s12, 3
    %p191 = pnand %p189, %p190
    %p192 = pneg %p191
    // Predicated region
    $region33: #{se3_norm_res_block.4} parent=5 // pred_check
      _
    $region34: #{se3_norm_res_block.4} parent=5 // pred_check_branch
      %194 = sbr.rel (%p191) target = $region36
    $region35: #{se3_norm_res_block.4} parent=5 // pred_region
      %s195 = ssub.s32 %s12, 1
      %p196 = pneg %p33
      %p197 = pneg %p30
      %p198 = pneg %p54
      %p199 = pneg %p51
      %p200 = pneg %p75
      %p201 = pneg %p72
      %p202 = scmp.lt.s32.totalorder %s17, 1
      %s203 = scalar_select %p202, %s17, 1
      %s204 = smul.addr %s203, 14
      %s205 = smul.addr %s204, 8
      %s206 = scalar_lea.vmem %s3, %s205
      %p207 = pneg %p101
      %p208 = pneg %p98
      %p209 = pneg %p127
      %p210 = pneg %p124
      %p211 = scmp.lt.s32.totalorder %s17, 1
      %s212 = scalar_select %p211, %s17, 1
      %s213 = smul.addr %s212, 7
      %s214 = smul.addr %s213, 8
      %s215 = scalar_lea.vmem %s4, %s214
      %p216 = pneg %p153
      %p217 = pneg %p150
      %p218 = scmp.lt.s32.totalorder %s17, 1
      %s219 = scalar_select %p218, %s17, 1
      %s220 = smul.addr %s219, 8
      %s221 = scalar_lea.vmem %s5, %s220
      %p222 = scmp.lt.s32.totalorder %s17, 1
      %s223 = scalar_select %p222, %s17, 1
      %s224 = smul.addr %s223, 14
      %s225 = smul.addr %s224, 8
      %s226 = scalar_lea.vmem %s3, %s225
      %p227 = scmp.lt.s32.totalorder %s17, 1
      %s228 = scalar_select %p227, %s17, 1
      %s229 = smul.addr %s228, 7
      %s230 = smul.addr %s229, 8
      %s231 = scalar_lea.vmem %s4, %s230
      %p232 = scmp.lt.s32.totalorder %s17, 1
      %s233 = scalar_select %p232, %s17, 1
      %s234 = smul.addr %s233, 8
      %s235 = scalar_lea.vmem %s5, %s234
      %v237 = vld [vmem:[%s1] ss:$4 sm:$0x1f]
      %s238 = scalar_lea.vmem %s1, 2
      %v239 = vld [vmem:[%s238] ss:$4 sm:$0x1f]
      %s240 = scalar_lea.vmem %s1, 3
      %v241 = vld [vmem:[%s240] ss:$4 sm:$0x1f]
      %v242 = vld [vmem:[%s226] sm:$0xff]
      %v243 = vld [vmem:[%s226 + $0x8] sm:$0xff]
      %v244 = vld [vmem:[%s226 + $0x10] sm:$0xff]
      %v245 = vld [vmem:[%s226 + $0x18] sm:$0xff]
      %v246 = vld [vmem:[%s226 + $0x20] sm:$0xff]
      %v247 = vld [vmem:[%s226 + $0x28] sm:$0xff]
      %v248 = vld [vmem:[%s226 + $0x30] sm:$0xff]
      %v249 = vld [vmem:[%s226 + $0x38] sm:$0xff]
      %v250 = vld [vmem:[%s226 + $0x40] sm:$0xff]
      %v251 = vld [vmem:[%s226 + $0x48] sm:$0xff]
      %v252 = vld [vmem:[%s226 + $0x50] sm:$0xff]
      %v253 = vld [vmem:[%s226 + $0x58] sm:$0xff]
      %v254 = vld [vmem:[%s226 + $0x60] sm:$0xff]
      %v255 = vld [vmem:[%s226 + $0x68] sm:$0xff]
      %v256 = vld [vmem:[%s0] sm:$0xff]
      %v257 = vld [vmem:[%s0 + $0x8] sm:$0xff]
      %259 = vset.pattern.permute.xlu0 0
      %260 = vperm.xlu0 %259, %v256
      %v261 = vpop.permute.xlu0 %260
      %264 = vset.pattern.permute.xlu0 0
      %265 = vperm.xlu0 %264, %v257
      %v266 = vpop.permute.xlu0 %265
      %v268 = vmul.f32 %v242, %v261
      %v269 = vmul.f32 %v243, %v261
      %v270 = vmul.f32 %v244, %v261
      %v271 = vmul.f32 %v245, %v261
      %v272 = vmul.f32 %v246, %v261
      %v273 = vmul.f32 %v247, %v261
      %v274 = vmul.f32 %v248, %v261
      %v275 = vmul.f32 %v249, %v266
      %v276 = vmul.f32 %v250, %v266
      %v277 = vmul.f32 %v251, %v266
      %v278 = vmul.f32 %v252, %v266
      %v279 = vmul.f32 %v253, %v266
      %v280 = vmul.f32 %v254, %v266
      %v281 = vmul.f32 %v255, %v266
      %v282 = vmax.f32 %v268, 0.0
      %v283 = vmax.f32 %v269, 0.0
      %v284 = vmax.f32 %v270, 0.0
      %v285 = vmax.f32 %v271, 0.0
      %v286 = vmax.f32 %v272, 0.0
      %v287 = vmax.f32 %v273, 0.0
      %v288 = vmax.f32 %v274, 0.0
      %v289 = vmax.f32 %v275, 0.0
      %v290 = vmax.f32 %v276, 0.0
      %v291 = vmax.f32 %v277, 0.0
      %v292 = vmax.f32 %v278, 0.0
      %v293 = vmax.f32 %v279, 0.0
      %v294 = vmax.f32 %v280, 0.0
      %v295 = vmax.f32 %v281, 0.0
      %296 = vst [vmem:[#allocation3] sm:$0xff] %v282
      %297 = vst [vmem:[#allocation3 + $0x8] sm:$0xff] %v283
      %298 = vst [vmem:[#allocation3 + $0x10] sm:$0xff] %v284
      %299 = vst [vmem:[#allocation3 + $0x18] sm:$0xff] %v285
      %300 = vst [vmem:[#allocation3 + $0x20] sm:$0xff] %v286
      %301 = vst [vmem:[#allocation3 + $0x28] sm:$0xff] %v287
      %302 = vst [vmem:[#allocation3 + $0x30] sm:$0xff] %v288
      %303 = vst [vmem:[#allocation3 + $0x38] sm:$0xff] %v289
      %304 = vst [vmem:[#allocation3 + $0x40] sm:$0xff] %v290
      %305 = vst [vmem:[#allocation3 + $0x48] sm:$0xff] %v291
      %306 = vst [vmem:[#allocation3 + $0x50] sm:$0xff] %v292
      %307 = vst [vmem:[#allocation3 + $0x58] sm:$0xff] %v293
      %308 = vst [vmem:[#allocation3 + $0x60] sm:$0xff] %v294
      %309 = vst [vmem:[#allocation3 + $0x68] sm:$0xff] %v295
      %310 = vst [vmem:[#allocation2 + $0x438] sm:$0xff] 0
      %311 = vst [vmem:[#allocation2 + $0x440] sm:$0xff] 0
      %312 = vst [vmem:[#allocation2 + $0x448] sm:$0xf] 0
      %313 = vst [vmem:[#allocation2 + $0x44c] sm:$0xff] 0
      %314 = vst [vmem:[#allocation2 + $0x454] sm:$0xff] 0
      %315 = vst [vmem:[#allocation2 + $0x45c] sm:$0xf] 0
      %316 = vst [vmem:[#allocation2 + $0x460] sm:$0xff] 0
      %317 = vst [vmem:[#allocation2 + $0x468] sm:$0xff] 0
      %318 = vst [vmem:[#allocation2 + $0x470] sm:$0xf] 0
      %319 = vst [vmem:[#allocation2 + $0x474] sm:$0xff] 0
      %320 = vst [vmem:[#allocation2 + $0x47c] sm:$0xff] 0
      %321 = vst [vmem:[#allocation2 + $0x484] sm:$0xf] 0
      %322 = vst [vmem:[#allocation2 + $0x488] sm:$0xff] 0
      %323 = vst [vmem:[#allocation2 + $0x490] sm:$0xff] 0
      %324 = vst [vmem:[#allocation2 + $0x498] sm:$0xf] 0
      %325 = vst [vmem:[#allocation2 + $0x49c] sm:$0xff] 0
      %326 = vst [vmem:[#allocation2 + $0x4a4] sm:$0xff] 0
      %327 = vst [vmem:[#allocation2 + $0x4ac] sm:$0xf] 0
      %328 = vst [vmem:[#allocation2 + $0x4b0] sm:$0xff] 0
      %329 = vst [vmem:[#allocation2 + $0x4b8] sm:$0xff] 0
      %330 = vst [vmem:[#allocation2 + $0x4c0] sm:$0xf] 0
      %331 = vst [vmem:[#allocation2 + $0x4c4] sm:$0xff] 0
      %332 = vst [vmem:[#allocation2 + $0x4cc] sm:$0xff] 0
      %333 = vst [vmem:[#allocation2 + $0x4d4] sm:$0xf] 0
      %334 = vst [vmem:[#allocation2 + $0x4d8] sm:$0xff] 0
      %335 = vst [vmem:[#allocation2 + $0x4e0] sm:$0xff] 0
      %336 = vst [vmem:[#allocation2 + $0x4e8] sm:$0xf] 0
      %337 = vst [vmem:[#allocation2 + $0x4ec] sm:$0xff] 0
      %338 = vst [vmem:[#allocation2 + $0x4f4] sm:$0xff] 0
      %339 = vst [vmem:[#allocation2 + $0x4fc] sm:$0xf] 0
      %v340 = vld [vmem:[#allocation3] sm:$0xff]
      %v341 = vld [vmem:[#allocation3 + $0x8] sm:$0xff]
      %v342 = vld [vmem:[#allocation3 + $0x10] sm:$0xff]
      %v343 = vld [vmem:[#allocation3 + $0x18] sm:$0xff]
      %v344 = vld [vmem:[#allocation3 + $0x20] sm:$0xff]
      %v345 = vld [vmem:[#allocation3 + $0x28] sm:$0xff]
      %v346 = vld [vmem:[#allocation3 + $0x38] sm:$0xff]
      %v347 = vld [vmem:[#allocation3 + $0x40] sm:$0xff]
      %v348 = vld [vmem:[#allocation3 + $0x48] sm:$0xff]
      %v349 = vld [vmem:[#allocation3 + $0x50] sm:$0xff]
      %v350 = vld [vmem:[#allocation3 + $0x58] sm:$0xff]
      %v351 = vld [vmem:[#allocation3 + $0x60] sm:$0xff]
      %v353 = vperm.slane %v237, 0
      %v354 = vperm.slane %v237, 1
      %v355 = vperm.slane %v237, 2
      %v356 = vperm.slane %v237, 3
      %v357 = vperm.slane %v237, 4
      %358 = vrot.lane.b32.xlu0 %v353, 39
      %v359 = vpop.permute.xlu0 %358
      %360 = vrot.lane.b32.xlu0 %v354, 39
      %v361 = vpop.permute.xlu0 %360
      %362 = vrot.lane.b32.xlu0 %v355, 39
      %v363 = vpop.permute.xlu0 %362
      %364 = vrot.lane.b32.xlu0 %v356, 39
      %v365 = vpop.permute.xlu0 %364
      %366 = vrot.lane.b32.xlu0 %v357, 39
      %v367 = vpop.permute.xlu0 %366
      %vm368 = vcmask 318464
      %v369 = vsel %vm368, %v359, %v361
      %v370 = vsel %vm368, %v361, %v363
      %v371 = vsel %vm368, %v363, %v365
      %v372 = vsel %vm368, %v365, %v367
      %v379 = vmul.f32 %v340, %v359
      %v380 = vmul.f32 %v341, %v369
      %v381 = vmul.f32 %v342, %v370
      %v382 = vmul.f32 %v343, %v371
      %v383 = vmul.f32 %v344, %v372
      %v384 = vmul.f32 %v345, %v367
      %v385 = vmul.f32 %v346, %v359
      %v386 = vmul.f32 %v347, %v369
      %v387 = vmul.f32 %v348, %v370
      %v388 = vmul.f32 %v349, %v371
      %v389 = vmul.f32 %v350, %v372
      %v390 = vmul.f32 %v351, %v367
      %v391 = vpack.c.bf16 %v380, %v379
      %v392 = vpack.c.bf16 %v382, %v381
      %v393 = vpack.c.bf16 %v384, %v383
      %v394 = vpack.c.bf16 %v386, %v385
      %v395 = vpack.c.bf16 %v388, %v387
      %v396 = vpack.c.bf16 %v390, %v389
      %403 = vrot.lane.b32.xlu0 %v391, 89
      %v404 = vpop.permute.xlu0 %403
      %405 = vrot.lane.b32.xlu0 %v392, 89
      %v406 = vpop.permute.xlu0 %405
      %407 = vrot.lane.b32.xlu0 %v393, 89
      %v408 = vpop.permute.xlu0 %407
      %409 = vrot.lane.b32.xlu0 %v394, 89
      %v410 = vpop.permute.xlu0 %409
      %411 = vrot.lane.b32.xlu0 %v395, 89
      %v412 = vpop.permute.xlu0 %411
      %413 = vrot.lane.b32.xlu0 %v396, 89
      %v414 = vpop.permute.xlu0 %413
      %v415 = vrot.slane %v404, 4
      %v416 = vrot.slane %v406, 4
      %v417 = vrot.slane %v408, 4
      %v418 = vrot.slane %v410, 4
      %v419 = vrot.slane %v412, 4
      %v420 = vrot.slane %v414, 4
      %vm421 = vcmask 1043456
      %v422 = vsel %vm421, %v415, %v416
      %vm423 = vcmask 728064
      %v424 = vsel %vm423, %v404, %v422
      %v425 = vsel %vm421, %v416, %v417
      %v426 = vsel %vm423, %v406, %v425
      %v427 = vsel %vm423, %v408, %v417
      %v428 = vsel %vm421, %v418, %v419
      %v429 = vsel %vm423, %v410, %v428
      %v430 = vsel %vm421, %v419, %v420
      %v431 = vsel %vm423, %v412, %v430
      %v432 = vsel %vm423, %v414, %v420
      %439 = vst [vmem:[#allocation2] sm:$0xff] %v424
      %440 = vst [vmem:[#allocation2 + $0x8] sm:$0xff] %v426
      %441 = vst [vmem:[#allocation2 + $0x10] sm:$0xf] %v427
      %442 = vst [vmem:[#allocation2 + $0x14] sm:$0xff] %v429
      %443 = vst [vmem:[#allocation2 + $0x1c] sm:$0xff] %v431
      %444 = vst [vmem:[#allocation2 + $0x24] sm:$0xf] %v432
      %v445 = vld [vmem:[#allocation3] sm:$0xff]
      %v446 = vld [vmem:[#allocation3 + $0x8] sm:$0xff]
      %v447 = vld [vmem:[#allocation3 + $0x10] sm:$0xff]
      %v448 = vld [vmem:[#allocation3 + $0x18] sm:$0xff]
      %v449 = vld [vmem:[#allocation3 + $0x20] sm:$0xff]
      %v450 = vld [vmem:[#allocation3 + $0x28] sm:$0xff]
      %v451 = vld [vmem:[#allocation3 + $0x38] sm:$0xff]
      %v452 = vld [vmem:[#allocation3 + $0x40] sm:$0xff]
      %v453 = vld [vmem:[#allocation3 + $0x48] sm:$0xff]
      %v454 = vld [vmem:[#allocation3 + $0x50] sm:$0xff]
      %v455 = vld [vmem:[#allocation3 + $0x58] sm:$0xff]
      %v456 = vld [vmem:[#allocation3 + $0x60] sm:$0xff]
      %v457 = vpack.c.bf16 %v446, %v445
      %v458 = vpack.c.bf16 %v448, %v447
      %v459 = vpack.c.bf16 %v450, %v449
      %v460 = vpack.c.bf16 %v452, %v451
      %v461 = vpack.c.bf16 %v454, %v453
      %v462 = vpack.c.bf16 %v456, %v455
      %469 = vrot.lane.b32.xlu0 %v457, 88
      %v470 = vpop.permute.xlu0 %469
      %471 = vrot.lane.b32.xlu0 %v458, 88
      %v472 = vpop.permute.xlu0 %471
      %473 = vrot.lane.b32.xlu0 %v459, 88
      %v474 = vpop.permute.xlu0 %473
      %475 = vrot.lane.b32.xlu0 %v460, 88
      %v476 = vpop.permute.xlu0 %475
      %477 = vrot.lane.b32.xlu0 %v461, 88
      %v478 = vpop.permute.xlu0 %477
      %479 = vrot.lane.b32.xlu0 %v462, 88
      %v480 = vpop.permute.xlu0 %479
      %v481 = vrot.slane %v470, 4
      %v482 = vrot.slane %v472, 4
      %v483 = vrot.slane %v474, 4
      %v484 = vrot.slane %v476, 4
      %v485 = vrot.slane %v478, 4
      %v486 = vrot.slane %v480, 4
      %v487 = vsel %vm421, %v481, %v482
      %vm488 = vcmask 719872
      %v489 = vsel %vm488, %v470, %v487
      %v490 = vsel %vm421, %v482, %v483
      %v491 = vsel %vm488, %v472, %v490
      %v492 = vsel %vm488, %v474, %v483
      %v493 = vsel %vm421, %v484, %v485
      %v494 = vsel %vm488, %v476, %v493
      %v495 = vsel %vm421, %v485, %v486
      %v496 = vsel %vm488, %v478, %v495
      %v497 = vsel %vm488, %v480, %v486
      %504 = vst [vmem:[#allocation2 + $0x28] sm:$0xff] %v489
      %505 = vst [vmem:[#allocation2 + $0x30] sm:$0xff] %v491
      %506 = vst [vmem:[#allocation2 + $0x38] sm:$0xf] %v492
      %507 = vst [vmem:[#allocation2 + $0x3c] sm:$0xff] %v494
      %508 = vst [vmem:[#allocation2 + $0x44] sm:$0xff] %v496
      %509 = vst [vmem:[#allocation2 + $0x4c] sm:$0xf] %v497
      %v510 = vld [vmem:[#allocation3] sm:$0xff]
      %v511 = vld [vmem:[#allocation3 + $0x8] sm:$0xff]
      %v512 = vld [vmem:[#allocation3 + $0x10] sm:$0xff]
      %v513 = vld [vmem:[#allocation3 + $0x18] sm:$0xff]
      %v514 = vld [vmem:[#allocation3 + $0x20] sm:$0xff]
      %v515 = vld [vmem:[#allocation3 + $0x28] sm:$0xff]
      %v516 = vld [vmem:[#allocation3 + $0x38] sm:$0xff]
      %v517 = vld [vmem:[#allocation3 + $0x40] sm:$0xff]
      %v518 = vld [vmem:[#allocation3 + $0x48] sm:$0xff]
      %v519 = vld [vmem:[#allocation3 + $0x50] sm:$0xff]
      %v520 = vld [vmem:[#allocation3 + $0x58] sm:$0xff]
      %v521 = vld [vmem:[#allocation3 + $0x60] sm:$0xff]
      %v523 = vperm.slane %v239, 0
      %v524 = vperm.slane %v239, 1
      %v525 = vperm.slane %v239, 2
      %v526 = vperm.slane %v239, 3
      %v527 = vperm.slane %v239, 4
      %528 = vrot.lane.b32.xlu0 %v523, 41
      %v529 = vpop.permute.xlu0 %528
      %530 = vrot.lane.b32.xlu0 %v524, 41
      %v531 = vpop.permute.xlu0 %530
      %532 = vrot.lane.b32.xlu0 %v525, 41
      %v533 = vpop.permute.xlu0 %532
      %534 = vrot.lane.b32.xlu0 %v526, 41
      %v535 = vpop.permute.xlu0 %534
      %536 = vrot.lane.b32.xlu0 %v527, 41
      %v537 = vpop.permute.xlu0 %536
      %vm538 = vcmask 334848
      %v539 = vsel %vm538, %v529, %v531
      %v540 = vsel %vm538, %v531, %v533
      %v541 = vsel %vm538, %v533, %v535
      %v542 = vsel %vm538, %v535, %v537
      %v549 = vmul.f32 %v510, %v529
      %v550 = vmul.f32 %v511, %v539
      %v551 = vmul.f32 %v512, %v540
      %v552 = vmul.f32 %v513, %v541
      %v553 = vmul.f32 %v514, %v542
      %v554 = vmul.f32 %v515, %v537
      %v555 = vmul.f32 %v516, %v529
      %v556 = vmul.f32 %v517, %v539
      %v557 = vmul.f32 %v518, %v540
      %v558 = vmul.f32 %v519, %v541
      %v559 = vmul.f32 %v520, %v542
      %v560 = vmul.f32 %v521, %v537
      %v561 = vpack.c.bf16 %v550, %v549
      %v562 = vpack.c.bf16 %v552, %v551
      %v563 = vpack.c.bf16 %v554, %v553
      %v564 = vpack.c.bf16 %v556, %v555
      %v565 = vpack.c.bf16 %v558, %v557
      %v566 = vpack.c.bf16 %v560, %v559
      %573 = vrot.lane.b32.xlu0 %v561, 87
      %v574 = vpop.permute.xlu0 %573
      %575 = vrot.lane.b32.xlu0 %v562, 87
      %v576 = vpop.permute.xlu0 %575
      %577 = vrot.lane.b32.xlu0 %v563, 87
      %v578 = vpop.permute.xlu0 %577
      %579 = vrot.lane.b32.xlu0 %v564, 87
      %v580 = vpop.permute.xlu0 %579
      %581 = vrot.lane.b32.xlu0 %v565, 87
      %v582 = vpop.permute.xlu0 %581
      %583 = vrot.lane.b32.xlu0 %v566, 87
      %v584 = vpop.permute.xlu0 %583
      %v585 = vrot.slane %v574, 4
      %v586 = vrot.slane %v576, 4
      %v587 = vrot.slane %v578, 4
      %v588 = vrot.slane %v580, 4
      %v589 = vrot.slane %v582, 4
      %v590 = vrot.slane %v584, 4
      %v591 = vsel %vm421, %v585, %v586
      %vm592 = vcmask 711680
      %v593 = vsel %vm592, %v574, %v591
      %v594 = vsel %vm421, %v586, %v587
      %v595 = vsel %vm592, %v576, %v594
      %v596 = vsel %vm592, %v578, %v587
      %v597 = vsel %vm421, %v588, %v589
      %v598 = vsel %vm592, %v580, %v597
      %v599 = vsel %vm421, %v589, %v590
      %v600 = vsel %vm592, %v582, %v599
      %v601 = vsel %vm592, %v584, %v590
      %608 = vst [vmem:[#allocation2 + $0x50] sm:$0xff] %v593
      %609 = vst [vmem:[#allocation2 + $0x58] sm:$0xff] %v595
      %610 = vst [vmem:[#allocation2 + $0x60] sm:$0xf] %v596
      %611 = vst [vmem:[#allocation2 + $0x64] sm:$0xff] %v598
      %612 = vst [vmem:[#allocation2 + $0x6c] sm:$0xff] %v600
      %613 = vst [vmem:[#allocation2 + $0x74] sm:$0xf] %v601
      %v614 = vld [vmem:[#allocation3] sm:$0xff]
      %v615 = vld [vmem:[#allocation3 + $0x8] sm:$0xff]
      %v616 = vld [vmem:[#allocation3 + $0x10] sm:$0xff]
      %v617 = vld [vmem:[#allocation3 + $0x18] sm:$0xff]
      %v618 = vld [vmem:[#allocation3 + $0x20] sm:$0xff]
      %v619 = vld [vmem:[#allocation3 + $0x28] sm:$0xff]
      %v620 = vld [vmem:[#allocation3 + $0x38] sm:$0xff]
      %v621 = vld [vmem:[#allocation3 + $0x40] sm:$0xff]
      %v622 = vld [vmem:[#allocation3 + $0x48] sm:$0xff]
      %v623 = vld [vmem:[#allocation3 + $0x50] sm:$0xff]
      %v624 = vld [vmem:[#allocation3 + $0x58] sm:$0xff]
      %v625 = vld [vmem:[#allocation3 + $0x60] sm:$0xff]
      %626 = vrot.lane.b32.xlu0 %v353, 47
      %v627 = vpop.permute.xlu0 %626
      %628 = vrot.lane.b32.xlu0 %v354, 47
      %v629 = vpop.permute.xlu0 %628
      %630 = vrot.lane.b32.xlu0 %v355, 47
      %v631 = vpop.permute.xlu0 %630
      %632 = vrot.lane.b32.xlu0 %v356, 47
      %v633 = vpop.permute.xlu0 %632
      %634 = vrot.lane.b32.xlu0 %v357, 47
      %v635 = vpop.permute.xlu0 %634
      %vm636 = vcmask 384000
      %v637 = vsel %vm636, %v627, %v629
      %v638 = vsel %vm636, %v629, %v631
      %v639 = vsel %vm636, %v631, %v633
      %v640 = vsel %vm636, %v633, %v635
      %v647 = vmul.f32 %v614, %v627
      %v648 = vmul.f32 %v615, %v637
      %v649 = vmul.f32 %v616, %v638
      %v650 = vmul.f32 %v617, %v639
      %v651 = vmul.f32 %v618, %v640
      %v652 = vmul.f32 %v619, %v635
      %v653 = vmul.f32 %v620, %v627
      %v654 = vmul.f32 %v621, %v637
      %v655 = vmul.f32 %v622, %v638
      %v656 = vmul.f32 %v623, %v639
      %v657 = vmul.f32 %v624, %v640
      %v658 = vmul.f32 %v625, %v635
      %v659 = vpack.c.bf16 %v648, %v647
      %v660 = vpack.c.bf16 %v650, %v649
      %v661 = vpack.c.bf16 %v652, %v651
      %v662 = vpack.c.bf16 %v654, %v653
      %v663 = vpack.c.bf16 %v656, %v655
      %v664 = vpack.c.bf16 %v658, %v657
      %671 = vrot.lane.b32.xlu0 %v659, 81
      %v672 = vpop.permute.xlu0 %671
      %673 = vrot.lane.b32.xlu0 %v660, 81
      %v674 = vpop.permute.xlu0 %673
      %675 = vrot.lane.b32.xlu0 %v661, 81
      %v676 = vpop.permute.xlu0 %675
      %677 = vrot.lane.b32.xlu0 %v662, 81
      %v678 = vpop.permute.xlu0 %677
      %679 = vrot.lane.b32.xlu0 %v663, 81
      %v680 = vpop.permute.xlu0 %679
      %681 = vrot.lane.b32.xlu0 %v664, 81
      %v682 = vpop.permute.xlu0 %681
      %v683 = vrot.slane %v672, 4
      %v684 = vrot.slane %v674, 4
      %v685 = vrot.slane %v676, 4
      %v686 = vrot.slane %v678, 4
      %v687 = vrot.slane %v680, 4
      %v688 = vrot.slane %v682, 4
      %v689 = vsel %vm421, %v683, %v684
      %vm690 = vcmask 662528
      %v691 = vsel %vm690, %v672, %v689
      %v692 = vsel %vm421, %v684, %v685
      %v693 = vsel %vm690, %v674, %v692
      %v694 = vsel %vm690, %v676, %v685
      %v695 = vsel %vm421, %v686, %v687
      %v696 = vsel %vm690, %v678, %v695
      %v697 = vsel %vm421, %v687, %v688
      %v698 = vsel %vm690, %v680, %v697
      %v699 = vsel %vm690, %v682, %v688
      %706 = vst [vmem:[#allocation2 + $0x78] sm:$0xff] %v691
      %707 = vst [vmem:[#allocation2 + $0x80] sm:$0xff] %v693
      %708 = vst [vmem:[#allocation2 + $0x88] sm:$0xf] %v694
      %709 = vst [vmem:[#allocation2 + $0x8c] sm:$0xff] %v696
      %710 = vst [vmem:[#allocation2 + $0x94] sm:$0xff] %v698
      %711 = vst [vmem:[#allocation2 + $0x9c] sm:$0xf] %v699
      %v712 = vld [vmem:[#allocation3] sm:$0xff]
      %v713 = vld [vmem:[#allocation3 + $0x8] sm:$0xff]
      %v714 = vld [vmem:[#allocation3 + $0x10] sm:$0xff]
      %v715 = vld [vmem:[#allocation3 + $0x18] sm:$0xff]
      %v716 = vld [vmem:[#allocation3 + $0x20] sm:$0xff]
      %v717 = vld [vmem:[#allocation3 + $0x28] sm:$0xff]
      %v718 = vld [vmem:[#allocation3 + $0x38] sm:$0xff]
      %v719 = vld [vmem:[#allocation3 + $0x40] sm:$0xff]
      %v720 = vld [vmem:[#allocation3 + $0x48] sm:$0xff]
      %v721 = vld [vmem:[#allocation3 + $0x50] sm:$0xff]
      %v722 = vld [vmem:[#allocation3 + $0x58] sm:$0xff]
      %v723 = vld [vmem:[#allocation3 + $0x60] sm:$0xff]
      %v724 = vpack.c.bf16 %v713, %v712
      %v725 = vpack.c.bf16 %v715, %v714
      %v726 = vpack.c.bf16 %v717, %v716
      %v727 = vpack.c.bf16 %v719, %v718
      %v728 = vpack.c.bf16 %v721, %v720
      %v729 = vpack.c.bf16 %v723, %v722
      %736 = vrot.lane.b32.xlu0 %v724, 80
      %v737 = vpop.permute.xlu0 %736
      %738 = vrot.lane.b32.xlu0 %v725, 80
      %v739 = vpop.permute.xlu0 %738
      %740 = vrot.lane.b32.xlu0 %v726, 80
      %v741 = vpop.permute.xlu0 %740
      %742 = vrot.lane.b32.xlu0 %v727, 80
      %v743 = vpop.permute.xlu0 %742
      %744 = vrot.lane.b32.xlu0 %v728, 80
      %v745 = vpop.permute.xlu0 %744
      %746 = vrot.lane.b32.xlu0 %v729, 80
      %v747 = vpop.permute.xlu0 %746
      %v748 = vrot.slane %v737, 4
      %v749 = vrot.slane %v739, 4
      %v750 = vrot.slane %v741, 4
      %v751 = vrot.slane %v743, 4
      %v752 = vrot.slane %v745, 4
      %v753 = vrot.slane %v747, 4
      %v754 = vsel %vm421, %v748, %v749
      %vm755 = vcmask 654336
      %v756 = vsel %vm755, %v737, %v754
      %v757 = vsel %vm421, %v749, %v750
      %v758 = vsel %vm755, %v739, %v757
      %v759 = vsel %vm755, %v741, %v750
      %v760 = vsel %vm421, %v751, %v752
      %v761 = vsel %vm755, %v743, %v760
      %v762 = vsel %vm421, %v752, %v753
      %v763 = vsel %vm755, %v745, %v762
      %v764 = vsel %vm755, %v747, %v753
      %771 = vst [vmem:[#allocation2 + $0xa0] sm:$0xff] %v756
      %772 = vst [vmem:[#allocation2 + $0xa8] sm:$0xff] %v758
      %773 = vst [vmem:[#allocation2 + $0xb0] sm:$0xf] %v759
      %774 = vst [vmem:[#allocation2 + $0xb4] sm:$0xff] %v761
      %775 = vst [vmem:[#allocation2 + $0xbc] sm:$0xff] %v763
      %776 = vst [vmem:[#allocation2 + $0xc4] sm:$0xf] %v764
      %v777 = vld [vmem:[#allocation3] sm:$0xff]
      %v778 = vld [vmem:[#allocation3 + $0x8] sm:$0xff]
      %v779 = vld [vmem:[#allocation3 + $0x10] sm:$0xff]
      %v780 = vld [vmem:[#allocation3 + $0x18] sm:$0xff]
      %v781 = vld [vmem:[#allocation3 + $0x20] sm:$0xff]
      %v782 = vld [vmem:[#allocation3 + $0x28] sm:$0xff]
      %v783 = vld [vmem:[#allocation3 + $0x38] sm:$0xff]
      %v784 = vld [vmem:[#allocation3 + $0x40] sm:$0xff]
      %v785 = vld [vmem:[#allocation3 + $0x48] sm:$0xff]
      %v786 = vld [vmem:[#allocation3 + $0x50] sm:$0xff]
      %v787 = vld [vmem:[#allocation3 + $0x58] sm:$0xff]
      %v788 = vld [vmem:[#allocation3 + $0x60] sm:$0xff]
      %789 = vrot.lane.b32.xlu0 %v523, 49
      %v790 = vpop.permute.xlu0 %789
      %791 = vrot.lane.b32.xlu0 %v524, 49
      %v792 = vpop.permute.xlu0 %791
      %793 = vrot.lane.b32.xlu0 %v525, 49
      %v794 = vpop.permute.xlu0 %793
      %795 = vrot.lane.b32.xlu0 %v526, 49
      %v796 = vpop.permute.xlu0 %795
      %797 = vrot.lane.b32.xlu0 %v527, 49
      %v798 = vpop.permute.xlu0 %797
      %vm799 = vcmask 400384
      %v800 = vsel %vm799, %v790, %v792
      %v801 = vsel %vm799, %v792, %v794
      %v802 = vsel %vm799, %v794, %v796
      %v803 = vsel %vm799, %v796, %v798
      %v810 = vmul.f32 %v777, %v790
      %v811 = vmul.f32 %v778, %v800
      %v812 = vmul.f32 %v779, %v801
      %v813 = vmul.f32 %v780, %v802
      %v814 = vmul.f32 %v781, %v803
      %v815 = vmul.f32 %v782, %v798
      %v816 = vmul.f32 %v783, %v790
      %v817 = vmul.f32 %v784, %v800
      %v818 = vmul.f32 %v785, %v801
      %v819 = vmul.f32 %v786, %v802
      %v820 = vmul.f32 %v787, %v803
      %v821 = vmul.f32 %v788, %v798
      %v822 = vpack.c.bf16 %v811, %v810
      %v823 = vpack.c.bf16 %v813, %v812
      %v824 = vpack.c.bf16 %v815, %v814
      %v825 = vpack.c.bf16 %v817, %v816
      %v826 = vpack.c.bf16 %v819, %v818
      %v827 = vpack.c.bf16 %v821, %v820
      %834 = vrot.lane.b32.xlu0 %v822, 79
      %v835 = vpop.permute.xlu0 %834
      %836 = vrot.lane.b32.xlu0 %v823, 79
      %v837 = vpop.permute.xlu0 %836
      %838 = vrot.lane.b32.xlu0 %v824, 79
      %v839 = vpop.permute.xlu0 %838
      %840 = vrot.lane.b32.xlu0 %v825, 79
      %v841 = vpop.permute.xlu0 %840
      %842 = vrot.lane.b32.xlu0 %v826, 79
      %v843 = vpop.permute.xlu0 %842
      %844 = vrot.lane.b32.xlu0 %v827, 79
      %v845 = vpop.permute.xlu0 %844
      %v846 = vrot.slane %v835, 4
      %v847 = vrot.slane %v837, 4
      %v848 = vrot.slane %v839, 4
      %v849 = vrot.slane %v841, 4
      %v850 = vrot.slane %v843, 4
      %v851 = vrot.slane %v845, 4
      %v852 = vsel %vm421, %v846, %v847
      %vm853 = vcmask 646144
      %v854 = vsel %vm853, %v835, %v852
      %v855 = vsel %vm421, %v847, %v848
      %v856 = vsel %vm853, %v837, %v855
      %v857 = vsel %vm853, %v839, %v848
      %v858 = vsel %vm421, %v849, %v850
      %v859 = vsel %vm853, %v841, %v858
      %v860 = vsel %vm421, %v850, %v851
      %v861 = vsel %vm853, %v843, %v860
      %v862 = vsel %vm853, %v845, %v851
      %869 = vst [vmem:[#allocation2 + $0xc8] sm:$0xff] %v854
      %870 = vst [vmem:[#allocation2 + $0xd0] sm:$0xff] %v856
      %871 = vst [vmem:[#allocation2 + $0xd8] sm:$0xf] %v857
      %872 = vst [vmem:[#allocation2 + $0xdc] sm:$0xff] %v859
      %873 = vst [vmem:[#allocation2 + $0xe4] sm:$0xff] %v861
      %874 = vst [vmem:[#allocation2 + $0xec] sm:$0xf] %v862
      %v875 = vld [vmem:[#allocation3] sm:$0xff]
      %v876 = vld [vmem:[#allocation3 + $0x8] sm:$0xff]
      %v877 = vld [vmem:[#allocation3 + $0x10] sm:$0xff]
      %v878 = vld [vmem:[#allocation3 + $0x18] sm:$0xff]
      %v879 = vld [vmem:[#allocation3 + $0x20] sm:$0xff]
      %v880 = vld [vmem:[#allocation3 + $0x28] sm:$0xff]
      %v881 = vld [vmem:[#allocation3 + $0x38] sm:$0xff]
      %v882 = vld [vmem:[#allocation3 + $0x40] sm:$0xff]
      %v883 = vld [vmem:[#allocation3 + $0x48] sm:$0xff]
      %v884 = vld [vmem:[#allocation3 + $0x50] sm:$0xff]
      %v885 = vld [vmem:[#allocation3 + $0x58] sm:$0xff]
      %v886 = vld [vmem:[#allocation3 + $0x60] sm:$0xff]
      %887 = vrot.lane.b32.xlu0 %v353, 55
      %v888 = vpop.permute.xlu0 %887
      %889 = vrot.lane.b32.xlu0 %v354, 55
      %v890 = vpop.permute.xlu0 %889
      %891 = vrot.lane.b32.xlu0 %v355, 55
      %v892 = vpop.permute.xlu0 %891
      %893 = vrot.lane.b32.xlu0 %v356, 55
      %v894 = vpop.permute.xlu0 %893
      %895 = vrot.lane.b32.xlu0 %v357, 55
      %v896 = vpop.permute.xlu0 %895
      %vm897 = vcmask 449536
      %v898 = vsel %vm897, %v888, %v890
      %v899 = vsel %vm897, %v890, %v892
      %v900 = vsel %vm897, %v892, %v894
      %v901 = vsel %vm897, %v894, %v896
      %v908 = vmul.f32 %v875, %v888
      %v909 = vmul.f32 %v876, %v898
      %v910 = vmul.f32 %v877, %v899
      %v911 = vmul.f32 %v878, %v900
      %v912 = vmul.f32 %v879, %v901
      %v913 = vmul.f32 %v880, %v896
      %v914 = vmul.f32 %v881, %v888
      %v915 = vmul.f32 %v882, %v898
      %v916 = vmul.f32 %v883, %v899
      %v917 = vmul.f32 %v884, %v900
      %v918 = vmul.f32 %v885, %v901
      %v919 = vmul.f32 %v886, %v896
      %v920 = vpack.c.bf16 %v909, %v908
      %v921 = vpack.c.bf16 %v911, %v910
      %v922 = vpack.c.bf16 %v913, %v912
      %v923 = vpack.c.bf16 %v915, %v914
      %v924 = vpack.c.bf16 %v917, %v916
      %v925 = vpack.c.bf16 %v919, %v918
      %932 = vrot.lane.b32.xlu0 %v920, 73
      %v933 = vpop.permute.xlu0 %932
      %934 = vrot.lane.b32.xlu0 %v921, 73
      %v935 = vpop.permute.xlu0 %934
      %936 = vrot.lane.b32.xlu0 %v922, 73
      %v937 = vpop.permute.xlu0 %936
      %938 = vrot.lane.b32.xlu0 %v923, 73
      %v939 = vpop.permute.xlu0 %938
      %940 = vrot.lane.b32.xlu0 %v924, 73
      %v941 = vpop.permute.xlu0 %940
      %942 = vrot.lane.b32.xlu0 %v925, 73
      %v943 = vpop.permute.xlu0 %942
      %v944 = vrot.slane %v933, 4
      %v945 = vrot.slane %v935, 4
      %v946 = vrot.slane %v937, 4
      %v947 = vrot.slane %v939, 4
      %v948 = vrot.slane %v941, 4
      %v949 = vrot.slane %v943, 4
      %v950 = vsel %vm421, %v944, %v945
      %vm951 = vcmask 596992
      %v952 = vsel %vm951, %v933, %v950
      %v953 = vsel %vm421, %v945, %v946
      %v954 = vsel %vm951, %v935, %v953
      %v955 = vsel %vm951, %v937, %v946
      %v956 = vsel %vm421, %v947, %v948
      %v957 = vsel %vm951, %v939, %v956
      %v958 = vsel %vm421, %v948, %v949
      %v959 = vsel %vm951, %v941, %v958
      %v960 = vsel %vm951, %v943, %v949
      %967 = vst [vmem:[#allocation2 + $0xf0] sm:$0xff] %v952
      %968 = vst [vmem:[#allocation2 + $0xf8] sm:$0xff] %v954
      %969 = vst [vmem:[#allocation2 + $0x100] sm:$0xf] %v955
      %970 = vst [vmem:[#allocation2 + $0x104] sm:$0xff] %v957
      %971 = vst [vmem:[#allocation2 + $0x10c] sm:$0xff] %v959
      %972 = vst [vmem:[#allocation2 + $0x114] sm:$0xf] %v960
      %v973 = vld [vmem:[#allocation3] sm:$0xff]
      %v974 = vld [vmem:[#allocation3 + $0x8] sm:$0xff]
      %v975 = vld [vmem:[#allocation3 + $0x10] sm:$0xff]
      %v976 = vld [vmem:[#allocation3 + $0x18] sm:$0xff]
      %v977 = vld [vmem:[#allocation3 + $0x20] sm:$0xff]
      %v978 = vld [vmem:[#allocation3 + $0x28] sm:$0xff]
      %v979 = vld [vmem:[#allocation3 + $0x38] sm:$0xff]
      %v980 = vld [vmem:[#allocation3 + $0x40] sm:$0xff]
      %v981 = vld [vmem:[#allocation3 + $0x48] sm:$0xff]
      %v982 = vld [vmem:[#allocation3 + $0x50] sm:$0xff]
      %v983 = vld [vmem:[#allocation3 + $0x58] sm:$0xff]
      %v984 = vld [vmem:[#allocation3 + $0x60] sm:$0xff]
      %v985 = vpack.c.bf16 %v974, %v973
      %v986 = vpack.c.bf16 %v976, %v975
      %v987 = vpack.c.bf16 %v978, %v977
      %v988 = vpack.c.bf16 %v980, %v979
      %v989 = vpack.c.bf16 %v982, %v981
      %v990 = vpack.c.bf16 %v984, %v983
      %997 = vrot.lane.b32.xlu0 %v985, 72
      %v998 = vpop.permute.xlu0 %997
      %999 = vrot.lane.b32.xlu0 %v986, 72
      %v1000 = vpop.permute.xlu0 %999
      %1001 = vrot.lane.b32.xlu0 %v987, 72
      %v1002 = vpop.permute.xlu0 %1001
      %1003 = vrot.lane.b32.xlu0 %v988, 72
      %v1004 = vpop.permute.xlu0 %1003
      %1005 = vrot.lane.b32.xlu0 %v989, 72
      %v1006 = vpop.permute.xlu0 %1005
      %1007 = vrot.lane.b32.xlu0 %v990, 72
      %v1008 = vpop.permute.xlu0 %1007
      %v1009 = vrot.slane %v998, 4
      %v1010 = vrot.slane %v1000, 4
      %v1011 = vrot.slane %v1002, 4
      %v1012 = vrot.slane %v1004, 4
      %v1013 = vrot.slane %v1006, 4
      %v1014 = vrot.slane %v1008, 4
      %v1015 = vsel %vm421, %v1009, %v1010
      %vm1016 = vcmask 588800
      %v1017 = vsel %vm1016, %v998, %v1015
      %v1018 = vsel %vm421, %v1010, %v1011
      %v1019 = vsel %vm1016, %v1000, %v1018
      %v1020 = vsel %vm1016, %v1002, %v1011
      %v1021 = vsel %vm421, %v1012, %v1013
      %v1022 = vsel %vm1016, %v1004, %v1021
      %v1023 = vsel %vm421, %v1013, %v1014
      %v1024 = vsel %vm1016, %v1006, %v1023
      %v1025 = vsel %vm1016, %v1008, %v1014
      %1032 = vst [vmem:[#allocation2 + $0x118] sm:$0xff] %v1017
      %1033 = vst [vmem:[#allocation2 + $0x120] sm:$0xff] %v1019
      %1034 = vst [vmem:[#allocation2 + $0x128] sm:$0xf] %v1020
      %1035 = vst [vmem:[#allocation2 + $0x12c] sm:$0xff] %v1022
      %1036 = vst [vmem:[#allocation2 + $0x134] sm:$0xff] %v1024
      %1037 = vst [vmem:[#allocation2 + $0x13c] sm:$0xf] %v1025
      %v1038 = vld [vmem:[#allocation3] sm:$0xff]
      %v1039 = vld [vmem:[#allocation3 + $0x8] sm:$0xff]
      %v1040 = vld [vmem:[#allocation3 + $0x10] sm:$0xff]
      %v1041 = vld [vmem:[#allocation3 + $0x18] sm:$0xff]
      %v1042 = vld [vmem:[#allocation3 + $0x20] sm:$0xff]
      %v1043 = vld [vmem:[#allocation3 + $0x28] sm:$0xff]
      %v1044 = vld [vmem:[#allocation3 + $0x38] sm:$0xff]
      %v1045 = vld [vmem:[#allocation3 + $0x40] sm:$0xff]
      %v1046 = vld [vmem:[#allocation3 + $0x48] sm:$0xff]
      %v1047 = vld [vmem:[#allocation3 + $0x50] sm:$0xff]
      %v1048 = vld [vmem:[#allocation3 + $0x58] sm:$0xff]
      %v1049 = vld [vmem:[#allocation3 + $0x60] sm:$0xff]
      %1050 = vrot.lane.b32.xlu0 %v523, 57
      %v1051 = vpop.permute.xlu0 %1050
      %1052 = vrot.lane.b32.xlu0 %v524, 57
      %v1053 = vpop.permute.xlu0 %1052
      %1054 = vrot.lane.b32.xlu0 %v525, 57
      %v1055 = vpop.permute.xlu0 %1054
      %1056 = vrot.lane.b32.xlu0 %v526, 57
      %v1057 = vpop.permute.xlu0 %1056
      %1058 = vrot.lane.b32.xlu0 %v527, 57
      %v1059 = vpop.permute.xlu0 %1058
      %vm1060 = vcmask 465920
      %v1061 = vsel %vm1060, %v1051, %v1053
      %v1062 = vsel %vm1060, %v1053, %v1055
      %v1063 = vsel %vm1060, %v1055, %v1057
      %v1064 = vsel %vm1060, %v1057, %v1059
      %v1071 = vmul.f32 %v1038, %v1051
      %v1072 = vmul.f32 %v1039, %v1061
      %v1073 = vmul.f32 %v1040, %v1062
      %v1074 = vmul.f32 %v1041, %v1063
      %v1075 = vmul.f32 %v1042, %v1064
      %v1076 = vmul.f32 %v1043, %v1059
      %v1077 = vmul.f32 %v1044, %v1051
      %v1078 = vmul.f32 %v1045, %v1061
      %v1079 = vmul.f32 %v1046, %v1062
      %v1080 = vmul.f32 %v1047, %v1063
      %v1081 = vmul.f32 %v1048, %v1064
      %v1082 = vmul.f32 %v1049, %v1059
      %v1083 = vpack.c.bf16 %v1072, %v1071
      %v1084 = vpack.c.bf16 %v1074, %v1073
      %v1085 = vpack.c.bf16 %v1076, %v1075
      %v1086 = vpack.c.bf16 %v1078, %v1077
      %v1087 = vpack.c.bf16 %v1080, %v1079
      %v1088 = vpack.c.bf16 %v1082, %v1081
      %1095 = vrot.lane.b32.xlu0 %v1083, 71
      %v1096 = vpop.permute.xlu0 %1095
      %1097 = vrot.lane.b32.xlu0 %v1084, 71
      %v1098 = vpop.permute.xlu0 %1097
      %1099 = vrot.lane.b32.xlu0 %v1085, 71
      %v1100 = vpop.permute.xlu0 %1099
      %1101 = vrot.lane.b32.xlu0 %v1086, 71
      %v1102 = vpop.permute.xlu0 %1101
      %1103 = vrot.lane.b32.xlu0 %v1087, 71
      %v1104 = vpop.permute.xlu0 %1103
      %1105 = vrot.lane.b32.xlu0 %v1088, 71
      %v1106 = vpop.permute.xlu0 %1105
      %v1107 = vrot.slane %v1096, 4
      %v1108 = vrot.slane %v1098, 4
      %v1109 = vrot.slane %v1100, 4
      %v1110 = vrot.slane %v1102, 4
      %v1111 = vrot.slane %v1104, 4
      %v1112 = vrot.slane %v1106, 4
      %v1113 = vsel %vm421, %v1107, %v1108
      %vm1114 = vcmask 580608
      %v1115 = vsel %vm1114, %v1096, %v1113
      %v1116 = vsel %vm421, %v1108, %v1109
      %v1117 = vsel %vm1114, %v1098, %v1116
      %v1118 = vsel %vm1114, %v1100, %v1109
      %v1119 = vsel %vm421, %v1110, %v1111
      %v1120 = vsel %vm1114, %v1102, %v1119
      %v1121 = vsel %vm421, %v1111, %v1112
      %v1122 = vsel %vm1114, %v1104, %v1121
      %v1123 = vsel %vm1114, %v1106, %v1112
      %1130 = vst [vmem:[#allocation2 + $0x140] sm:$0xff] %v1115
      %1131 = vst [vmem:[#allocation2 + $0x148] sm:$0xff] %v1117
      %1132 = vst [vmem:[#allocation2 + $0x150] sm:$0xf] %v1118
      %1133 = vst [vmem:[#allocation2 + $0x154] sm:$0xff] %v1120
      %1134 = vst [vmem:[#allocation2 + $0x15c] sm:$0xff] %v1122
      %1135 = vst [vmem:[#allocation2 + $0x164] sm:$0xf] %v1123
      %v1136 = vld [vmem:[#allocation3] sm:$0xff]
      %v1137 = vld [vmem:[#allocation3 + $0x8] sm:$0xff]
      %v1138 = vld [vmem:[#allocation3 + $0x10] sm:$0xff]
      %v1139 = vld [vmem:[#allocation3 + $0x18] sm:$0xff]
      %v1140 = vld [vmem:[#allocation3 + $0x20] sm:$0xff]
      %v1141 = vld [vmem:[#allocation3 + $0x28] sm:$0xff]
      %v1142 = vld [vmem:[#allocation3 + $0x38] sm:$0xff]
      %v1143 = vld [vmem:[#allocation3 + $0x40] sm:$0xff]
      %v1144 = vld [vmem:[#allocation3 + $0x48] sm:$0xff]
      %v1145 = vld [vmem:[#allocation3 + $0x50] sm:$0xff]
      %v1146 = vld [vmem:[#allocation3 + $0x58] sm:$0xff]
      %v1147 = vld [vmem:[#allocation3 + $0x60] sm:$0xff]
      %1148 = vrot.lane.b32.xlu0 %v353, 119
      %v1149 = vpop.permute.xlu0 %1148
      %1150 = vrot.lane.b32.xlu0 %v354, 119
      %v1151 = vpop.permute.xlu0 %1150
      %1152 = vrot.lane.b32.xlu0 %v355, 119
      %v1153 = vpop.permute.xlu0 %1152
      %1154 = vrot.lane.b32.xlu0 %v356, 119
      %v1155 = vpop.permute.xlu0 %1154
      %1156 = vrot.lane.b32.xlu0 %v357, 119
      %v1157 = vpop.permute.xlu0 %1156
      %vm1158 = vcmask 973824
      %v1159 = vsel %vm1158, %v1149, %v1151
      %v1160 = vsel %vm1158, %v1151, %v1153
      %v1161 = vsel %vm1158, %v1153, %v1155
      %v1162 = vsel %vm1158, %v1155, %v1157
      %v1169 = vmul.f32 %v1136, %v1149
      %v1170 = vmul.f32 %v1137, %v1159
      %v1171 = vmul.f32 %v1138, %v1160
      %v1172 = vmul.f32 %v1139, %v1161
      %v1173 = vmul.f32 %v1140, %v1162
      %v1174 = vmul.f32 %v1141, %v1157
      %v1175 = vmul.f32 %v1142, %v1149
      %v1176 = vmul.f32 %v1143, %v1159
      %v1177 = vmul.f32 %v1144, %v1160
      %v1178 = vmul.f32 %v1145, %v1161
      %v1179 = vmul.f32 %v1146, %v1162
      %v1180 = vmul.f32 %v1147, %v1157
      %v1181 = vpack.c.bf16 %v1170, %v1169
      %v1182 = vpack.c.bf16 %v1172, %v1171
      %v1183 = vpack.c.bf16 %v1174, %v1173
      %v1184 = vpack.c.bf16 %v1176, %v1175
      %v1185 = vpack.c.bf16 %v1178, %v1177
      %v1186 = vpack.c.bf16 %v1180, %v1179
      %1193 = vrot.lane.b32.xlu0 %v1181, 9
      %v1194 = vpop.permute.xlu0 %1193
      %1195 = vrot.lane.b32.xlu0 %v1182, 9
      %v1196 = vpop.permute.xlu0 %1195
      %1197 = vrot.lane.b32.xlu0 %v1183, 9
      %v1198 = vpop.permute.xlu0 %1197
      %1199 = vrot.lane.b32.xlu0 %v1184, 9
      %v1200 = vpop.permute.xlu0 %1199
      %1201 = vrot.lane.b32.xlu0 %v1185, 9
      %v1202 = vpop.permute.xlu0 %1201
      %1203 = vrot.lane.b32.xlu0 %v1186, 9
      %v1204 = vpop.permute.xlu0 %1203
      %v1205 = vrot.slane %v1194, 4
      %v1206 = vrot.slane %v1196, 4
      %v1207 = vrot.slane %v1198, 4
      %v1208 = vrot.slane %v1200, 4
      %v1209 = vrot.slane %v1202, 4
      %v1210 = vrot.slane %v1204, 4
      %v1211 = vsel %vm421, %v1205, %v1206
      %vm1212 = vcmask 72704
      %v1213 = vsel %vm1212, %v1194, %v1211
      %v1214 = vsel %vm421, %v1206, %v1207
      %v1215 = vsel %vm1212, %v1196, %v1214
      %v1216 = vsel %vm1212, %v1198, %v1207
      %v1217 = vsel %vm421, %v1208, %v1209
      %v1218 = vsel %vm1212, %v1200, %v1217
      %v1219 = vsel %vm421, %v1209, %v1210
      %v1220 = vsel %vm1212, %v1202, %v1219
      %v1221 = vsel %vm1212, %v1204, %v1210
      %1228 = vst [vmem:[#allocation2 + $0x168] sm:$0xff] %v1213
      %1229 = vst [vmem:[#allocation2 + $0x170] sm:$0xff] %v1215
      %1230 = vst [vmem:[#allocation2 + $0x178] sm:$0xf] %v1216
      %1231 = vst [vmem:[#allocation2 + $0x17c] sm:$0xff] %v1218
      %1232 = vst [vmem:[#allocation2 + $0x184] sm:$0xff] %v1220
      %1233 = vst [vmem:[#allocation2 + $0x18c] sm:$0xf] %v1221
      %v1234 = vld [vmem:[#allocation3] sm:$0xff]
      %v1235 = vld [vmem:[#allocation3 + $0x8] sm:$0xff]
      %v1236 = vld [vmem:[#allocation3 + $0x10] sm:$0xff]
      %v1237 = vld [vmem:[#allocation3 + $0x18] sm:$0xff]
      %v1238 = vld [vmem:[#allocation3 + $0x20] sm:$0xff]
      %v1239 = vld [vmem:[#allocation3 + $0x28] sm:$0xff]
      %v1240 = vld [vmem:[#allocation3 + $0x38] sm:$0xff]
      %v1241 = vld [vmem:[#allocation3 + $0x40] sm:$0xff]
      %v1242 = vld [vmem:[#allocation3 + $0x48] sm:$0xff]
      %v1243 = vld [vmem:[#allocation3 + $0x50] sm:$0xff]
      %v1244 = vld [vmem:[#allocation3 + $0x58] sm:$0xff]
      %v1245 = vld [vmem:[#allocation3 + $0x60] sm:$0xff]
      %v1246 = vpack.c.bf16 %v1235, %v1234
      %v1247 = vpack.c.bf16 %v1237, %v1236
      %v1248 = vpack.c.bf16 %v1239, %v1238
      %v1249 = vpack.c.bf16 %v1241, %v1240
      %v1250 = vpack.c.bf16 %v1243, %v1242
      %v1251 = vpack.c.bf16 %v1245, %v1244
      %1258 = vrot.lane.b32.xlu0 %v1246, 8
      %v1259 = vpop.permute.xlu0 %1258
      %1260 = vrot.lane.b32.xlu0 %v1247, 8
      %v1261 = vpop.permute.xlu0 %1260
      %1262 = vrot.lane.b32.xlu0 %v1248, 8
      %v1263 = vpop.permute.xlu0 %1262
      %1264 = vrot.lane.b32.xlu0 %v1249, 8
      %v1265 = vpop.permute.xlu0 %1264
      %1266 = vrot.lane.b32.xlu0 %v1250, 8
      %v1267 = vpop.permute.xlu0 %1266
      %1268 = vrot.lane.b32.xlu0 %v1251, 8
      %v1269 = vpop.permute.xlu0 %1268
      %v1270 = vrot.slane %v1259, 4
      %v1271 = vrot.slane %v1261, 4
      %v1272 = vrot.slane %v1263, 4
      %v1273 = vrot.slane %v1265, 4
      %v1274 = vrot.slane %v1267, 4
      %v1275 = vrot.slane %v1269, 4
      %v1276 = vsel %vm421, %v1270, %v1271
      %vm1277 = vcmask 64512
      %v1278 = vsel %vm1277, %v1259, %v1276
      %v1279 = vsel %vm421, %v1271, %v1272
      %v1280 = vsel %vm1277, %v1261, %v1279
      %v1281 = vsel %vm1277, %v1263, %v1272
      %v1282 = vsel %vm421, %v1273, %v1274
      %v1283 = vsel %vm1277, %v1265, %v1282
      %v1284 = vsel %vm421, %v1274, %v1275
      %v1285 = vsel %vm1277, %v1267, %v1284
      %v1286 = vsel %vm1277, %v1269, %v1275
      %1293 = vst [vmem:[#allocation2 + $0x190] sm:$0xff] %v1278
      %1294 = vst [vmem:[#allocation2 + $0x198] sm:$0xff] %v1280
      %1295 = vst [vmem:[#allocation2 + $0x1a0] sm:$0xf] %v1281
      %1296 = vst [vmem:[#allocation2 + $0x1a4] sm:$0xff] %v1283
      %1297 = vst [vmem:[#allocation2 + $0x1ac] sm:$0xff] %v1285
      %1298 = vst [vmem:[#allocation2 + $0x1b4] sm:$0xf] %v1286
      %v1299 = vld [vmem:[#allocation3] sm:$0xff]
      %v1300 = vld [vmem:[#allocation3 + $0x8] sm:$0xff]
      %v1301 = vld [vmem:[#allocation3 + $0x10] sm:$0xff]
      %v1302 = vld [vmem:[#allocation3 + $0x18] sm:$0xff]
      %v1303 = vld [vmem:[#allocation3 + $0x20] sm:$0xff]
      %v1304 = vld [vmem:[#allocation3 + $0x28] sm:$0xff]
      %v1305 = vld [vmem:[#allocation3 + $0x38] sm:$0xff]
      %v1306 = vld [vmem:[#allocation3 + $0x40] sm:$0xff]
      %v1307 = vld [vmem:[#allocation3 + $0x48] sm:$0xff]
      %v1308 = vld [vmem:[#allocation3 + $0x50] sm:$0xff]
      %v1309 = vld [vmem:[#allocation3 + $0x58] sm:$0xff]
      %v1310 = vld [vmem:[#allocation3 + $0x60] sm:$0xff]
      %1311 = vrot.lane.b32.xlu0 %v523, 121
      %v1312 = vpop.permute.xlu0 %1311
      %1313 = vrot.lane.b32.xlu0 %v524, 121
      %v1314 = vpop.permute.xlu0 %1313
      %1315 = vrot.lane.b32.xlu0 %v525, 121
      %v1316 = vpop.permute.xlu0 %1315
      %1317 = vrot.lane.b32.xlu0 %v526, 121
      %v1318 = vpop.permute.xlu0 %1317
      %1319 = vrot.lane.b32.xlu0 %v527, 121
      %v1320 = vpop.permute.xlu0 %1319
      %vm1321 = vcmask 990208
      %v1322 = vsel %vm1321, %v1312, %v1314
      %v1323 = vsel %vm1321, %v1314, %v1316
      %v1324 = vsel %vm1321, %v1316, %v1318
      %v1325 = vsel %vm1321, %v1318, %v1320
      %v1332 = vmul.f32 %v1299, %v1312
      %v1333 = vmul.f32 %v1300, %v1322
      %v1334 = vmul.f32 %v1301, %v1323
      %v1335 = vmul.f32 %v1302, %v1324
      %v1336 = vmul.f32 %v1303, %v1325
      %v1337 = vmul.f32 %v1304, %v1320
      %v1338 = vmul.f32 %v1305, %v1312
      %v1339 = vmul.f32 %v1306, %v1322
      %v1340 = vmul.f32 %v1307, %v1323
      %v1341 = vmul.f32 %v1308, %v1324
      %v1342 = vmul.f32 %v1309, %v1325
      %v1343 = vmul.f32 %v1310, %v1320
      %v1344 = vpack.c.bf16 %v1333, %v1332
      %v1345 = vpack.c.bf16 %v1335, %v1334
      %v1346 = vpack.c.bf16 %v1337, %v1336
      %v1347 = vpack.c.bf16 %v1339, %v1338
      %v1348 = vpack.c.bf16 %v1341, %v1340
      %v1349 = vpack.c.bf16 %v1343, %v1342
      %1356 = vrot.lane.b32.xlu0 %v1344, 7
      %v1357 = vpop.permute.xlu0 %1356
      %1358 = vrot.lane.b32.xlu0 %v1345, 7
      %v1359 = vpop.permute.xlu0 %1358
      %1360 = vrot.lane.b32.xlu0 %v1346, 7
      %v1361 = vpop.permute.xlu0 %1360
      %1362 = vrot.lane.b32.xlu0 %v1347, 7
      %v1363 = vpop.permute.xlu0 %1362
      %1364 = vrot.lane.b32.xlu0 %v1348, 7
      %v1365 = vpop.permute.xlu0 %1364
      %1366 = vrot.lane.b32.xlu0 %v1349, 7
      %v1367 = vpop.permute.xlu0 %1366
      %v1368 = vrot.slane %v1357, 4
      %v1369 = vrot.slane %v1359, 4
      %v1370 = vrot.slane %v1361, 4
      %v1371 = vrot.slane %v1363, 4
      %v1372 = vrot.slane %v1365, 4
      %v1373 = vrot.slane %v1367, 4
      %v1374 = vsel %vm421, %v1368, %v1369
      %vm1375 = vcmask 56320
      %v1376 = vsel %vm1375, %v1357, %v1374
      %v1377 = vsel %vm421, %v1369, %v1370
      %v1378 = vsel %vm1375, %v1359, %v1377
      %v1379 = vsel %vm1375, %v1361, %v1370
      %v1380 = vsel %vm421, %v1371, %v1372
      %v1381 = vsel %vm1375, %v1363, %v1380
      %v1382 = vsel %vm421, %v1372, %v1373
      %v1383 = vsel %vm1375, %v1365, %v1382
      %v1384 = vsel %vm1375, %v1367, %v1373
      %1391 = vst [vmem:[#allocation2 + $0x1b8] sm:$0xff] %v1376
      %1392 = vst [vmem:[#allocation2 + $0x1c0] sm:$0xff] %v1378
      %1393 = vst [vmem:[#allocation2 + $0x1c8] sm:$0xf] %v1379
      %1394 = vst [vmem:[#allocation2 + $0x1cc] sm:$0xff] %v1381
      %1395 = vst [vmem:[#allocation2 + $0x1d4] sm:$0xff] %v1383
      %1396 = vst [vmem:[#allocation2 + $0x1dc] sm:$0xf] %v1384
      %v1397 = vld [vmem:[#allocation3] sm:$0xff]
      %v1398 = vld [vmem:[#allocation3 + $0x8] sm:$0xff]
      %v1399 = vld [vmem:[#allocation3 + $0x10] sm:$0xff]
      %v1400 = vld [vmem:[#allocation3 + $0x18] sm:$0xff]
      %v1401 = vld [vmem:[#allocation3 + $0x20] sm:$0xff]
      %v1402 = vld [vmem:[#allocation3 + $0x28] sm:$0xff]
      %v1403 = vld [vmem:[#allocation3 + $0x38] sm:$0xff]
      %v1404 = vld [vmem:[#allocation3 + $0x40] sm:$0xff]
      %v1405 = vld [vmem:[#allocation3 + $0x48] sm:$0xff]
      %v1406 = vld [vmem:[#allocation3 + $0x50] sm:$0xff]
      %v1407 = vld [vmem:[#allocation3 + $0x58] sm:$0xff]
      %v1408 = vld [vmem:[#allocation3 + $0x60] sm:$0xff]
      %1409 = vrot.lane.b32.xlu0 %v353, 127
      %v1410 = vpop.permute.xlu0 %1409
      %1411 = vrot.lane.b32.xlu0 %v354, 127
      %v1412 = vpop.permute.xlu0 %1411
      %1413 = vrot.lane.b32.xlu0 %v355, 127
      %v1414 = vpop.permute.xlu0 %1413
      %1415 = vrot.lane.b32.xlu0 %v356, 127
      %v1416 = vpop.permute.xlu0 %1415
      %1417 = vrot.lane.b32.xlu0 %v357, 127
      %v1418 = vpop.permute.xlu0 %1417
      %vm1419 = vcmask 1039360
      %v1420 = vsel %vm1419, %v1410, %v1412
      %v1421 = vsel %vm1419, %v1412, %v1414
      %v1422 = vsel %vm1419, %v1414, %v1416
      %v1423 = vsel %vm1419, %v1416, %v1418
      %v1430 = vmul.f32 %v1397, %v1410
      %v1431 = vmul.f32 %v1398, %v1420
      %v1432 = vmul.f32 %v1399, %v1421
      %v1433 = vmul.f32 %v1400, %v1422
      %v1434 = vmul.f32 %v1401, %v1423
      %v1435 = vmul.f32 %v1402, %v1418
      %v1436 = vmul.f32 %v1403, %v1410
      %v1437 = vmul.f32 %v1404, %v1420
      %v1438 = vmul.f32 %v1405, %v1421
      %v1439 = vmul.f32 %v1406, %v1422
      %v1440 = vmul.f32 %v1407, %v1423
      %v1441 = vmul.f32 %v1408, %v1418
      %v1442 = vpack.c.bf16 %v1431, %v1430
      %v1443 = vpack.c.bf16 %v1433, %v1432
      %v1444 = vpack.c.bf16 %v1435, %v1434
      %v1445 = vpack.c.bf16 %v1437, %v1436
      %v1446 = vpack.c.bf16 %v1439, %v1438
      %v1447 = vpack.c.bf16 %v1441, %v1440
      %1454 = vrot.lane.b32.xlu0 %v1442, 1
      %v1455 = vpop.permute.xlu0 %1454
      %1456 = vrot.lane.b32.xlu0 %v1443, 1
      %v1457 = vpop.permute.xlu0 %1456
      %1458 = vrot.lane.b32.xlu0 %v1444, 1
      %v1459 = vpop.permute.xlu0 %1458
      %1460 = vrot.lane.b32.xlu0 %v1445, 1
      %v1461 = vpop.permute.xlu0 %1460
      %1462 = vrot.lane.b32.xlu0 %v1446, 1
      %v1463 = vpop.permute.xlu0 %1462
      %1464 = vrot.lane.b32.xlu0 %v1447, 1
      %v1465 = vpop.permute.xlu0 %1464
      %v1466 = vrot.slane %v1455, 4
      %v1467 = vrot.slane %v1457, 4
      %v1468 = vrot.slane %v1459, 4
      %v1469 = vrot.slane %v1461, 4
      %v1470 = vrot.slane %v1463, 4
      %v1471 = vrot.slane %v1465, 4
      %v1472 = vsel %vm421, %v1466, %v1467
      %vm1473 = vcmask 7168
      %v1474 = vsel %vm1473, %v1455, %v1472
      %v1475 = vsel %vm421, %v1467, %v1468
      %v1476 = vsel %vm1473, %v1457, %v1475
      %v1477 = vsel %vm1473, %v1459, %v1468
      %v1478 = vsel %vm421, %v1469, %v1470
      %v1479 = vsel %vm1473, %v1461, %v1478
      %v1480 = vsel %vm421, %v1470, %v1471
      %v1481 = vsel %vm1473, %v1463, %v1480
      %v1482 = vsel %vm1473, %v1465, %v1471
      %1489 = vst [vmem:[#allocation2 + $0x1e0] sm:$0xff] %v1474
      %1490 = vst [vmem:[#allocation2 + $0x1e8] sm:$0xff] %v1476
      %1491 = vst [vmem:[#allocation2 + $0x1f0] sm:$0xf] %v1477
      %1492 = vst [vmem:[#allocation2 + $0x1f4] sm:$0xff] %v1479
      %1493 = vst [vmem:[#allocation2 + $0x1fc] sm:$0xff] %v1481
      %1494 = vst [vmem:[#allocation2 + $0x204] sm:$0xf] %v1482
      %v1495 = vld [vmem:[#allocation3 + $0x8] sm:$0xff]
      %v1496 = vld [vmem:[#allocation3 + $0x10] sm:$0xff]
      %v1497 = vld [vmem:[#allocation3 + $0x18] sm:$0xff]
      %v1498 = vld [vmem:[#allocation3 + $0x20] sm:$0xff]
      %v1499 = vld [vmem:[#allocation3 + $0x28] sm:$0xff]
      %v1500 = vld [vmem:[#allocation3 + $0x40] sm:$0xff]
      %v1501 = vld [vmem:[#allocation3 + $0x48] sm:$0xff]
      %v1502 = vld [vmem:[#allocation3 + $0x50] sm:$0xff]
      %v1503 = vld [vmem:[#allocation3 + $0x58] sm:$0xff]
      %v1504 = vld [vmem:[#allocation3 + $0x60] sm:$0xff]
      %v1505 = vpack.c.bf16 %v1496, %v1495
      %v1506 = vpack.c.bf16 %v1498, %v1497
      %v1507 = vpack.c.bf16 %v1499, %v1499
      %v1508 = vpack.c.bf16 %v1501, %v1500
      %v1509 = vpack.c.bf16 %v1503, %v1502
      %v1510 = vpack.c.bf16 %v1504, %v1504
      %1511 = vst [vmem:[#allocation2 + $0x208] sm:$0xff] %v1505
      %1512 = vst [vmem:[#allocation2 + $0x210] sm:$0xff] %v1506
      %1513 = vst [vmem:[#allocation2 + $0x218] sm:$0xf] %v1507
      %1514 = vst [vmem:[#allocation2 + $0x21c] sm:$0xff] %v1508
      %1515 = vst [vmem:[#allocation2 + $0x224] sm:$0xff] %v1509
      %1516 = vst [vmem:[#allocation2 + $0x22c] sm:$0xf] %v1510
      %v1517 = vld [vmem:[#allocation3 + $0x8] sm:$0xff]
      %v1518 = vld [vmem:[#allocation3 + $0x10] sm:$0xff]
      %v1519 = vld [vmem:[#allocation3 + $0x18] sm:$0xff]
      %v1520 = vld [vmem:[#allocation3 + $0x20] sm:$0xff]
      %v1521 = vld [vmem:[#allocation3 + $0x28] sm:$0xff]
      %v1522 = vld [vmem:[#allocation3 + $0x30] sm:$0xff]
      %v1523 = vld [vmem:[#allocation3 + $0x40] sm:$0xff]
      %v1524 = vld [vmem:[#allocation3 + $0x48] sm:$0xff]
      %v1525 = vld [vmem:[#allocation3 + $0x50] sm:$0xff]
      %v1526 = vld [vmem:[#allocation3 + $0x58] sm:$0xff]
      %v1527 = vld [vmem:[#allocation3 + $0x60] sm:$0xff]
      %v1528 = vld [vmem:[#allocation3 + $0x68] sm:$0xff]
      %1529 = vrot.lane.b32.xlu0 %v523, 1
      %v1530 = vpop.permute.xlu0 %1529
      %1531 = vrot.lane.b32.xlu0 %v524, 1
      %v1532 = vpop.permute.xlu0 %1531
      %1533 = vrot.lane.b32.xlu0 %v525, 1
      %v1534 = vpop.permute.xlu0 %1533
      %1535 = vrot.lane.b32.xlu0 %v526, 1
      %v1536 = vpop.permute.xlu0 %1535
      %1537 = vrot.lane.b32.xlu0 %v527, 1
      %v1538 = vpop.permute.xlu0 %1537
      %vm1539 = vcmask 7168
      %v1540 = vsel %vm1539, %v1530, %v1532
      %v1541 = vsel %vm1539, %v1532, %v1534
      %v1542 = vsel %vm1539, %v1534, %v1536
      %v1543 = vsel %vm1539, %v1536, %v1538
      %v1550 = vmul.f32 %v1517, %v1530
      %v1551 = vmul.f32 %v1518, %v1540
      %v1552 = vmul.f32 %v1519, %v1541
      %v1553 = vmul.f32 %v1520, %v1542
      %v1554 = vmul.f32 %v1521, %v1543
      %v1555 = vmul.f32 %v1522, %v1538
      %v1556 = vmul.f32 %v1523, %v1530
      %v1557 = vmul.f32 %v1524, %v1540
      %v1558 = vmul.f32 %v1525, %v1541
      %v1559 = vmul.f32 %v1526, %v1542
      %v1560 = vmul.f32 %v1527, %v1543
      %v1561 = vmul.f32 %v1528, %v1538
      %v1562 = vpack.c.bf16 %v1551, %v1550
      %v1563 = vpack.c.bf16 %v1553, %v1552
      %v1564 = vpack.c.bf16 %v1555, %v1554
      %v1565 = vpack.c.bf16 %v1557, %v1556
      %v1566 = vpack.c.bf16 %v1559, %v1558
      %v1567 = vpack.c.bf16 %v1561, %v1560
      %1574 = vrot.lane.b32.xlu0 %v1562, 127
      %v1575 = vpop.permute.xlu0 %1574
      %1576 = vrot.lane.b32.xlu0 %v1563, 127
      %v1577 = vpop.permute.xlu0 %1576
      %1578 = vrot.lane.b32.xlu0 %v1564, 127
      %v1579 = vpop.permute.xlu0 %1578
      %1580 = vrot.lane.b32.xlu0 %v1565, 127
      %v1581 = vpop.permute.xlu0 %1580
      %1582 = vrot.lane.b32.xlu0 %v1566, 127
      %v1583 = vpop.permute.xlu0 %1582
      %1584 = vrot.lane.b32.xlu0 %v1567, 127
      %v1585 = vpop.permute.xlu0 %1584
      %v1586 = vrot.slane %v1575, 4
      %v1587 = vrot.slane %v1577, 4
      %v1588 = vrot.slane %v1579, 4
      %v1589 = vrot.slane %v1581, 4
      %v1590 = vrot.slane %v1583, 4
      %v1591 = vrot.slane %v1585, 4
      %v1592 = vsel %vm421, %v1586, %v1587
      %vm1593 = vcmask 1039360
      %v1594 = vsel %vm1593, %v1575, %v1592
      %v1595 = vsel %vm421, %v1587, %v1588
      %v1596 = vsel %vm1593, %v1577, %v1595
      %v1597 = vsel %vm1593, %v1579, %v1588
      %v1598 = vsel %vm421, %v1589, %v1590
      %v1599 = vsel %vm1593, %v1581, %v1598
      %v1600 = vsel %vm421, %v1590, %v1591
      %v1601 = vsel %vm1593, %v1583, %v1600
      %v1602 = vsel %vm1593, %v1585, %v1591
      %1609 = vst [vmem:[#allocation2 + $0x230] sm:$0xff] %v1594
      %1610 = vst [vmem:[#allocation2 + $0x238] sm:$0xff] %v1596
      %1611 = vst [vmem:[#allocation2 + $0x240] sm:$0xf] %v1597
      %1612 = vst [vmem:[#allocation2 + $0x244] sm:$0xff] %v1599
      %1613 = vst [vmem:[#allocation2 + $0x24c] sm:$0xff] %v1601
      %1614 = vst [vmem:[#allocation2 + $0x254] sm:$0xf] %v1602
      %v1615 = vld [vmem:[#allocation3 + $0x8] sm:$0xff]
      %v1616 = vld [vmem:[#allocation3 + $0x10] sm:$0xff]
      %v1617 = vld [vmem:[#allocation3 + $0x18] sm:$0xff]
      %v1618 = vld [vmem:[#allocation3 + $0x20] sm:$0xff]
      %v1619 = vld [vmem:[#allocation3 + $0x28] sm:$0xff]
      %v1620 = vld [vmem:[#allocation3 + $0x30] sm:$0xff]
      %v1621 = vld [vmem:[#allocation3 + $0x40] sm:$0xff]
      %v1622 = vld [vmem:[#allocation3 + $0x48] sm:$0xff]
      %v1623 = vld [vmem:[#allocation3 + $0x50] sm:$0xff]
      %v1624 = vld [vmem:[#allocation3 + $0x58] sm:$0xff]
      %v1625 = vld [vmem:[#allocation3 + $0x60] sm:$0xff]
      %v1626 = vld [vmem:[#allocation3 + $0x68] sm:$0xff]
      %1627 = vrot.lane.b32.xlu0 %v353, 7
      %v1628 = vpop.permute.xlu0 %1627
      %1629 = vrot.lane.b32.xlu0 %v354, 7
      %v1630 = vpop.permute.xlu0 %1629
      %1631 = vrot.lane.b32.xlu0 %v355, 7
      %v1632 = vpop.permute.xlu0 %1631
      %1633 = vrot.lane.b32.xlu0 %v356, 7
      %v1634 = vpop.permute.xlu0 %1633
      %1635 = vrot.lane.b32.xlu0 %v357, 7
      %v1636 = vpop.permute.xlu0 %1635
      %vm1637 = vcmask 56320
      %v1638 = vsel %vm1637, %v1628, %v1630
      %v1639 = vsel %vm1637, %v1630, %v1632
      %v1640 = vsel %vm1637, %v1632, %v1634
      %v1641 = vsel %vm1637, %v1634, %v1636
      %v1648 = vmul.f32 %v1615, %v1628
      %v1649 = vmul.f32 %v1616, %v1638
      %v1650 = vmul.f32 %v1617, %v1639
      %v1651 = vmul.f32 %v1618, %v1640
      %v1652 = vmul.f32 %v1619, %v1641
      %v1653 = vmul.f32 %v1620, %v1636
      %v1654 = vmul.f32 %v1621, %v1628
      %v1655 = vmul.f32 %v1622, %v1638
      %v1656 = vmul.f32 %v1623, %v1639
      %v1657 = vmul.f32 %v1624, %v1640
      %v1658 = vmul.f32 %v1625, %v1641
      %v1659 = vmul.f32 %v1626, %v1636
      %v1660 = vpack.c.bf16 %v1649, %v1648
      %v1661 = vpack.c.bf16 %v1651, %v1650
      %v1662 = vpack.c.bf16 %v1653, %v1652
      %v1663 = vpack.c.bf16 %v1655, %v1654
      %v1664 = vpack.c.bf16 %v1657, %v1656
      %v1665 = vpack.c.bf16 %v1659, %v1658
      %1672 = vrot.lane.b32.xlu0 %v1660, 121
      %v1673 = vpop.permute.xlu0 %1672
      %1674 = vrot.lane.b32.xlu0 %v1661, 121
      %v1675 = vpop.permute.xlu0 %1674
      %1676 = vrot.lane.b32.xlu0 %v1662, 121
      %v1677 = vpop.permute.xlu0 %1676
      %1678 = vrot.lane.b32.xlu0 %v1663, 121
      %v1679 = vpop.permute.xlu0 %1678
      %1680 = vrot.lane.b32.xlu0 %v1664, 121
      %v1681 = vpop.permute.xlu0 %1680
      %1682 = vrot.lane.b32.xlu0 %v1665, 121
      %v1683 = vpop.permute.xlu0 %1682
      %v1684 = vrot.slane %v1673, 4
      %v1685 = vrot.slane %v1675, 4
      %v1686 = vrot.slane %v1677, 4
      %v1687 = vrot.slane %v1679, 4
      %v1688 = vrot.slane %v1681, 4
      %v1689 = vrot.slane %v1683, 4
      %v1690 = vsel %vm421, %v1684, %v1685
      %vm1691 = vcmask 990208
      %v1692 = vsel %vm1691, %v1673, %v1690
      %v1693 = vsel %vm421, %v1685, %v1686
      %v1694 = vsel %vm1691, %v1675, %v1693
      %v1695 = vsel %vm1691, %v1677, %v1686
      %v1696 = vsel %vm421, %v1687, %v1688
      %v1697 = vsel %vm1691, %v1679, %v1696
      %v1698 = vsel %vm421, %v1688, %v1689
      %v1699 = vsel %vm1691, %v1681, %v1698
      %v1700 = vsel %vm1691, %v1683, %v1689
      %1707 = vst [vmem:[#allocation2 + $0x258] sm:$0xff] %v1692
      %1708 = vst [vmem:[#allocation2 + $0x260] sm:$0xff] %v1694
      %1709 = vst [vmem:[#allocation2 + $0x268] sm:$0xf] %v1695
      %1710 = vst [vmem:[#allocation2 + $0x26c] sm:$0xff] %v1697
      %1711 = vst [vmem:[#allocation2 + $0x274] sm:$0xff] %v1699
      %1712 = vst [vmem:[#allocation2 + $0x27c] sm:$0xf] %v1700
      %v1713 = vld [vmem:[#allocation3 + $0x8] sm:$0xff]
      %v1714 = vld [vmem:[#allocation3 + $0x10] sm:$0xff]
      %v1715 = vld [vmem:[#allocation3 + $0x18] sm:$0xff]
      %v1716 = vld [vmem:[#allocation3 + $0x20] sm:$0xff]
      %v1717 = vld [vmem:[#allocation3 + $0x28] sm:$0xff]
      %v1718 = vld [vmem:[#allocation3 + $0x30] sm:$0xff]
      %v1719 = vld [vmem:[#allocation3 + $0x40] sm:$0xff]
      %v1720 = vld [vmem:[#allocation3 + $0x48] sm:$0xff]
      %v1721 = vld [vmem:[#allocation3 + $0x50] sm:$0xff]
      %v1722 = vld [vmem:[#allocation3 + $0x58] sm:$0xff]
      %v1723 = vld [vmem:[#allocation3 + $0x60] sm:$0xff]
      %v1724 = vld [vmem:[#allocation3 + $0x68] sm:$0xff]
      %v1725 = vpack.c.bf16 %v1714, %v1713
      %v1726 = vpack.c.bf16 %v1716, %v1715
      %v1727 = vpack.c.bf16 %v1718, %v1717
      %v1728 = vpack.c.bf16 %v1720, %v1719
      %v1729 = vpack.c.bf16 %v1722, %v1721
      %v1730 = vpack.c.bf16 %v1724, %v1723
      %1737 = vrot.lane.b32.xlu0 %v1725, 120
      %v1738 = vpop.permute.xlu0 %1737
      %1739 = vrot.lane.b32.xlu0 %v1726, 120
      %v1740 = vpop.permute.xlu0 %1739
      %1741 = vrot.lane.b32.xlu0 %v1727, 120
      %v1742 = vpop.permute.xlu0 %1741
      %1743 = vrot.lane.b32.xlu0 %v1728, 120
      %v1744 = vpop.permute.xlu0 %1743
      %1745 = vrot.lane.b32.xlu0 %v1729, 120
      %v1746 = vpop.permute.xlu0 %1745
      %1747 = vrot.lane.b32.xlu0 %v1730, 120
      %v1748 = vpop.permute.xlu0 %1747
      %v1749 = vrot.slane %v1738, 4
      %v1750 = vrot.slane %v1740, 4
      %v1751 = vrot.slane %v1742, 4
      %v1752 = vrot.slane %v1744, 4
      %v1753 = vrot.slane %v1746, 4
      %v1754 = vrot.slane %v1748, 4
      %v1755 = vsel %vm421, %v1749, %v1750
      %vm1756 = vcmask 982016
      %v1757 = vsel %vm1756, %v1738, %v1755
      %v1758 = vsel %vm421, %v1750, %v1751
      %v1759 = vsel %vm1756, %v1740, %v1758
      %v1760 = vsel %vm1756, %v1742, %v1751
      %v1761 = vsel %vm421, %v1752, %v1753
      %v1762 = vsel %vm1756, %v1744, %v1761
      %v1763 = vsel %vm421, %v1753, %v1754
      %v1764 = vsel %vm1756, %v1746, %v1763
      %v1765 = vsel %vm1756, %v1748, %v1754
      %1772 = vst [vmem:[#allocation2 + $0x280] sm:$0xff] %v1757
      %1773 = vst [vmem:[#allocation2 + $0x288] sm:$0xff] %v1759
      %1774 = vst [vmem:[#allocation2 + $0x290] sm:$0xf] %v1760
      %1775 = vst [vmem:[#allocation2 + $0x294] sm:$0xff] %v1762
      %1776 = vst [vmem:[#allocation2 + $0x29c] sm:$0xff] %v1764
      %1777 = vst [vmem:[#allocation2 + $0x2a4] sm:$0xf] %v1765
      %v1778 = vld [vmem:[#allocation3 + $0x8] sm:$0xff]
      %v1779 = vld [vmem:[#allocation3 + $0x10] sm:$0xff]
      %v1780 = vld [vmem:[#allocation3 + $0x18] sm:$0xff]
      %v1781 = vld [vmem:[#allocation3 + $0x20] sm:$0xff]
      %v1782 = vld [vmem:[#allocation3 + $0x28] sm:$0xff]
      %v1783 = vld [vmem:[#allocation3 + $0x30] sm:$0xff]
      %v1784 = vld [vmem:[#allocation3 + $0x40] sm:$0xff]
      %v1785 = vld [vmem:[#allocation3 + $0x48] sm:$0xff]
      %v1786 = vld [vmem:[#allocation3 + $0x50] sm:$0xff]
      %v1787 = vld [vmem:[#allocation3 + $0x58] sm:$0xff]
      %v1788 = vld [vmem:[#allocation3 + $0x60] sm:$0xff]
      %v1789 = vld [vmem:[#allocation3 + $0x68] sm:$0xff]
      %1790 = vrot.lane.b32.xlu0 %v523, 9
      %v1791 = vpop.permute.xlu0 %1790
      %1792 = vrot.lane.b32.xlu0 %v524, 9
      %v1793 = vpop.permute.xlu0 %1792
      %1794 = vrot.lane.b32.xlu0 %v525, 9
      %v1795 = vpop.permute.xlu0 %1794
      %1796 = vrot.lane.b32.xlu0 %v526, 9
      %v1797 = vpop.permute.xlu0 %1796
      %1798 = vrot.lane.b32.xlu0 %v527, 9
      %v1799 = vpop.permute.xlu0 %1798
      %vm1800 = vcmask 72704
      %v1801 = vsel %vm1800, %v1791, %v1793
      %v1802 = vsel %vm1800, %v1793, %v1795
      %v1803 = vsel %vm1800, %v1795, %v1797
      %v1804 = vsel %vm1800, %v1797, %v1799
      %v1811 = vmul.f32 %v1778, %v1791
      %v1812 = vmul.f32 %v1779, %v1801
      %v1813 = vmul.f32 %v1780, %v1802
      %v1814 = vmul.f32 %v1781, %v1803
      %v1815 = vmul.f32 %v1782, %v1804
      %v1816 = vmul.f32 %v1783, %v1799
      %v1817 = vmul.f32 %v1784, %v1791
      %v1818 = vmul.f32 %v1785, %v1801
      %v1819 = vmul.f32 %v1786, %v1802
      %v1820 = vmul.f32 %v1787, %v1803
      %v1821 = vmul.f32 %v1788, %v1804
      %v1822 = vmul.f32 %v1789, %v1799
      %v1823 = vpack.c.bf16 %v1812, %v1811
      %v1824 = vpack.c.bf16 %v1814, %v1813
      %v1825 = vpack.c.bf16 %v1816, %v1815
      %v1826 = vpack.c.bf16 %v1818, %v1817
      %v1827 = vpack.c.bf16 %v1820, %v1819
      %v1828 = vpack.c.bf16 %v1822, %v1821
      %1835 = vrot.lane.b32.xlu0 %v1823, 119
      %v1836 = vpop.permute.xlu0 %1835
      %1837 = vrot.lane.b32.xlu0 %v1824, 119
      %v1838 = vpop.permute.xlu0 %1837
      %1839 = vrot.lane.b32.xlu0 %v1825, 119
      %v1840 = vpop.permute.xlu0 %1839
      %1841 = vrot.lane.b32.xlu0 %v1826, 119
      %v1842 = vpop.permute.xlu0 %1841
      %1843 = vrot.lane.b32.xlu0 %v1827, 119
      %v1844 = vpop.permute.xlu0 %1843
      %1845 = vrot.lane.b32.xlu0 %v1828, 119
      %v1846 = vpop.permute.xlu0 %1845
      %v1847 = vrot.slane %v1836, 4
      %v1848 = vrot.slane %v1838, 4
      %v1849 = vrot.slane %v1840, 4
      %v1850 = vrot.slane %v1842, 4
      %v1851 = vrot.slane %v1844, 4
      %v1852 = vrot.slane %v1846, 4
      %v1853 = vsel %vm421, %v1847, %v1848
      %vm1854 = vcmask 973824
      %v1855 = vsel %vm1854, %v1836, %v1853
      %v1856 = vsel %vm421, %v1848, %v1849
      %v1857 = vsel %vm1854, %v1838, %v1856
      %v1858 = vsel %vm1854, %v1840, %v1849
      %v1859 = vsel %vm421, %v1850, %v1851
      %v1860 = vsel %vm1854, %v1842, %v1859
      %v1861 = vsel %vm421, %v1851, %v1852
      %v1862 = vsel %vm1854, %v1844, %v1861
      %v1863 = vsel %vm1854, %v1846, %v1852
      %1870 = vst [vmem:[#allocation2 + $0x2a8] sm:$0xff] %v1855
      %1871 = vst [vmem:[#allocation2 + $0x2b0] sm:$0xff] %v1857
      %1872 = vst [vmem:[#allocation2 + $0x2b8] sm:$0xf] %v1858
      %1873 = vst [vmem:[#allocation2 + $0x2bc] sm:$0xff] %v1860
      %1874 = vst [vmem:[#allocation2 + $0x2c4] sm:$0xff] %v1862
      %1875 = vst [vmem:[#allocation2 + $0x2cc] sm:$0xf] %v1863
      %v1876 = vld [vmem:[#allocation3 + $0x8] sm:$0xff]
      %v1877 = vld [vmem:[#allocation3 + $0x10] sm:$0xff]
      %v1878 = vld [vmem:[#allocation3 + $0x18] sm:$0xff]
      %v1879 = vld [vmem:[#allocation3 + $0x20] sm:$0xff]
      %v1880 = vld [vmem:[#allocation3 + $0x28] sm:$0xff]
      %v1881 = vld [vmem:[#allocation3 + $0x30] sm:$0xff]
      %v1882 = vld [vmem:[#allocation3 + $0x40] sm:$0xff]
      %v1883 = vld [vmem:[#allocation3 + $0x48] sm:$0xff]
      %v1884 = vld [vmem:[#allocation3 + $0x50] sm:$0xff]
      %v1885 = vld [vmem:[#allocation3 + $0x58] sm:$0xff]
      %v1886 = vld [vmem:[#allocation3 + $0x60] sm:$0xff]
      %v1887 = vld [vmem:[#allocation3 + $0x68] sm:$0xff]
      %1888 = vrot.lane.b32.xlu0 %v353, 71
      %v1889 = vpop.permute.xlu0 %1888
      %1890 = vrot.lane.b32.xlu0 %v354, 71
      %v1891 = vpop.permute.xlu0 %1890
      %1892 = vrot.lane.b32.xlu0 %v355, 71
      %v1893 = vpop.permute.xlu0 %1892
      %1894 = vrot.lane.b32.xlu0 %v356, 71
      %v1895 = vpop.permute.xlu0 %1894
      %1896 = vrot.lane.b32.xlu0 %v357, 71
      %v1897 = vpop.permute.xlu0 %1896
      %vm1898 = vcmask 580608
      %v1899 = vsel %vm1898, %v1889, %v1891
      %v1900 = vsel %vm1898, %v1891, %v1893
      %v1901 = vsel %vm1898, %v1893, %v1895
      %v1902 = vsel %vm1898, %v1895, %v1897
      %v1909 = vmul.f32 %v1876, %v1889
      %v1910 = vmul.f32 %v1877, %v1899
      %v1911 = vmul.f32 %v1878, %v1900
      %v1912 = vmul.f32 %v1879, %v1901
      %v1913 = vmul.f32 %v1880, %v1902
      %v1914 = vmul.f32 %v1881, %v1897
      %v1915 = vmul.f32 %v1882, %v1889
      %v1916 = vmul.f32 %v1883, %v1899
      %v1917 = vmul.f32 %v1884, %v1900
      %v1918 = vmul.f32 %v1885, %v1901
      %v1919 = vmul.f32 %v1886, %v1902
      %v1920 = vmul.f32 %v1887, %v1897
      %v1921 = vpack.c.bf16 %v1910, %v1909
      %v1922 = vpack.c.bf16 %v1912, %v1911
      %v1923 = vpack.c.bf16 %v1914, %v1913
      %v1924 = vpack.c.bf16 %v1916, %v1915
      %v1925 = vpack.c.bf16 %v1918, %v1917
      %v1926 = vpack.c.bf16 %v1920, %v1919
      %1933 = vrot.lane.b32.xlu0 %v1921, 57
      %v1934 = vpop.permute.xlu0 %1933
      %1935 = vrot.lane.b32.xlu0 %v1922, 57
      %v1936 = vpop.permute.xlu0 %1935
      %1937 = vrot.lane.b32.xlu0 %v1923, 57
      %v1938 = vpop.permute.xlu0 %1937
      %1939 = vrot.lane.b32.xlu0 %v1924, 57
      %v1940 = vpop.permute.xlu0 %1939
      %1941 = vrot.lane.b32.xlu0 %v1925, 57
      %v1942 = vpop.permute.xlu0 %1941
      %1943 = vrot.lane.b32.xlu0 %v1926, 57
      %v1944 = vpop.permute.xlu0 %1943
      %v1945 = vrot.slane %v1934, 4
      %v1946 = vrot.slane %v1936, 4
      %v1947 = vrot.slane %v1938, 4
      %v1948 = vrot.slane %v1940, 4
      %v1949 = vrot.slane %v1942, 4
      %v1950 = vrot.slane %v1944, 4
      %v1951 = vsel %vm421, %v1945, %v1946
      %vm1952 = vcmask 465920
      %v1953 = vsel %vm1952, %v1934, %v1951
      %v1954 = vsel %vm421, %v1946, %v1947
      %v1955 = vsel %vm1952, %v1936, %v1954
      %v1956 = vsel %vm1952, %v1938, %v1947
      %v1957 = vsel %vm421, %v1948, %v1949
      %v1958 = vsel %vm1952, %v1940, %v1957
      %v1959 = vsel %vm421, %v1949, %v1950
      %v1960 = vsel %vm1952, %v1942, %v1959
      %v1961 = vsel %vm1952, %v1944, %v1950
      %1968 = vst [vmem:[#allocation2 + $0x2d0] sm:$0xff] %v1953
      %1969 = vst [vmem:[#allocation2 + $0x2d8] sm:$0xff] %v1955
      %1970 = vst [vmem:[#allocation2 + $0x2e0] sm:$0xf] %v1956
      %1971 = vst [vmem:[#allocation2 + $0x2e4] sm:$0xff] %v1958
      %1972 = vst [vmem:[#allocation2 + $0x2ec] sm:$0xff] %v1960
      %1973 = vst [vmem:[#allocation2 + $0x2f4] sm:$0xf] %v1961
      %v1974 = vld [vmem:[#allocation3 + $0x8] sm:$0xff]
      %v1975 = vld [vmem:[#allocation3 + $0x10] sm:$0xff]
      %v1976 = vld [vmem:[#allocation3 + $0x18] sm:$0xff]
      %v1977 = vld [vmem:[#allocation3 + $0x20] sm:$0xff]
      %v1978 = vld [vmem:[#allocation3 + $0x28] sm:$0xff]
      %v1979 = vld [vmem:[#allocation3 + $0x30] sm:$0xff]
      %v1980 = vld [vmem:[#allocation3 + $0x40] sm:$0xff]
      %v1981 = vld [vmem:[#allocation3 + $0x48] sm:$0xff]
      %v1982 = vld [vmem:[#allocation3 + $0x50] sm:$0xff]
      %v1983 = vld [vmem:[#allocation3 + $0x58] sm:$0xff]
      %v1984 = vld [vmem:[#allocation3 + $0x60] sm:$0xff]
      %v1985 = vld [vmem:[#allocation3 + $0x68] sm:$0xff]
      %v1986 = vpack.c.bf16 %v1975, %v1974
      %v1987 = vpack.c.bf16 %v1977, %v1976
      %v1988 = vpack.c.bf16 %v1979, %v1978
      %v1989 = vpack.c.bf16 %v1981, %v1980
      %v1990 = vpack.c.bf16 %v1983, %v1982
      %v1991 = vpack.c.bf16 %v1985, %v1984
      %1998 = vrot.lane.b32.xlu0 %v1986, 56
      %v1999 = vpop.permute.xlu0 %1998
      %2000 = vrot.lane.b32.xlu0 %v1987, 56
      %v2001 = vpop.permute.xlu0 %2000
      %2002 = vrot.lane.b32.xlu0 %v1988, 56
      %v2003 = vpop.permute.xlu0 %2002
      %2004 = vrot.lane.b32.xlu0 %v1989, 56
      %v2005 = vpop.permute.xlu0 %2004
      %2006 = vrot.lane.b32.xlu0 %v1990, 56
      %v2007 = vpop.permute.xlu0 %2006
      %2008 = vrot.lane.b32.xlu0 %v1991, 56
      %v2009 = vpop.permute.xlu0 %2008
      %v2010 = vrot.slane %v1999, 4
      %v2011 = vrot.slane %v2001, 4
      %v2012 = vrot.slane %v2003, 4
      %v2013 = vrot.slane %v2005, 4
      %v2014 = vrot.slane %v2007, 4
      %v2015 = vrot.slane %v2009, 4
      %v2016 = vsel %vm421, %v2010, %v2011
      %vm2017 = vcmask 457728
      %v2018 = vsel %vm2017, %v1999, %v2016
      %v2019 = vsel %vm421, %v2011, %v2012
      %v2020 = vsel %vm2017, %v2001, %v2019
      %v2021 = vsel %vm2017, %v2003, %v2012
      %v2022 = vsel %vm421, %v2013, %v2014
      %v2023 = vsel %vm2017, %v2005, %v2022
      %v2024 = vsel %vm421, %v2014, %v2015
      %v2025 = vsel %vm2017, %v2007, %v2024
      %v2026 = vsel %vm2017, %v2009, %v2015
      %2033 = vst [vmem:[#allocation2 + $0x2f8] sm:$0xff] %v2018
      %2034 = vst [vmem:[#allocation2 + $0x300] sm:$0xff] %v2020
      %2035 = vst [vmem:[#allocation2 + $0x308] sm:$0xf] %v2021
      %2036 = vst [vmem:[#allocation2 + $0x30c] sm:$0xff] %v2023
      %2037 = vst [vmem:[#allocation2 + $0x314] sm:$0xff] %v2025
      %2038 = vst [vmem:[#allocation2 + $0x31c] sm:$0xf] %v2026
      %v2039 = vld [vmem:[#allocation3 + $0x8] sm:$0xff]
      %v2040 = vld [vmem:[#allocation3 + $0x10] sm:$0xff]
      %v2041 = vld [vmem:[#allocation3 + $0x18] sm:$0xff]
      %v2042 = vld [vmem:[#allocation3 + $0x20] sm:$0xff]
      %v2043 = vld [vmem:[#allocation3 + $0x28] sm:$0xff]
      %v2044 = vld [vmem:[#allocation3 + $0x30] sm:$0xff]
      %v2045 = vld [vmem:[#allocation3 + $0x40] sm:$0xff]
      %v2046 = vld [vmem:[#allocation3 + $0x48] sm:$0xff]
      %v2047 = vld [vmem:[#allocation3 + $0x50] sm:$0xff]
      %v2048 = vld [vmem:[#allocation3 + $0x58] sm:$0xff]
      %v2049 = vld [vmem:[#allocation3 + $0x60] sm:$0xff]
      %v2050 = vld [vmem:[#allocation3 + $0x68] sm:$0xff]
      %2051 = vrot.lane.b32.xlu0 %v523, 73
      %v2052 = vpop.permute.xlu0 %2051
      %2053 = vrot.lane.b32.xlu0 %v524, 73
      %v2054 = vpop.permute.xlu0 %2053
      %2055 = vrot.lane.b32.xlu0 %v525, 73
      %v2056 = vpop.permute.xlu0 %2055
      %2057 = vrot.lane.b32.xlu0 %v526, 73
      %v2058 = vpop.permute.xlu0 %2057
      %2059 = vrot.lane.b32.xlu0 %v527, 73
      %v2060 = vpop.permute.xlu0 %2059
      %vm2061 = vcmask 596992
      %v2062 = vsel %vm2061, %v2052, %v2054
      %v2063 = vsel %vm2061, %v2054, %v2056
      %v2064 = vsel %vm2061, %v2056, %v2058
      %v2065 = vsel %vm2061, %v2058, %v2060
      %v2072 = vmul.f32 %v2039, %v2052
      %v2073 = vmul.f32 %v2040, %v2062
      %v2074 = vmul.f32 %v2041, %v2063
      %v2075 = vmul.f32 %v2042, %v2064
      %v2076 = vmul.f32 %v2043, %v2065
      %v2077 = vmul.f32 %v2044, %v2060
      %v2078 = vmul.f32 %v2045, %v2052
      %v2079 = vmul.f32 %v2046, %v2062
      %v2080 = vmul.f32 %v2047, %v2063
      %v2081 = vmul.f32 %v2048, %v2064
      %v2082 = vmul.f32 %v2049, %v2065
      %v2083 = vmul.f32 %v2050, %v2060
      %v2084 = vpack.c.bf16 %v2073, %v2072
      %v2085 = vpack.c.bf16 %v2075, %v2074
      %v2086 = vpack.c.bf16 %v2077, %v2076
      %v2087 = vpack.c.bf16 %v2079, %v2078
      %v2088 = vpack.c.bf16 %v2081, %v2080
      %v2089 = vpack.c.bf16 %v2083, %v2082
      %2096 = vrot.lane.b32.xlu0 %v2084, 55
      %v2097 = vpop.permute.xlu0 %2096
      %2098 = vrot.lane.b32.xlu0 %v2085, 55
      %v2099 = vpop.permute.xlu0 %2098
      %2100 = vrot.lane.b32.xlu0 %v2086, 55
      %v2101 = vpop.permute.xlu0 %2100
      %2102 = vrot.lane.b32.xlu0 %v2087, 55
      %v2103 = vpop.permute.xlu0 %2102
      %2104 = vrot.lane.b32.xlu0 %v2088, 55
      %v2105 = vpop.permute.xlu0 %2104
      %2106 = vrot.lane.b32.xlu0 %v2089, 55
      %v2107 = vpop.permute.xlu0 %2106
      %v2108 = vrot.slane %v2097, 4
      %v2109 = vrot.slane %v2099, 4
      %v2110 = vrot.slane %v2101, 4
      %v2111 = vrot.slane %v2103, 4
      %v2112 = vrot.slane %v2105, 4
      %v2113 = vrot.slane %v2107, 4
      %v2114 = vsel %vm421, %v2108, %v2109
      %vm2115 = vcmask 449536
      %v2116 = vsel %vm2115, %v2097, %v2114
      %v2117 = vsel %vm421, %v2109, %v2110
      %v2118 = vsel %vm2115, %v2099, %v2117
      %v2119 = vsel %vm2115, %v2101, %v2110
      %v2120 = vsel %vm421, %v2111, %v2112
      %v2121 = vsel %vm2115, %v2103, %v2120
      %v2122 = vsel %vm421, %v2112, %v2113
      %v2123 = vsel %vm2115, %v2105, %v2122
      %v2124 = vsel %vm2115, %v2107, %v2113
      %2131 = vst [vmem:[#allocation2 + $0x320] sm:$0xff] %v2116
      %2132 = vst [vmem:[#allocation2 + $0x328] sm:$0xff] %v2118
      %2133 = vst [vmem:[#allocation2 + $0x330] sm:$0xf] %v2119
      %2134 = vst [vmem:[#allocation2 + $0x334] sm:$0xff] %v2121
      %2135 = vst [vmem:[#allocation2 + $0x33c] sm:$0xff] %v2123
      %2136 = vst [vmem:[#allocation2 + $0x344] sm:$0xf] %v2124
      %v2137 = vld [vmem:[#allocation3 + $0x8] sm:$0xff]
      %v2138 = vld [vmem:[#allocation3 + $0x10] sm:$0xff]
      %v2139 = vld [vmem:[#allocation3 + $0x18] sm:$0xff]
      %v2140 = vld [vmem:[#allocation3 + $0x20] sm:$0xff]
      %v2141 = vld [vmem:[#allocation3 + $0x28] sm:$0xff]
      %v2142 = vld [vmem:[#allocation3 + $0x30] sm:$0xff]
      %v2143 = vld [vmem:[#allocation3 + $0x40] sm:$0xff]
      %v2144 = vld [vmem:[#allocation3 + $0x48] sm:$0xff]
      %v2145 = vld [vmem:[#allocation3 + $0x50] sm:$0xff]
      %v2146 = vld [vmem:[#allocation3 + $0x58] sm:$0xff]
      %v2147 = vld [vmem:[#allocation3 + $0x60] sm:$0xff]
      %v2148 = vld [vmem:[#allocation3 + $0x68] sm:$0xff]
      %2149 = vrot.lane.b32.xlu0 %v353, 79
      %v2150 = vpop.permute.xlu0 %2149
      %2151 = vrot.lane.b32.xlu0 %v354, 79
      %v2152 = vpop.permute.xlu0 %2151
      %2153 = vrot.lane.b32.xlu0 %v355, 79
      %v2154 = vpop.permute.xlu0 %2153
      %2155 = vrot.lane.b32.xlu0 %v356, 79
      %v2156 = vpop.permute.xlu0 %2155
      %2157 = vrot.lane.b32.xlu0 %v357, 79
      %v2158 = vpop.permute.xlu0 %2157
      %vm2159 = vcmask 646144
      %v2160 = vsel %vm2159, %v2150, %v2152
      %v2161 = vsel %vm2159, %v2152, %v2154
      %v2162 = vsel %vm2159, %v2154, %v2156
      %v2163 = vsel %vm2159, %v2156, %v2158
      %v2170 = vmul.f32 %v2137, %v2150
      %v2171 = vmul.f32 %v2138, %v2160
      %v2172 = vmul.f32 %v2139, %v2161
      %v2173 = vmul.f32 %v2140, %v2162
      %v2174 = vmul.f32 %v2141, %v2163
      %v2175 = vmul.f32 %v2142, %v2158
      %v2176 = vmul.f32 %v2143, %v2150
      %v2177 = vmul.f32 %v2144, %v2160
      %v2178 = vmul.f32 %v2145, %v2161
      %v2179 = vmul.f32 %v2146, %v2162
      %v2180 = vmul.f32 %v2147, %v2163
      %v2181 = vmul.f32 %v2148, %v2158
      %v2182 = vpack.c.bf16 %v2171, %v2170
      %v2183 = vpack.c.bf16 %v2173, %v2172
      %v2184 = vpack.c.bf16 %v2175, %v2174
      %v2185 = vpack.c.bf16 %v2177, %v2176
      %v2186 = vpack.c.bf16 %v2179, %v2178
      %v2187 = vpack.c.bf16 %v2181, %v2180
      %2194 = vrot.lane.b32.xlu0 %v2182, 49
      %v2195 = vpop.permute.xlu0 %2194
      %2196 = vrot.lane.b32.xlu0 %v2183, 49
      %v2197 = vpop.permute.xlu0 %2196
      %2198 = vrot.lane.b32.xlu0 %v2184, 49
      %v2199 = vpop.permute.xlu0 %2198
      %2200 = vrot.lane.b32.xlu0 %v2185, 49
      %v2201 = vpop.permute.xlu0 %2200
      %2202 = vrot.lane.b32.xlu0 %v2186, 49
      %v2203 = vpop.permute.xlu0 %2202
      %2204 = vrot.lane.b32.xlu0 %v2187, 49
      %v2205 = vpop.permute.xlu0 %2204
      %v2206 = vrot.slane %v2195, 4
      %v2207 = vrot.slane %v2197, 4
      %v2208 = vrot.slane %v2199, 4
      %v2209 = vrot.slane %v2201, 4
      %v2210 = vrot.slane %v2203, 4
      %v2211 = vrot.slane %v2205, 4
      %v2212 = vsel %vm421, %v2206, %v2207
      %vm2213 = vcmask 400384
      %v2214 = vsel %vm2213, %v2195, %v2212
      %v2215 = vsel %vm421, %v2207, %v2208
      %v2216 = vsel %vm2213, %v2197, %v2215
      %v2217 = vsel %vm2213, %v2199, %v2208
      %v2218 = vsel %vm421, %v2209, %v2210
      %v2219 = vsel %vm2213, %v2201, %v2218
      %v2220 = vsel %vm421, %v2210, %v2211
      %v2221 = vsel %vm2213, %v2203, %v2220
      %v2222 = vsel %vm2213, %v2205, %v2211
      %2229 = vst [vmem:[#allocation2 + $0x348] sm:$0xff] %v2214
      %2230 = vst [vmem:[#allocation2 + $0x350] sm:$0xff] %v2216
      %2231 = vst [vmem:[#allocation2 + $0x358] sm:$0xf] %v2217
      %2232 = vst [vmem:[#allocation2 + $0x35c] sm:$0xff] %v2219
      %2233 = vst [vmem:[#allocation2 + $0x364] sm:$0xff] %v2221
      %2234 = vst [vmem:[#allocation2 + $0x36c] sm:$0xf] %v2222
      %v2235 = vld [vmem:[#allocation3 + $0x8] sm:$0xff]
      %v2236 = vld [vmem:[#allocation3 + $0x10] sm:$0xff]
      %v2237 = vld [vmem:[#allocation3 + $0x18] sm:$0xff]
      %v2238 = vld [vmem:[#allocation3 + $0x20] sm:$0xff]
      %v2239 = vld [vmem:[#allocation3 + $0x28] sm:$0xff]
      %v2240 = vld [vmem:[#allocation3 + $0x30] sm:$0xff]
      %v2241 = vld [vmem:[#allocation3 + $0x40] sm:$0xff]
      %v2242 = vld [vmem:[#allocation3 + $0x48] sm:$0xff]
      %v2243 = vld [vmem:[#allocation3 + $0x50] sm:$0xff]
      %v2244 = vld [vmem:[#allocation3 + $0x58] sm:$0xff]
      %v2245 = vld [vmem:[#allocation3 + $0x60] sm:$0xff]
      %v2246 = vld [vmem:[#allocation3 + $0x68] sm:$0xff]
      %v2247 = vpack.c.bf16 %v2236, %v2235
      %v2248 = vpack.c.bf16 %v2238, %v2237
      %v2249 = vpack.c.bf16 %v2240, %v2239
      %v2250 = vpack.c.bf16 %v2242, %v2241
      %v2251 = vpack.c.bf16 %v2244, %v2243
      %v2252 = vpack.c.bf16 %v2246, %v2245
      %2259 = vrot.lane.b32.xlu0 %v2247, 48
      %v2260 = vpop.permute.xlu0 %2259
      %2261 = vrot.lane.b32.xlu0 %v2248, 48
      %v2262 = vpop.permute.xlu0 %2261
      %2263 = vrot.lane.b32.xlu0 %v2249, 48
      %v2264 = vpop.permute.xlu0 %2263
      %2265 = vrot.lane.b32.xlu0 %v2250, 48
      %v2266 = vpop.permute.xlu0 %2265
      %2267 = vrot.lane.b32.xlu0 %v2251, 48
      %v2268 = vpop.permute.xlu0 %2267
      %2269 = vrot.lane.b32.xlu0 %v2252, 48
      %v2270 = vpop.permute.xlu0 %2269
      %v2271 = vrot.slane %v2260, 4
      %v2272 = vrot.slane %v2262, 4
      %v2273 = vrot.slane %v2264, 4
      %v2274 = vrot.slane %v2266, 4
      %v2275 = vrot.slane %v2268, 4
      %v2276 = vrot.slane %v2270, 4
      %v2277 = vsel %vm421, %v2271, %v2272
      %vm2278 = vcmask 392192
      %v2279 = vsel %vm2278, %v2260, %v2277
      %v2280 = vsel %vm421, %v2272, %v2273
      %v2281 = vsel %vm2278, %v2262, %v2280
      %v2282 = vsel %vm2278, %v2264, %v2273
      %v2283 = vsel %vm421, %v2274, %v2275
      %v2284 = vsel %vm2278, %v2266, %v2283
      %v2285 = vsel %vm421, %v2275, %v2276
      %v2286 = vsel %vm2278, %v2268, %v2285
      %v2287 = vsel %vm2278, %v2270, %v2276
      %2294 = vst [vmem:[#allocation2 + $0x370] sm:$0xff] %v2279
      %2295 = vst [vmem:[#allocation2 + $0x378] sm:$0xff] %v2281
      %2296 = vst [vmem:[#allocation2 + $0x380] sm:$0xf] %v2282
      %2297 = vst [vmem:[#allocation2 + $0x384] sm:$0xff] %v2284
      %2298 = vst [vmem:[#allocation2 + $0x38c] sm:$0xff] %v2286
      %2299 = vst [vmem:[#allocation2 + $0x394] sm:$0xf] %v2287
      %v2300 = vld [vmem:[#allocation3 + $0x8] sm:$0xff]
      %v2301 = vld [vmem:[#allocation3 + $0x10] sm:$0xff]
      %v2302 = vld [vmem:[#allocation3 + $0x18] sm:$0xff]
      %v2303 = vld [vmem:[#allocation3 + $0x20] sm:$0xff]
      %v2304 = vld [vmem:[#allocation3 + $0x28] sm:$0xff]
      %v2305 = vld [vmem:[#allocation3 + $0x30] sm:$0xff]
      %v2306 = vld [vmem:[#allocation3 + $0x40] sm:$0xff]
      %v2307 = vld [vmem:[#allocation3 + $0x48] sm:$0xff]
      %v2308 = vld [vmem:[#allocation3 + $0x50] sm:$0xff]
      %v2309 = vld [vmem:[#allocation3 + $0x58] sm:$0xff]
      %v2310 = vld [vmem:[#allocation3 + $0x60] sm:$0xff]
      %v2311 = vld [vmem:[#allocation3 + $0x68] sm:$0xff]
      %2312 = vrot.lane.b32.xlu0 %v523, 81
      %v2313 = vpop.permute.xlu0 %2312
      %2314 = vrot.lane.b32.xlu0 %v524, 81
      %v2315 = vpop.permute.xlu0 %2314
      %2316 = vrot.lane.b32.xlu0 %v525, 81
      %v2317 = vpop.permute.xlu0 %2316
      %2318 = vrot.lane.b32.xlu0 %v526, 81
      %v2319 = vpop.permute.xlu0 %2318
      %2320 = vrot.lane.b32.xlu0 %v527, 81
      %v2321 = vpop.permute.xlu0 %2320
      %vm2322 = vcmask 662528
      %v2323 = vsel %vm2322, %v2313, %v2315
      %v2324 = vsel %vm2322, %v2315, %v2317
      %v2325 = vsel %vm2322, %v2317, %v2319
      %v2326 = vsel %vm2322, %v2319, %v2321
      %v2333 = vmul.f32 %v2300, %v2313
      %v2334 = vmul.f32 %v2301, %v2323
      %v2335 = vmul.f32 %v2302, %v2324
      %v2336 = vmul.f32 %v2303, %v2325
      %v2337 = vmul.f32 %v2304, %v2326
      %v2338 = vmul.f32 %v2305, %v2321
      %v2339 = vmul.f32 %v2306, %v2313
      %v2340 = vmul.f32 %v2307, %v2323
      %v2341 = vmul.f32 %v2308, %v2324
      %v2342 = vmul.f32 %v2309, %v2325
      %v2343 = vmul.f32 %v2310, %v2326
      %v2344 = vmul.f32 %v2311, %v2321
      %v2345 = vpack.c.bf16 %v2334, %v2333
      %v2346 = vpack.c.bf16 %v2336, %v2335
      %v2347 = vpack.c.bf16 %v2338, %v2337
      %v2348 = vpack.c.bf16 %v2340, %v2339
      %v2349 = vpack.c.bf16 %v2342, %v2341
      %v2350 = vpack.c.bf16 %v2344, %v2343
      %2357 = vrot.lane.b32.xlu0 %v2345, 47
      %v2358 = vpop.permute.xlu0 %2357
      %2359 = vrot.lane.b32.xlu0 %v2346, 47
      %v2360 = vpop.permute.xlu0 %2359
      %2361 = vrot.lane.b32.xlu0 %v2347, 47
      %v2362 = vpop.permute.xlu0 %2361
      %2363 = vrot.lane.b32.xlu0 %v2348, 47
      %v2364 = vpop.permute.xlu0 %2363
      %2365 = vrot.lane.b32.xlu0 %v2349, 47
      %v2366 = vpop.permute.xlu0 %2365
      %2367 = vrot.lane.b32.xlu0 %v2350, 47
      %v2368 = vpop.permute.xlu0 %2367
      %v2369 = vrot.slane %v2358, 4
      %v2370 = vrot.slane %v2360, 4
      %v2371 = vrot.slane %v2362, 4
      %v2372 = vrot.slane %v2364, 4
      %v2373 = vrot.slane %v2366, 4
      %v2374 = vrot.slane %v2368, 4
      %v2375 = vsel %vm421, %v2369, %v2370
      %vm2376 = vcmask 384000
      %v2377 = vsel %vm2376, %v2358, %v2375
      %v2378 = vsel %vm421, %v2370, %v2371
      %v2379 = vsel %vm2376, %v2360, %v2378
      %v2380 = vsel %vm2376, %v2362, %v2371
      %v2381 = vsel %vm421, %v2372, %v2373
      %v2382 = vsel %vm2376, %v2364, %v2381
      %v2383 = vsel %vm421, %v2373, %v2374
      %v2384 = vsel %vm2376, %v2366, %v2383
      %v2385 = vsel %vm2376, %v2368, %v2374
      %2392 = vst [vmem:[#allocation2 + $0x398] sm:$0xff] %v2377
      %2393 = vst [vmem:[#allocation2 + $0x3a0] sm:$0xff] %v2379
      %2394 = vst [vmem:[#allocation2 + $0x3a8] sm:$0xf] %v2380
      %2395 = vst [vmem:[#allocation2 + $0x3ac] sm:$0xff] %v2382
      %2396 = vst [vmem:[#allocation2 + $0x3b4] sm:$0xff] %v2384
      %2397 = vst [vmem:[#allocation2 + $0x3bc] sm:$0xf] %v2385
      %v2398 = vld [vmem:[#allocation3 + $0x8] sm:$0xff]
      %v2399 = vld [vmem:[#allocation3 + $0x10] sm:$0xff]
      %v2400 = vld [vmem:[#allocation3 + $0x18] sm:$0xff]
      %v2401 = vld [vmem:[#allocation3 + $0x20] sm:$0xff]
      %v2402 = vld [vmem:[#allocation3 + $0x28] sm:$0xff]
      %v2403 = vld [vmem:[#allocation3 + $0x30] sm:$0xff]
      %v2404 = vld [vmem:[#allocation3 + $0x40] sm:$0xff]
      %v2405 = vld [vmem:[#allocation3 + $0x48] sm:$0xff]
      %v2406 = vld [vmem:[#allocation3 + $0x50] sm:$0xff]
      %v2407 = vld [vmem:[#allocation3 + $0x58] sm:$0xff]
      %v2408 = vld [vmem:[#allocation3 + $0x60] sm:$0xff]
      %v2409 = vld [vmem:[#allocation3 + $0x68] sm:$0xff]
      %2410 = vrot.lane.b32.xlu0 %v353, 87
      %v2411 = vpop.permute.xlu0 %2410
      %2412 = vrot.lane.b32.xlu0 %v354, 87
      %v2413 = vpop.permute.xlu0 %2412
      %2414 = vrot.lane.b32.xlu0 %v355, 87
      %v2415 = vpop.permute.xlu0 %2414
      %2416 = vrot.lane.b32.xlu0 %v356, 87
      %v2417 = vpop.permute.xlu0 %2416
      %2418 = vrot.lane.b32.xlu0 %v357, 87
      %v2419 = vpop.permute.xlu0 %2418
      %vm2420 = vcmask 711680
      %v2421 = vsel %vm2420, %v2411, %v2413
      %v2422 = vsel %vm2420, %v2413, %v2415
      %v2423 = vsel %vm2420, %v2415, %v2417
      %v2424 = vsel %vm2420, %v2417, %v2419
      %v2431 = vmul.f32 %v2398, %v2411
      %v2432 = vmul.f32 %v2399, %v2421
      %v2433 = vmul.f32 %v2400, %v2422
      %v2434 = vmul.f32 %v2401, %v2423
      %v2435 = vmul.f32 %v2402, %v2424
      %v2436 = vmul.f32 %v2403, %v2419
      %v2437 = vmul.f32 %v2404, %v2411
      %v2438 = vmul.f32 %v2405, %v2421
      %v2439 = vmul.f32 %v2406, %v2422
      %v2440 = vmul.f32 %v2407, %v2423
      %v2441 = vmul.f32 %v2408, %v2424
      %v2442 = vmul.f32 %v2409, %v2419
      %v2443 = vpack.c.bf16 %v2432, %v2431
      %v2444 = vpack.c.bf16 %v2434, %v2433
      %v2445 = vpack.c.bf16 %v2436, %v2435
      %v2446 = vpack.c.bf16 %v2438, %v2437
      %v2447 = vpack.c.bf16 %v2440, %v2439
      %v2448 = vpack.c.bf16 %v2442, %v2441
      %2455 = vrot.lane.b32.xlu0 %v2443, 41
      %v2456 = vpop.permute.xlu0 %2455
      %2457 = vrot.lane.b32.xlu0 %v2444, 41
      %v2458 = vpop.permute.xlu0 %2457
      %2459 = vrot.lane.b32.xlu0 %v2445, 41
      %v2460 = vpop.permute.xlu0 %2459
      %2461 = vrot.lane.b32.xlu0 %v2446, 41
      %v2462 = vpop.permute.xlu0 %2461
      %2463 = vrot.lane.b32.xlu0 %v2447, 41
      %v2464 = vpop.permute.xlu0 %2463
      %2465 = vrot.lane.b32.xlu0 %v2448, 41
      %v2466 = vpop.permute.xlu0 %2465
      %v2467 = vrot.slane %v2456, 4
      %v2468 = vrot.slane %v2458, 4
      %v2469 = vrot.slane %v2460, 4
      %v2470 = vrot.slane %v2462, 4
      %v2471 = vrot.slane %v2464, 4
      %v2472 = vrot.slane %v2466, 4
      %v2473 = vsel %vm421, %v2467, %v2468
      %vm2474 = vcmask 334848
      %v2475 = vsel %vm2474, %v2456, %v2473
      %v2476 = vsel %vm421, %v2468, %v2469
      %v2477 = vsel %vm2474, %v2458, %v2476
      %v2478 = vsel %vm2474, %v2460, %v2469
      %v2479 = vsel %vm421, %v2470, %v2471
      %v2480 = vsel %vm2474, %v2462, %v2479
      %v2481 = vsel %vm421, %v2471, %v2472
      %v2482 = vsel %vm2474, %v2464, %v2481
      %v2483 = vsel %vm2474, %v2466, %v2472
      %2490 = vst [vmem:[#allocation2 + $0x3c0] sm:$0xff] %v2475
      %2491 = vst [vmem:[#allocation2 + $0x3c8] sm:$0xff] %v2477
      %2492 = vst [vmem:[#allocation2 + $0x3d0] sm:$0xf] %v2478
      %2493 = vst [vmem:[#allocation2 + $0x3d4] sm:$0xff] %v2480
      %2494 = vst [vmem:[#allocation2 + $0x3dc] sm:$0xff] %v2482
      %2495 = vst [vmem:[#allocation2 + $0x3e4] sm:$0xf] %v2483
      %v2496 = vld [vmem:[#allocation3 + $0x8] sm:$0xff]
      %v2497 = vld [vmem:[#allocation3 + $0x10] sm:$0xff]
      %v2498 = vld [vmem:[#allocation3 + $0x18] sm:$0xff]
      %v2499 = vld [vmem:[#allocation3 + $0x20] sm:$0xff]
      %v2500 = vld [vmem:[#allocation3 + $0x28] sm:$0xff]
      %v2501 = vld [vmem:[#allocation3 + $0x30] sm:$0xff]
      %v2502 = vld [vmem:[#allocation3 + $0x40] sm:$0xff]
      %v2503 = vld [vmem:[#allocation3 + $0x48] sm:$0xff]
      %v2504 = vld [vmem:[#allocation3 + $0x50] sm:$0xff]
      %v2505 = vld [vmem:[#allocation3 + $0x58] sm:$0xff]
      %v2506 = vld [vmem:[#allocation3 + $0x60] sm:$0xff]
      %v2507 = vld [vmem:[#allocation3 + $0x68] sm:$0xff]
      %v2508 = vpack.c.bf16 %v2497, %v2496
      %v2509 = vpack.c.bf16 %v2499, %v2498
      %v2510 = vpack.c.bf16 %v2501, %v2500
      %v2511 = vpack.c.bf16 %v2503, %v2502
      %v2512 = vpack.c.bf16 %v2505, %v2504
      %v2513 = vpack.c.bf16 %v2507, %v2506
      %2520 = vrot.lane.b32.xlu0 %v2508, 40
      %v2521 = vpop.permute.xlu0 %2520
      %2522 = vrot.lane.b32.xlu0 %v2509, 40
      %v2523 = vpop.permute.xlu0 %2522
      %2524 = vrot.lane.b32.xlu0 %v2510, 40
      %v2525 = vpop.permute.xlu0 %2524
      %2526 = vrot.lane.b32.xlu0 %v2511, 40
      %v2527 = vpop.permute.xlu0 %2526
      %2528 = vrot.lane.b32.xlu0 %v2512, 40
      %v2529 = vpop.permute.xlu0 %2528
      %2530 = vrot.lane.b32.xlu0 %v2513, 40
      %v2531 = vpop.permute.xlu0 %2530
      %v2532 = vrot.slane %v2521, 4
      %v2533 = vrot.slane %v2523, 4
      %v2534 = vrot.slane %v2525, 4
      %v2535 = vrot.slane %v2527, 4
      %v2536 = vrot.slane %v2529, 4
      %v2537 = vrot.slane %v2531, 4
      %v2538 = vsel %vm421, %v2532, %v2533
      %vm2539 = vcmask 326656
      %v2540 = vsel %vm2539, %v2521, %v2538
      %v2541 = vsel %vm421, %v2533, %v2534
      %v2542 = vsel %vm2539, %v2523, %v2541
      %v2543 = vsel %vm2539, %v2525, %v2534
      %v2544 = vsel %vm421, %v2535, %v2536
      %v2545 = vsel %vm2539, %v2527, %v2544
      %v2546 = vsel %vm421, %v2536, %v2537
      %v2547 = vsel %vm2539, %v2529, %v2546
      %v2548 = vsel %vm2539, %v2531, %v2537
      %2555 = vst [vmem:[#allocation2 + $0x3e8] sm:$0xff] %v2540
      %2556 = vst [vmem:[#allocation2 + $0x3f0] sm:$0xff] %v2542
      %2557 = vst [vmem:[#allocation2 + $0x3f8] sm:$0xf] %v2543
      %2558 = vst [vmem:[#allocation2 + $0x3fc] sm:$0xff] %v2545
      %2559 = vst [vmem:[#allocation2 + $0x404] sm:$0xff] %v2547
      %2560 = vst [vmem:[#allocation2 + $0x40c] sm:$0xf] %v2548
      %v2561 = vld [vmem:[#allocation3 + $0x8] sm:$0xff]
      %v2562 = vld [vmem:[#allocation3 + $0x10] sm:$0xff]
      %v2563 = vld [vmem:[#allocation3 + $0x18] sm:$0xff]
      %v2564 = vld [vmem:[#allocation3 + $0x20] sm:$0xff]
      %v2565 = vld [vmem:[#allocation3 + $0x28] sm:$0xff]
      %v2566 = vld [vmem:[#allocation3 + $0x30] sm:$0xff]
      %v2567 = vld [vmem:[#allocation3 + $0x40] sm:$0xff]
      %v2568 = vld [vmem:[#allocation3 + $0x48] sm:$0xff]
      %v2569 = vld [vmem:[#allocation3 + $0x50] sm:$0xff]
      %v2570 = vld [vmem:[#allocation3 + $0x58] sm:$0xff]
      %v2571 = vld [vmem:[#allocation3 + $0x60] sm:$0xff]
      %v2572 = vld [vmem:[#allocation3 + $0x68] sm:$0xff]
      %2573 = vrot.lane.b32.xlu0 %v523, 89
      %v2574 = vpop.permute.xlu0 %2573
      %2575 = vrot.lane.b32.xlu0 %v524, 89
      %v2576 = vpop.permute.xlu0 %2575
      %2577 = vrot.lane.b32.xlu0 %v525, 89
      %v2578 = vpop.permute.xlu0 %2577
      %2579 = vrot.lane.b32.xlu0 %v526, 89
      %v2580 = vpop.permute.xlu0 %2579
      %2581 = vrot.lane.b32.xlu0 %v527, 89
      %v2582 = vpop.permute.xlu0 %2581
      %vm2583 = vcmask 728064
      %v2584 = vsel %vm2583, %v2574, %v2576
      %v2585 = vsel %vm2583, %v2576, %v2578
      %v2586 = vsel %vm2583, %v2578, %v2580
      %v2587 = vsel %vm2583, %v2580, %v2582
      %v2594 = vmul.f32 %v2561, %v2574
      %v2595 = vmul.f32 %v2562, %v2584
      %v2596 = vmul.f32 %v2563, %v2585
      %v2597 = vmul.f32 %v2564, %v2586
      %v2598 = vmul.f32 %v2565, %v2587
      %v2599 = vmul.f32 %v2566, %v2582
      %v2600 = vmul.f32 %v2567, %v2574
      %v2601 = vmul.f32 %v2568, %v2584
      %v2602 = vmul.f32 %v2569, %v2585
      %v2603 = vmul.f32 %v2570, %v2586
      %v2604 = vmul.f32 %v2571, %v2587
      %v2605 = vmul.f32 %v2572, %v2582
      %v2606 = vpack.c.bf16 %v2595, %v2594
      %v2607 = vpack.c.bf16 %v2597, %v2596
      %v2608 = vpack.c.bf16 %v2599, %v2598
      %v2609 = vpack.c.bf16 %v2601, %v2600
      %v2610 = vpack.c.bf16 %v2603, %v2602
      %v2611 = vpack.c.bf16 %v2605, %v2604
      %2618 = vrot.lane.b32.xlu0 %v2606, 39
      %v2619 = vpop.permute.xlu0 %2618
      %2620 = vrot.lane.b32.xlu0 %v2607, 39
      %v2621 = vpop.permute.xlu0 %2620
      %2622 = vrot.lane.b32.xlu0 %v2608, 39
      %v2623 = vpop.permute.xlu0 %2622
      %2624 = vrot.lane.b32.xlu0 %v2609, 39
      %v2625 = vpop.permute.xlu0 %2624
      %2626 = vrot.lane.b32.xlu0 %v2610, 39
      %v2627 = vpop.permute.xlu0 %2626
      %2628 = vrot.lane.b32.xlu0 %v2611, 39
      %v2629 = vpop.permute.xlu0 %2628
      %v2630 = vrot.slane %v2619, 4
      %v2631 = vrot.slane %v2621, 4
      %v2632 = vrot.slane %v2623, 4
      %v2633 = vrot.slane %v2625, 4
      %v2634 = vrot.slane %v2627, 4
      %v2635 = vrot.slane %v2629, 4
      %v2636 = vsel %vm421, %v2630, %v2631
      %vm2637 = vcmask 318464
      %v2638 = vsel %vm2637, %v2619, %v2636
      %v2639 = vsel %vm421, %v2631, %v2632
      %v2640 = vsel %vm2637, %v2621, %v2639
      %v2641 = vsel %vm2637, %v2623, %v2632
      %v2642 = vsel %vm421, %v2633, %v2634
      %v2643 = vsel %vm2637, %v2625, %v2642
      %v2644 = vsel %vm421, %v2634, %v2635
      %v2645 = vsel %vm2637, %v2627, %v2644
      %v2646 = vsel %vm2637, %v2629, %v2635
      %2653 = vst [vmem:[#allocation2 + $0x410] sm:$0xff] %v2638
      %2654 = vst [vmem:[#allocation2 + $0x418] sm:$0xff] %v2640
      %2655 = vst [vmem:[#allocation2 + $0x420] sm:$0xf] %v2641
      %2656 = vst [vmem:[#allocation2 + $0x424] sm:$0xff] %v2643
      %2657 = vst [vmem:[#allocation2 + $0x42c] sm:$0xff] %v2645
      %2658 = vst [vmem:[#allocation2 + $0x434] sm:$0xf] %v2646
      %v2659 = vld [vmem:[%s2] sm:$0xff]
      %v2660 = vld [vmem:[%s2 + $0x8] sm:$0xff]
      %v2661 = vld [vmem:[#allocation2] sm:$0xff]
      %v2662 = vld [vmem:[#allocation2 + $0x8] sm:$0xff]
      %v2663 = vld [vmem:[#allocation2 + $0x10] sm:$0xf]
      %v2664 = vld [vmem:[#allocation2 + $0x14] sm:$0xff]
      %v2665 = vld [vmem:[#allocation2 + $0x1c] sm:$0xff]
      %v2666 = vld [vmem:[#allocation2 + $0x24] sm:$0xf]
      %v2667 = vld [vmem:[#allocation2 + $0x28] sm:$0xff]
      %v2668 = vld [vmem:[#allocation2 + $0x30] sm:$0xff]
      %v2669 = vld [vmem:[#allocation2 + $0x38] sm:$0xf]
      %v2670 = vld [vmem:[#allocation2 + $0x3c] sm:$0xff]
      %v2671 = vld [vmem:[#allocation2 + $0x44] sm:$0xff]
      %v2672 = vld [vmem:[#allocation2 + $0x4c] sm:$0xf]
      %v2673 = vld [vmem:[#allocation2 + $0x50] sm:$0xff]
      %v2674 = vld [vmem:[#allocation2 + $0x58] sm:$0xff]
      %v2675 = vld [vmem:[#allocation2 + $0x60] sm:$0xf]
      %v2676 = vld [vmem:[#allocation2 + $0x64] sm:$0xff]
      %v2677 = vld [vmem:[#allocation2 + $0x6c] sm:$0xff]
      %v2678 = vld [vmem:[#allocation2 + $0x74] sm:$0xf]
      %v2679 = vld [vmem:[#allocation2 + $0x78] sm:$0xff]
      %v2680 = vld [vmem:[#allocation2 + $0x80] sm:$0xff]
      %v2681 = vld [vmem:[#allocation2 + $0x88] sm:$0xf]
      %v2682 = vld [vmem:[#allocation2 + $0x8c] sm:$0xff]
      %v2683 = vld [vmem:[#allocation2 + $0x94] sm:$0xff]
      %v2684 = vld [vmem:[#allocation2 + $0x9c] sm:$0xf]
      %v2685 = vld [vmem:[#allocation2 + $0xa0] sm:$0xff]
      %v2686 = vld [vmem:[#allocation2 + $0xa8] sm:$0xff]
      %v2687 = vld [vmem:[#allocation2 + $0xb0] sm:$0xf]
      %v2688 = vld [vmem:[#allocation2 + $0xb4] sm:$0xff]
      %v2689 = vld [vmem:[#allocation2 + $0xbc] sm:$0xff]
      %v2690 = vld [vmem:[#allocation2 + $0xc4] sm:$0xf]
      %v2691 = vld [vmem:[#allocation2 + $0xc8] sm:$0xff]
      %v2692 = vld [vmem:[#allocation2 + $0xd0] sm:$0xff]
      %v2693 = vld [vmem:[#allocation2 + $0xd8] sm:$0xf]
      %v2694 = vld [vmem:[#allocation2 + $0xdc] sm:$0xff]
      %v2695 = vld [vmem:[#allocation2 + $0xe4] sm:$0xff]
      %v2696 = vld [vmem:[#allocation2 + $0xec] sm:$0xf]
      %v2697 = vld [vmem:[#allocation2 + $0xf0] sm:$0xff]
      %v2698 = vld [vmem:[#allocation2 + $0xf8] sm:$0xff]
      %v2699 = vld [vmem:[#allocation2 + $0x100] sm:$0xf]
      %v2700 = vld [vmem:[#allocation2 + $0x104] sm:$0xff]
      %v2701 = vld [vmem:[#allocation2 + $0x10c] sm:$0xff]
      %v2702 = vld [vmem:[#allocation2 + $0x114] sm:$0xf]
      %v2703 = vld [vmem:[#allocation2 + $0x118] sm:$0xff]
      %v2704 = vld [vmem:[#allocation2 + $0x120] sm:$0xff]
      %v2705 = vld [vmem:[#allocation2 + $0x128] sm:$0xf]
      %v2706 = vld [vmem:[#allocation2 + $0x12c] sm:$0xff]
      %v2707 = vld [vmem:[#allocation2 + $0x134] sm:$0xff]
      %v2708 = vld [vmem:[#allocation2 + $0x13c] sm:$0xf]
      %v2709 = vld [vmem:[#allocation2 + $0x140] sm:$0xff]
      %v2710 = vld [vmem:[#allocation2 + $0x148] sm:$0xff]
      %v2711 = vld [vmem:[#allocation2 + $0x150] sm:$0xf]
      %v2712 = vld [vmem:[#allocation2 + $0x154] sm:$0xff]
      %v2713 = vld [vmem:[#allocation2 + $0x15c] sm:$0xff]
      %v2714 = vld [vmem:[#allocation2 + $0x164] sm:$0xf]
      %v2715 = vld [vmem:[#allocation2 + $0x168] sm:$0xff]
      %v2716 = vld [vmem:[#allocation2 + $0x170] sm:$0xff]
      %v2717 = vld [vmem:[#allocation2 + $0x178] sm:$0xf]
      %v2718 = vld [vmem:[#allocation2 + $0x17c] sm:$0xff]
      %v2719 = vld [vmem:[#allocation2 + $0x184] sm:$0xff]
      %v2720 = vld [vmem:[#allocation2 + $0x18c] sm:$0xf]
      %v2721 = vld [vmem:[#allocation2 + $0x190] sm:$0xff]
      %v2722 = vld [vmem:[#allocation2 + $0x198] sm:$0xff]
      %v2723 = vld [vmem:[#allocation2 + $0x1a0] sm:$0xf]
      %v2724 = vld [vmem:[#allocation2 + $0x1a4] sm:$0xff]
      %v2725 = vld [vmem:[#allocation2 + $0x1ac] sm:$0xff]
      %v2726 = vld [vmem:[#allocation2 + $0x1b4] sm:$0xf]
      %v2727 = vld [vmem:[#allocation2 + $0x1b8] sm:$0xff]
      %v2728 = vld [vmem:[#allocation2 + $0x1c0] sm:$0xff]
      %v2729 = vld [vmem:[#allocation2 + $0x1c8] sm:$0xf]
      %v2730 = vld [vmem:[#allocation2 + $0x1cc] sm:$0xff]
      %v2731 = vld [vmem:[#allocation2 + $0x1d4] sm:$0xff]
      %v2732 = vld [vmem:[#allocation2 + $0x1dc] sm:$0xf]
      %v2733 = vld [vmem:[#allocation2 + $0x1e0] sm:$0xff]
      %v2734 = vld [vmem:[#allocation2 + $0x1e8] sm:$0xff]
      %v2735 = vld [vmem:[#allocation2 + $0x1f0] sm:$0xf]
      %v2736 = vld [vmem:[#allocation2 + $0x1f4] sm:$0xff]
      %v2737 = vld [vmem:[#allocation2 + $0x1fc] sm:$0xff]
      %v2738 = vld [vmem:[#allocation2 + $0x204] sm:$0xf]
      %v2739 = vld [vmem:[#allocation2 + $0x208] sm:$0xff]
      %v2740 = vld [vmem:[#allocation2 + $0x210] sm:$0xff]
      %v2741 = vld [vmem:[#allocation2 + $0x218] sm:$0xf]
      %v2742 = vld [vmem:[#allocation2 + $0x21c] sm:$0xff]
      %v2743 = vld [vmem:[#allocation2 + $0x224] sm:$0xff]
      %v2744 = vld [vmem:[#allocation2 + $0x22c] sm:$0xf]
      %v2745 = vld [vmem:[#allocation2 + $0x230] sm:$0xff]
      %v2746 = vld [vmem:[#allocation2 + $0x238] sm:$0xff]
      %v2747 = vld [vmem:[#allocation2 + $0x240] sm:$0xf]
      %v2748 = vld [vmem:[#allocation2 + $0x244] sm:$0xff]
      %v2749 = vld [vmem:[#allocation2 + $0x24c] sm:$0xff]
      %v2750 = vld [vmem:[#allocation2 + $0x254] sm:$0xf]
      %v2751 = vld [vmem:[#allocation2 + $0x258] sm:$0xff]
      %v2752 = vld [vmem:[#allocation2 + $0x260] sm:$0xff]
      %v2753 = vld [vmem:[#allocation2 + $0x268] sm:$0xf]
      %v2754 = vld [vmem:[#allocation2 + $0x26c] sm:$0xff]
      %v2755 = vld [vmem:[#allocation2 + $0x274] sm:$0xff]
      %v2756 = vld [vmem:[#allocation2 + $0x27c] sm:$0xf]
      %v2757 = vld [vmem:[#allocation2 + $0x280] sm:$0xff]
      %v2758 = vld [vmem:[#allocation2 + $0x288] sm:$0xff]
      %v2759 = vld [vmem:[#allocation2 + $0x290] sm:$0xf]
      %v2760 = vld [vmem:[#allocation2 + $0x294] sm:$0xff]
      %v2761 = vld [vmem:[#allocation2 + $0x29c] sm:$0xff]
      %v2762 = vld [vmem:[#allocation2 + $0x2a4] sm:$0xf]
      %v2763 = vld [vmem:[#allocation2 + $0x2a8] sm:$0xff]
      %v2764 = vld [vmem:[#allocation2 + $0x2b0] sm:$0xff]
      %v2765 = vld [vmem:[#allocation2 + $0x2b8] sm:$0xf]
      %v2766 = vld [vmem:[#allocation2 + $0x2bc] sm:$0xff]
      %v2767 = vld [vmem:[#allocation2 + $0x2c4] sm:$0xff]
      %v2768 = vld [vmem:[#allocation2 + $0x2cc] sm:$0xf]
      %v2769 = vld [vmem:[#allocation2 + $0x2d0] sm:$0xff]
      %v2770 = vld [vmem:[#allocation2 + $0x2d8] sm:$0xff]
      %v2771 = vld [vmem:[#allocation2 + $0x2e0] sm:$0xf]
      %v2772 = vld [vmem:[#allocation2 + $0x2e4] sm:$0xff]
      %v2773 = vld [vmem:[#allocation2 + $0x2ec] sm:$0xff]
      %v2774 = vld [vmem:[#allocation2 + $0x2f4] sm:$0xf]
      %v2775 = vld [vmem:[#allocation2 + $0x2f8] sm:$0xff]
      %v2776 = vld [vmem:[#allocation2 + $0x300] sm:$0xff]
      %v2777 = vld [vmem:[#allocation2 + $0x308] sm:$0xf]
      %v2778 = vld [vmem:[#allocation2 + $0x30c] sm:$0xff]
      %v2779 = vld [vmem:[#allocation2 + $0x314] sm:$0xff]
      %v2780 = vld [vmem:[#allocation2 + $0x31c] sm:$0xf]
      %v2781 = vld [vmem:[#allocation2 + $0x320] sm:$0xff]
      %v2782 = vld [vmem:[#allocation2 + $0x328] sm:$0xff]
      %v2783 = vld [vmem:[#allocation2 + $0x330] sm:$0xf]
      %v2784 = vld [vmem:[#allocation2 + $0x334] sm:$0xff]
      %v2785 = vld [vmem:[#allocation2 + $0x33c] sm:$0xff]
      %v2786 = vld [vmem:[#allocation2 + $0x344] sm:$0xf]
      %v2787 = vld [vmem:[#allocation2 + $0x348] sm:$0xff]
      %v2788 = vld [vmem:[#allocation2 + $0x350] sm:$0xff]
      %v2789 = vld [vmem:[#allocation2 + $0x358] sm:$0xf]
      %v2790 = vld [vmem:[#allocation2 + $0x35c] sm:$0xff]
      %v2791 = vld [vmem:[#allocation2 + $0x364] sm:$0xff]
      %v2792 = vld [vmem:[#allocation2 + $0x36c] sm:$0xf]
      %v2793 = vld [vmem:[#allocation2 + $0x370] sm:$0xff]
      %v2794 = vld [vmem:[#allocation2 + $0x378] sm:$0xff]
      %v2795 = vld [vmem:[#allocation2 + $0x380] sm:$0xf]
      %v2796 = vld [vmem:[#allocation2 + $0x384] sm:$0xff]
      %v2797 = vld [vmem:[#allocation2 + $0x38c] sm:$0xff]
      %v2798 = vld [vmem:[#allocation2 + $0x394] sm:$0xf]
      %v2799 = vld [vmem:[#allocation2 + $0x398] sm:$0xff]
      %v2800 = vld [vmem:[#allocation2 + $0x3a0] sm:$0xff]
      %v2801 = vld [vmem:[#allocation2 + $0x3a8] sm:$0xf]
      %v2802 = vld [vmem:[#allocation2 + $0x3ac] sm:$0xff]
      %v2803 = vld [vmem:[#allocation2 + $0x3b4] sm:$0xff]
      %v2804 = vld [vmem:[#allocation2 + $0x3bc] sm:$0xf]
      %v2805 = vld [vmem:[#allocation2 + $0x3c0] sm:$0xff]
      %v2806 = vld [vmem:[#allocation2 + $0x3c8] sm:$0xff]
      %v2807 = vld [vmem:[#allocation2 + $0x3d0] sm:$0xf]
      %v2808 = vld [vmem:[#allocation2 + $0x3d4] sm:$0xff]
      %v2809 = vld [vmem:[#allocation2 + $0x3dc] sm:$0xff]
      %v2810 = vld [vmem:[#allocation2 + $0x3e4] sm:$0xf]
      %v2811 = vld [vmem:[#allocation2 + $0x3e8] sm:$0xff]
      %v2812 = vld [vmem:[#allocation2 + $0x3f0] sm:$0xff]
      %v2813 = vld [vmem:[#allocation2 + $0x3f8] sm:$0xf]
      %v2814 = vld [vmem:[#allocation2 + $0x3fc] sm:$0xff]
      %v2815 = vld [vmem:[#allocation2 + $0x404] sm:$0xff]
      %v2816 = vld [vmem:[#allocation2 + $0x40c] sm:$0xf]
      %v2817 = vld [vmem:[#allocation2 + $0x410] sm:$0xff]
      %v2818 = vld [vmem:[#allocation2 + $0x418] sm:$0xff]
      %v2819 = vld [vmem:[#allocation2 + $0x420] sm:$0xf]
      %v2820 = vld [vmem:[#allocation2 + $0x424] sm:$0xff]
      %v2821 = vld [vmem:[#allocation2 + $0x42c] sm:$0xff]
      %v2822 = vld [vmem:[#allocation2 + $0x434] sm:$0xf]
      %v2823 = vld [vmem:[#allocation2 + $0x438] sm:$0xff]
      %v2824 = vld [vmem:[#allocation2 + $0x440] sm:$0xff]
      %v2825 = vld [vmem:[#allocation2 + $0x448] sm:$0xf]
      %v2826 = vld [vmem:[#allocation2 + $0x44c] sm:$0xff]
      %v2827 = vld [vmem:[#allocation2 + $0x454] sm:$0xff]
      %v2828 = vld [vmem:[#allocation2 + $0x45c] sm:$0xf]
      %v2829 = vld [vmem:[#allocation2 + $0x460] sm:$0xff]
      %v2830 = vld [vmem:[#allocation2 + $0x468] sm:$0xff]
      %v2831 = vld [vmem:[#allocation2 + $0x470] sm:$0xf]
      %v2832 = vld [vmem:[#allocation2 + $0x474] sm:$0xff]
      %v2833 = vld [vmem:[#allocation2 + $0x47c] sm:$0xff]
      %v2834 = vld [vmem:[#allocation2 + $0x484] sm:$0xf]
      %v2835 = vld [vmem:[#allocation2 + $0x488] sm:$0xff]
      %v2836 = vld [vmem:[#allocation2 + $0x490] sm:$0xff]
      %v2837 = vld [vmem:[#allocation2 + $0x498] sm:$0xf]
      %v2838 = vld [vmem:[#allocation2 + $0x49c] sm:$0xff]
      %v2839 = vld [vmem:[#allocation2 + $0x4a4] sm:$0xff]
      %v2840 = vld [vmem:[#allocation2 + $0x4ac] sm:$0xf]
      %v2841 = vld [vmem:[#allocation2 + $0x4b0] sm:$0xff]
      %v2842 = vld [vmem:[#allocation2 + $0x4b8] sm:$0xff]
      %v2843 = vld [vmem:[#allocation2 + $0x4c0] sm:$0xf]
      %v2844 = vld [vmem:[#allocation2 + $0x4c4] sm:$0xff]
      %v2845 = vld [vmem:[#allocation2 + $0x4cc] sm:$0xff]
      %v2846 = vld [vmem:[#allocation2 + $0x4d4] sm:$0xf]
      %v2847 = vld [vmem:[#allocation2 + $0x4d8] sm:$0xff]
      %v2848 = vld [vmem:[#allocation2 + $0x4e0] sm:$0xff]
      %v2849 = vld [vmem:[#allocation2 + $0x4e8] sm:$0xf]
      %v2850 = vld [vmem:[#allocation2 + $0x4ec] sm:$0xff]
      %v2851 = vld [vmem:[#allocation2 + $0x4f4] sm:$0xff]
      %v2852 = vld [vmem:[#allocation2 + $0x4fc] sm:$0xf]
      %v2855 = vunpack.c.l.b16 %v2659
      %v2856 = vunpack.c.h.b16 %v2659
      %v2857 = vunpack.c.l.b16 %v2660
      %v2858 = vunpack.c.h.b16 %v2660
      %v2859 = vpack.c.b16 %v2855, %v2855
      %v2860 = vpack.c.b16 %v2856, %v2856
      %v2861 = vpack.c.b16 %v2857, %v2857
      %v2862 = vpack.c.b16 %v2858, %v2858
      %v3059 = vunpack.c.l.b16 %v2661
      %v3060 = vunpack.c.h.b16 %v2661
      %v3061 = vunpack.c.l.b16 %v2662
      %v3062 = vunpack.c.h.b16 %v2662
      %v3063 = vunpack.c.l.b16 %v2663
      %v3064 = vunpack.c.l.b16 %v2664
      %v3065 = vunpack.c.h.b16 %v2664
      %v3066 = vunpack.c.l.b16 %v2665
      %v3067 = vunpack.c.h.b16 %v2665
      %v3068 = vunpack.c.l.b16 %v2666
      %v3069 = vunpack.c.l.b16 %v2667
      %v3070 = vunpack.c.h.b16 %v2667
      %v3071 = vunpack.c.l.b16 %v2668
      %v3072 = vunpack.c.h.b16 %v2668
      %v3073 = vunpack.c.l.b16 %v2669
      %v3074 = vunpack.c.l.b16 %v2670
      %v3075 = vunpack.c.h.b16 %v2670
      %v3076 = vunpack.c.l.b16 %v2671
      %v3077 = vunpack.c.h.b16 %v2671
      %v3078 = vunpack.c.l.b16 %v2672
      %v3079 = vunpack.c.l.b16 %v2673
      %v3080 = vunpack.c.h.b16 %v2673
      %v3081 = vunpack.c.l.b16 %v2674
      %v3082 = vunpack.c.h.b16 %v2674
      %v3083 = vunpack.c.l.b16 %v2675
      %v3084 = vunpack.c.l.b16 %v2676
      %v3085 = vunpack.c.h.b16 %v2676
      %v3086 = vunpack.c.l.b16 %v2677
      %v3087 = vunpack.c.h.b16 %v2677
      %v3088 = vunpack.c.l.b16 %v2678
      %v3089 = vunpack.c.l.b16 %v2679
      %v3090 = vunpack.c.h.b16 %v2679
      %v3091 = vunpack.c.l.b16 %v2680
      %v3092 = vunpack.c.h.b16 %v2680
      %v3093 = vunpack.c.l.b16 %v2681
      %v3094 = vunpack.c.l.b16 %v2682
      %v3095 = vunpack.c.h.b16 %v2682
      %v3096 = vunpack.c.l.b16 %v2683
      %v3097 = vunpack.c.h.b16 %v2683
      %v3098 = vunpack.c.l.b16 %v2684
      %v3099 = vunpack.c.l.b16 %v2685
      %v3100 = vunpack.c.h.b16 %v2685
      %v3101 = vunpack.c.l.b16 %v2686
      %v3102 = vunpack.c.h.b16 %v2686
      %v3103 = vunpack.c.l.b16 %v2687
      %v3104 = vunpack.c.l.b16 %v2688
      %v3105 = vunpack.c.h.b16 %v2688
      %v3106 = vunpack.c.l.b16 %v2689
      %v3107 = vunpack.c.h.b16 %v2689
      %v3108 = vunpack.c.l.b16 %v2690
      %v3109 = vunpack.c.l.b16 %v2691
      %v3110 = vunpack.c.h.b16 %v2691
      %v3111 = vunpack.c.l.b16 %v2692
      %v3112 = vunpack.c.h.b16 %v2692
      %v3113 = vunpack.c.l.b16 %v2693
      %v3114 = vunpack.c.l.b16 %v2694
      %v3115 = vunpack.c.h.b16 %v2694
      %v3116 = vunpack.c.l.b16 %v2695
      %v3117 = vunpack.c.h.b16 %v2695
      %v3118 = vunpack.c.l.b16 %v2696
      %v3119 = vunpack.c.l.b16 %v2697
      %v3120 = vunpack.c.h.b16 %v2697
      %v3121 = vunpack.c.l.b16 %v2698
      %v3122 = vunpack.c.h.b16 %v2698
      %v3123 = vunpack.c.l.b16 %v2699
      %v3124 = vunpack.c.l.b16 %v2700
      %v3125 = vunpack.c.h.b16 %v2700
      %v3126 = vunpack.c.l.b16 %v2701
      %v3127 = vunpack.c.h.b16 %v2701
      %v3128 = vunpack.c.l.b16 %v2702
      %v3129 = vunpack.c.l.b16 %v2703
      %v3130 = vunpack.c.h.b16 %v2703
      %v3131 = vunpack.c.l.b16 %v2704
      %v3132 = vunpack.c.h.b16 %v2704
      %v3133 = vunpack.c.l.b16 %v2705
      %v3134 = vunpack.c.l.b16 %v2706
      %v3135 = vunpack.c.h.b16 %v2706
      %v3136 = vunpack.c.l.b16 %v2707
      %v3137 = vunpack.c.h.b16 %v2707
      %v3138 = vunpack.c.l.b16 %v2708
      %v3139 = vunpack.c.l.b16 %v2709
      %v3140 = vunpack.c.h.b16 %v2709
      %v3141 = vunpack.c.l.b16 %v2710
      %v3142 = vunpack.c.h.b16 %v2710
      %v3143 = vunpack.c.l.b16 %v2711
      %v3144 = vunpack.c.l.b16 %v2712
      %v3145 = vunpack.c.h.b16 %v2712
      %v3146 = vunpack.c.l.b16 %v2713
      %v3147 = vunpack.c.h.b16 %v2713
      %v3148 = vunpack.c.l.b16 %v2714
      %v3149 = vunpack.c.l.b16 %v2715
      %v3150 = vunpack.c.h.b16 %v2715
      %v3151 = vunpack.c.l.b16 %v2716
      %v3152 = vunpack.c.h.b16 %v2716
      %v3153 = vunpack.c.l.b16 %v2717
      %v3154 = vunpack.c.l.b16 %v2718
      %v3155 = vunpack.c.h.b16 %v2718
      %v3156 = vunpack.c.l.b16 %v2719
      %v3157 = vunpack.c.h.b16 %v2719
      %v3158 = vunpack.c.l.b16 %v2720
      %v3159 = vunpack.c.l.b16 %v2721
      %v3160 = vunpack.c.h.b16 %v2721
      %v3161 = vunpack.c.l.b16 %v2722
      %v3162 = vunpack.c.h.b16 %v2722
      %v3163 = vunpack.c.l.b16 %v2723
      %v3164 = vunpack.c.l.b16 %v2724
      %v3165 = vunpack.c.h.b16 %v2724
      %v3166 = vunpack.c.l.b16 %v2725
      %v3167 = vunpack.c.h.b16 %v2725
      %v3168 = vunpack.c.l.b16 %v2726
      %v3169 = vunpack.c.l.b16 %v2727
      %v3170 = vunpack.c.h.b16 %v2727
      %v3171 = vunpack.c.l.b16 %v2728
      %v3172 = vunpack.c.h.b16 %v2728
      %v3173 = vunpack.c.l.b16 %v2729
      %v3174 = vunpack.c.l.b16 %v2730
      %v3175 = vunpack.c.h.b16 %v2730
      %v3176 = vunpack.c.l.b16 %v2731
      %v3177 = vunpack.c.h.b16 %v2731
      %v3178 = vunpack.c.l.b16 %v2732
      %v3179 = vunpack.c.l.b16 %v2733
      %v3180 = vunpack.c.h.b16 %v2733
      %v3181 = vunpack.c.l.b16 %v2734
      %v3182 = vunpack.c.h.b16 %v2734
      %v3183 = vunpack.c.l.b16 %v2735
      %v3184 = vunpack.c.l.b16 %v2736
      %v3185 = vunpack.c.h.b16 %v2736
      %v3186 = vunpack.c.l.b16 %v2737
      %v3187 = vunpack.c.h.b16 %v2737
      %v3188 = vunpack.c.l.b16 %v2738
      %v3189 = vunpack.c.l.b16 %v2739
      %v3190 = vunpack.c.h.b16 %v2739
      %v3191 = vunpack.c.l.b16 %v2740
      %v3192 = vunpack.c.h.b16 %v2740
      %v3193 = vunpack.c.l.b16 %v2741
      %v3194 = vunpack.c.l.b16 %v2742
      %v3195 = vunpack.c.h.b16 %v2742
      %v3196 = vunpack.c.l.b16 %v2743
      %v3197 = vunpack.c.h.b16 %v2743
      %v3198 = vunpack.c.l.b16 %v2744
      %v3199 = vunpack.c.l.b16 %v2745
      %v3200 = vunpack.c.h.b16 %v2745
      %v3201 = vunpack.c.l.b16 %v2746
      %v3202 = vunpack.c.h.b16 %v2746
      %v3203 = vunpack.c.l.b16 %v2747
      %v3204 = vunpack.c.l.b16 %v2748
      %v3205 = vunpack.c.h.b16 %v2748
      %v3206 = vunpack.c.l.b16 %v2749
      %v3207 = vunpack.c.h.b16 %v2749
      %v3208 = vunpack.c.l.b16 %v2750
      %v3209 = vunpack.c.l.b16 %v2751
      %v3210 = vunpack.c.h.b16 %v2751
      %v3211 = vunpack.c.l.b16 %v2752
      %v3212 = vunpack.c.h.b16 %v2752
      %v3213 = vunpack.c.l.b16 %v2753
      %v3214 = vunpack.c.l.b16 %v2754
      %v3215 = vunpack.c.h.b16 %v2754
      %v3216 = vunpack.c.l.b16 %v2755
      %v3217 = vunpack.c.h.b16 %v2755
      %v3218 = vunpack.c.l.b16 %v2756
      %v3219 = vunpack.c.l.b16 %v2757
      %v3220 = vunpack.c.h.b16 %v2757
      %v3221 = vunpack.c.l.b16 %v2758
      %v3222 = vunpack.c.h.b16 %v2758
      %v3223 = vunpack.c.l.b16 %v2759
      %v3224 = vunpack.c.l.b16 %v2760
      %v3225 = vunpack.c.h.b16 %v2760
      %v3226 = vunpack.c.l.b16 %v2761
      %v3227 = vunpack.c.h.b16 %v2761
      %v3228 = vunpack.c.l.b16 %v2762
      %v3229 = vunpack.c.l.b16 %v2763
      %v3230 = vunpack.c.h.b16 %v2763
      %v3231 = vunpack.c.l.b16 %v2764
      %v3232 = vunpack.c.h.b16 %v2764
      %v3233 = vunpack.c.l.b16 %v2765
      %v3234 = vunpack.c.l.b16 %v2766
      %v3235 = vunpack.c.h.b16 %v2766
      %v3236 = vunpack.c.l.b16 %v2767
      %v3237 = vunpack.c.h.b16 %v2767
      %v3238 = vunpack.c.l.b16 %v2768
      %v3239 = vunpack.c.l.b16 %v2769
      %v3240 = vunpack.c.h.b16 %v2769
      %v3241 = vunpack.c.l.b16 %v2770
      %v3242 = vunpack.c.h.b16 %v2770
      %v3243 = vunpack.c.l.b16 %v2771
      %v3244 = vunpack.c.l.b16 %v2772
      %v3245 = vunpack.c.h.b16 %v2772
      %v3246 = vunpack.c.l.b16 %v2773
      %v3247 = vunpack.c.h.b16 %v2773
      %v3248 = vunpack.c.l.b16 %v2774
      %v3249 = vunpack.c.l.b16 %v2775
      %v3250 = vunpack.c.h.b16 %v2775
      %v3251 = vunpack.c.l.b16 %v2776
      %v3252 = vunpack.c.h.b16 %v2776
      %v3253 = vunpack.c.l.b16 %v2777
      %v3254 = vunpack.c.l.b16 %v2778
      %v3255 = vunpack.c.h.b16 %v2778
      %v3256 = vunpack.c.l.b16 %v2779
      %v3257 = vunpack.c.h.b16 %v2779
      %v3258 = vunpack.c.l.b16 %v2780
      %v3259 = vunpack.c.l.b16 %v2781
      %v3260 = vunpack.c.h.b16 %v2781
      %v3261 = vunpack.c.l.b16 %v2782
      %v3262 = vunpack.c.h.b16 %v2782
      %v3263 = vunpack.c.l.b16 %v2783
      %v3264 = vunpack.c.l.b16 %v2784
      %v3265 = vunpack.c.h.b16 %v2784
      %v3266 = vunpack.c.l.b16 %v2785
      %v3267 = vunpack.c.h.b16 %v2785
      %v3268 = vunpack.c.l.b16 %v2786
      %v3269 = vunpack.c.l.b16 %v2787
      %v3270 = vunpack.c.h.b16 %v2787
      %v3271 = vunpack.c.l.b16 %v2788
      %v3272 = vunpack.c.h.b16 %v2788
      %v3273 = vunpack.c.l.b16 %v2789
      %v3274 = vunpack.c.l.b16 %v2790
      %v3275 = vunpack.c.h.b16 %v2790
      %v3276 = vunpack.c.l.b16 %v2791
      %v3277 = vunpack.c.h.b16 %v2791
      %v3278 = vunpack.c.l.b16 %v2792
      %v3279 = vunpack.c.l.b16 %v2793
      %v3280 = vunpack.c.h.b16 %v2793
      %v3281 = vunpack.c.l.b16 %v2794
      %v3282 = vunpack.c.h.b16 %v2794
      %v3283 = vunpack.c.l.b16 %v2795
      %v3284 = vunpack.c.l.b16 %v2796
      %v3285 = vunpack.c.h.b16 %v2796
      %v3286 = vunpack.c.l.b16 %v2797
      %v3287 = vunpack.c.h.b16 %v2797
      %v3288 = vunpack.c.l.b16 %v2798
      %v3289 = vunpack.c.l.b16 %v2799
      %v3290 = vunpack.c.h.b16 %v2799
      %v3291 = vunpack.c.l.b16 %v2800
      %v3292 = vunpack.c.h.b16 %v2800
      %v3293 = vunpack.c.l.b16 %v2801
      %v3294 = vunpack.c.l.b16 %v2802
      %v3295 = vunpack.c.h.b16 %v2802
      %v3296 = vunpack.c.l.b16 %v2803
      %v3297 = vunpack.c.h.b16 %v2803
      %v3298 = vunpack.c.l.b16 %v2804
      %v3299 = vunpack.c.l.b16 %v2805
      %v3300 = vunpack.c.h.b16 %v2805
      %v3301 = vunpack.c.l.b16 %v2806
      %v3302 = vunpack.c.h.b16 %v2806
      %v3303 = vunpack.c.l.b16 %v2807
      %v3304 = vunpack.c.l.b16 %v2808
      %v3305 = vunpack.c.h.b16 %v2808
      %v3306 = vunpack.c.l.b16 %v2809
      %v3307 = vunpack.c.h.b16 %v2809
      %v3308 = vunpack.c.l.b16 %v2810
      %v3309 = vunpack.c.l.b16 %v2811
      %v3310 = vunpack.c.h.b16 %v2811
      %v3311 = vunpack.c.l.b16 %v2812
      %v3312 = vunpack.c.h.b16 %v2812
      %v3313 = vunpack.c.l.b16 %v2813
      %v3314 = vunpack.c.l.b16 %v2814
      %v3315 = vunpack.c.h.b16 %v2814
      %v3316 = vunpack.c.l.b16 %v2815
      %v3317 = vunpack.c.h.b16 %v2815
      %v3318 = vunpack.c.l.b16 %v2816
      %v3319 = vunpack.c.l.b16 %v2817
      %v3320 = vunpack.c.h.b16 %v2817
      %v3321 = vunpack.c.l.b16 %v2818
      %v3322 = vunpack.c.h.b16 %v2818
      %v3323 = vunpack.c.l.b16 %v2819
      %v3324 = vunpack.c.l.b16 %v2820
      %v3325 = vunpack.c.h.b16 %v2820
      %v3326 = vunpack.c.l.b16 %v2821
      %v3327 = vunpack.c.h.b16 %v2821
      %v3328 = vunpack.c.l.b16 %v2822
      %v3329 = vunpack.c.l.b16 %v2823
      %v3330 = vunpack.c.h.b16 %v2823
      %v3331 = vunpack.c.l.b16 %v2824
      %v3332 = vunpack.c.h.b16 %v2824
      %v3333 = vunpack.c.l.b16 %v2825
      %v3334 = vunpack.c.l.b16 %v2826
      %v3335 = vunpack.c.h.b16 %v2826
      %v3336 = vunpack.c.l.b16 %v2827
      %v3337 = vunpack.c.h.b16 %v2827
      %v3338 = vunpack.c.l.b16 %v2828
      %v3339 = vunpack.c.l.b16 %v2829
      %v3340 = vunpack.c.h.b16 %v2829
      %v3341 = vunpack.c.l.b16 %v2830
      %v3342 = vunpack.c.h.b16 %v2830
      %v3343 = vunpack.c.l.b16 %v2831
      %v3344 = vunpack.c.l.b16 %v2832
      %v3345 = vunpack.c.h.b16 %v2832
      %v3346 = vunpack.c.l.b16 %v2833
      %v3347 = vunpack.c.h.b16 %v2833
      %v3348 = vunpack.c.l.b16 %v2834
      %v3349 = vunpack.c.l.b16 %v2835
      %v3350 = vunpack.c.h.b16 %v2835
      %v3351 = vunpack.c.l.b16 %v2836
      %v3352 = vunpack.c.h.b16 %v2836
      %v3353 = vunpack.c.l.b16 %v2837
      %v3354 = vunpack.c.l.b16 %v2838
      %v3355 = vunpack.c.h.b16 %v2838
      %v3356 = vunpack.c.l.b16 %v2839
      %v3357 = vunpack.c.h.b16 %v2839
      %v3358 = vunpack.c.l.b16 %v2840
      %v3359 = vunpack.c.l.b16 %v2841
      %v3360 = vunpack.c.h.b16 %v2841
      %v3361 = vunpack.c.l.b16 %v2842
      %v3362 = vunpack.c.h.b16 %v2842
      %v3363 = vunpack.c.l.b16 %v2843
      %v3364 = vunpack.c.l.b16 %v2844
      %v3365 = vunpack.c.h.b16 %v2844
      %v3366 = vunpack.c.l.b16 %v2845
      %v3367 = vunpack.c.h.b16 %v2845
      %v3368 = vunpack.c.l.b16 %v2846
      %v3369 = vunpack.c.l.b16 %v2847
      %v3370 = vunpack.c.h.b16 %v2847
      %v3371 = vunpack.c.l.b16 %v2848
      %v3372 = vunpack.c.h.b16 %v2848
      %v3373 = vunpack.c.l.b16 %v2849
      %v3374 = vunpack.c.l.b16 %v2850
      %v3375 = vunpack.c.h.b16 %v2850
      %v3376 = vunpack.c.l.b16 %v2851
      %v3377 = vunpack.c.h.b16 %v2851
      %v3378 = vunpack.c.l.b16 %v2852
      %v3379 = vpack.c.b16 %v3064, %v3059
      %v3380 = vpack.c.b16 %v3065, %v3060
      %v3381 = vpack.c.b16 %v3066, %v3061
      %v3382 = vpack.c.b16 %v3067, %v3062
      %v3383 = vpack.c.b16 %v3068, %v3063
      %v3384 = vpack.c.b16 %v3074, %v3069
      %v3385 = vpack.c.b16 %v3075, %v3070
      %v3386 = vpack.c.b16 %v3076, %v3071
      %v3387 = vpack.c.b16 %v3077, %v3072
      %v3388 = vpack.c.b16 %v3078, %v3073
      %v3389 = vpack.c.b16 %v3084, %v3079
      %v3390 = vpack.c.b16 %v3085, %v3080
      %v3391 = vpack.c.b16 %v3086, %v3081
      %v3392 = vpack.c.b16 %v3087, %v3082
      %v3393 = vpack.c.b16 %v3088, %v3083
      %v3394 = vpack.c.b16 %v3094, %v3089
      %v3395 = vpack.c.b16 %v3095, %v3090
      %v3396 = vpack.c.b16 %v3096, %v3091
      %v3397 = vpack.c.b16 %v3097, %v3092
      %v3398 = vpack.c.b16 %v3098, %v3093
      %v3399 = vpack.c.b16 %v3104, %v3099
      %v3400 = vpack.c.b16 %v3105, %v3100
      %v3401 = vpack.c.b16 %v3106, %v3101
      %v3402 = vpack.c.b16 %v3107, %v3102
      %v3403 = vpack.c.b16 %v3108, %v3103
      %v3404 = vpack.c.b16 %v3114, %v3109
      %v3405 = vpack.c.b16 %v3115, %v3110
      %v3406 = vpack.c.b16 %v3116, %v3111
      %v3407 = vpack.c.b16 %v3117, %v3112
      %v3408 = vpack.c.b16 %v3118, %v3113
      %v3409 = vpack.c.b16 %v3124, %v3119
      %v3410 = vpack.c.b16 %v3125, %v3120
      %v3411 = vpack.c.b16 %v3126, %v3121
      %v3412 = vpack.c.b16 %v3127, %v3122
      %v3413 = vpack.c.b16 %v3128, %v3123
      %v3414 = vpack.c.b16 %v3134, %v3129
      %v3415 = vpack.c.b16 %v3135, %v3130
      %v3416 = vpack.c.b16 %v3136, %v3131
      %v3417 = vpack.c.b16 %v3137, %v3132
      %v3418 = vpack.c.b16 %v3138, %v3133
      %v3419 = vpack.c.b16 %v3144, %v3139
      %v3420 = vpack.c.b16 %v3145, %v3140
      %v3421 = vpack.c.b16 %v3146, %v3141
      %v3422 = vpack.c.b16 %v3147, %v3142
      %v3423 = vpack.c.b16 %v3148, %v3143
      %v3424 = vpack.c.b16 %v3154, %v3149
      %v3425 = vpack.c.b16 %v3155, %v3150
      %v3426 = vpack.c.b16 %v3156, %v3151
      %v3427 = vpack.c.b16 %v3157, %v3152
      %v3428 = vpack.c.b16 %v3158, %v3153
      %v3429 = vpack.c.b16 %v3164, %v3159
      %v3430 = vpack.c.b16 %v3165, %v3160
      %v3431 = vpack.c.b16 %v3166, %v3161
      %v3432 = vpack.c.b16 %v3167, %v3162
      %v3433 = vpack.c.b16 %v3168, %v3163
      %v3434 = vpack.c.b16 %v3174, %v3169
      %v3435 = vpack.c.b16 %v3175, %v3170
      %v3436 = vpack.c.b16 %v3176, %v3171
      %v3437 = vpack.c.b16 %v3177, %v3172
      %v3438 = vpack.c.b16 %v3178, %v3173
      %v3439 = vpack.c.b16 %v3184, %v3179
      %v3440 = vpack.c.b16 %v3185, %v3180
      %v3441 = vpack.c.b16 %v3186, %v3181
      %v3442 = vpack.c.b16 %v3187, %v3182
      %v3443 = vpack.c.b16 %v3188, %v3183
      %v3444 = vpack.c.b16 %v3194, %v3189
      %v3445 = vpack.c.b16 %v3195, %v3190
      %v3446 = vpack.c.b16 %v3196, %v3191
      %v3447 = vpack.c.b16 %v3197, %v3192
      %v3448 = vpack.c.b16 %v3198, %v3193
      %v3449 = vpack.c.b16 %v3204, %v3199
      %v3450 = vpack.c.b16 %v3205, %v3200
      %v3451 = vpack.c.b16 %v3206, %v3201
      %v3452 = vpack.c.b16 %v3207, %v3202
      %v3453 = vpack.c.b16 %v3208, %v3203
      %v3454 = vpack.c.b16 %v3214, %v3209
      %v3455 = vpack.c.b16 %v3215, %v3210
      %v3456 = vpack.c.b16 %v3216, %v3211
      %v3457 = vpack.c.b16 %v3217, %v3212
      %v3458 = vpack.c.b16 %v3218, %v3213
      %v3459 = vpack.c.b16 %v3224, %v3219
      %v3460 = vpack.c.b16 %v3225, %v3220
      %v3461 = vpack.c.b16 %v3226, %v3221
      %v3462 = vpack.c.b16 %v3227, %v3222
      %v3463 = vpack.c.b16 %v3228, %v3223
      %v3464 = vpack.c.b16 %v3234, %v3229
      %v3465 = vpack.c.b16 %v3235, %v3230
      %v3466 = vpack.c.b16 %v3236, %v3231
      %v3467 = vpack.c.b16 %v3237, %v3232
      %v3468 = vpack.c.b16 %v3238, %v3233
      %v3469 = vpack.c.b16 %v3244, %v3239
      %v3470 = vpack.c.b16 %v3245, %v3240
      %v3471 = vpack.c.b16 %v3246, %v3241
      %v3472 = vpack.c.b16 %v3247, %v3242
      %v3473 = vpack.c.b16 %v3248, %v3243
      %v3474 = vpack.c.b16 %v3254, %v3249
      %v3475 = vpack.c.b16 %v3255, %v3250
      %v3476 = vpack.c.b16 %v3256, %v3251
      %v3477 = vpack.c.b16 %v3257, %v3252
      %v3478 = vpack.c.b16 %v3258, %v3253
      %v3479 = vpack.c.b16 %v3264, %v3259
      %v3480 = vpack.c.b16 %v3265, %v3260
      %v3481 = vpack.c.b16 %v3266, %v3261
      %v3482 = vpack.c.b16 %v3267, %v3262
      %v3483 = vpack.c.b16 %v3268, %v3263
      %v3484 = vpack.c.b16 %v3274, %v3269
      %v3485 = vpack.c.b16 %v3275, %v3270
      %v3486 = vpack.c.b16 %v3276, %v3271
      %v3487 = vpack.c.b16 %v3277, %v3272
      %v3488 = vpack.c.b16 %v3278, %v3273
      %v3489 = vpack.c.b16 %v3284, %v3279
      %v3490 = vpack.c.b16 %v3285, %v3280
      %v3491 = vpack.c.b16 %v3286, %v3281
      %v3492 = vpack.c.b16 %v3287, %v3282
      %v3493 = vpack.c.b16 %v3288, %v3283
      %v3494 = vpack.c.b16 %v3294, %v3289
      %v3495 = vpack.c.b16 %v3295, %v3290
      %v3496 = vpack.c.b16 %v3296, %v3291
      %v3497 = vpack.c.b16 %v3297, %v3292
      %v3498 = vpack.c.b16 %v3298, %v3293
      %v3499 = vpack.c.b16 %v3304, %v3299
      %v3500 = vpack.c.b16 %v3305, %v3300
      %v3501 = vpack.c.b16 %v3306, %v3301
      %v3502 = vpack.c.b16 %v3307, %v3302
      %v3503 = vpack.c.b16 %v3308, %v3303
      %v3504 = vpack.c.b16 %v3314, %v3309
      %v3505 = vpack.c.b16 %v3315, %v3310
      %v3506 = vpack.c.b16 %v3316, %v3311
      %v3507 = vpack.c.b16 %v3317, %v3312
      %v3508 = vpack.c.b16 %v3318, %v3313
      %v3509 = vpack.c.b16 %v3324, %v3319
      %v3510 = vpack.c.b16 %v3325, %v3320
      %v3511 = vpack.c.b16 %v3326, %v3321
      %v3512 = vpack.c.b16 %v3327, %v3322
      %v3513 = vpack.c.b16 %v3328, %v3323
      %v3514 = vpack.c.b16 %v3334, %v3329
      %v3515 = vpack.c.b16 %v3335, %v3330
      %v3516 = vpack.c.b16 %v3336, %v3331
      %v3517 = vpack.c.b16 %v3337, %v3332
      %v3518 = vpack.c.b16 %v3338, %v3333
      %v3519 = vpack.c.b16 %v3344, %v3339
      %v3520 = vpack.c.b16 %v3345, %v3340
      %v3521 = vpack.c.b16 %v3346, %v3341
      %v3522 = vpack.c.b16 %v3347, %v3342
      %v3523 = vpack.c.b16 %v3348, %v3343
      %v3524 = vpack.c.b16 %v3354, %v3349
      %v3525 = vpack.c.b16 %v3355, %v3350
      %v3526 = vpack.c.b16 %v3356, %v3351
      %v3527 = vpack.c.b16 %v3357, %v3352
      %v3528 = vpack.c.b16 %v3358, %v3353
      %v3529 = vpack.c.b16 %v3364, %v3359
      %v3530 = vpack.c.b16 %v3365, %v3360
      %v3531 = vpack.c.b16 %v3366, %v3361
      %v3532 = vpack.c.b16 %v3367, %v3362
      %v3533 = vpack.c.b16 %v3368, %v3363
      %v3534 = vpack.c.b16 %v3374, %v3369
      %v3535 = vpack.c.b16 %v3375, %v3370
      %v3536 = vpack.c.b16 %v3376, %v3371
      %v3537 = vpack.c.b16 %v3377, %v3372
      %v3538 = vpack.c.b16 %v3378, %v3373
      %3699 = vmatpush.bf16.msra.mxu0 %v3414
      %3700 = vmatpush.bf16.msra.mxu0 %v3409
      %3701 = vmatpush.bf16.msra.mxu0 %v3404
      %3702 = vmatpush.bf16.msra.mxu0 %v3399
      %3703 = vmatpush.bf16.msra.mxu0 %v3394
      %3704 = vmatpush.bf16.msra.mxu0 %v3389
      %3705 = vmatpush.bf16.msra.mxu0 %v3384
      %3706 = vmatpush.bf16.msra.mxu0 %v3379
      %3707 = vmatmul.bf16.gmra.mxu0 %v2859
      %v3708 = vpop.f32.mrf.mxu0
      %v3709 = vadd.f32 0.0, %v3708
      %v3710 = vpop.f32.mrf.mxu0
      %3711 = vdwg.mxu0
      %3712 = vmatpush.bf16.msra.mxu0 %v3454
      %3713 = vmatpush.bf16.msra.mxu0 %v3449
      %3714 = vmatpush.bf16.msra.mxu0 %v3444
      %3715 = vmatpush.bf16.msra.mxu0 %v3439
      %3716 = vmatpush.bf16.msra.mxu0 %v3434
      %3717 = vmatpush.bf16.msra.mxu0 %v3429
      %3718 = vmatpush.bf16.msra.mxu0 %v3424
      %3719 = vmatpush.bf16.msra.mxu0 %v3419
      %3720 = vmatmul.bf16.gmra.mxu0 %v2860
      %v3721 = vpop.f32.mrf.mxu0
      %v3722 = vadd.f32 %v3709, %v3721
      %v3723 = vpop.f32.mrf.mxu0
      %3724 = vdwg.mxu0
      %3725 = vmatpush.bf16.msra.mxu0 %v3494
      %3726 = vmatpush.bf16.msra.mxu0 %v3489
      %3727 = vmatpush.bf16.msra.mxu0 %v3484
      %3728 = vmatpush.bf16.msra.mxu0 %v3479
      %3729 = vmatpush.bf16.msra.mxu0 %v3474
      %3730 = vmatpush.bf16.msra.mxu0 %v3469
      %3731 = vmatpush.bf16.msra.mxu0 %v3464
      %3732 = vmatpush.bf16.msra.mxu0 %v3459
      %3733 = vmatmul.bf16.gmra.mxu0 %v2861
      %v3734 = vpop.f32.mrf.mxu0
      %v3735 = vadd.f32 %v3722, %v3734
      %v3736 = vpop.f32.mrf.mxu0
      %3737 = vdwg.mxu0
      %3738 = vmatpush.bf16.msra.mxu0 %v3534
      %3739 = vmatpush.bf16.msra.mxu0 %v3529
      %3740 = vmatpush.bf16.msra.mxu0 %v3524
      %3741 = vmatpush.bf16.msra.mxu0 %v3519
      %3742 = vmatpush.bf16.msra.mxu0 %v3514
      %3743 = vmatpush.bf16.msra.mxu0 %v3509
      %3744 = vmatpush.bf16.msra.mxu0 %v3504
      %3745 = vmatpush.bf16.msra.mxu0 %v3499
      %3746 = vmatmul.bf16.gmra.mxu0 %v2862
      %v3747 = vpop.f32.mrf.mxu0
      %v3748 = vadd.f32 %v3735, %v3747
      %v3749 = vpop.f32.mrf.mxu0
      %3750 = vdwg.mxu0
      %3751 = vmatpush.bf16.msra.mxu0 %v3415
      %3752 = vmatpush.bf16.msra.mxu0 %v3410
      %3753 = vmatpush.bf16.msra.mxu0 %v3405
      %3754 = vmatpush.bf16.msra.mxu0 %v3400
      %3755 = vmatpush.bf16.msra.mxu0 %v3395
      %3756 = vmatpush.bf16.msra.mxu0 %v3390
      %3757 = vmatpush.bf16.msra.mxu0 %v3385
      %3758 = vmatpush.bf16.msra.mxu0 %v3380
      %3759 = vmatmul.bf16.gmra.mxu0 %v2859
      %v3760 = vpop.f32.mrf.mxu0
      %v3761 = vadd.f32 0.0, %v3760
      %v3762 = vpop.f32.mrf.mxu0
      %3763 = vdwg.mxu0
      %3764 = vmatpush.bf16.msra.mxu0 %v3455
      %3765 = vmatpush.bf16.msra.mxu0 %v3450
      %3766 = vmatpush.bf16.msra.mxu0 %v3445
      %3767 = vmatpush.bf16.msra.mxu0 %v3440
      %3768 = vmatpush.bf16.msra.mxu0 %v3435
      %3769 = vmatpush.bf16.msra.mxu0 %v3430
      %3770 = vmatpush.bf16.msra.mxu0 %v3425
      %3771 = vmatpush.bf16.msra.mxu0 %v3420
      %3772 = vmatmul.bf16.gmra.mxu0 %v2860
      %v3773 = vpop.f32.mrf.mxu0
      %v3774 = vadd.f32 %v3761, %v3773
      %v3775 = vpop.f32.mrf.mxu0
      %3776 = vdwg.mxu0
      %3777 = vmatpush.bf16.msra.mxu0 %v3495
      %3778 = vmatpush.bf16.msra.mxu0 %v3490
      %3779 = vmatpush.bf16.msra.mxu0 %v3485
      %3780 = vmatpush.bf16.msra.mxu0 %v3480
      %3781 = vmatpush.bf16.msra.mxu0 %v3475
      %3782 = vmatpush.bf16.msra.mxu0 %v3470
      %3783 = vmatpush.bf16.msra.mxu0 %v3465
      %3784 = vmatpush.bf16.msra.mxu0 %v3460
      %3785 = vmatmul.bf16.gmra.mxu0 %v2861
      %v3786 = vpop.f32.mrf.mxu0
      %v3787 = vadd.f32 %v3774, %v3786
      %v3788 = vpop.f32.mrf.mxu0
      %3789 = vdwg.mxu0
      %3790 = vmatpush.bf16.msra.mxu0 %v3535
      %3791 = vmatpush.bf16.msra.mxu0 %v3530
      %3792 = vmatpush.bf16.msra.mxu0 %v3525
      %3793 = vmatpush.bf16.msra.mxu0 %v3520
      %3794 = vmatpush.bf16.msra.mxu0 %v3515
      %3795 = vmatpush.bf16.msra.mxu0 %v3510
      %3796 = vmatpush.bf16.msra.mxu0 %v3505
      %3797 = vmatpush.bf16.msra.mxu0 %v3500
      %3798 = vmatmul.bf16.gmra.mxu0 %v2862
      %v3799 = vpop.f32.mrf.mxu0
      %v3800 = vadd.f32 %v3787, %v3799
      %v3801 = vpop.f32.mrf.mxu0
      %3802 = vdwg.mxu0
      %3803 = vmatpush.bf16.msra.mxu0 %v3416
      %3804 = vmatpush.bf16.msra.mxu0 %v3411
      %3805 = vmatpush.bf16.msra.mxu0 %v3406
      %3806 = vmatpush.bf16.msra.mxu0 %v3401
      %3807 = vmatpush.bf16.msra.mxu0 %v3396
      %3808 = vmatpush.bf16.msra.mxu0 %v3391
      %3809 = vmatpush.bf16.msra.mxu0 %v3386
      %3810 = vmatpush.bf16.msra.mxu0 %v3381
      %3811 = vmatmul.bf16.gmra.mxu0 %v2859
      %v3812 = vpop.f32.mrf.mxu0
      %v3813 = vadd.f32 0.0, %v3812
      %v3814 = vpop.f32.mrf.mxu0
      %3815 = vdwg.mxu0
      %3816 = vmatpush.bf16.msra.mxu0 %v3456
      %3817 = vmatpush.bf16.msra.mxu0 %v3451
      %3818 = vmatpush.bf16.msra.mxu0 %v3446
      %3819 = vmatpush.bf16.msra.mxu0 %v3441
      %3820 = vmatpush.bf16.msra.mxu0 %v3436
      %3821 = vmatpush.bf16.msra.mxu0 %v3431
      %3822 = vmatpush.bf16.msra.mxu0 %v3426
      %3823 = vmatpush.bf16.msra.mxu0 %v3421
      %3824 = vmatmul.bf16.gmra.mxu0 %v2860
      %v3825 = vpop.f32.mrf.mxu0
      %v3826 = vadd.f32 %v3813, %v3825
      %v3827 = vpop.f32.mrf.mxu0
      %3828 = vdwg.mxu0
      %3829 = vmatpush.bf16.msra.mxu0 %v3496
      %3830 = vmatpush.bf16.msra.mxu0 %v3491
      %3831 = vmatpush.bf16.msra.mxu0 %v3486
      %3832 = vmatpush.bf16.msra.mxu0 %v3481
      %3833 = vmatpush.bf16.msra.mxu0 %v3476
      %3834 = vmatpush.bf16.msra.mxu0 %v3471
      %3835 = vmatpush.bf16.msra.mxu0 %v3466
      %3836 = vmatpush.bf16.msra.mxu0 %v3461
      %3837 = vmatmul.bf16.gmra.mxu0 %v2861
      %v3838 = vpop.f32.mrf.mxu0
      %v3839 = vadd.f32 %v3826, %v3838
      %v3840 = vpop.f32.mrf.mxu0
      %3841 = vdwg.mxu0
      %3842 = vmatpush.bf16.msra.mxu0 %v3536
      %3843 = vmatpush.bf16.msra.mxu0 %v3531
      %3844 = vmatpush.bf16.msra.mxu0 %v3526
      %3845 = vmatpush.bf16.msra.mxu0 %v3521
      %3846 = vmatpush.bf16.msra.mxu0 %v3516
      %3847 = vmatpush.bf16.msra.mxu0 %v3511
      %3848 = vmatpush.bf16.msra.mxu0 %v3506
      %3849 = vmatpush.bf16.msra.mxu0 %v3501
      %3850 = vmatmul.bf16.gmra.mxu0 %v2862
      %v3851 = vpop.f32.mrf.mxu0
      %v3852 = vadd.f32 %v3839, %v3851
      %v3853 = vpop.f32.mrf.mxu0
      %3854 = vdwg.mxu0
      %3855 = vmatpush.bf16.msra.mxu0 %v3417
      %3856 = vmatpush.bf16.msra.mxu0 %v3412
      %3857 = vmatpush.bf16.msra.mxu0 %v3407
      %3858 = vmatpush.bf16.msra.mxu0 %v3402
      %3859 = vmatpush.bf16.msra.mxu0 %v3397
      %3860 = vmatpush.bf16.msra.mxu0 %v3392
      %3861 = vmatpush.bf16.msra.mxu0 %v3387
      %3862 = vmatpush.bf16.msra.mxu0 %v3382
      %3863 = vmatmul.bf16.gmra.mxu0 %v2859
      %v3864 = vpop.f32.mrf.mxu0
      %v3865 = vadd.f32 0.0, %v3864
      %v3866 = vpop.f32.mrf.mxu0
      %3867 = vdwg.mxu0
      %3868 = vmatpush.bf16.msra.mxu0 %v3457
      %3869 = vmatpush.bf16.msra.mxu0 %v3452
      %3870 = vmatpush.bf16.msra.mxu0 %v3447
      %3871 = vmatpush.bf16.msra.mxu0 %v3442
      %3872 = vmatpush.bf16.msra.mxu0 %v3437
      %3873 = vmatpush.bf16.msra.mxu0 %v3432
      %3874 = vmatpush.bf16.msra.mxu0 %v3427
      %3875 = vmatpush.bf16.msra.mxu0 %v3422
      %3876 = vmatmul.bf16.gmra.mxu0 %v2860
      %v3877 = vpop.f32.mrf.mxu0
      %v3878 = vadd.f32 %v3865, %v3877
      %v3879 = vpop.f32.mrf.mxu0
      %3880 = vdwg.mxu0
      %3881 = vmatpush.bf16.msra.mxu0 %v3497
      %3882 = vmatpush.bf16.msra.mxu0 %v3492
      %3883 = vmatpush.bf16.msra.mxu0 %v3487
      %3884 = vmatpush.bf16.msra.mxu0 %v3482
      %3885 = vmatpush.bf16.msra.mxu0 %v3477
      %3886 = vmatpush.bf16.msra.mxu0 %v3472
      %3887 = vmatpush.bf16.msra.mxu0 %v3467
      %3888 = vmatpush.bf16.msra.mxu0 %v3462
      %3889 = vmatmul.bf16.gmra.mxu0 %v2861
      %v3890 = vpop.f32.mrf.mxu0
      %v3891 = vadd.f32 %v3878, %v3890
      %v3892 = vpop.f32.mrf.mxu0
      %3893 = vdwg.mxu0
      %3894 = vmatpush.bf16.msra.mxu0 %v3537
      %3895 = vmatpush.bf16.msra.mxu0 %v3532
      %3896 = vmatpush.bf16.msra.mxu0 %v3527
      %3897 = vmatpush.bf16.msra.mxu0 %v3522
      %3898 = vmatpush.bf16.msra.mxu0 %v3517
      %3899 = vmatpush.bf16.msra.mxu0 %v3512
      %3900 = vmatpush.bf16.msra.mxu0 %v3507
      %3901 = vmatpush.bf16.msra.mxu0 %v3502
      %3902 = vmatmul.bf16.gmra.mxu0 %v2862
      %v3903 = vpop.f32.mrf.mxu0
      %v3904 = vadd.f32 %v3891, %v3903
      %v3905 = vpop.f32.mrf.mxu0
      %3906 = vdwg.mxu0
      %3907 = vmatpush.bf16.msra.mxu0 %v3418
      %3908 = vmatpush.bf16.msra.mxu0 %v3413
      %3909 = vmatpush.bf16.msra.mxu0 %v3408
      %3910 = vmatpush.bf16.msra.mxu0 %v3403
      %3911 = vmatpush.bf16.msra.mxu0 %v3398
      %3912 = vmatpush.bf16.msra.mxu0 %v3393
      %3913 = vmatpush.bf16.msra.mxu0 %v3388
      %3914 = vmatpush.bf16.msra.mxu0 %v3383
      %3915 = vmatmul.bf16.gmra.mxu0 %v2859
      %v3916 = vpop.f32.mrf.mxu0
      %v3917 = vadd.f32 0.0, %v3916
      %v3918 = vpop.f32.mrf.mxu0
      %3919 = vdwg.mxu0
      %3920 = vmatpush.bf16.msra.mxu0 %v3458
      %3921 = vmatpush.bf16.msra.mxu0 %v3453
      %3922 = vmatpush.bf16.msra.mxu0 %v3448
      %3923 = vmatpush.bf16.msra.mxu0 %v3443
      %3924 = vmatpush.bf16.msra.mxu0 %v3438
      %3925 = vmatpush.bf16.msra.mxu0 %v3433
      %3926 = vmatpush.bf16.msra.mxu0 %v3428
      %3927 = vmatpush.bf16.msra.mxu0 %v3423
      %3928 = vmatmul.bf16.gmra.mxu0 %v2860
      %v3929 = vpop.f32.mrf.mxu0
      %v3930 = vadd.f32 %v3917, %v3929
      %v3931 = vpop.f32.mrf.mxu0
      %3932 = vdwg.mxu0
      %3933 = vmatpush.bf16.msra.mxu0 %v3498
      %3934 = vmatpush.bf16.msra.mxu0 %v3493
      %3935 = vmatpush.bf16.msra.mxu0 %v3488
      %3936 = vmatpush.bf16.msra.mxu0 %v3483
      %3937 = vmatpush.bf16.msra.mxu0 %v3478
      %3938 = vmatpush.bf16.msra.mxu0 %v3473
      %3939 = vmatpush.bf16.msra.mxu0 %v3468
      %3940 = vmatpush.bf16.msra.mxu0 %v3463
      %3941 = vmatmul.bf16.gmra.mxu0 %v2861
      %v3942 = vpop.f32.mrf.mxu0
      %v3943 = vadd.f32 %v3930, %v3942
      %v3944 = vpop.f32.mrf.mxu0
      %3945 = vdwg.mxu0
      %3946 = vmatpush.bf16.msra.mxu0 %v3538
      %3947 = vmatpush.bf16.msra.mxu0 %v3533
      %3948 = vmatpush.bf16.msra.mxu0 %v3528
      %3949 = vmatpush.bf16.msra.mxu0 %v3523
      %3950 = vmatpush.bf16.msra.mxu0 %v3518
      %3951 = vmatpush.bf16.msra.mxu0 %v3513
      %3952 = vmatpush.bf16.msra.mxu0 %v3508
      %3953 = vmatpush.bf16.msra.mxu0 %v3503
      %3954 = vmatmul.bf16.gmra.mxu0 %v2862
      %v3955 = vpop.f32.mrf.mxu0
      %v3956 = vadd.f32 %v3943, %v3955
      %v3957 = vpop.f32.mrf.mxu0
      %3958 = vdwg.mxu0
      %v3960 = vperm.slane %v241, 0
      %v3961 = vperm.slane %v241, 1
      %v3962 = vperm.slane %v241, 2
      %v3963 = vperm.slane %v241, 3
      %v3964 = vperm.slane %v241, 4
      %v3970 = vmul.f32 %v3748, %v3960
      %v3971 = vmul.f32 %v3800, %v3961
      %v3972 = vmul.f32 %v3852, %v3962
      %v3973 = vmul.f32 %v3904, %v3963
      %v3974 = vmul.f32 %v3956, %v3964
      %v3975 = vmul.f32 %v3970, %v3970
      %v3976 = vmul.f32 %v3971, %v3971
      %v3977 = vmul.f32 %v3972, %v3972
      %v3978 = vmul.f32 %v3973, %v3973
      %v3979 = vmul.f32 %v3974, %v3974
      %v3980 = vadd.f32 %v3975, %v3976
      %v3981 = vadd.f32 %v3980, %v3977
      %v3982 = vadd.f32 %v3981, %v3978
      %v3983 = vadd.f32 %v3982, %v3979
      %3984 = vadd.xlane.f32.xlu0 %v3983
      %v3985 = vpop.xlane.xlu0 %3984
      %3986 = vst.msk [vmem:[%s235] sm:$0xff] %vm1539, %v3985
      %3987 = vst [vmem:[%s231] sm:$0xff] 0.0
      %3988 = vst [vmem:[%s231 + $0x30] sm:$0xff] 0.0
      %3989 = vst [vmem:[%s231 + $0x8] sm:$0xff] %v3970
      %3990 = vst [vmem:[%s231 + $0x10] sm:$0xff] %v3971
      %3991 = vst [vmem:[%s231 + $0x18] sm:$0xff] %v3972
      %3992 = vst [vmem:[%s231 + $0x20] sm:$0xff] %v3973
      %3993 = vst [vmem:[%s231 + $0x28] sm:$0xff] %v3974
      %p3994 = scmp.lt.s32.totalorder %s17, 1
      %s3995 = scalar_select %p3994, %s17, 1
      %s3996 = smul.addr %s3995, 7
      %s3997 = smul.addr %s3996, 8
      %s3998 = scalar_lea.vmem %s4, %s3997
      %p3999 = scmp.lt.s32.totalorder %s17, 1
      %s4000 = scalar_select %p3999, %s17, 1
      %s4001 = smul.addr %s4000, 8
      %s4002 = scalar_lea.vmem %s5, %s4001
      // Predicated region
      $region37: #{se3_norm_res_block.4} parent=35 // pred_check
        %p4003 = pneg %p124
      $region38: #{se3_norm_res_block.4} parent=35 // pred_check_branch
        %4005 = sbr.rel (%p4003) target = $region40
      $region39: #{se3_norm_res_block.4} parent=35 // pred_region
        _
      $region40: #{se3_norm_res_block.4} parent=35 // pred_fallthru
        _
      // Predicated region
      $region41: #{se3_norm_res_block.4} parent=35 // pred_check
        %p4006 = pneg %p150
      $region42: #{se3_norm_res_block.4} parent=35 // pred_check_branch
        %4008 = sbr.rel (%p4006) target = $region44
      $region43: #{se3_norm_res_block.4} parent=35 // pred_region
        _
      $region44: #{se3_norm_res_block.4} parent=35 // pred_fallthru
        _
    $region36: #{se3_norm_res_block.4} parent=5 // pred_fallthru
      _
    %p4009 = scmp.le.s32.totalorder 2, %s12
    // Predicated region
    $region45: #{se3_norm_res_block.4} parent=5 // pred_check
      %p4010 = pneg %p4009
    $region46: #{se3_norm_res_block.4} parent=5 // pred_check_branch
      %4012 = sbr.rel (%p4010) target = $region48
    $region47: #{se3_norm_res_block.4} parent=5 // pred_region
      %s4013 = ssub.s32 %s12, 2
      // Predicated region
      $region49: #{se3_norm_res_block.4} parent=47 // pred_check
        %p4014 = pneg %p130
      $region50: #{se3_norm_res_block.4} parent=47 // pred_check_branch
        %4016 = sbr.rel (%p4014) target = $region52
      $region51: #{se3_norm_res_block.4} parent=47 // pred_region
        %p4017 = scmp.lt.s32.totalorder %s18, 1
        %s4018 = scalar_select %p4017, %s18, 1
        %s4019 = smul.addr %s4018, 7
        %s4020 = smul.addr %s4019, 8
        %s4021 = scalar_lea.vmem %s4, %s4020
      $region52: #{se3_norm_res_block.4} parent=47 // pred_fallthru
        _
      // Predicated region
      $region53: #{se3_norm_res_block.4} parent=47 // pred_check
        %p4022 = pneg %p156
      $region54: #{se3_norm_res_block.4} parent=47 // pred_check_branch
        %4024 = sbr.rel (%p4022) target = $region56
      $region55: #{se3_norm_res_block.4} parent=47 // pred_region
        %p4025 = scmp.lt.s32.totalorder %s18, 1
        %s4026 = scalar_select %p4025, %s18, 1
        %s4027 = smul.addr %s4026, 8
        %s4028 = scalar_lea.vmem %s5, %s4027
      $region56: #{se3_norm_res_block.4} parent=47 // pred_fallthru
        _
    $region48: #{se3_norm_res_block.4} parent=5 // pred_fallthru
      _
  $region6: #{se3_norm_res_block.4} parent=0 // loop_footer
    %s16 = sadd.s32 1, %s12
  $region7: #{se3_norm_res_block.4} parent=0 // loop_footer_branch
    %11 = sbr.rel target = $region3
  $region8: #{se3_norm_res_block.4} parent=0 // loop_exit
    _

</llo_original>
